<compile_context>
chip_gen: v5e
topology: v5e:2x2
jax: 0.10.0
libtpu: 0.0.40
codegen_flags: <defaults>
</compile_context>

<pallas_src>
import functools

import jax
import jax.numpy as jnp
from jax.experimental import pallas as pl
from jax.experimental.pallas import tpu as pltpu


# -----------------------------------------------------------------------------
# Helpers
# -----------------------------------------------------------------------------
@functools.lru_cache(maxsize=None)
def _buffered_supported():
    """Probe once whether BlockSpec(pipeline_mode=pl.Buffered(1)) compiles+runs."""
    if not hasattr(pl, "Buffered"):
        return False
    try:
        with jax.ensure_compile_time_eval():
            def _probe(x_ref, o_ref):
                o_ref[...] = x_ref[...] + 1.0
            fn = pl.pallas_call(
                _probe,
                out_shape=jax.ShapeDtypeStruct((8, 128), jnp.float32),
                grid=(1,),
                in_specs=[pl.BlockSpec((8, 128), lambda i: (0, 0),
                                       pipeline_mode=pl.Buffered(1))],
                out_specs=pl.BlockSpec((8, 128), lambda i: (0, 0)),
            )
            jax.block_until_ready(fn(jnp.zeros((8, 128), jnp.float32)))
        return True
    except Exception:
        return False


def _resident_spec(shape):
    """Grid-invariant (weight / bias) block: constant index_map, single-buffered."""
    index_map = lambda *_: (0,) * len(shape)
    if _buffered_supported():
        return pl.BlockSpec(shape, index_map, pipeline_mode=pl.Buffered(1))
    return pl.BlockSpec(shape, index_map)


def _vmem_limit(est_bytes):
    # explicit scoped-VMEM limit: at least the 32 MiB default, capped at v7x's
    # 64 MiB physical so the same code compiles on v5e / v6e / v7x.
    return int(min(64 << 20, max(32 << 20, int(1.25 * est_bytes))))


def _pick_batch_tile(batch, n_tokens, target_rows=512):
    """Pack enough batch rows per grid step to fill the MXU M dimension."""
    bt = max(1, min(batch, 8, max(1, target_rows // max(n_tokens, 1))))
    while batch % bt:
        bt -= 1
    return bt


# -----------------------------------------------------------------------------
# Pallas kernels: linear (+ fused add), fused LayerNorm + linear
# -----------------------------------------------------------------------------
def _linear_kernel(x_ref, w_ref, b_ref, o_ref, *, compute_dtype):
    x = x_ref[0].astype(compute_dtype)
    y = jnp.dot(x, w_ref[...], preferred_element_type=jnp.float32) + b_ref[...]
    o_ref[0] = y.astype(o_ref.dtype)


def _linear_add_kernel(x_ref, w_ref, b_ref, a_ref, o_ref, *, compute_dtype):
    x = x_ref[0].astype(compute_dtype)
    y = (jnp.dot(x, w_ref[...], preferred_element_type=jnp.float32)
         + b_ref[...] + a_ref[0].astype(jnp.float32))
    o_ref[0] = y.astype(o_ref.dtype)


def pallas_linear(x, w, b, add=None, *, row_tile=512, compute_dtype=jnp.bfloat16):
    """y = x @ w + b (+ add)   for x [B, N, K], w [K, Nout], b [Nout].

    `add` is optional, shape (1, N, Nout) or (B, N, Nout); fused into the matmul
    epilogue (positional-embedding adds).  Row-tiled over tokens, weights stay
    resident (single-buffered) while activation tiles are pipelined HBM<->VMEM.
    """
    B, N, K = x.shape
    Nout = w.shape[1]
    TN = N if N <= row_tile else row_tile
    grid = (B, pl.cdiv(N, TN))

    w_c = w.astype(compute_dtype)             # halve weight DMA + resident VMEM
    b2d = b.reshape(1, Nout).astype(jnp.float32)

    x_spec = pl.BlockSpec((1, TN, K), lambda bi, j: (bi, j, 0))
    w_spec = _resident_spec((K, Nout))
    b_spec = _resident_spec((1, Nout))
    out_spec = pl.BlockSpec((1, TN, Nout), lambda bi, j: (bi, j, 0))

    itemsize = jnp.dtype(x.dtype).itemsize
    flops = int(2 * B * N * K * Nout)
    bytes_accessed = int(x.size * itemsize
                         + K * Nout * jnp.dtype(compute_dtype).itemsize
                         + Nout * 4 + B * N * Nout * itemsize)
    vmem_est = int(2 * (TN * K + TN * Nout) * 4
                   + K * Nout * jnp.dtype(compute_dtype).itemsize + Nout * 4)

    if add is None:
        kernel = functools.partial(_linear_kernel, compute_dtype=compute_dtype)
        in_specs = [x_spec, w_spec, b_spec]
        args = (x, w_c, b2d)
    else:
        add_batched = add.shape[0] != 1
        a_map = (lambda bi, j: (bi, j, 0)) if add_batched else (lambda bi, j: (0, j, 0))
        a_spec = pl.BlockSpec((1, TN, Nout), a_map)
        kernel = functools.partial(_linear_add_kernel, compute_dtype=compute_dtype)
        in_specs = [x_spec, w_spec, b_spec, a_spec]
        args = (x, w_c, b2d, add)
        bytes_accessed += int(add.size * jnp.dtype(add.dtype).itemsize)
        vmem_est += int(2 * TN * Nout * 4)

    return pl.pallas_call(
        kernel,
        out_shape=jax.ShapeDtypeStruct((B, N, Nout), x.dtype),
        grid=grid,
        in_specs=in_specs,
        out_specs=out_spec,
        compiler_params=pltpu.CompilerParams(
            dimension_semantics=("parallel", "parallel"),
            vmem_limit_bytes=_vmem_limit(vmem_est)),
        cost_estimate=pl.CostEstimate(flops=flops, transcendentals=0,
                                      bytes_accessed=bytes_accessed),
    )(*args)


def _ln_linear_kernel(x_ref, g_ref, bln_ref, w_ref, b_ref, o_ref, *, compute_dtype):
    x = x_ref[0].astype(jnp.float32)
    mu = jnp.mean(x, axis=-1, keepdims=True)
    var = jnp.mean((x - mu) ** 2, axis=-1, keepdims=True)
    h = (x - mu) * jax.lax.rsqrt(var + 1e-5) * g_ref[...] + bln_ref[...]
    y = jnp.dot(h.astype(compute_dtype), w_ref[...],
                preferred_element_type=jnp.float32) + b_ref[...]
    o_ref[0] = y.astype(o_ref.dtype)


def pallas_ln_linear(x, g, bln, w, b, *, row_tile=512, compute_dtype=jnp.bfloat16):
    """y = LayerNorm(x) @ w + b  (LayerNorm fused into the matmul prologue)."""
    B, N, K = x.shape
    Nout = w.shape[1]
    TN = N if N <= row_tile else row_tile
    grid = (B, pl.cdiv(N, TN))

    w_c = w.astype(compute_dtype)
    itemsize = jnp.dtype(x.dtype).itemsize
    flops = int(2 * B * N * K * Nout)
    bytes_accessed = int(x.size * itemsize
                         + K * Nout * jnp.dtype(compute_dtype).itemsize
                         + (2 * K + Nout) * 4 + B * N * Nout * itemsize)
    vmem_est = int(2 * (TN * K + TN * Nout) * 4
                   + K * Nout * jnp.dtype(compute_dtype).itemsize + (2 * K + Nout) * 4)

    return pl.pallas_call(
        functools.partial(_ln_linear_kernel, compute_dtype=compute_dtype),
        out_shape=jax.ShapeDtypeStruct((B, N, Nout), x.dtype),
        grid=grid,
        in_specs=[pl.BlockSpec((1, TN, K), lambda bi, j: (bi, j, 0)),
                  _resident_spec((1, K)), _resident_spec((1, K)),
                  _resident_spec((K, Nout)), _resident_spec((1, Nout))],
        out_specs=pl.BlockSpec((1, TN, Nout), lambda bi, j: (bi, j, 0)),
        compiler_params=pltpu.CompilerParams(
            dimension_semantics=("parallel", "parallel"),
            vmem_limit_bytes=_vmem_limit(vmem_est)),
        cost_estimate=pl.CostEstimate(flops=flops, transcendentals=int(B * N),
                                      bytes_accessed=bytes_accessed),
    )(x, g.reshape(1, K).astype(jnp.float32), bln.reshape(1, K).astype(jnp.float32),
      w_c, b.reshape(1, Nout).astype(jnp.float32))


# -----------------------------------------------------------------------------
# Pallas kernel: fused pre-LN transformer block (batch-row packed)
# -----------------------------------------------------------------------------
def _transformer_block_kernel(x_ref, ln1_g, ln1_b, wqkv, wo, bo,
                              ln2_g, ln2_b, w1, b1, w2, b2, o_ref,
                              qkv_scratch, attn_scratch,
                              *, num_heads, batch_tile, compute_dtype):
    """Pre-LN transformer block (MONAI TransformerBlock semantics):
       x = x + attn(norm1(x)); x = x + mlp(norm2(x)).

    The block sees batch_tile samples flattened into M = batch_tile * N rows so
    the qkv / out-proj / MLP matmuls fill the MXU; attention is head-batched per
    sample (unrolled over batch_tile)."""
    x = x_ref[...].astype(jnp.float32)            # [M, D]
    M, D = x.shape
    N = M // batch_tile
    H = num_heads
    dh = D // H
    scale = dh ** -0.5

    def ln(v, g, b):
        mu = jnp.mean(v, axis=-1, keepdims=True)
        var = jnp.mean((v - mu) ** 2, axis=-1, keepdims=True)
        return (v - mu) * jax.lax.rsqrt(var + 1e-5) * g[...] + b[...]

    # ---- multi-head self-attention (qkv has no bias, matches MONAI SABlock) ----
    h = ln(x, ln1_g, ln1_b).astype(compute_dtype)
    qkv_scratch[...] = jnp.dot(h, wqkv[...],
                               preferred_element_type=jnp.float32)    # [M, 3D]

    # TODO(synk): for production sequence lengths replace the unrolled per-sample
    # loop with a (Bt*H)-batched dot + flash-style online softmax over KV tiles,
    # and use pltpu.einshape for the head split/merge once dh reaches lane width.
    for bt in range(batch_tile):
        rows = qkv_scratch[pl.ds(bt * N, N), :]                       # [N, 3D]
        q = rows[:, 0:D].reshape(N, H, dh).transpose(1, 0, 2)         # [H, N, dh]
        k = rows[:, D:2 * D].reshape(N, H, dh).transpose(1, 0, 2)
        v = rows[:, 2 * D:3 * D].reshape(N, H, dh).transpose(1, 0, 2)

        s = jax.lax.dot_general(
            q.astype(compute_dtype), k.astype(compute_dtype),
            (((2,), (2,)), ((0,), (0,))),
            preferred_element_type=jnp.float32) * scale               # [H, N, N]
        s = s - jnp.max(s, axis=-1, keepdims=True)
        p = jnp.exp(s)
        # divide -> EUP reciprocal + VPU multiply (frees the VALU slot)
        p = p * pl.reciprocal(jnp.sum(p, axis=-1, keepdims=True), approx=True)

        ctx = jax.lax.dot_general(
            p.astype(compute_dtype), v.astype(compute_dtype),
            (((2,), (1,)), ((0,), (0,))),
            preferred_element_type=jnp.float32)                       # [H, N, dh]
        attn_scratch[pl.ds(bt * N, N), :] = ctx.transpose(1, 0, 2).reshape(N, D)

    attn = jnp.dot(attn_scratch[...].astype(compute_dtype), wo[...],
                   preferred_element_type=jnp.float32) + bo[...]
    x = x + attn

    # ---- MLP ----
    h2 = ln(x, ln2_g, ln2_b).astype(compute_dtype)
    m = jnp.dot(h2, w1[...], preferred_element_type=jnp.float32) + b1[...]
    # TODO(synk): PyTorch nn.GELU uses the exact erf formulation; the tanh
    # approximation is used here for a guaranteed Mosaic lowering.
    m = jax.nn.gelu(m, approximate=True)
    m = jnp.dot(m.astype(compute_dtype), w2[...],
                preferred_element_type=jnp.float32) + b2[...]
    x = x + m

    o_ref[...] = x.astype(o_ref.dtype)


def pallas_transformer_block(x, p, num_heads, *, compute_dtype=jnp.bfloat16,
                             batch_tile=None):
    B, N, D = x.shape
    mlp_dim = p['w1'].shape[1]
    Bt = _pick_batch_tile(B, N) if batch_tile is None else batch_tile
    M = Bt * N
    grid = (B // Bt,)

    # flatten (B, N, D) -> (B*N, D) outside the kernel so each grid step sees a
    # lane/sublane-dense (M, D) row slab (MXU fill + amortized grid overhead).
    x2 = x.reshape(B * N, D)

    wqkv = p['wqkv'].astype(compute_dtype)
    wo = p['wo'].astype(compute_dtype)
    w1 = p['w1'].astype(compute_dtype)
    w2 = p['w2'].astype(compute_dtype)

    kernel = functools.partial(_transformer_block_kernel, num_heads=num_heads,
                               batch_tile=Bt, compute_dtype=compute_dtype)

    wbytes = int((wqkv.size + wo.size + w1.size + w2.size)
                 * jnp.dtype(compute_dtype).itemsize)
    flops = int(2 * B * N * D * 3 * D          # qkv projection
                + 4 * B * N * N * D            # scores + context
                + 2 * B * N * D * D            # output projection
                + 4 * B * N * D * mlp_dim)     # MLP
    transcendentals = int(B * num_heads * N * N + B * N * mlp_dim)
    bytes_accessed = int(2 * B * N * D * jnp.dtype(x.dtype).itemsize + wbytes
                         + (6 * D + 2 * mlp_dim) * 4)
    vmem_est = int(wbytes + 4 * M * D * 4 + 4 * M * (3 * D + D)   # tiles + scratch
                   + 2 * M * max(3 * D, mlp_dim) * 4)

    out2 = pl.pallas_call(
        kernel,
        out_shape=jax.ShapeDtypeStruct((B * N, D), x.dtype),
        grid=grid,
        in_specs=[pl.BlockSpec((M, D), lambda i: (i, 0)),
                  _resident_spec((1, D)), _resident_spec((1, D)),
                  _resident_spec((D, 3 * D)),
                  _resident_spec((D, D)), _resident_spec((1, D)),
                  _resident_spec((1, D)), _resident_spec((1, D)),
                  _resident_spec((D, mlp_dim)), _resident_spec((1, mlp_dim)),
                  _resident_spec((mlp_dim, D)), _resident_spec((1, D))],
        out_specs=pl.BlockSpec((M, D), lambda i: (i, 0)),
        scratch_shapes=[pltpu.VMEM((M, 3 * D), jnp.float32),
                        pltpu.VMEM((M, D), jnp.float32)],
        compiler_params=pltpu.CompilerParams(
            dimension_semantics=("parallel",),
            vmem_limit_bytes=_vmem_limit(vmem_est)),
        cost_estimate=pl.CostEstimate(flops=flops, transcendentals=transcendentals,
                                      bytes_accessed=bytes_accessed),
    )(x2,
      p['ln1_g'].reshape(1, D), p['ln1_b'].reshape(1, D),
      wqkv,
      wo, p['bo'].reshape(1, D),
      p['ln2_g'].reshape(1, D), p['ln2_b'].reshape(1, D),
      w1, p['b1'].reshape(1, mlp_dim),
      w2, p['b2'].reshape(1, D))
    return out2.reshape(B, N, D)


# -----------------------------------------------------------------------------
# Parameter construction (deterministic, in-script)
# -----------------------------------------------------------------------------
def _trunc_normal(key, shape, std=0.02):
    return std * jax.random.truncated_normal(key, -2.0, 2.0, shape, jnp.float32)


def _block_params(key, dim, mlp_dim):
    k = jax.random.split(key, 4)
    return dict(
        ln1_g=jnp.ones((dim,), jnp.float32), ln1_b=jnp.zeros((dim,), jnp.float32),
        wqkv=_trunc_normal(k[0], (dim, 3 * dim)),
        wo=_trunc_normal(k[1], (dim, dim)), bo=jnp.zeros((dim,), jnp.float32),
        ln2_g=jnp.ones((dim,), jnp.float32), ln2_b=jnp.zeros((dim,), jnp.float32),
        w1=_trunc_normal(k[2], (dim, mlp_dim)), b1=jnp.zeros((mlp_dim,), jnp.float32),
        w2=_trunc_normal(k[3], (mlp_dim, dim)), b2=jnp.zeros((dim,), jnp.float32),
    )


def init_params(key, cfg):
    p = cfg['patch_size']
    n_patches = (cfg['img_size'] // p) ** 2
    patch_dim = cfg['in_channels'] * p * p
    hidden, dec_dim = cfg['hidden_size'], cfg['decoder_dim']

    keys = jax.random.split(key, 10 + cfg['num_layers'] + cfg['decoder_depth'])
    ki = iter(range(len(keys)))

    params = dict(
        patch_emb_w=_trunc_normal(keys[next(ki)], (patch_dim, hidden)),
        patch_emb_b=jnp.zeros((hidden,), jnp.float32),
        pos_emb=_trunc_normal(keys[next(ki)], (1, n_patches, hidden)),
        enc_blocks=[_block_params(keys[next(ki)], hidden, cfg['mlp_dim'])
                    for _ in range(cfg['num_layers'])],
        enc_to_dec_w=_trunc_normal(keys[next(ki)], (hidden, dec_dim)),
        enc_to_dec_b=jnp.zeros((dec_dim,), jnp.float32),
        dec_blocks=[_block_params(keys[next(ki)], dec_dim, 4 * dec_dim)
                    for _ in range(cfg['decoder_depth'])],
        dec_norm_g=jnp.ones((dec_dim,), jnp.float32),
        dec_norm_b=jnp.zeros((dec_dim,), jnp.float32),
        mask_token=jax.random.normal(keys[next(ki)], (dec_dim,), jnp.float32),
        dec_pos_emb=jax.random.normal(keys[next(ki)], (n_patches, dec_dim), jnp.float32),
        to_pixels_w=_trunc_normal(keys[next(ki)], (dec_dim, patch_dim)),
        to_pixels_b=jnp.zeros((patch_dim,), jnp.float32),
    )
    return params


# -----------------------------------------------------------------------------
# MAE forward (glue in JAX, hot paths in Pallas)
# -----------------------------------------------------------------------------
def mae_forward(x, params, mask_key, *, cfg, compute_dtype=jnp.bfloat16):
    B, C, H, W = x.shape
    p = cfg['patch_size']
    gh, gw = H // p, W // p
    n_patches = gh * gw
    patch_dim = C * p * p
    dec_dim = cfg['decoder_dim']

    # to_patch: 'b c (h p1) (w p2) -> b (h w) (p1 p2 c)'
    patches = x.reshape(B, C, gh, p, gw, p)
    patches = patches.transpose(0, 2, 4, 3, 5, 1)
    patches = patches.reshape(B, n_patches, patch_dim)

    # patch_to_emb (Linear) with the position-embedding add fused into the kernel
    tokens = pallas_linear(patches, params['patch_emb_w'], params['patch_emb_b'],
                           add=params['pos_emb'], compute_dtype=compute_dtype)

    # random masking
    num_masked = int(cfg['masking_ratio'] * n_patches)
    rand = jax.random.uniform(mask_key, (B, n_patches))
    rand_indices = jnp.argsort(rand, axis=-1)
    masked_indices = rand_indices[:, :num_masked]
    unmasked_indices = rand_indices[:, num_masked:]
    batch_range = jnp.arange(B)[:, None]

    tokens = jnp.take_along_axis(tokens, unmasked_indices[..., None], axis=1)

    # encoder transformer blocks
    for blk in params['enc_blocks']:
        tokens = pallas_transformer_block(tokens, blk, cfg['num_heads'],
                                          compute_dtype=compute_dtype)
    encoded_tokens = tokens

    # encoder -> decoder projection, with the gathered decoder positional
    # embeddings of the unmasked positions fused into the linear epilogue
    unmasked_pos = jnp.take(params['dec_pos_emb'], unmasked_indices, axis=0)
    decoder_tokens = pallas_linear(encoded_tokens,
                                   params['enc_to_dec_w'], params['enc_to_dec_b'],
                                   add=unmasked_pos, compute_dtype=compute_dtype)

    # mask tokens + positional embeddings of masked positions
    mask_tokens = jnp.broadcast_to(params['mask_token'], (B, num_masked, dec_dim))
    mask_tokens = mask_tokens + jnp.take(params['dec_pos_emb'], masked_indices, axis=0)

    decoder_tokens = jnp.concatenate([mask_tokens, decoder_tokens], axis=1)

    # decoder transformer blocks
    for blk in params['dec_blocks']:
        decoder_tokens = pallas_transformer_block(decoder_tokens, blk,
                                                  cfg['decoder_heads'],
                                                  compute_dtype=compute_dtype)

    # decoder norm fused into the pixel-reconstruction linear, masked rows only
    # (LayerNorm is per-row, so slicing before the fused LN+linear is equivalent
    #  to the PyTorch norm-then-slice)
    mask_tok_out = decoder_tokens[:, :num_masked]
    pred_pixel_values = pallas_ln_linear(mask_tok_out,
                                         params['dec_norm_g'], params['dec_norm_b'],
                                         params['to_pixels_w'], params['to_pixels_b'],
                                         compute_dtype=compute_dtype)

    return pred_pixel_values, patches, batch_range, masked_indices


# -----------------------------------------------------------------------------
if __name__ == "__main__":
    cfg = dict(
        in_channels=4, img_size=32, patch_size=8,
        hidden_size=32, mlp_dim=64, num_layers=2, num_heads=4,
        decoder_dim=64, decoder_depth=1, decoder_heads=4,
        masking_ratio=0.75,
    )
    key = jax.random.PRNGKey(0)
    pkey, xkey, mkey = jax.random.split(key, 3)

    params = init_params(pkey, cfg)
    x = jax.random.normal(
        xkey, (2, cfg['in_channels'], cfg['img_size'], cfg['img_size']), jnp.float32)

    # probe Buffered(1) support once, eagerly, before any jit tracing
    _buffered_supported()

    # bf16 MXU inputs (f32 accumulation; LayerNorm / softmax / GELU math in f32).
    # Use compute_dtype=jnp.float32 for bit-closer parity with the PyTorch ref.
    fwd = jax.jit(functools.partial(mae_forward, cfg=cfg,
                                    compute_dtype=jnp.bfloat16))
    outs = jax.block_until_ready(fwd(x, params, mkey))

    pred, patches, batch_range, masked_indices = outs
    n_patches = (cfg['img_size'] // cfg['patch_size']) ** 2
    num_masked = int(cfg['masking_ratio'] * n_patches)
    patch_dim = cfg['in_channels'] * cfg['patch_size'] ** 2
    assert pred.shape == (2, num_masked, patch_dim)
    assert patches.shape == (2, n_patches, patch_dim)
    assert batch_range.shape == (2, 1)
    assert masked_indices.shape == (2, num_masked)
    assert bool(jnp.all(jnp.isfinite(pred)))
    print("KERNEL_OK")
</pallas_src>

<mosaic_0001>
module attributes {stable_mosaic.version = 11 : i64} {
  func.func @_probe(%arg0: i32, %arg1: memref<8x128xf32, #tpu.memory_space<vmem>>, %arg2: memref<8x128xf32, #tpu.memory_space<vmem>>) attributes {dimension_semantics = [#tpu.dimension_semantics<arbitrary>], iteration_bounds = array<i64: 1>, scalar_prefetch = 0 : i64, scratch_operands = 0 : i64, tpu.core_type = #tpu.core_type<tc>, window_params = [{pipeline_mode = #tpu.pipeline_mode<synchronous>, transform_indices = @transform_0, window_bounds = array<i64: 8, 128>}, {pipeline_mode = #tpu.pipeline_mode<synchronous>, transform_indices = @transform_1, window_bounds = array<i64: 8, 128>}]} {
    %c0 = arith.constant 0 : index
    %c0_0 = arith.constant 0 : index
    %0 = vector.load %arg1[%c0, %c0_0] : memref<8x128xf32, #tpu.memory_space<vmem>>, vector<8x128xf32>
    %cst = arith.constant 1.000000e+00 : f32
    %1 = vector.broadcast %cst : f32 to vector<8x128xf32>
    %2 = arith.addf %0, %1 : vector<8x128xf32>
    %c0_1 = arith.constant 0 : index
    %c0_2 = arith.constant 0 : index
    %3 = vector.load %arg2[%c0_1, %c0_2] : memref<8x128xf32, #tpu.memory_space<vmem>>, vector<8x128xf32>
    tpu.vector_store %arg2[%c0_1, %c0_2], %2 {strides = array<i32>} : memref<8x128xf32, #tpu.memory_space<vmem>>, vector<8x128xf32>,
    return
  }
  func.func @transform_0(%arg0: i32) -> (i32, i32) {
    %c0_i32 = arith.constant 0 : i32
    %c0_i32_0 = arith.constant 0 : i32
    %c0_i32_1 = arith.constant 0 : i32
    return %c0_i32, %c0_i32_0 : i32, i32
  }
  func.func @transform_1(%arg0: i32) -> (i32, i32) {
    %c0_i32 = arith.constant 0 : i32
    %c0_i32_0 = arith.constant 0 : i32
    %c0_i32_1 = arith.constant 0 : i32
    return %c0_i32, %c0_i32_0 : i32, i32
  }
}

module attributes {stable_mosaic.version = 11 : i64} {
  func.func @_linear_add_kernel(%arg0: i32, %arg1: i32, %arg2: memref<1x16x256xf32, #tpu.memory_space<vmem>>, %arg3: memref<256x32xbf16, #tpu.memory_space<vmem>>, %arg4: memref<1x32xf32, #tpu.memory_space<vmem>>, %arg5: memref<1x16x32xf32, #tpu.memory_space<vmem>>, %arg6: memref<1x16x32xf32, #tpu.memory_space<vmem>>) attributes {dimension_semantics = [#tpu.dimension_semantics<parallel>, #tpu.dimension_semantics<parallel>], iteration_bounds = array<i64: 2, 1>, scalar_prefetch = 0 : i64, scratch_operands = 0 : i64, tpu.core_type = #tpu.core_type<tc>, window_params = [{transform_indices = @transform_0, window_bounds = array<i64: 1, 16, 256>}, {pipeline_mode = #tpu.pipeline_mode<synchronous>, transform_indices = @transform_1, window_bounds = array<i64: 256, 32>}, {pipeline_mode = #tpu.pipeline_mode<synchronous>, transform_indices = @transform_2, window_bounds = array<i64: 1, 32>}, {transform_indices = @transform_3, window_bounds = array<i64: 1, 16, 32>}, {transform_indices = @transform_4, window_bounds = array<i64: 1, 16, 32>}]} {
    %c0 = arith.constant 0 : index
    %c0_0 = arith.constant 0 : index
    %c0_1 = arith.constant 0 : index
    %0 = vector.load %arg2[%c0, %c0_0, %c0_1] : memref<1x16x256xf32, #tpu.memory_space<vmem>>, vector<1x16x256xf32>
    %1 = vector.shape_cast %0 : vector<1x16x256xf32> to vector<16x256xf32>
    %2 = arith.truncf %1 : vector<16x256xf32> to vector<16x256xbf16>
    %c0_2 = arith.constant 0 : index
    %c0_3 = arith.constant 0 : index
    %3 = vector.load %arg3[%c0_2, %c0_3] : memref<256x32xbf16, #tpu.memory_space<vmem>>, vector<256x32xbf16>
    %cst = arith.constant dense<0.000000e+00> : vector<16x32xf32>
    %4 = tpu.matmul %2, %3, %cst {dimension_numbers = #tpu.dot_dimension_numbers<[1], [0], [0], [1], [0, 0, 1, 1], [], []>} : vector<16x256xbf16>, vector<256x32xbf16>, vector<16x32xf32> -> vector<16x32xf32>
    %c0_4 = arith.constant 0 : index
    %c0_5 = arith.constant 0 : index
    %5 = vector.load %arg4[%c0_4, %c0_5] : memref<1x32xf32, #tpu.memory_space<vmem>>, vector<1x32xf32>
    %6 = vector.broadcast %5 : vector<1x32xf32> to vector<16x32xf32>
    %7 = arith.addf %4, %6 : vector<16x32xf32>
    %c0_6 = arith.constant 0 : index
    %c0_7 = arith.constant 0 : index
    %c0_8 = arith.constant 0 : index
    %8 = vector.load %arg5[%c0_6, %c0_7, %c0_8] : memref<1x16x32xf32, #tpu.memory_space<vmem>>, vector<1x16x32xf32>
    %9 = vector.shape_cast %8 : vector<1x16x32xf32> to vector<16x32xf32>
    %10 = arith.addf %7, %9 : vector<16x32xf32>
    %c0_9 = arith.constant 0 : index
    %c0_10 = arith.constant 0 : index
    %c0_11 = arith.constant 0 : index
    %11 = vector.load %arg6[%c0_9, %c0_10, %c0_11] : memref<1x16x32xf32, #tpu.memory_space<vmem>>, vector<1x16x32xf32>
    %12 = vector.shape_cast %11 : vector<1x16x32xf32> to vector<16x32xf32>
    %13 = vector.shape_cast %10 : vector<16x32xf32> to vector<1x16x32xf32>
    tpu.vector_store %arg6[%c0_9, %c0_10, %c0_11], %13 {strides = array<i32>} : memref<1x16x32xf32, #tpu.memory_space<vmem>>, vector<1x16x32xf32>,
    return
  }
  func.func @transform_0(%arg0: i32, %arg1: i32) -> (i32, i32, i32) {
    %c0_i32 = arith.constant 0 : i32
    %c0_i32_0 = arith.constant 0 : i32
    return %arg0, %arg1, %c0_i32 : i32, i32, i32
  }
  func.func @transform_1(%arg0: i32, %arg1: i32) -> (i32, i32) {
    %c0_i32 = arith.constant 0 : i32
    %c0_i32_0 = arith.constant 0 : i32
    %c0_i32_1 = arith.constant 0 : i32
    return %c0_i32, %c0_i32_0 : i32, i32
  }
  func.func @transform_2(%arg0: i32, %arg1: i32) -> (i32, i32) {
    %c0_i32 = arith.constant 0 : i32
    %c0_i32_0 = arith.constant 0 : i32
    %c0_i32_1 = arith.constant 0 : i32
    return %c0_i32, %c0_i32_0 : i32, i32
  }
  func.func @transform_3(%arg0: i32, %arg1: i32) -> (i32, i32, i32) {
    %c0_i32 = arith.constant 0 : i32
    %c0_i32_0 = arith.constant 0 : i32
    %c0_i32_1 = arith.constant 0 : i32
    return %c0_i32, %arg1, %c0_i32_0 : i32, i32, i32
  }
  func.func @transform_4(%arg0: i32, %arg1: i32) -> (i32, i32, i32) {
    %c0_i32 = arith.constant 0 : i32
    %c0_i32_0 = arith.constant 0 : i32
    return %arg0, %arg1, %c0_i32 : i32, i32, i32
  }
}

module attributes {stable_mosaic.version = 11 : i64} {
  func.func @_transformer_block_kernel(%arg0: i32, %arg1: memref<8x32xf32, #tpu.memory_space<vmem>>, %arg2: memref<1x32xf32, #tpu.memory_space<vmem>>, %arg3: memref<1x32xf32, #tpu.memory_space<vmem>>, %arg4: memref<32x96xbf16, #tpu.memory_space<vmem>>, %arg5: memref<32x32xbf16, #tpu.memory_space<vmem>>, %arg6: memref<1x32xf32, #tpu.memory_space<vmem>>, %arg7: memref<1x32xf32, #tpu.memory_space<vmem>>, %arg8: memref<1x32xf32, #tpu.memory_space<vmem>>, %arg9: memref<32x64xbf16, #tpu.memory_space<vmem>>, %arg10: memref<1x64xf32, #tpu.memory_space<vmem>>, %arg11: memref<64x32xbf16, #tpu.memory_space<vmem>>, %arg12: memref<1x32xf32, #tpu.memory_space<vmem>>, %arg13: memref<8x32xf32, #tpu.memory_space<vmem>>, %arg14: memref<8x96xf32, #tpu.memory_space<vmem>>, %arg15: memref<8x32xf32, #tpu.memory_space<vmem>>) attributes {dimension_semantics = [#tpu.dimension_semantics<parallel>], iteration_bounds = array<i64: 1>, scalar_prefetch = 0 : i64, scratch_operands = 2 : i64, tpu.core_type = #tpu.core_type<tc>, window_params = [{transform_indices = @transform_0, window_bounds = array<i64: 8, 32>}, {pipeline_mode = #tpu.pipeline_mode<synchronous>, transform_indices = @transform_1, window_bounds = array<i64: 1, 32>}, {pipeline_mode = #tpu.pipeline_mode<synchronous>, transform_indices = @transform_2, window_bounds = array<i64: 1, 32>}, {pipeline_mode = #tpu.pipeline_mode<synchronous>, transform_indices = @transform_3, window_bounds = array<i64: 32, 96>}, {pipeline_mode = #tpu.pipeline_mode<synchronous>, transform_indices = @transform_4, window_bounds = array<i64: 32, 32>}, {pipeline_mode = #tpu.pipeline_mode<synchronous>, transform_indices = @transform_5, window_bounds = array<i64: 1, 32>}, {pipeline_mode = #tpu.pipeline_mode<synchronous>, transform_indices = @transform_6, window_bounds = array<i64: 1, 32>}, {pipeline_mode = #tpu.pipeline_mode<synchronous>, transform_indices = @transform_7, window_bounds = array<i64: 1, 32>}, {pipeline_mode = #tpu.pipeline_mode<synchronous>, transform_indices = @transform_8, window_bounds = array<i64: 32, 64>}, {pipeline_mode = #tpu.pipeline_mode<synchronous>, transform_indices = @transform_9, window_bounds = array<i64: 1, 64>}, {pipeline_mode = #tpu.pipeline_mode<synchronous>, transform_indices = @transform_10, window_bounds = array<i64: 64, 32>}, {pipeline_mode = #tpu.pipeline_mode<synchronous>, transform_indices = @transform_11, window_bounds = array<i64: 1, 32>}, {transform_indices = @transform_12, window_bounds = array<i64: 8, 32>}]} {
    %c0 = arith.constant 0 : index
    %c0_0 = arith.constant 0 : index
    %0 = vector.load %arg1[%c0, %c0_0] : memref<8x32xf32, #tpu.memory_space<vmem>>, vector<8x32xf32>
    %cst = arith.constant dense<0.000000e+00> : vector<8xf32>
    %1 = vector.multi_reduction <add>, %0, %cst [1] : vector<8x32xf32> to vector<8xf32>
    %2 = vector.shape_cast %1 : vector<8xf32> to vector<8x1xf32>
    %cst_1 = arith.constant 3.200000e+01 : f32
    %3 = vector.broadcast %cst_1 : f32 to vector<8x1xf32>
    %4 = arith.divf %2, %3 : vector<8x1xf32>
    %5 = vector.broadcast %4 : vector<8x1xf32> to vector<8x32xf32>
    %6 = arith.subf %0, %5 : vector<8x32xf32>
    %7 = arith.mulf %6, %6 : vector<8x32xf32>
    %cst_2 = arith.constant dense<0.000000e+00> : vector<8xf32>
    %8 = vector.multi_reduction <add>, %7, %cst_2 [1] : vector<8x32xf32> to vector<8xf32>
    %9 = vector.shape_cast %8 : vector<8xf32> to vector<8x1xf32>
    %cst_3 = arith.constant 3.200000e+01 : f32
    %10 = vector.broadcast %cst_3 : f32 to vector<8x1xf32>
    %11 = arith.divf %9, %10 : vector<8x1xf32>
    %12 = vector.broadcast %4 : vector<8x1xf32> to vector<8x32xf32>
    %13 = arith.subf %0, %12 : vector<8x32xf32>
    %cst_4 = arith.constant 9.99999974E-6 : f32
    %14 = vector.broadcast %cst_4 : f32 to vector<8x1xf32>
    %15 = arith.addf %11, %14 : vector<8x1xf32>
    %16 = math.rsqrt %15 : vector<8x1xf32>
    %17 = vector.broadcast %16 : vector<8x1xf32> to vector<8x32xf32>
    %18 = arith.mulf %13, %17 : vector<8x32xf32>
    %c0_5 = arith.constant 0 : index
    %c0_6 = arith.constant 0 : index
    %19 = vector.load %arg2[%c0_5, %c0_6] : memref<1x32xf32, #tpu.memory_space<vmem>>, vector<1x32xf32>
    %20 = vector.broadcast %19 : vector<1x32xf32> to vector<8x32xf32>
    %21 = arith.mulf %18, %20 : vector<8x32xf32>
    %c0_7 = arith.constant 0 : index
    %c0_8 = arith.constant 0 : index
    %22 = vector.load %arg3[%c0_7, %c0_8] : memref<1x32xf32, #tpu.memory_space<vmem>>, vector<1x32xf32>
    %23 = vector.broadcast %22 : vector<1x32xf32> to vector<8x32xf32>
    %24 = arith.addf %21, %23 : vector<8x32xf32>
    %25 = arith.truncf %24 : vector<8x32xf32> to vector<8x32xbf16>
    %c0_9 = arith.constant 0 : index
    %c0_10 = arith.constant 0 : index
    %26 = vector.load %arg4[%c0_9, %c0_10] : memref<32x96xbf16, #tpu.memory_space<vmem>>, vector<32x96xbf16>
    %cst_11 = arith.constant dense<0.000000e+00> : vector<8x96xf32>
    %27 = tpu.matmul %25, %26, %cst_11 {dimension_numbers = #tpu.dot_dimension_numbers<[1], [0], [0], [1], [0, 0, 1, 1], [], []>} : vector<8x32xbf16>, vector<32x96xbf16>, vector<8x96xf32> -> vector<8x96xf32>
    %c0_12 = arith.constant 0 : index
    %c0_13 = arith.constant 0 : index
    %28 = vector.load %arg14[%c0_12, %c0_13] : memref<8x96xf32, #tpu.memory_space<vmem>>, vector<8x96xf32>
    tpu.vector_store %arg14[%c0_12, %c0_13], %27 {strides = array<i32>} : memref<8x96xf32, #tpu.memory_space<vmem>>, vector<8x96xf32>,
    %c0_14 = arith.constant 0 : index
    %c0_15 = arith.constant 0 : index
    %29 = vector.load %arg14[%c0_14, %c0_15] : memref<8x96xf32, #tpu.memory_space<vmem>>, vector<4x96xf32>
    %30 = vector.extract_strided_slice %29 {offsets = [0, 0], sizes = [4, 32], strides = [1, 1]} : vector<4x96xf32> to vector<4x32xf32>
    %31 = vector.shape_cast %30 : vector<4x32xf32> to vector<4x4x8xf32>
    %32 = tpu.transpose %31, [1, 0, 2] : vector<4x4x8xf32> -> vector<4x4x8xf32>
    %33 = vector.extract_strided_slice %29 {offsets = [0, 32], sizes = [4, 32], strides = [1, 1]} : vector<4x96xf32> to vector<4x32xf32>
    %34 = vector.shape_cast %33 : vector<4x32xf32> to vector<4x4x8xf32>
    %35 = tpu.transpose %34, [1, 0, 2] : vector<4x4x8xf32> -> vector<4x4x8xf32>
    %36 = vector.extract_strided_slice %29 {offsets = [0, 64], sizes = [4, 32], strides = [1, 1]} : vector<4x96xf32> to vector<4x32xf32>
    %37 = vector.shape_cast %36 : vector<4x32xf32> to vector<4x4x8xf32>
    %38 = tpu.transpose %37, [1, 0, 2] : vector<4x4x8xf32> -> vector<4x4x8xf32>
    %39 = arith.truncf %32 : vector<4x4x8xf32> to vector<4x4x8xbf16>
    %40 = arith.truncf %35 : vector<4x4x8xf32> to vector<4x4x8xbf16>
    %cst_16 = arith.constant dense<0.000000e+00> : vector<4x4x4xf32>
    %41 = tpu.matmul %39, %40, %cst_16 {dimension_numbers = #tpu.dot_dimension_numbers<[2], [2], [1], [1], [0, 0, 0, 1, 1, 1], [0], [0]>} : vector<4x4x8xbf16>, vector<4x4x8xbf16>, vector<4x4x4xf32> -> vector<4x4x4xf32>
    %cst_17 = arith.constant 0.353553385 : f32
    %42 = vector.broadcast %cst_17 : f32 to vector<4x4x4xf32>
    %43 = arith.mulf %41, %42 : vector<4x4x4xf32>
    %cst_18 = arith.constant dense<0xFF800000> : vector<4x4xf32>
    %44 = vector.multi_reduction <maximumf>, %43, %cst_18 [2] : vector<4x4x4xf32> to vector<4x4xf32>
    %45 = vector.shape_cast %44 : vector<4x4xf32> to vector<4x4x1xf32>
    %46 = vector.broadcast %45 : vector<4x4x1xf32> to vector<4x4x4xf32>
    %47 = arith.subf %43, %46 : vector<4x4x4xf32>
    %48 = math.exp %47 : vector<4x4x4xf32>
    %cst_19 = arith.constant dense<0.000000e+00> : vector<4x4xf32>
    %49 = vector.multi_reduction <add>, %48, %cst_19 [2] : vector<4x4x4xf32> to vector<4x4xf32>
    %50 = vector.shape_cast %49 : vector<4x4xf32> to vector<4x4x1xf32>
    %51 = tpu.reciprocal %50 {approx = true} : vector<4x4x1xf32> -> vector<4x4x1xf32>
    %52 = vector.broadcast %51 : vector<4x4x1xf32> to vector<4x4x4xf32>
    %53 = arith.mulf %48, %52 : vector<4x4x4xf32>
    %54 = arith.truncf %53 : vector<4x4x4xf32> to vector<4x4x4xbf16>
    %55 = arith.truncf %38 : vector<4x4x8xf32> to vector<4x4x8xbf16>
    %cst_20 = arith.constant dense<0.000000e+00> : vector<4x4x8xf32>
    %56 = tpu.matmul %54, %55, %cst_20 {dimension_numbers = #tpu.dot_dimension_numbers<[2], [1], [1], [2], [0, 0, 0, 1, 1, 2], [0], [0]>} : vector<4x4x4xbf16>, vector<4x4x8xbf16>, vector<4x4x8xf32> -> vector<4x4x8xf32>
    %57 = tpu.transpose %56, [1, 0, 2] : vector<4x4x8xf32> -> vector<4x4x8xf32>
    %58 = vector.shape_cast %57 : vector<4x4x8xf32> to vector<4x32xf32>
    %c0_21 = arith.constant 0 : index
    %c0_22 = arith.constant 0 : index
    %59 = vector.load %arg15[%c0_21, %c0_22] : memref<8x32xf32, #tpu.memory_space<vmem>>, vector<4x32xf32>
    tpu.vector_store %arg15[%c0_21, %c0_22], %58 {strides = array<i32>} : memref<8x32xf32, #tpu.memory_space<vmem>>, vector<4x32xf32>,
    %c4 = arith.constant 4 : index
    %c0_23 = arith.constant 0 : index
    %60 = vector.load %arg14[%c4, %c0_23] : memref<8x96xf32, #tpu.memory_space<vmem>>, vector<4x96xf32>
    %61 = vector.extract_strided_slice %60 {offsets = [0, 0], sizes = [4, 32], strides = [1, 1]} : vector<4x96xf32> to vector<4x32xf32>
    %62 = vector.shape_cast %61 : vector<4x32xf32> to vector<4x4x8xf32>
    %63 = tpu.transpose %62, [1, 0, 2] : vector<4x4x8xf32> -> vector<4x4x8xf32>
    %64 = vector.extract_strided_slice %60 {offsets = [0, 32], sizes = [4, 32], strides = [1, 1]} : vector<4x96xf32> to vector<4x32xf32>
    %65 = vector.shape_cast %64 : vector<4x32xf32> to vector<4x4x8xf32>
    %66 = tpu.transpose %65, [1, 0, 2] : vector<4x4x8xf32> -> vector<4x4x8xf32>
    %67 = vector.extract_strided_slice %60 {offsets = [0, 64], sizes = [4, 32], strides = [1, 1]} : vector<4x96xf32> to vector<4x32xf32>
    %68 = vector.shape_cast %67 : vector<4x32xf32> to vector<4x4x8xf32>
    %69 = tpu.transpose %68, [1, 0, 2] : vector<4x4x8xf32> -> vector<4x4x8xf32>
    %70 = arith.truncf %63 : vector<4x4x8xf32> to vector<4x4x8xbf16>
    %71 = arith.truncf %66 : vector<4x4x8xf32> to vector<4x4x8xbf16>
    %cst_24 = arith.constant dense<0.000000e+00> : vector<4x4x4xf32>
    %72 = tpu.matmul %70, %71, %cst_24 {dimension_numbers = #tpu.dot_dimension_numbers<[2], [2], [1], [1], [0, 0, 0, 1, 1, 1], [0], [0]>} : vector<4x4x8xbf16>, vector<4x4x8xbf16>, vector<4x4x4xf32> -> vector<4x4x4xf32>
    %cst_25 = arith.constant 0.353553385 : f32
    %73 = vector.broadcast %cst_25 : f32 to vector<4x4x4xf32>
    %74 = arith.mulf %72, %73 : vector<4x4x4xf32>
    %cst_26 = arith.constant dense<0xFF800000> : vector<4x4xf32>
    %75 = vector.multi_reduction <maximumf>, %74, %cst_26 [2] : vector<4x4x4xf32> to vector<4x4xf32>
    %76 = vector.shape_cast %75 : vector<4x4xf32> to vector<4x4x1xf32>
    %77 = vector.broadcast %76 : vector<4x4x1xf32> to vector<4x4x4xf32>
    %78 = arith.subf %74, %77 : vector<4x4x4xf32>
    %79 = math.exp %78 : vector<4x4x4xf32>
    %cst_27 = arith.constant dense<0.000000e+00> : vector<4x4xf32>
    %80 = vector.multi_reduction <add>, %79, %cst_27 [2] : vector<4x4x4xf32> to vector<4x4xf32>
    %81 = vector.shape_cast %80 : vector<4x4xf32> to vector<4x4x1xf32>
    %82 = tpu.reciprocal %81 {approx = true} : vector<4x4x1xf32> -> vector<4x4x1xf32>
    %83 = vector.broadcast %82 : vector<4x4x1xf32> to vector<4x4x4xf32>
    %84 = arith.mulf %79, %83 : vector<4x4x4xf32>
    %85 = arith.truncf %84 : vector<4x4x4xf32> to vector<4x4x4xbf16>
    %86 = arith.truncf %69 : vector<4x4x8xf32> to vector<4x4x8xbf16>
    %cst_28 = arith.constant dense<0.000000e+00> : vector<4x4x8xf32>
    %87 = tpu.matmul %85, %86, %cst_28 {dimension_numbers = #tpu.dot_dimension_numbers<[2], [1], [1], [2], [0, 0, 0, 1, 1, 2], [0], [0]>} : vector<4x4x4xbf16>, vector<4x4x8xbf16>, vector<4x4x8xf32> -> vector<4x4x8xf32>
    %88 = tpu.transpose %87, [1, 0, 2] : vector<4x4x8xf32> -> vector<4x4x8xf32>
    %89 = vector.shape_cast %88 : vector<4x4x8xf32> to vector<4x32xf32>
    %c4_29 = arith.constant 4 : index
    %c0_30 = arith.constant 0 : index
    %90 = vector.load %arg15[%c4_29, %c0_30] : memref<8x32xf32, #tpu.memory_space<vmem>>, vector<4x32xf32>
    tpu.vector_store %arg15[%c4_29, %c0_30], %89 {strides = array<i32>} : memref<8x32xf32, #tpu.memory_space<vmem>>, vector<4x32xf32>,
    %c0_31 = arith.constant 0 : index
    %c0_32 = arith.constant 0 : index
    %91 = vector.load %arg15[%c0_31, %c0_32] : memref<8x32xf32, #tpu.memory_space<vmem>>, vector<8x32xf32>
    %92 = arith.truncf %91 : vector<8x32xf32> to vector<8x32xbf16>
    %c0_33 = arith.constant 0 : index
    %c0_34 = arith.constant 0 : index
    %93 = vector.load %arg5[%c0_33, %c0_34] : memref<32x32xbf16, #tpu.memory_space<vmem>>, vector<32x32xbf16>
    %cst_35 = arith.constant dense<0.000000e+00> : vector<8x32xf32>
    %94 = tpu.matmul %92, %93, %cst_35 {dimension_numbers = #tpu.dot_dimension_numbers<[1], [0], [0], [1], [0, 0, 1, 1], [], []>} : vector<8x32xbf16>, vector<32x32xbf16>, vector<8x32xf32> -> vector<8x32xf32>
    %c0_36 = arith.constant 0 : index
    %c0_37 = arith.constant 0 : index
    %95 = vector.load %arg6[%c0_36, %c0_37] : memref<1x32xf32, #tpu.memory_space<vmem>>, vector<1x32xf32>
    %96 = vector.broadcast %95 : vector<1x32xf32> to vector<8x32xf32>
    %97 = arith.addf %94, %96 : vector<8x32xf32>
    %98 = arith.addf %0, %97 : vector<8x32xf32>
    %cst_38 = arith.constant dense<0.000000e+00> : vector<8xf32>
    %99 = vector.multi_reduction <add>, %98, %cst_38 [1] : vector<8x32xf32> to vector<8xf32>
    %100 = vector.shape_cast %99 : vector<8xf32> to vector<8x1xf32>
    %cst_39 = arith.constant 3.200000e+01 : f32
    %101 = vector.broadcast %cst_39 : f32 to vector<8x1xf32>
    %102 = arith.divf %100, %101 : vector<8x1xf32>
    %103 = vector.broadcast %102 : vector<8x1xf32> to vector<8x32xf32>
    %104 = arith.subf %98, %103 : vector<8x32xf32>
    %105 = arith.mulf %104, %104 : vector<8x32xf32>
    %cst_40 = arith.constant dense<0.000000e+00> : vector<8xf32>
    %106 = vector.multi_reduction <add>, %105, %cst_40 [1] : vector<8x32xf32> to vector<8xf32>
    %107 = vector.shape_cast %106 : vector<8xf32> to vector<8x1xf32>
    %cst_41 = arith.constant 3.200000e+01 : f32
    %108 = vector.broadcast %cst_41 : f32 to vector<8x1xf32>
    %109 = arith.divf %107, %108 : vector<8x1xf32>
    %110 = vector.broadcast %102 : vector<8x1xf32> to vector<8x32xf32>
    %111 = arith.subf %98, %110 : vector<8x32xf32>
    %cst_42 = arith.constant 9.99999974E-6 : f32
    %112 = vector.broadcast %cst_42 : f32 to vector<8x1xf32>
    %113 = arith.addf %109, %112 : vector<8x1xf32>
    %114 = math.rsqrt %113 : vector<8x1xf32>
    %115 = vector.broadcast %114 : vector<8x1xf32> to vector<8x32xf32>
    %116 = arith.mulf %111, %115 : vector<8x32xf32>
    %c0_43 = arith.constant 0 : index
    %c0_44 = arith.constant 0 : index
    %117 = vector.load %arg7[%c0_43, %c0_44] : memref<1x32xf32, #tpu.memory_space<vmem>>, vector<1x32xf32>
    %118 = vector.broadcast %117 : vector<1x32xf32> to vector<8x32xf32>
    %119 = arith.mulf %116, %118 : vector<8x32xf32>
    %c0_45 = arith.constant 0 : index
    %c0_46 = arith.constant 0 : index
    %120 = vector.load %arg8[%c0_45, %c0_46] : memref<1x32xf32, #tpu.memory_space<vmem>>, vector<1x32xf32>
    %121 = vector.broadcast %120 : vector<1x32xf32> to vector<8x32xf32>
    %122 = arith.addf %119, %121 : vector<8x32xf32>
    %123 = arith.truncf %122 : vector<8x32xf32> to vector<8x32xbf16>
    %c0_47 = arith.constant 0 : index
    %c0_48 = arith.constant 0 : index
    %124 = vector.load %arg9[%c0_47, %c0_48] : memref<32x64xbf16, #tpu.memory_space<vmem>>, vector<32x64xbf16>
    %cst_49 = arith.constant dense<0.000000e+00> : vector<8x64xf32>
    %125 = tpu.matmul %123, %124, %cst_49 {dimension_numbers = #tpu.dot_dimension_numbers<[1], [0], [0], [1], [0, 0, 1, 1], [], []>} : vector<8x32xbf16>, vector<32x64xbf16>, vector<8x64xf32> -> vector<8x64xf32>
    %c0_50 = arith.constant 0 : index
    %c0_51 = arith.constant 0 : index
    %126 = vector.load %arg10[%c0_50, %c0_51] : memref<1x64xf32, #tpu.memory_space<vmem>>, vector<1x64xf32>
    %127 = vector.broadcast %126 : vector<1x64xf32> to vector<8x64xf32>
    %128 = arith.addf %125, %127 : vector<8x64xf32>
    %129 = arith.mulf %128, %128 : vector<8x64xf32>
    %130 = arith.mulf %128, %129 : vector<8x64xf32>
    %cst_52 = arith.constant 4.471500e-02 : f32
    %131 = vector.broadcast %cst_52 : f32 to vector<8x64xf32>
    %132 = arith.mulf %131, %130 : vector<8x64xf32>
    %133 = arith.addf %128, %132 : vector<8x64xf32>
    %cst_53 = arith.constant 0.797884583 : f32
    %134 = vector.broadcast %cst_53 : f32 to vector<8x64xf32>
    %135 = arith.mulf %134, %133 : vector<8x64xf32>
    %136 = math.tanh %135 : vector<8x64xf32>
    %cst_54 = arith.constant 1.000000e+00 : f32
    %137 = vector.broadcast %cst_54 : f32 to vector<8x64xf32>
    %138 = arith.addf %137, %136 : vector<8x64xf32>
    %cst_55 = arith.constant 5.000000e-01 : f32
    %139 = vector.broadcast %cst_55 : f32 to vector<8x64xf32>
    %140 = arith.mulf %139, %138 : vector<8x64xf32>
    %141 = arith.mulf %128, %140 : vector<8x64xf32>
    %142 = arith.truncf %141 : vector<8x64xf32> to vector<8x64xbf16>
    %c0_56 = arith.constant 0 : index
    %c0_57 = arith.constant 0 : index
    %143 = vector.load %arg11[%c0_56, %c0_57] : memref<64x32xbf16, #tpu.memory_space<vmem>>, vector<64x32xbf16>
    %cst_58 = arith.constant dense<0.000000e+00> : vector<8x32xf32>
    %144 = tpu.matmul %142, %143, %cst_58 {dimension_numbers = #tpu.dot_dimension_numbers<[1], [0], [0], [1], [0, 0, 1, 1], [], []>} : vector<8x64xbf16>, vector<64x32xbf16>, vector<8x32xf32> -> vector<8x32xf32>
    %c0_59 = arith.constant 0 : index
    %c0_60 = arith.constant 0 : index
    %145 = vector.load %arg12[%c0_59, %c0_60] : memref<1x32xf32, #tpu.memory_space<vmem>>, vector<1x32xf32>
    %146 = vector.broadcast %145 : vector<1x32xf32> to vector<8x32xf32>
    %147 = arith.addf %144, %146 : vector<8x32xf32>
    %148 = arith.addf %98, %147 : vector<8x32xf32>
    %c0_61 = arith.constant 0 : index
    %c0_62 = arith.constant 0 : index
    %149 = vector.load %arg13[%c0_61, %c0_62] : memref<8x32xf32, #tpu.memory_space<vmem>>, vector<8x32xf32>
    tpu.vector_store %arg13[%c0_61, %c0_62], %148 {strides = array<i32>} : memref<8x32xf32, #tpu.memory_space<vmem>>, vector<8x32xf32>,
    return
  }
  func.func @transform_0(%arg0: i32) -> (i32, i32) {
    %c0_i32 = arith.constant 0 : i32
    %c0_i32_0 = arith.constant 0 : i32
    return %arg0, %c0_i32 : i32, i32
  }
  func.func @transform_1(%arg0: i32) -> (i32, i32) {
    %c0_i32 = arith.constant 0 : i32
    %c0_i32_0 = arith.constant 0 : i32
    %c0_i32_1 = arith.constant 0 : i32
    return %c0_i32, %c0_i32_0 : i32, i32
  }
  func.func @transform_2(%arg0: i32) -> (i32, i32) {
    %c0_i32 = arith.constant 0 : i32
    %c0_i32_0 = arith.constant 0 : i32
    %c0_i32_1 = arith.constant 0 : i32
    return %c0_i32, %c0_i32_0 : i32, i32
  }
  func.func @transform_3(%arg0: i32) -> (i32, i32) {
    %c0_i32 = arith.constant 0 : i32
    %c0_i32_0 = arith.constant 0 : i32
    %c0_i32_1 = arith.constant 0 : i32
    return %c0_i32, %c0_i32_0 : i32, i32
  }
  func.func @transform_4(%arg0: i32) -> (i32, i32) {
    %c0_i32 = arith.constant 0 : i32
    %c0_i32_0 = arith.constant 0 : i32
    %c0_i32_1 = arith.constant 0 : i32
    return %c0_i32, %c0_i32_0 : i32, i32
  }
  func.func @transform_5(%arg0: i32) -> (i32, i32) {
    %c0_i32 = arith.constant 0 : i32
    %c0_i32_0 = arith.constant 0 : i32
    %c0_i32_1 = arith.constant 0 : i32
    return %c0_i32, %c0_i32_0 : i32, i32
  }
  func.func @transform_6(%arg0: i32) -> (i32, i32) {
    %c0_i32 = arith.constant 0 : i32
    %c0_i32_0 = arith.constant 0 : i32
    %c0_i32_1 = arith.constant 0 : i32
    return %c0_i32, %c0_i32_0 : i32, i32
  }
  func.func @transform_7(%arg0: i32) -> (i32, i32) {
    %c0_i32 = arith.constant 0 : i32
    %c0_i32_0 = arith.constant 0 : i32
    %c0_i32_1 = arith.constant 0 : i32
    return %c0_i32, %c0_i32_0 : i32, i32
  }
  func.func @transform_8(%arg0: i32) -> (i32, i32) {
    %c0_i32 = arith.constant 0 : i32
    %c0_i32_0 = arith.constant 0 : i32
    %c0_i32_1 = arith.constant 0 : i32
    return %c0_i32, %c0_i32_0 : i32, i32
  }
  func.func @transform_9(%arg0: i32) -> (i32, i32) {
    %c0_i32 = arith.constant 0 : i32
    %c0_i32_0 = arith.constant 0 : i32
    %c0_i32_1 = arith.constant 0 : i32
    return %c0_i32, %c0_i32_0 : i32, i32
  }
  func.func @transform_10(%arg0: i32) -> (i32, i32) {
    %c0_i32 = arith.constant 0 : i32
    %c0_i32_0 = arith.constant 0 : i32
    %c0_i32_1 = arith.constant 0 : i32
    return %c0_i32, %c0_i32_0 : i32, i32
  }
  func.func @transform_11(%arg0: i32) -> (i32, i32) {
    %c0_i32 = arith.constant 0 : i32
    %c0_i32_0 = arith.constant 0 : i32
    %c0_i32_1 = arith.constant 0 : i32
    return %c0_i32, %c0_i32_0 : i32, i32
  }
  func.func @transform_12(%arg0: i32) -> (i32, i32) {
    %c0_i32 = arith.constant 0 : i32
    %c0_i32_0 = arith.constant 0 : i32
    return %arg0, %c0_i32 : i32, i32
  }
}

module attributes {stable_mosaic.version = 11 : i64} {
  func.func @_linear_add_kernel(%arg0: i32, %arg1: i32, %arg2: memref<1x4x32xf32, #tpu.memory_space<vmem>>, %arg3: memref<32x64xbf16, #tpu.memory_space<vmem>>, %arg4: memref<1x64xf32, #tpu.memory_space<vmem>>, %arg5: memref<1x4x64xf32, #tpu.memory_space<vmem>>, %arg6: memref<1x4x64xf32, #tpu.memory_space<vmem>>) attributes {dimension_semantics = [#tpu.dimension_semantics<parallel>, #tpu.dimension_semantics<parallel>], iteration_bounds = array<i64: 2, 1>, scalar_prefetch = 0 : i64, scratch_operands = 0 : i64, tpu.core_type = #tpu.core_type<tc>, window_params = [{transform_indices = @transform_0, window_bounds = array<i64: 1, 4, 32>}, {pipeline_mode = #tpu.pipeline_mode<synchronous>, transform_indices = @transform_1, window_bounds = array<i64: 32, 64>}, {pipeline_mode = #tpu.pipeline_mode<synchronous>, transform_indices = @transform_2, window_bounds = array<i64: 1, 64>}, {transform_indices = @transform_3, window_bounds = array<i64: 1, 4, 64>}, {transform_indices = @transform_4, window_bounds = array<i64: 1, 4, 64>}]} {
    %c0 = arith.constant 0 : index
    %c0_0 = arith.constant 0 : index
    %c0_1 = arith.constant 0 : index
    %0 = vector.load %arg2[%c0, %c0_0, %c0_1] : memref<1x4x32xf32, #tpu.memory_space<vmem>>, vector<1x4x32xf32>
    %1 = vector.shape_cast %0 : vector<1x4x32xf32> to vector<4x32xf32>
    %2 = arith.truncf %1 : vector<4x32xf32> to vector<4x32xbf16>
    %c0_2 = arith.constant 0 : index
    %c0_3 = arith.constant 0 : index
    %3 = vector.load %arg3[%c0_2, %c0_3] : memref<32x64xbf16, #tpu.memory_space<vmem>>, vector<32x64xbf16>
    %cst = arith.constant dense<0.000000e+00> : vector<4x64xf32>
    %4 = tpu.matmul %2, %3, %cst {dimension_numbers = #tpu.dot_dimension_numbers<[1], [0], [0], [1], [0, 0, 1, 1], [], []>} : vector<4x32xbf16>, vector<32x64xbf16>, vector<4x64xf32> -> vector<4x64xf32>
    %c0_4 = arith.constant 0 : index
    %c0_5 = arith.constant 0 : index
    %5 = vector.load %arg4[%c0_4, %c0_5] : memref<1x64xf32, #tpu.memory_space<vmem>>, vector<1x64xf32>
    %6 = vector.broadcast %5 : vector<1x64xf32> to vector<4x64xf32>
    %7 = arith.addf %4, %6 : vector<4x64xf32>
    %c0_6 = arith.constant 0 : index
    %c0_7 = arith.constant 0 : index
    %c0_8 = arith.constant 0 : index
    %8 = vector.load %arg5[%c0_6, %c0_7, %c0_8] : memref<1x4x64xf32, #tpu.memory_space<vmem>>, vector<1x4x64xf32>
    %9 = vector.shape_cast %8 : vector<1x4x64xf32> to vector<4x64xf32>
    %10 = arith.addf %7, %9 : vector<4x64xf32>
    %c0_9 = arith.constant 0 : index
    %c0_10 = arith.constant 0 : index
    %c0_11 = arith.constant 0 : index
    %11 = vector.load %arg6[%c0_9, %c0_10, %c0_11] : memref<1x4x64xf32, #tpu.memory_space<vmem>>, vector<1x4x64xf32>
    %12 = vector.shape_cast %11 : vector<1x4x64xf32> to vector<4x64xf32>
    %13 = vector.shape_cast %10 : vector<4x64xf32> to vector<1x4x64xf32>
    tpu.vector_store %arg6[%c0_9, %c0_10, %c0_11], %13 {strides = array<i32>} : memref<1x4x64xf32, #tpu.memory_space<vmem>>, vector<1x4x64xf32>,
    return
  }
  func.func @transform_0(%arg0: i32, %arg1: i32) -> (i32, i32, i32) {
    %c0_i32 = arith.constant 0 : i32
    %c0_i32_0 = arith.constant 0 : i32
    return %arg0, %arg1, %c0_i32 : i32, i32, i32
  }
  func.func @transform_1(%arg0: i32, %arg1: i32) -> (i32, i32) {
    %c0_i32 = arith.constant 0 : i32
    %c0_i32_0 = arith.constant 0 : i32
    %c0_i32_1 = arith.constant 0 : i32
    return %c0_i32, %c0_i32_0 : i32, i32
  }
  func.func @transform_2(%arg0: i32, %arg1: i32) -> (i32, i32) {
    %c0_i32 = arith.constant 0 : i32
    %c0_i32_0 = arith.constant 0 : i32
    %c0_i32_1 = arith.constant 0 : i32
    return %c0_i32, %c0_i32_0 : i32, i32
  }
  func.func @transform_3(%arg0: i32, %arg1: i32) -> (i32, i32, i32) {
    %c0_i32 = arith.constant 0 : i32
    %c0_i32_0 = arith.constant 0 : i32
    return %arg0, %arg1, %c0_i32 : i32, i32, i32
  }
  func.func @transform_4(%arg0: i32, %arg1: i32) -> (i32, i32, i32) {
    %c0_i32 = arith.constant 0 : i32
    %c0_i32_0 = arith.constant 0 : i32
    return %arg0, %arg1, %c0_i32 : i32, i32, i32
  }
}

module attributes {stable_mosaic.version = 11 : i64} {
  func.func @_ln_linear_kernel(%arg0: i32, %arg1: i32, %arg2: memref<1x12x64xf32, #tpu.memory_space<vmem>>, %arg3: memref<1x64xf32, #tpu.memory_space<vmem>>, %arg4: memref<1x64xf32, #tpu.memory_space<vmem>>, %arg5: memref<64x256xbf16, #tpu.memory_space<vmem>>, %arg6: memref<1x256xf32, #tpu.memory_space<vmem>>, %arg7: memref<1x12x256xf32, #tpu.memory_space<vmem>>) attributes {dimension_semantics = [#tpu.dimension_semantics<parallel>, #tpu.dimension_semantics<parallel>], iteration_bounds = array<i64: 2, 1>, scalar_prefetch = 0 : i64, scratch_operands = 0 : i64, tpu.core_type = #tpu.core_type<tc>, window_params = [{transform_indices = @transform_0, window_bounds = array<i64: 1, 12, 64>}, {pipeline_mode = #tpu.pipeline_mode<synchronous>, transform_indices = @transform_1, window_bounds = array<i64: 1, 64>}, {pipeline_mode = #tpu.pipeline_mode<synchronous>, transform_indices = @transform_2, window_bounds = array<i64: 1, 64>}, {pipeline_mode = #tpu.pipeline_mode<synchronous>, transform_indices = @transform_3, window_bounds = array<i64: 64, 256>}, {pipeline_mode = #tpu.pipeline_mode<synchronous>, transform_indices = @transform_4, window_bounds = array<i64: 1, 256>}, {transform_indices = @transform_5, window_bounds = array<i64: 1, 12, 256>}]} {
    %c0 = arith.constant 0 : index
    %c0_0 = arith.constant 0 : index
    %c0_1 = arith.constant 0 : index
    %0 = vector.load %arg2[%c0, %c0_0, %c0_1] : memref<1x12x64xf32, #tpu.memory_space<vmem>>, vector<1x12x64xf32>
    %1 = vector.shape_cast %0 : vector<1x12x64xf32> to vector<12x64xf32>
    %cst = arith.constant dense<0.000000e+00> : vector<12xf32>
    %2 = vector.multi_reduction <add>, %1, %cst [1] : vector<12x64xf32> to vector<12xf32>
    %3 = vector.shape_cast %2 : vector<12xf32> to vector<12x1xf32>
    %cst_2 = arith.constant 6.400000e+01 : f32
    %4 = vector.broadcast %cst_2 : f32 to vector<12x1xf32>
    %5 = arith.divf %3, %4 : vector<12x1xf32>
    %6 = vector.broadcast %5 : vector<12x1xf32> to vector<12x64xf32>
    %7 = arith.subf %1, %6 : vector<12x64xf32>
    %8 = arith.mulf %7, %7 : vector<12x64xf32>
    %cst_3 = arith.constant dense<0.000000e+00> : vector<12xf32>
    %9 = vector.multi_reduction <add>, %8, %cst_3 [1] : vector<12x64xf32> to vector<12xf32>
    %10 = vector.shape_cast %9 : vector<12xf32> to vector<12x1xf32>
    %cst_4 = arith.constant 6.400000e+01 : f32
    %11 = vector.broadcast %cst_4 : f32 to vector<12x1xf32>
    %12 = arith.divf %10, %11 : vector<12x1xf32>
    %13 = vector.broadcast %5 : vector<12x1xf32> to vector<12x64xf32>
    %14 = arith.subf %1, %13 : vector<12x64xf32>
    %cst_5 = arith.constant 9.99999974E-6 : f32
    %15 = vector.broadcast %cst_5 : f32 to vector<12x1xf32>
    %16 = arith.addf %12, %15 : vector<12x1xf32>
    %17 = math.rsqrt %16 : vector<12x1xf32>
    %18 = vector.broadcast %17 : vector<12x1xf32> to vector<12x64xf32>
    %19 = arith.mulf %14, %18 : vector<12x64xf32>
    %c0_6 = arith.constant 0 : index
    %c0_7 = arith.constant 0 : index
    %20 = vector.load %arg3[%c0_6, %c0_7] : memref<1x64xf32, #tpu.memory_space<vmem>>, vector<1x64xf32>
    %21 = vector.broadcast %20 : vector<1x64xf32> to vector<12x64xf32>
    %22 = arith.mulf %19, %21 : vector<12x64xf32>
    %c0_8 = arith.constant 0 : index
    %c0_9 = arith.constant 0 : index
    %23 = vector.load %arg4[%c0_8, %c0_9] : memref<1x64xf32, #tpu.memory_space<vmem>>, vector<1x64xf32>
    %24 = vector.broadcast %23 : vector<1x64xf32> to vector<12x64xf32>
    %25 = arith.addf %22, %24 : vector<12x64xf32>
    %26 = arith.truncf %25 : vector<12x64xf32> to vector<12x64xbf16>
    %c0_10 = arith.constant 0 : index
    %c0_11 = arith.constant 0 : index
    %27 = vector.load %arg5[%c0_10, %c0_11] : memref<64x256xbf16, #tpu.memory_space<vmem>>, vector<64x256xbf16>
    %cst_12 = arith.constant dense<0.000000e+00> : vector<12x256xf32>
    %28 = tpu.matmul %26, %27, %cst_12 {dimension_numbers = #tpu.dot_dimension_numbers<[1], [0], [0], [1], [0, 0, 1, 1], [], []>} : vector<12x64xbf16>, vector<64x256xbf16>, vector<12x256xf32> -> vector<12x256xf32>
    %c0_13 = arith.constant 0 : index
    %c0_14 = arith.constant 0 : index
    %29 = vector.load %arg6[%c0_13, %c0_14] : memref<1x256xf32, #tpu.memory_space<vmem>>, vector<1x256xf32>
    %30 = vector.broadcast %29 : vector<1x256xf32> to vector<12x256xf32>
    %31 = arith.addf %28, %30 : vector<12x256xf32>
    %c0_15 = arith.constant 0 : index
    %c0_16 = arith.constant 0 : index
    %c0_17 = arith.constant 0 : index
    %32 = vector.load %arg7[%c0_15, %c0_16, %c0_17] : memref<1x12x256xf32, #tpu.memory_space<vmem>>, vector<1x12x256xf32>
    %33 = vector.shape_cast %32 : vector<1x12x256xf32> to vector<12x256xf32>
    %34 = vector.shape_cast %31 : vector<12x256xf32> to vector<1x12x256xf32>
    tpu.vector_store %arg7[%c0_15, %c0_16, %c0_17], %34 {strides = array<i32>} : memref<1x12x256xf32, #tpu.memory_space<vmem>>, vector<1x12x256xf32>,
    return
  }
  func.func @transform_0(%arg0: i32, %arg1: i32) -> (i32, i32, i32) {
    %c0_i32 = arith.constant 0 : i32
    %c0_i32_0 = arith.constant 0 : i32
    return %arg0, %arg1, %c0_i32 : i32, i32, i32
  }
  func.func @transform_1(%arg0: i32, %arg1: i32) -> (i32, i32) {
    %c0_i32 = arith.constant 0 : i32
    %c0_i32_0 = arith.constant 0 : i32
    %c0_i32_1 = arith.constant 0 : i32
    return %c0_i32, %c0_i32_0 : i32, i32
  }
  func.func @transform_2(%arg0: i32, %arg1: i32) -> (i32, i32) {
    %c0_i32 = arith.constant 0 : i32
    %c0_i32_0 = arith.constant 0 : i32
    %c0_i32_1 = arith.constant 0 : i32
    return %c0_i32, %c0_i32_0 : i32, i32
  }
  func.func @transform_3(%arg0: i32, %arg1: i32) -> (i32, i32) {
    %c0_i32 = arith.constant 0 : i32
    %c0_i32_0 = arith.constant 0 : i32
    %c0_i32_1 = arith.constant 0 : i32
    return %c0_i32, %c0_i32_0 : i32, i32
  }
  func.func @transform_4(%arg0: i32, %arg1: i32) -> (i32, i32) {
    %c0_i32 = arith.constant 0 : i32
    %c0_i32_0 = arith.constant 0 : i32
    %c0_i32_1 = arith.constant 0 : i32
    return %c0_i32, %c0_i32_0 : i32, i32
  }
  func.func @transform_5(%arg0: i32, %arg1: i32) -> (i32, i32, i32) {
    %c0_i32 = arith.constant 0 : i32
    %c0_i32_0 = arith.constant 0 : i32
    return %arg0, %arg1, %c0_i32 : i32, i32, i32
  }
}

module attributes {stable_mosaic.version = 11 : i64} {
  func.func @_transformer_block_kernel(%arg0: i32, %arg1: memref<32x64xf32, #tpu.memory_space<vmem>>, %arg2: memref<1x64xf32, #tpu.memory_space<vmem>>, %arg3: memref<1x64xf32, #tpu.memory_space<vmem>>, %arg4: memref<64x192xbf16, #tpu.memory_space<vmem>>, %arg5: memref<64x64xbf16, #tpu.memory_space<vmem>>, %arg6: memref<1x64xf32, #tpu.memory_space<vmem>>, %arg7: memref<1x64xf32, #tpu.memory_space<vmem>>, %arg8: memref<1x64xf32, #tpu.memory_space<vmem>>, %arg9: memref<64x256xbf16, #tpu.memory_space<vmem>>, %arg10: memref<1x256xf32, #tpu.memory_space<vmem>>, %arg11: memref<256x64xbf16, #tpu.memory_space<vmem>>, %arg12: memref<1x64xf32, #tpu.memory_space<vmem>>, %arg13: memref<32x64xf32, #tpu.memory_space<vmem>>, %arg14: memref<32x192xf32, #tpu.memory_space<vmem>>, %arg15: memref<32x64xf32, #tpu.memory_space<vmem>>) attributes {dimension_semantics = [#tpu.dimension_semantics<parallel>], iteration_bounds = array<i64: 1>, scalar_prefetch = 0 : i64, scratch_operands = 2 : i64, tpu.core_type = #tpu.core_type<tc>, window_params = [{transform_indices = @transform_0, window_bounds = array<i64: 32, 64>}, {pipeline_mode = #tpu.pipeline_mode<synchronous>, transform_indices = @transform_1, window_bounds = array<i64: 1, 64>}, {pipeline_mode = #tpu.pipeline_mode<synchronous>, transform_indices = @transform_2, window_bounds = array<i64: 1, 64>}, {pipeline_mode = #tpu.pipeline_mode<synchronous>, transform_indices = @transform_3, window_bounds = array<i64: 64, 192>}, {pipeline_mode = #tpu.pipeline_mode<synchronous>, transform_indices = @transform_4, window_bounds = array<i64: 64, 64>}, {pipeline_mode = #tpu.pipeline_mode<synchronous>, transform_indices = @transform_5, window_bounds = array<i64: 1, 64>}, {pipeline_mode = #tpu.pipeline_mode<synchronous>, transform_indices = @transform_6, window_bounds = array<i64: 1, 64>}, {pipeline_mode = #tpu.pipeline_mode<synchronous>, transform_indices = @transform_7, window_bounds = array<i64: 1, 64>}, {pipeline_mode = #tpu.pipeline_mode<synchronous>, transform_indices = @transform_8, window_bounds = array<i64: 64, 256>}, {pipeline_mode = #tpu.pipeline_mode<synchronous>, transform_indices = @transform_9, window_bounds = array<i64: 1, 256>}, {pipeline_mode = #tpu.pipeline_mode<synchronous>, transform_indices = @transform_10, window_bounds = array<i64: 256, 64>}, {pipeline_mode = #tpu.pipeline_mode<synchronous>, transform_indices = @transform_11, window_bounds = array<i64: 1, 64>}, {transform_indices = @transform_12, window_bounds = array<i64: 32, 64>}]} {
    %c0 = arith.constant 0 : index
    %c0_0 = arith.constant 0 : index
    %0 = vector.load %arg1[%c0, %c0_0] : memref<32x64xf32, #tpu.memory_space<vmem>>, vector<32x64xf32>
    %cst = arith.constant dense<0.000000e+00> : vector<32xf32>
    %1 = vector.multi_reduction <add>, %0, %cst [1] : vector<32x64xf32> to vector<32xf32>
    %2 = vector.shape_cast %1 : vector<32xf32> to vector<32x1xf32>
    %cst_1 = arith.constant 6.400000e+01 : f32
    %3 = vector.broadcast %cst_1 : f32 to vector<32x1xf32>
    %4 = arith.divf %2, %3 : vector<32x1xf32>
    %5 = vector.broadcast %4 : vector<32x1xf32> to vector<32x64xf32>
    %6 = arith.subf %0, %5 : vector<32x64xf32>
    %7 = arith.mulf %6, %6 : vector<32x64xf32>
    %cst_2 = arith.constant dense<0.000000e+00> : vector<32xf32>
    %8 = vector.multi_reduction <add>, %7, %cst_2 [1] : vector<32x64xf32> to vector<32xf32>
    %9 = vector.shape_cast %8 : vector<32xf32> to vector<32x1xf32>
    %cst_3 = arith.constant 6.400000e+01 : f32
    %10 = vector.broadcast %cst_3 : f32 to vector<32x1xf32>
    %11 = arith.divf %9, %10 : vector<32x1xf32>
    %12 = vector.broadcast %4 : vector<32x1xf32> to vector<32x64xf32>
    %13 = arith.subf %0, %12 : vector<32x64xf32>
    %cst_4 = arith.constant 9.99999974E-6 : f32
    %14 = vector.broadcast %cst_4 : f32 to vector<32x1xf32>
    %15 = arith.addf %11, %14 : vector<32x1xf32>
    %16 = math.rsqrt %15 : vector<32x1xf32>
    %17 = vector.broadcast %16 : vector<32x1xf32> to vector<32x64xf32>
    %18 = arith.mulf %13, %17 : vector<32x64xf32>
    %c0_5 = arith.constant 0 : index
    %c0_6 = arith.constant 0 : index
    %19 = vector.load %arg2[%c0_5, %c0_6] : memref<1x64xf32, #tpu.memory_space<vmem>>, vector<1x64xf32>
    %20 = vector.broadcast %19 : vector<1x64xf32> to vector<32x64xf32>
    %21 = arith.mulf %18, %20 : vector<32x64xf32>
    %c0_7 = arith.constant 0 : index
    %c0_8 = arith.constant 0 : index
    %22 = vector.load %arg3[%c0_7, %c0_8] : memref<1x64xf32, #tpu.memory_space<vmem>>, vector<1x64xf32>
    %23 = vector.broadcast %22 : vector<1x64xf32> to vector<32x64xf32>
    %24 = arith.addf %21, %23 : vector<32x64xf32>
    %25 = arith.truncf %24 : vector<32x64xf32> to vector<32x64xbf16>
    %c0_9 = arith.constant 0 : index
    %c0_10 = arith.constant 0 : index
    %26 = vector.load %arg4[%c0_9, %c0_10] : memref<64x192xbf16, #tpu.memory_space<vmem>>, vector<64x192xbf16>
    %cst_11 = arith.constant dense<0.000000e+00> : vector<32x192xf32>
    %27 = tpu.matmul %25, %26, %cst_11 {dimension_numbers = #tpu.dot_dimension_numbers<[1], [0], [0], [1], [0, 0, 1, 1], [], []>} : vector<32x64xbf16>, vector<64x192xbf16>, vector<32x192xf32> -> vector<32x192xf32>
    %c0_12 = arith.constant 0 : index
    %c0_13 = arith.constant 0 : index
    %28 = vector.load %arg14[%c0_12, %c0_13] : memref<32x192xf32, #tpu.memory_space<vmem>>, vector<32x192xf32>
    tpu.vector_store %arg14[%c0_12, %c0_13], %27 {strides = array<i32>} : memref<32x192xf32, #tpu.memory_space<vmem>>, vector<32x192xf32>,
    %c0_14 = arith.constant 0 : index
    %c0_15 = arith.constant 0 : index
    %29 = vector.load %arg14[%c0_14, %c0_15] : memref<32x192xf32, #tpu.memory_space<vmem>>, vector<16x192xf32>
    %30 = vector.extract_strided_slice %29 {offsets = [0, 0], sizes = [16, 64], strides = [1, 1]} : vector<16x192xf32> to vector<16x64xf32>
    %31 = vector.shape_cast %30 : vector<16x64xf32> to vector<16x4x16xf32>
    %32 = tpu.transpose %31, [1, 0, 2] : vector<16x4x16xf32> -> vector<4x16x16xf32>
    %33 = vector.extract_strided_slice %29 {offsets = [0, 64], sizes = [16, 64], strides = [1, 1]} : vector<16x192xf32> to vector<16x64xf32>
    %34 = vector.shape_cast %33 : vector<16x64xf32> to vector<16x4x16xf32>
    %35 = tpu.transpose %34, [1, 0, 2] : vector<16x4x16xf32> -> vector<4x16x16xf32>
    %36 = vector.extract_strided_slice %29 {offsets = [0, 128], sizes = [16, 64], strides = [1, 1]} : vector<16x192xf32> to vector<16x64xf32>
    %37 = vector.shape_cast %36 : vector<16x64xf32> to vector<16x4x16xf32>
    %38 = tpu.transpose %37, [1, 0, 2] : vector<16x4x16xf32> -> vector<4x16x16xf32>
    %39 = arith.truncf %32 : vector<4x16x16xf32> to vector<4x16x16xbf16>
    %40 = arith.truncf %35 : vector<4x16x16xf32> to vector<4x16x16xbf16>
    %cst_16 = arith.constant dense<0.000000e+00> : vector<4x16x16xf32>
    %41 = tpu.matmul %39, %40, %cst_16 {dimension_numbers = #tpu.dot_dimension_numbers<[2], [2], [1], [1], [0, 0, 0, 1, 1, 1], [0], [0]>} : vector<4x16x16xbf16>, vector<4x16x16xbf16>, vector<4x16x16xf32> -> vector<4x16x16xf32>
    %cst_17 = arith.constant 2.500000e-01 : f32
    %42 = vector.broadcast %cst_17 : f32 to vector<4x16x16xf32>
    %43 = arith.mulf %41, %42 : vector<4x16x16xf32>
    %cst_18 = arith.constant dense<0xFF800000> : vector<4x16xf32>
    %44 = vector.multi_reduction <maximumf>, %43, %cst_18 [2] : vector<4x16x16xf32> to vector<4x16xf32>
    %45 = vector.shape_cast %44 : vector<4x16xf32> to vector<4x16x1xf32>
    %46 = vector.broadcast %45 : vector<4x16x1xf32> to vector<4x16x16xf32>
    %47 = arith.subf %43, %46 : vector<4x16x16xf32>
    %48 = math.exp %47 : vector<4x16x16xf32>
    %cst_19 = arith.constant dense<0.000000e+00> : vector<4x16xf32>
    %49 = vector.multi_reduction <add>, %48, %cst_19 [2] : vector<4x16x16xf32> to vector<4x16xf32>
    %50 = vector.shape_cast %49 : vector<4x16xf32> to vector<4x16x1xf32>
    %51 = tpu.reciprocal %50 {approx = true} : vector<4x16x1xf32> -> vector<4x16x1xf32>
    %52 = vector.broadcast %51 : vector<4x16x1xf32> to vector<4x16x16xf32>
    %53 = arith.mulf %48, %52 : vector<4x16x16xf32>
    %54 = arith.truncf %53 : vector<4x16x16xf32> to vector<4x16x16xbf16>
    %55 = arith.truncf %38 : vector<4x16x16xf32> to vector<4x16x16xbf16>
    %cst_20 = arith.constant dense<0.000000e+00> : vector<4x16x16xf32>
    %56 = tpu.matmul %54, %55, %cst_20 {dimension_numbers = #tpu.dot_dimension_numbers<[2], [1], [1], [2], [0, 0, 0, 1, 1, 2], [0], [0]>} : vector<4x16x16xbf16>, vector<4x16x16xbf16>, vector<4x16x16xf32> -> vector<4x16x16xf32>
    %57 = tpu.transpose %56, [1, 0, 2] : vector<4x16x16xf32> -> vector<16x4x16xf32>
    %58 = vector.shape_cast %57 : vector<16x4x16xf32> to vector<16x64xf32>
    %c0_21 = arith.constant 0 : index
    %c0_22 = arith.constant 0 : index
    %59 = vector.load %arg15[%c0_21, %c0_22] : memref<32x64xf32, #tpu.memory_space<vmem>>, vector<16x64xf32>
    tpu.vector_store %arg15[%c0_21, %c0_22], %58 {strides = array<i32>} : memref<32x64xf32, #tpu.memory_space<vmem>>, vector<16x64xf32>,
    %c16 = arith.constant 16 : index
    %c0_23 = arith.constant 0 : index
    %60 = vector.load %arg14[%c16, %c0_23] : memref<32x192xf32, #tpu.memory_space<vmem>>, vector<16x192xf32>
    %61 = vector.extract_strided_slice %60 {offsets = [0, 0], sizes = [16, 64], strides = [1, 1]} : vector<16x192xf32> to vector<16x64xf32>
    %62 = vector.shape_cast %61 : vector<16x64xf32> to vector<16x4x16xf32>
    %63 = tpu.transpose %62, [1, 0, 2] : vector<16x4x16xf32> -> vector<4x16x16xf32>
    %64 = vector.extract_strided_slice %60 {offsets = [0, 64], sizes = [16, 64], strides = [1, 1]} : vector<16x192xf32> to vector<16x64xf32>
    %65 = vector.shape_cast %64 : vector<16x64xf32> to vector<16x4x16xf32>
    %66 = tpu.transpose %65, [1, 0, 2] : vector<16x4x16xf32> -> vector<4x16x16xf32>
    %67 = vector.extract_strided_slice %60 {offsets = [0, 128], sizes = [16, 64], strides = [1, 1]} : vector<16x192xf32> to vector<16x64xf32>
    %68 = vector.shape_cast %67 : vector<16x64xf32> to vector<16x4x16xf32>
    %69 = tpu.transpose %68, [1, 0, 2] : vector<16x4x16xf32> -> vector<4x16x16xf32>
    %70 = arith.truncf %63 : vector<4x16x16xf32> to vector<4x16x16xbf16>
    %71 = arith.truncf %66 : vector<4x16x16xf32> to vector<4x16x16xbf16>
    %cst_24 = arith.constant dense<0.000000e+00> : vector<4x16x16xf32>
    %72 = tpu.matmul %70, %71, %cst_24 {dimension_numbers = #tpu.dot_dimension_numbers<[2], [2], [1], [1], [0, 0, 0, 1, 1, 1], [0], [0]>} : vector<4x16x16xbf16>, vector<4x16x16xbf16>, vector<4x16x16xf32> -> vector<4x16x16xf32>
    %cst_25 = arith.constant 2.500000e-01 : f32
    %73 = vector.broadcast %cst_25 : f32 to vector<4x16x16xf32>
    %74 = arith.mulf %72, %73 : vector<4x16x16xf32>
    %cst_26 = arith.constant dense<0xFF800000> : vector<4x16xf32>
    %75 = vector.multi_reduction <maximumf>, %74, %cst_26 [2] : vector<4x16x16xf32> to vector<4x16xf32>
    %76 = vector.shape_cast %75 : vector<4x16xf32> to vector<4x16x1xf32>
    %77 = vector.broadcast %76 : vector<4x16x1xf32> to vector<4x16x16xf32>
    %78 = arith.subf %74, %77 : vector<4x16x16xf32>
    %79 = math.exp %78 : vector<4x16x16xf32>
    %cst_27 = arith.constant dense<0.000000e+00> : vector<4x16xf32>
    %80 = vector.multi_reduction <add>, %79, %cst_27 [2] : vector<4x16x16xf32> to vector<4x16xf32>
    %81 = vector.shape_cast %80 : vector<4x16xf32> to vector<4x16x1xf32>
    %82 = tpu.reciprocal %81 {approx = true} : vector<4x16x1xf32> -> vector<4x16x1xf32>
    %83 = vector.broadcast %82 : vector<4x16x1xf32> to vector<4x16x16xf32>
    %84 = arith.mulf %79, %83 : vector<4x16x16xf32>
    %85 = arith.truncf %84 : vector<4x16x16xf32> to vector<4x16x16xbf16>
    %86 = arith.truncf %69 : vector<4x16x16xf32> to vector<4x16x16xbf16>
    %cst_28 = arith.constant dense<0.000000e+00> : vector<4x16x16xf32>
    %87 = tpu.matmul %85, %86, %cst_28 {dimension_numbers = #tpu.dot_dimension_numbers<[2], [1], [1], [2], [0, 0, 0, 1, 1, 2], [0], [0]>} : vector<4x16x16xbf16>, vector<4x16x16xbf16>, vector<4x16x16xf32> -> vector<4x16x16xf32>
    %88 = tpu.transpose %87, [1, 0, 2] : vector<4x16x16xf32> -> vector<16x4x16xf32>
    %89 = vector.shape_cast %88 : vector<16x4x16xf32> to vector<16x64xf32>
    %c16_29 = arith.constant 16 : index
    %c0_30 = arith.constant 0 : index
    %90 = vector.load %arg15[%c16_29, %c0_30] : memref<32x64xf32, #tpu.memory_space<vmem>>, vector<16x64xf32>
    tpu.vector_store %arg15[%c16_29, %c0_30], %89 {strides = array<i32>} : memref<32x64xf32, #tpu.memory_space<vmem>>, vector<16x64xf32>,
    %c0_31 = arith.constant 0 : index
    %c0_32 = arith.constant 0 : index
    %91 = vector.load %arg15[%c0_31, %c0_32] : memref<32x64xf32, #tpu.memory_space<vmem>>, vector<32x64xf32>
    %92 = arith.truncf %91 : vector<32x64xf32> to vector<32x64xbf16>
    %c0_33 = arith.constant 0 : index
    %c0_34 = arith.constant 0 : index
    %93 = vector.load %arg5[%c0_33, %c0_34] : memref<64x64xbf16, #tpu.memory_space<vmem>>, vector<64x64xbf16>
    %cst_35 = arith.constant dense<0.000000e+00> : vector<32x64xf32>
    %94 = tpu.matmul %92, %93, %cst_35 {dimension_numbers = #tpu.dot_dimension_numbers<[1], [0], [0], [1], [0, 0, 1, 1], [], []>} : vector<32x64xbf16>, vector<64x64xbf16>, vector<32x64xf32> -> vector<32x64xf32>
    %c0_36 = arith.constant 0 : index
    %c0_37 = arith.constant 0 : index
    %95 = vector.load %arg6[%c0_36, %c0_37] : memref<1x64xf32, #tpu.memory_space<vmem>>, vector<1x64xf32>
    %96 = vector.broadcast %95 : vector<1x64xf32> to vector<32x64xf32>
    %97 = arith.addf %94, %96 : vector<32x64xf32>
    %98 = arith.addf %0, %97 : vector<32x64xf32>
    %cst_38 = arith.constant dense<0.000000e+00> : vector<32xf32>
    %99 = vector.multi_reduction <add>, %98, %cst_38 [1] : vector<32x64xf32> to vector<32xf32>
    %100 = vector.shape_cast %99 : vector<32xf32> to vector<32x1xf32>
    %cst_39 = arith.constant 6.400000e+01 : f32
    %101 = vector.broadcast %cst_39 : f32 to vector<32x1xf32>
    %102 = arith.divf %100, %101 : vector<32x1xf32>
    %103 = vector.broadcast %102 : vector<32x1xf32> to vector<32x64xf32>
    %104 = arith.subf %98, %103 : vector<32x64xf32>
    %105 = arith.mulf %104, %104 : vector<32x64xf32>
    %cst_40 = arith.constant dense<0.000000e+00> : vector<32xf32>
    %106 = vector.multi_reduction <add>, %105, %cst_40 [1] : vector<32x64xf32> to vector<32xf32>
    %107 = vector.shape_cast %106 : vector<32xf32> to vector<32x1xf32>
    %cst_41 = arith.constant 6.400000e+01 : f32
    %108 = vector.broadcast %cst_41 : f32 to vector<32x1xf32>
    %109 = arith.divf %107, %108 : vector<32x1xf32>
    %110 = vector.broadcast %102 : vector<32x1xf32> to vector<32x64xf32>
    %111 = arith.subf %98, %110 : vector<32x64xf32>
    %cst_42 = arith.constant 9.99999974E-6 : f32
    %112 = vector.broadcast %cst_42 : f32 to vector<32x1xf32>
    %113 = arith.addf %109, %112 : vector<32x1xf32>
    %114 = math.rsqrt %113 : vector<32x1xf32>
    %115 = vector.broadcast %114 : vector<32x1xf32> to vector<32x64xf32>
    %116 = arith.mulf %111, %115 : vector<32x64xf32>
    %c0_43 = arith.constant 0 : index
    %c0_44 = arith.constant 0 : index
    %117 = vector.load %arg7[%c0_43, %c0_44] : memref<1x64xf32, #tpu.memory_space<vmem>>, vector<1x64xf32>
    %118 = vector.broadcast %117 : vector<1x64xf32> to vector<32x64xf32>
    %119 = arith.mulf %116, %118 : vector<32x64xf32>
    %c0_45 = arith.constant 0 : index
    %c0_46 = arith.constant 0 : index
    %120 = vector.load %arg8[%c0_45, %c0_46] : memref<1x64xf32, #tpu.memory_space<vmem>>, vector<1x64xf32>
    %121 = vector.broadcast %120 : vector<1x64xf32> to vector<32x64xf32>
    %122 = arith.addf %119, %121 : vector<32x64xf32>
    %123 = arith.truncf %122 : vector<32x64xf32> to vector<32x64xbf16>
    %c0_47 = arith.constant 0 : index
    %c0_48 = arith.constant 0 : index
    %124 = vector.load %arg9[%c0_47, %c0_48] : memref<64x256xbf16, #tpu.memory_space<vmem>>, vector<64x256xbf16>
    %cst_49 = arith.constant dense<0.000000e+00> : vector<32x256xf32>
    %125 = tpu.matmul %123, %124, %cst_49 {dimension_numbers = #tpu.dot_dimension_numbers<[1], [0], [0], [1], [0, 0, 1, 1], [], []>} : vector<32x64xbf16>, vector<64x256xbf16>, vector<32x256xf32> -> vector<32x256xf32>
    %c0_50 = arith.constant 0 : index
    %c0_51 = arith.constant 0 : index
    %126 = vector.load %arg10[%c0_50, %c0_51] : memref<1x256xf32, #tpu.memory_space<vmem>>, vector<1x256xf32>
    %127 = vector.broadcast %126 : vector<1x256xf32> to vector<32x256xf32>
    %128 = arith.addf %125, %127 : vector<32x256xf32>
    %129 = arith.mulf %128, %128 : vector<32x256xf32>
    %130 = arith.mulf %128, %129 : vector<32x256xf32>
    %cst_52 = arith.constant 4.471500e-02 : f32
    %131 = vector.broadcast %cst_52 : f32 to vector<32x256xf32>
    %132 = arith.mulf %131, %130 : vector<32x256xf32>
    %133 = arith.addf %128, %132 : vector<32x256xf32>
    %cst_53 = arith.constant 0.797884583 : f32
    %134 = vector.broadcast %cst_53 : f32 to vector<32x256xf32>
    %135 = arith.mulf %134, %133 : vector<32x256xf32>
    %136 = math.tanh %135 : vector<32x256xf32>
    %cst_54 = arith.constant 1.000000e+00 : f32
    %137 = vector.broadcast %cst_54 : f32 to vector<32x256xf32>
    %138 = arith.addf %137, %136 : vector<32x256xf32>
    %cst_55 = arith.constant 5.000000e-01 : f32
    %139 = vector.broadcast %cst_55 : f32 to vector<32x256xf32>
    %140 = arith.mulf %139, %138 : vector<32x256xf32>
    %141 = arith.mulf %128, %140 : vector<32x256xf32>
    %142 = arith.truncf %141 : vector<32x256xf32> to vector<32x256xbf16>
    %c0_56 = arith.constant 0 : index
    %c0_57 = arith.constant 0 : index
    %143 = vector.load %arg11[%c0_56, %c0_57] : memref<256x64xbf16, #tpu.memory_space<vmem>>, vector<256x64xbf16>
    %cst_58 = arith.constant dense<0.000000e+00> : vector<32x64xf32>
    %144 = tpu.matmul %142, %143, %cst_58 {dimension_numbers = #tpu.dot_dimension_numbers<[1], [0], [0], [1], [0, 0, 1, 1], [], []>} : vector<32x256xbf16>, vector<256x64xbf16>, vector<32x64xf32> -> vector<32x64xf32>
    %c0_59 = arith.constant 0 : index
    %c0_60 = arith.constant 0 : index
    %145 = vector.load %arg12[%c0_59, %c0_60] : memref<1x64xf32, #tpu.memory_space<vmem>>, vector<1x64xf32>
    %146 = vector.broadcast %145 : vector<1x64xf32> to vector<32x64xf32>
    %147 = arith.addf %144, %146 : vector<32x64xf32>
    %148 = arith.addf %98, %147 : vector<32x64xf32>
    %c0_61 = arith.constant 0 : index
    %c0_62 = arith.constant 0 : index
    %149 = vector.load %arg13[%c0_61, %c0_62] : memref<32x64xf32, #tpu.memory_space<vmem>>, vector<32x64xf32>
    tpu.vector_store %arg13[%c0_61, %c0_62], %148 {strides = array<i32>} : memref<32x64xf32, #tpu.memory_space<vmem>>, vector<32x64xf32>,
    return
  }
  func.func @transform_0(%arg0: i32) -> (i32, i32) {
    %c0_i32 = arith.constant 0 : i32
    %c0_i32_0 = arith.constant 0 : i32
    return %arg0, %c0_i32 : i32, i32
  }
  func.func @transform_1(%arg0: i32) -> (i32, i32) {
    %c0_i32 = arith.constant 0 : i32
    %c0_i32_0 = arith.constant 0 : i32
    %c0_i32_1 = arith.constant 0 : i32
    return %c0_i32, %c0_i32_0 : i32, i32
  }
  func.func @transform_2(%arg0: i32) -> (i32, i32) {
    %c0_i32 = arith.constant 0 : i32
    %c0_i32_0 = arith.constant 0 : i32
    %c0_i32_1 = arith.constant 0 : i32
    return %c0_i32, %c0_i32_0 : i32, i32
  }
  func.func @transform_3(%arg0: i32) -> (i32, i32) {
    %c0_i32 = arith.constant 0 : i32
    %c0_i32_0 = arith.constant 0 : i32
    %c0_i32_1 = arith.constant 0 : i32
    return %c0_i32, %c0_i32_0 : i32, i32
  }
  func.func @transform_4(%arg0: i32) -> (i32, i32) {
    %c0_i32 = arith.constant 0 : i32
    %c0_i32_0 = arith.constant 0 : i32
    %c0_i32_1 = arith.constant 0 : i32
    return %c0_i32, %c0_i32_0 : i32, i32
  }
  func.func @transform_5(%arg0: i32) -> (i32, i32) {
    %c0_i32 = arith.constant 0 : i32
    %c0_i32_0 = arith.constant 0 : i32
    %c0_i32_1 = arith.constant 0 : i32
    return %c0_i32, %c0_i32_0 : i32, i32
  }
  func.func @transform_6(%arg0: i32) -> (i32, i32) {
    %c0_i32 = arith.constant 0 : i32
    %c0_i32_0 = arith.constant 0 : i32
    %c0_i32_1 = arith.constant 0 : i32
    return %c0_i32, %c0_i32_0 : i32, i32
  }
  func.func @transform_7(%arg0: i32) -> (i32, i32) {
    %c0_i32 = arith.constant 0 : i32
    %c0_i32_0 = arith.constant 0 : i32
    %c0_i32_1 = arith.constant 0 : i32
    return %c0_i32, %c0_i32_0 : i32, i32
  }
  func.func @transform_8(%arg0: i32) -> (i32, i32) {
    %c0_i32 = arith.constant 0 : i32
    %c0_i32_0 = arith.constant 0 : i32
    %c0_i32_1 = arith.constant 0 : i32
    return %c0_i32, %c0_i32_0 : i32, i32
  }
  func.func @transform_9(%arg0: i32) -> (i32, i32) {
    %c0_i32 = arith.constant 0 : i32
    %c0_i32_0 = arith.constant 0 : i32
    %c0_i32_1 = arith.constant 0 : i32
    return %c0_i32, %c0_i32_0 : i32, i32
  }
  func.func @transform_10(%arg0: i32) -> (i32, i32) {
    %c0_i32 = arith.constant 0 : i32
    %c0_i32_0 = arith.constant 0 : i32
    %c0_i32_1 = arith.constant 0 : i32
    return %c0_i32, %c0_i32_0 : i32, i32
  }
  func.func @transform_11(%arg0: i32) -> (i32, i32) {
    %c0_i32 = arith.constant 0 : i32
    %c0_i32_0 = arith.constant 0 : i32
    %c0_i32_1 = arith.constant 0 : i32
    return %c0_i32, %c0_i32_0 : i32, i32
  }
  func.func @transform_12(%arg0: i32) -> (i32, i32) {
    %c0_i32 = arith.constant 0 : i32
    %c0_i32_0 = arith.constant 0 : i32
    return %arg0, %c0_i32 : i32, i32
  }
}

</mosaic_0001>

<llo_original>
// kernel: tpu_custom_call.1
$region0: #{tpu_custom_call.1}
  #allocation0 [shape = 'u32[]', space=smem, size = 0x4, offset = 0x4, fixed_abs, tag = 'smem constant byte address 0x4 - core index']
  #allocation1 [shape = 'u32[72,128]{1,0:T(1,128)}', space=vmem, size = 0x9000, scoped, tag = 'internal scratch']
  %s0 = inlined_call_operand.hbm [shape: f32[8,128], index: 0, kind: input, shape index: {}]
  %s1 = inlined_call_operand.hbm [shape: f32[8,128], index: 1, kind: output, shape index: {}]
  %s2 = sld [smem:[#allocation0]]
  $region18: #{tpu_custom_call.1} parent=0
    _
  %s4 = ssub.s32 1, %s2
  %s5 = scalar_select 0, %s4, %s2
  $region1: #{tpu_custom_call.1} parent=0
    #allocation2 [shape = 'u8[4096]{0}', space=vmem, size = 0x1000, scoped, tag = 'input window, operand 0, single buffered']
    #allocation3 [shape = 's32[1]{0}', space=sflag, size = 0x4, scoped, tag = 'scoped memory for tpu_custom_call.1']
    #allocation4 [shape = 's32[1]{0}', space=sflag, size = 0x4, scoped, tag = 'scoped memory for tpu_custom_call.1']
    #allocation5 [shape = 'u8[4096]{0}', space=vmem, size = 0x1000, scoped, tag = 'output window, operand 0, single buffered']
    %6 = vsyncpa [#allocation3], 0
    %7 = vsyncpa [#allocation4], 0
    // Predicated region
    $region2: #{tpu_custom_call.1} parent=1 // pred_check
      _
    $region3: #{tpu_custom_call.1} parent=1 // pred_check_branch
      %9 = sbr.rel (0) target = $region5
    $region4: #{tpu_custom_call.1} parent=1 // pred_region
      %11 = vsyncadd [#allocation3], 0
      %s13 = sshll.u32 %s0, 4
      %s14 = int_to_ptr.hbm [resolvable:$true] %s13
      %s15 = sshll.u32 [#allocation2], 4
      %s16 = int_to_ptr.vmem [resolvable:$true] %s15
      %18 = dma.hbm_to_vmem [thread:$0]  %s14, 128, %s16, [#allocation3]
    $region5: #{tpu_custom_call.1} parent=1 // pred_fallthru
      _
    // Predicated region
    $region6: #{tpu_custom_call.1} parent=1 // pred_check
      _
    $region7: #{tpu_custom_call.1} parent=1 // pred_check_branch
      %20 = sbr.rel (0) target = $region9
    $region8: #{tpu_custom_call.1} parent=1 // pred_region
      %22 = dma.done [#allocation3], 128
    $region9: #{tpu_custom_call.1} parent=1 // pred_fallthru
      _
    %v23 = vld [vmem:[#allocation2] sm:$0xff]
    %v24 = vadd.f32 %v23, 1.0
    %25 = vst [vmem:[#allocation5] sm:$0xff] %v24
    // Predicated region
    $region10: #{tpu_custom_call.1} parent=1 // pred_check
      _
    $region11: #{tpu_custom_call.1} parent=1 // pred_check_branch
      %27 = sbr.rel (0) target = $region13
    $region12: #{tpu_custom_call.1} parent=1 // pred_region
      %29 = vsyncadd [#allocation4], 0
      %s31 = sshll.u32 [#allocation5], 4
      %s32 = int_to_ptr.vmem [resolvable:$true] %s31
      %s33 = sshll.u32 %s1, 4
      %s34 = int_to_ptr.hbm [resolvable:$true] %s33
      %36 = dma.vmem_to_hbm [thread:$0]  %s32, 128, %s34, [#allocation4]
    $region13: #{tpu_custom_call.1} parent=1 // pred_fallthru
      _
    // Predicated region
    $region14: #{tpu_custom_call.1} parent=1 // pred_check
      _
    $region15: #{tpu_custom_call.1} parent=1 // pred_check_branch
      %38 = sbr.rel (0) target = $region17
    $region16: #{tpu_custom_call.1} parent=1 // pred_region
      %40 = dma.done [#allocation4], 128
    $region17: #{tpu_custom_call.1} parent=1 // pred_fallthru
      _
    %41 = vsyncpa [#allocation3], 1
    %42 = vsyncpa [#allocation4], 1

// kernel: mae_forward.6
$region0: #{mae_forward.6}
  #allocation0 [shape = 'u32[]', space=smem, size = 0x4, offset = 0x4, fixed_abs, tag = 'smem constant byte address 0x4 - core index']
  #allocation1 [shape = 'u32[72,128]{1,0:T(1,128)}', space=vmem, size = 0x9000, scoped, tag = 'internal scratch']
  %s0 = inlined_call_operand.vmem [shape: f32[2,16,256], index: 0, kind: input, shape index: {}]
  %s1 = inlined_call_operand.vmem [shape: bf16[256,32], index: 1, kind: input, shape index: {}]
  %s2 = inlined_call_operand.vmem [shape: f32[1,32], index: 2, kind: input, shape index: {}]
  %s3 = inlined_call_operand.vmem [shape: f32[1,16,32], index: 3, kind: input, shape index: {}]
  %s4 = inlined_call_operand.vmem [shape: f32[2,16,32], index: 4, kind: output, shape index: {}]
  %s5 = sld [smem:[#allocation0]]
  $region49: #{mae_forward.6} parent=0
    _
  %s7 = ssub.s32 1, %s5
  %s8 = scalar_select 0, %s7, %s5
  loop: start=0, step=1, limit=4
  $region2: #{mae_forward.6} parent=0 // loop_pre_header
    _
  $region3: #{mae_forward.6} parent=0 // loop_header
    %s10 = sphi 0, %s14
    %p11 = scmp.ge.s32.totalorder %s10, 4
    %s17 = sphi 0, %s29
    %s18 = sphi 0, %s25
    %s19 = sphi 0, %s17
    %s20 = sphi 0, %s18
    %s21 = sphi 0, %s19
    %s22 = sphi 0, %s20
    %s34 = sphi 0, %s36
    %s37 = sphi 0, %s34
    %s38 = sphi 0, %s37
    %s54 = sphi 0, %s38
    %s58 = sphi 0, %s58
    %s60 = sphi 0, %s58
    %s61 = sphi 0, %s60
    %s75 = sphi 0, %s61
    %s79 = sphi 0, %s79
    %s81 = sphi 0, %s79
    %s82 = sphi 0, %s81
    %s96 = sphi 0, %s82
    %s102 = sphi 0, %s104
    %s105 = sphi 0, %s102
    %s106 = sphi 0, %s105
    %s122 = sphi 0, %s106
    %s130 = sphi 0, %s132
    %s133 = sphi 0, %s130
    %s134 = sphi 0, %s133
    %s150 = sphi 0, %s134
  $region4: #{mae_forward.6} parent=0 // loop_header_branch
    %13 = sbr.rel (%p11) target = $region8
  $region5: #{mae_forward.6} parent=0 // loop_body
    %s15 = ssub.s32 %s10, 1
    %s16 = ssub.s32 %s10, 2
    %s23 = sadd.s32 1, %s18
    %p24 = scmp.ge.s32.totalorder %s23, 1
    %s25 = scalar_select %p24, 0, %s23
    %s26 = sadd.s32 1, %s17
    %s27 = scalar_select %p24, %s26, %s17
    %p28 = scmp.ge.s32.totalorder %s27, 2
    %s29 = scalar_select %p28, 0, %s27
    %s30 = ssub.s32 %s17, %s29
    %s31 = ssub.s32 %s18, %s25
    %s32 = sor.u32 %s30, %s31
    %p33 = scmp.eq.s32.totalorder %s32, 0
    %s35 = sadd.s32 %s34, 1
    %s36 = scalar_select %p33, %s34, %s35
    %p39 = pneg %p33
    %p40 = scmp.eq.s32.totalorder %s10, 1
    %p41 = por %p39, %p40
    %p42 = scmp.ne.s32.totalorder %s34, %s37
    %p43 = scmp.eq.s32.totalorder %s10, 0
    %p44 = por %p42, %p43
    %p45 = scmp.ne.s32.totalorder %s34, %s37
    %p46 = scmp.eq.s32.totalorder %s15, 1
    %p47 = por %p45, %p46
    %p48 = scmp.ne.s32.totalorder %s37, %s38
    %p49 = scmp.eq.s32.totalorder %s15, 0
    %p50 = por %p48, %p49
    %p51 = scmp.ne.s32.totalorder %s37, %s38
    %p52 = scmp.eq.s32.totalorder %s16, 1
    %p53 = por %p51, %p52
    %p55 = scmp.ne.s32.totalorder %s38, %s54
    %p56 = scmp.eq.s32.totalorder %s16, 0
    %p57 = por %p55, %p56
    %s59 = sadd.s32 %s58, 1
    %p62 = scmp.eq.s32.totalorder %s10, 1
    %p63 = scmp.ne.s32.totalorder %s58, %s60
    %p64 = scmp.eq.s32.totalorder %s10, 0
    %p65 = por %p63, %p64
    %p66 = scmp.ne.s32.totalorder %s58, %s60
    %p67 = scmp.eq.s32.totalorder %s15, 1
    %p68 = por %p66, %p67
    %p69 = scmp.ne.s32.totalorder %s60, %s61
    %p70 = scmp.eq.s32.totalorder %s15, 0
    %p71 = por %p69, %p70
    %p72 = scmp.ne.s32.totalorder %s60, %s61
    %p73 = scmp.eq.s32.totalorder %s16, 1
    %p74 = por %p72, %p73
    %p76 = scmp.ne.s32.totalorder %s61, %s75
    %p77 = scmp.eq.s32.totalorder %s16, 0
    %p78 = por %p76, %p77
    %s80 = sadd.s32 %s79, 1
    %p83 = scmp.eq.s32.totalorder %s10, 1
    %p84 = scmp.ne.s32.totalorder %s79, %s81
    %p85 = scmp.eq.s32.totalorder %s10, 0
    %p86 = por %p84, %p85
    %p87 = scmp.ne.s32.totalorder %s79, %s81
    %p88 = scmp.eq.s32.totalorder %s15, 1
    %p89 = por %p87, %p88
    %p90 = scmp.ne.s32.totalorder %s81, %s82
    %p91 = scmp.eq.s32.totalorder %s15, 0
    %p92 = por %p90, %p91
    %p93 = scmp.ne.s32.totalorder %s81, %s82
    %p94 = scmp.eq.s32.totalorder %s16, 1
    %p95 = por %p93, %p94
    %p97 = scmp.ne.s32.totalorder %s82, %s96
    %p98 = scmp.eq.s32.totalorder %s16, 0
    %p99 = por %p97, %p98
    %s100 = ssub.s32 %s18, %s25
    %p101 = scmp.eq.s32.totalorder %s100, 0
    %s103 = sadd.s32 %s102, 1
    %s104 = scalar_select %p101, %s102, %s103
    %p107 = pneg %p101
    %p108 = scmp.eq.s32.totalorder %s10, 1
    %p109 = por %p107, %p108
    %p110 = scmp.ne.s32.totalorder %s102, %s105
    %p111 = scmp.eq.s32.totalorder %s10, 0
    %p112 = por %p110, %p111
    %p113 = scmp.ne.s32.totalorder %s102, %s105
    %p114 = scmp.eq.s32.totalorder %s15, 1
    %p115 = por %p113, %p114
    %p116 = scmp.ne.s32.totalorder %s105, %s106
    %p117 = scmp.eq.s32.totalorder %s15, 0
    %p118 = por %p116, %p117
    %p119 = scmp.ne.s32.totalorder %s105, %s106
    %p120 = scmp.eq.s32.totalorder %s16, 1
    %p121 = por %p119, %p120
    %p123 = scmp.ne.s32.totalorder %s106, %s122
    %p124 = scmp.eq.s32.totalorder %s16, 0
    %p125 = por %p123, %p124
    %s126 = ssub.s32 %s17, %s29
    %s127 = ssub.s32 %s18, %s25
    %s128 = sor.u32 %s126, %s127
    %p129 = scmp.eq.s32.totalorder %s128, 0
    %s131 = sadd.s32 %s130, 1
    %s132 = scalar_select %p129, %s130, %s131
    %p135 = pneg %p129
    %p136 = scmp.eq.s32.totalorder %s10, 1
    %p137 = por %p135, %p136
    %p138 = scmp.ne.s32.totalorder %s130, %s133
    %p139 = scmp.eq.s32.totalorder %s10, 0
    %p140 = por %p138, %p139
    %p141 = scmp.ne.s32.totalorder %s130, %s133
    %p142 = scmp.eq.s32.totalorder %s15, 1
    %p143 = por %p141, %p142
    %p144 = scmp.ne.s32.totalorder %s133, %s134
    %p145 = scmp.eq.s32.totalorder %s15, 0
    %p146 = por %p144, %p145
    %p147 = scmp.ne.s32.totalorder %s133, %s134
    %p148 = scmp.eq.s32.totalorder %s16, 1
    %p149 = por %p147, %p148
    %p151 = scmp.ne.s32.totalorder %s134, %s150
    %p152 = scmp.eq.s32.totalorder %s16, 0
    %p153 = por %p151, %p152
    %p154 = scmp.le.s32.totalorder 1, %s10
    %p155 = scmp.lt.s32.totalorder %s10, 3
    %p156 = pnand %p154, %p155
    %p157 = pneg %p156
    // Predicated region
    $region9: #{mae_forward.6} parent=5 // pred_check
      _
    $region10: #{mae_forward.6} parent=5 // pred_check_branch
      %159 = sbr.rel (%p156) target = $region12
    $region11: #{mae_forward.6} parent=5 // pred_region
      %s160 = ssub.s32 %s10, 1
      // Predicated region
      $region13: #{mae_forward.6} parent=11 // pred_check
        %p161 = pneg %p71
      $region14: #{mae_forward.6} parent=11 // pred_check_branch
        %163 = sbr.rel (%p161) target = $region16
      $region15: #{mae_forward.6} parent=11 // pred_region
        _
      $region16: #{mae_forward.6} parent=11 // pred_fallthru
        _
      // Predicated region
      $region17: #{mae_forward.6} parent=11 // pred_check
        %p164 = pneg %p92
      $region18: #{mae_forward.6} parent=11 // pred_check_branch
        %166 = sbr.rel (%p164) target = $region20
      $region19: #{mae_forward.6} parent=11 // pred_region
        _
      $region20: #{mae_forward.6} parent=11 // pred_fallthru
        _
      // Predicated region
      $region21: #{mae_forward.6} parent=11 // pred_check
        %p167 = pneg %p118
      $region22: #{mae_forward.6} parent=11 // pred_check_branch
        %169 = sbr.rel (%p167) target = $region24
      $region23: #{mae_forward.6} parent=11 // pred_region
        %s170 = smul.u32 2, %s20
        %p171 = scmp.lt.s32.totalorder %s170, 1
        %s172 = scalar_select %p171, %s170, 1
        %s173 = smul.addr %s172, 8
        %s174 = scalar_lea.vmem %s3, %s173
        %s175 = smul.u32 2, %s20
      $region24: #{mae_forward.6} parent=11 // pred_fallthru
        _
    $region12: #{mae_forward.6} parent=5 // pred_fallthru
      _
    %p176 = scmp.lt.s32.totalorder %s10, 2
    // Predicated region
    $region25: #{mae_forward.6} parent=5 // pred_check
      %p177 = pneg %p176
    $region26: #{mae_forward.6} parent=5 // pred_check_branch
      %179 = sbr.rel (%p177) target = $region28
    $region27: #{mae_forward.6} parent=5 // pred_region
      // Predicated region
      $region29: #{mae_forward.6} parent=27 // pred_check
        %p180 = pneg %p44
      $region30: #{mae_forward.6} parent=27 // pred_check_branch
        %182 = sbr.rel (%p180) target = $region32
      $region31: #{mae_forward.6} parent=27 // pred_region
        %s183 = smul.u32 2, %s18
        %p184 = scmp.lt.s32.totalorder %s17, 1
        %s185 = scalar_select %p184, %s17, 1
        %p186 = scmp.lt.s32.totalorder %s183, 1
        %s187 = scalar_select %p186, %s183, 1
        %s188 = smul.addr %s187, 2
        %s189 = smul.addr %s185, 4
        %s190 = sadd.s32 %s188, %s189
        %s191 = smul.addr %s190, 8
        %s192 = scalar_lea.vmem %s0, %s191
        %s193 = smul.u32 2, %s18
      $region32: #{mae_forward.6} parent=27 // pred_fallthru
        _
    $region28: #{mae_forward.6} parent=5 // pred_fallthru
      _
    %p194 = scmp.le.s32.totalorder 1, %s10
    %p195 = scmp.lt.s32.totalorder %s10, 3
    %p196 = pnand %p194, %p195
    %p197 = pneg %p196
    // Predicated region
    $region33: #{mae_forward.6} parent=5 // pred_check
      _
    $region34: #{mae_forward.6} parent=5 // pred_check_branch
      %199 = sbr.rel (%p196) target = $region36
    $region35: #{mae_forward.6} parent=5 // pred_region
      %s200 = ssub.s32 %s10, 1
      %s201 = smul.u32 2, %s20
      %p202 = scmp.lt.s32.totalorder %s19, 1
      %s203 = scalar_select %p202, %s19, 1
      %p204 = scmp.lt.s32.totalorder %s201, 1
      %s205 = scalar_select %p204, %s201, 1
      %s206 = smul.addr %s205, 2
      %s207 = smul.addr %s203, 4
      %s208 = sadd.s32 %s206, %s207
      %s209 = smul.addr %s208, 8
      %s210 = scalar_lea.vmem %s0, %s209
      %p211 = pneg %p50
      %p212 = pneg %p47
      %p213 = pneg %p71
      %p214 = pneg %p68
      %p215 = pneg %p92
      %p216 = pneg %p89
      %s217 = smul.u32 2, %s20
      %p218 = scmp.lt.s32.totalorder %s217, 1
      %s219 = scalar_select %p218, %s217, 1
      %s220 = smul.addr %s219, 8
      %s221 = scalar_lea.vmem %s3, %s220
      %p222 = pneg %p118
      %p223 = pneg %p115
      %p224 = pneg %p146
      %p225 = pneg %p143
      %s226 = smul.u32 2, %s20
      %p227 = scmp.lt.s32.totalorder %s19, 1
      %s228 = scalar_select %p227, %s19, 1
      %p229 = scmp.lt.s32.totalorder %s226, 1
      %s230 = scalar_select %p229, %s226, 1
      %s231 = smul.addr %s228, 2
      %s232 = sadd.s32 %s230, %s231
      %s233 = smul.addr %s232, 8
      %s234 = scalar_lea.vmem %s4, %s233
      %s235 = smul.u32 2, %s20
      %p236 = scmp.lt.s32.totalorder %s19, 1
      %s237 = scalar_select %p236, %s19, 1
      %p238 = scmp.lt.s32.totalorder %s235, 1
      %s239 = scalar_select %p238, %s235, 1
      %s240 = smul.addr %s239, 2
      %s241 = smul.addr %s237, 4
      %s242 = sadd.s32 %s240, %s241
      %s243 = smul.addr %s242, 8
      %s244 = scalar_lea.vmem %s0, %s243
      %s245 = smul.u32 2, %s20
      %s246 = smul.u32 2, %s20
      %p247 = scmp.lt.s32.totalorder %s246, 1
      %s248 = scalar_select %p247, %s246, 1
      %s249 = smul.addr %s248, 8
      %s250 = scalar_lea.vmem %s3, %s249
      %s251 = smul.u32 2, %s20
      %s252 = smul.u32 2, %s20
      %p253 = scmp.lt.s32.totalorder %s19, 1
      %s254 = scalar_select %p253, %s19, 1
      %p255 = scmp.lt.s32.totalorder %s252, 1
      %s256 = scalar_select %p255, %s252, 1
      %s257 = smul.addr %s254, 2
      %s258 = sadd.s32 %s256, %s257
      %s259 = smul.addr %s258, 8
      %s260 = scalar_lea.vmem %s4, %s259
      %s261 = smul.u32 2, %s20
      %v262 = vld [vmem:[%s244] sm:$0xff]
      %v263 = vld [vmem:[%s244 + $0x8] sm:$0xff]
      %v264 = vld [vmem:[%s244 + $0x10] sm:$0xff]
      %v265 = vld [vmem:[%s244 + $0x18] sm:$0xff]
      %v266 = vpack.c.bf16 %v264, %v262
      %v267 = vpack.c.bf16 %v265, %v263
      %v268 = vld [vmem:[%s1] sm:$0xf]
      %v269 = vld [vmem:[%s1 + $0x4] sm:$0xf]
      %v270 = vld [vmem:[%s1 + $0x8] sm:$0xf]
      %v271 = vld [vmem:[%s1 + $0xc] sm:$0xf]
      %v272 = vld [vmem:[%s1 + $0x10] sm:$0xf]
      %v273 = vld [vmem:[%s1 + $0x14] sm:$0xf]
      %v274 = vld [vmem:[%s1 + $0x18] sm:$0xf]
      %v275 = vld [vmem:[%s1 + $0x1c] sm:$0xf]
      %v276 = vld [vmem:[%s1 + $0x20] sm:$0xf]
      %v277 = vld [vmem:[%s1 + $0x24] sm:$0xf]
      %v278 = vld [vmem:[%s1 + $0x28] sm:$0xf]
      %v279 = vld [vmem:[%s1 + $0x2c] sm:$0xf]
      %v280 = vld [vmem:[%s1 + $0x30] sm:$0xf]
      %v281 = vld [vmem:[%s1 + $0x34] sm:$0xf]
      %v282 = vld [vmem:[%s1 + $0x38] sm:$0xf]
      %v283 = vld [vmem:[%s1 + $0x3c] sm:$0xf]
      %v284 = vld [vmem:[%s1 + $0x40] sm:$0xf]
      %v285 = vld [vmem:[%s1 + $0x44] sm:$0xf]
      %v286 = vld [vmem:[%s1 + $0x48] sm:$0xf]
      %v287 = vld [vmem:[%s1 + $0x4c] sm:$0xf]
      %v288 = vld [vmem:[%s1 + $0x50] sm:$0xf]
      %v289 = vld [vmem:[%s1 + $0x54] sm:$0xf]
      %v290 = vld [vmem:[%s1 + $0x58] sm:$0xf]
      %v291 = vld [vmem:[%s1 + $0x5c] sm:$0xf]
      %v292 = vld [vmem:[%s1 + $0x60] sm:$0xf]
      %v293 = vld [vmem:[%s1 + $0x64] sm:$0xf]
      %v294 = vld [vmem:[%s1 + $0x68] sm:$0xf]
      %v295 = vld [vmem:[%s1 + $0x6c] sm:$0xf]
      %v296 = vld [vmem:[%s1 + $0x70] sm:$0xf]
      %v297 = vld [vmem:[%s1 + $0x74] sm:$0xf]
      %v298 = vld [vmem:[%s1 + $0x78] sm:$0xf]
      %v299 = vld [vmem:[%s1 + $0x7c] sm:$0xf]
      %v300 = vld [vmem:[%s2] sm:$0x1]
      %v302 = vperm.slane %v300, 0
      %v336 = vunpack.c.l.b16 %v268
      %v337 = vunpack.c.l.b16 %v269
      %v338 = vunpack.c.l.b16 %v270
      %v339 = vunpack.c.l.b16 %v271
      %v340 = vunpack.c.l.b16 %v272
      %v341 = vunpack.c.l.b16 %v273
      %v342 = vunpack.c.l.b16 %v274
      %v343 = vunpack.c.l.b16 %v275
      %v344 = vunpack.c.l.b16 %v276
      %v345 = vunpack.c.l.b16 %v277
      %v346 = vunpack.c.l.b16 %v278
      %v347 = vunpack.c.l.b16 %v279
      %v348 = vunpack.c.l.b16 %v280
      %v349 = vunpack.c.l.b16 %v281
      %v350 = vunpack.c.l.b16 %v282
      %v351 = vunpack.c.l.b16 %v283
      %v352 = vunpack.c.l.b16 %v284
      %v353 = vunpack.c.l.b16 %v285
      %v354 = vunpack.c.l.b16 %v286
      %v355 = vunpack.c.l.b16 %v287
      %v356 = vunpack.c.l.b16 %v288
      %v357 = vunpack.c.l.b16 %v289
      %v358 = vunpack.c.l.b16 %v290
      %v359 = vunpack.c.l.b16 %v291
      %v360 = vunpack.c.l.b16 %v292
      %v361 = vunpack.c.l.b16 %v293
      %v362 = vunpack.c.l.b16 %v294
      %v363 = vunpack.c.l.b16 %v295
      %v364 = vunpack.c.l.b16 %v296
      %v365 = vunpack.c.l.b16 %v297
      %v366 = vunpack.c.l.b16 %v298
      %v367 = vunpack.c.l.b16 %v299
      %v368 = vpack.c.b16 %v337, %v336
      %v369 = vpack.c.b16 %v339, %v338
      %v370 = vpack.c.b16 %v341, %v340
      %v371 = vpack.c.b16 %v343, %v342
      %v372 = vpack.c.b16 %v345, %v344
      %v373 = vpack.c.b16 %v347, %v346
      %v374 = vpack.c.b16 %v349, %v348
      %v375 = vpack.c.b16 %v351, %v350
      %v376 = vpack.c.b16 %v353, %v352
      %v377 = vpack.c.b16 %v355, %v354
      %v378 = vpack.c.b16 %v357, %v356
      %v379 = vpack.c.b16 %v359, %v358
      %v380 = vpack.c.b16 %v361, %v360
      %v381 = vpack.c.b16 %v363, %v362
      %v382 = vpack.c.b16 %v365, %v364
      %v383 = vpack.c.b16 %v367, %v366
      %400 = vmatpush.bf16.msra.mxu0 %v375
      %401 = vmatpush.bf16.msra.mxu0 %v374
      %402 = vmatpush.bf16.msra.mxu0 %v373
      %403 = vmatpush.bf16.msra.mxu0 %v372
      %404 = vmatpush.bf16.msra.mxu0 %v371
      %405 = vmatpush.bf16.msra.mxu0 %v370
      %406 = vmatpush.bf16.msra.mxu0 %v369
      %407 = vmatpush.bf16.msra.mxu0 %v368
      %408 = vmatmul.bf16.gmra.mxu0 %v266
      %v409 = vpop.f32.mrf.mxu0
      %v410 = vadd.f32 %v302, %v409
      %v411 = vpop.f32.mrf.mxu0
      %v412 = vadd.f32 %v302, %v411
      %413 = vdwg.mxu0
      %414 = vmatpush.bf16.msra.mxu0 %v383
      %415 = vmatpush.bf16.msra.mxu0 %v382
      %416 = vmatpush.bf16.msra.mxu0 %v381
      %417 = vmatpush.bf16.msra.mxu0 %v380
      %418 = vmatpush.bf16.msra.mxu0 %v379
      %419 = vmatpush.bf16.msra.mxu0 %v378
      %420 = vmatpush.bf16.msra.mxu0 %v377
      %421 = vmatpush.bf16.msra.mxu0 %v376
      %422 = vmatmul.bf16.gmra.mxu0 %v267
      %v423 = vpop.f32.mrf.mxu0
      %v424 = vadd.f32 %v410, %v423
      %v425 = vpop.f32.mrf.mxu0
      %v426 = vadd.f32 %v412, %v425
      %427 = vdwg.mxu0
      %v428 = vld [vmem:[%s250] sm:$0xff]
      %v429 = vld [vmem:[%s250 + $0x8] sm:$0xff]
      %v430 = vadd.f32 %v424, %v428
      %v431 = vadd.f32 %v426, %v429
      %vm432 = vcmask 261120
      %433 = vst.msk [vmem:[%s260] sm:$0xff] %vm432, %v430
      %434 = vst.msk [vmem:[%s260 + $0x8] sm:$0xff] %vm432, %v431
      %s435 = smul.u32 2, %s20
      %p436 = scmp.lt.s32.totalorder %s19, 1
      %s437 = scalar_select %p436, %s19, 1
      %p438 = scmp.lt.s32.totalorder %s435, 1
      %s439 = scalar_select %p438, %s435, 1
      %s440 = smul.addr %s437, 2
      %s441 = sadd.s32 %s439, %s440
      %s442 = smul.addr %s441, 8
      %s443 = scalar_lea.vmem %s4, %s442
      // Predicated region
      $region37: #{mae_forward.6} parent=35 // pred_check
        %p444 = pneg %p143
      $region38: #{mae_forward.6} parent=35 // pred_check_branch
        %446 = sbr.rel (%p444) target = $region40
      $region39: #{mae_forward.6} parent=35 // pred_region
        %s447 = smul.u32 2, %s20
      $region40: #{mae_forward.6} parent=35 // pred_fallthru
        _
    $region36: #{mae_forward.6} parent=5 // pred_fallthru
      _
    %p448 = scmp.le.s32.totalorder 2, %s10
    // Predicated region
    $region41: #{mae_forward.6} parent=5 // pred_check
      %p449 = pneg %p448
    $region42: #{mae_forward.6} parent=5 // pred_check_branch
      %451 = sbr.rel (%p449) target = $region44
    $region43: #{mae_forward.6} parent=5 // pred_region
      %s452 = ssub.s32 %s10, 2
      // Predicated region
      $region45: #{mae_forward.6} parent=43 // pred_check
        %p453 = pneg %p149
      $region46: #{mae_forward.6} parent=43 // pred_check_branch
        %455 = sbr.rel (%p453) target = $region48
      $region47: #{mae_forward.6} parent=43 // pred_region
        %s456 = smul.u32 2, %s22
        %p457 = scmp.lt.s32.totalorder %s21, 1
        %s458 = scalar_select %p457, %s21, 1
        %p459 = scmp.lt.s32.totalorder %s456, 1
        %s460 = scalar_select %p459, %s456, 1
        %s461 = smul.addr %s458, 2
        %s462 = sadd.s32 %s460, %s461
        %s463 = smul.addr %s462, 8
        %s464 = scalar_lea.vmem %s4, %s463
      $region48: #{mae_forward.6} parent=43 // pred_fallthru
        _
    $region44: #{mae_forward.6} parent=5 // pred_fallthru
      _
  $region6: #{mae_forward.6} parent=0 // loop_footer
    %s14 = sadd.s32 1, %s10
  $region7: #{mae_forward.6} parent=0 // loop_footer_branch
    %9 = sbr.rel target = $region3
  $region8: #{mae_forward.6} parent=0 // loop_exit
    _

// kernel: mae_forward.9
$region0: #{mae_forward.9}
  #allocation0 [shape = 'u32[]', space=smem, size = 0x4, offset = 0x4, fixed_abs, tag = 'smem constant byte address 0x4 - core index']
  #allocation1 [shape = 'u32[72,128]{1,0:T(1,128)}', space=vmem, size = 0x9000, scoped, tag = 'internal scratch']
  %s0 = inlined_call_operand.vmem [shape: f32[2,4,32], index: 0, kind: input, shape index: {}]
  %s1 = inlined_call_operand.vmem [shape: bf16[32,64], index: 1, kind: input, shape index: {}]
  %s2 = inlined_call_operand.vmem [shape: f32[1,64], index: 2, kind: input, shape index: {}]
  %s3 = inlined_call_operand.vmem [shape: f32[2,4,64], index: 3, kind: input, shape index: {}]
  %s4 = inlined_call_operand.vmem [shape: f32[2,4,64], index: 4, kind: output, shape index: {}]
  %s5 = sld [smem:[#allocation0]]
  $region49: #{mae_forward.9} parent=0
    _
  %s7 = ssub.s32 1, %s5
  %s8 = scalar_select 0, %s7, %s5
  loop: start=0, step=1, limit=4
  $region2: #{mae_forward.9} parent=0 // loop_pre_header
    _
  $region3: #{mae_forward.9} parent=0 // loop_header
    %s10 = sphi 0, %s14
    %p11 = scmp.ge.s32.totalorder %s10, 4
    %s17 = sphi 0, %s29
    %s18 = sphi 0, %s25
    %s19 = sphi 0, %s17
    %s20 = sphi 0, %s18
    %s21 = sphi 0, %s19
    %s22 = sphi 0, %s20
    %s34 = sphi 0, %s36
    %s37 = sphi 0, %s34
    %s38 = sphi 0, %s37
    %s54 = sphi 0, %s38
    %s58 = sphi 0, %s58
    %s60 = sphi 0, %s58
    %s61 = sphi 0, %s60
    %s75 = sphi 0, %s61
    %s79 = sphi 0, %s79
    %s81 = sphi 0, %s79
    %s82 = sphi 0, %s81
    %s96 = sphi 0, %s82
    %s104 = sphi 0, %s106
    %s107 = sphi 0, %s104
    %s108 = sphi 0, %s107
    %s124 = sphi 0, %s108
    %s132 = sphi 0, %s134
    %s135 = sphi 0, %s132
    %s136 = sphi 0, %s135
    %s152 = sphi 0, %s136
  $region4: #{mae_forward.9} parent=0 // loop_header_branch
    %13 = sbr.rel (%p11) target = $region8
  $region5: #{mae_forward.9} parent=0 // loop_body
    %s15 = ssub.s32 %s10, 1
    %s16 = ssub.s32 %s10, 2
    %s23 = sadd.s32 1, %s18
    %p24 = scmp.ge.s32.totalorder %s23, 1
    %s25 = scalar_select %p24, 0, %s23
    %s26 = sadd.s32 1, %s17
    %s27 = scalar_select %p24, %s26, %s17
    %p28 = scmp.ge.s32.totalorder %s27, 2
    %s29 = scalar_select %p28, 0, %s27
    %s30 = ssub.s32 %s17, %s29
    %s31 = ssub.s32 %s18, %s25
    %s32 = sor.u32 %s30, %s31
    %p33 = scmp.eq.s32.totalorder %s32, 0
    %s35 = sadd.s32 %s34, 1
    %s36 = scalar_select %p33, %s34, %s35
    %p39 = pneg %p33
    %p40 = scmp.eq.s32.totalorder %s10, 1
    %p41 = por %p39, %p40
    %p42 = scmp.ne.s32.totalorder %s34, %s37
    %p43 = scmp.eq.s32.totalorder %s10, 0
    %p44 = por %p42, %p43
    %p45 = scmp.ne.s32.totalorder %s34, %s37
    %p46 = scmp.eq.s32.totalorder %s15, 1
    %p47 = por %p45, %p46
    %p48 = scmp.ne.s32.totalorder %s37, %s38
    %p49 = scmp.eq.s32.totalorder %s15, 0
    %p50 = por %p48, %p49
    %p51 = scmp.ne.s32.totalorder %s37, %s38
    %p52 = scmp.eq.s32.totalorder %s16, 1
    %p53 = por %p51, %p52
    %p55 = scmp.ne.s32.totalorder %s38, %s54
    %p56 = scmp.eq.s32.totalorder %s16, 0
    %p57 = por %p55, %p56
    %s59 = sadd.s32 %s58, 1
    %p62 = scmp.eq.s32.totalorder %s10, 1
    %p63 = scmp.ne.s32.totalorder %s58, %s60
    %p64 = scmp.eq.s32.totalorder %s10, 0
    %p65 = por %p63, %p64
    %p66 = scmp.ne.s32.totalorder %s58, %s60
    %p67 = scmp.eq.s32.totalorder %s15, 1
    %p68 = por %p66, %p67
    %p69 = scmp.ne.s32.totalorder %s60, %s61
    %p70 = scmp.eq.s32.totalorder %s15, 0
    %p71 = por %p69, %p70
    %p72 = scmp.ne.s32.totalorder %s60, %s61
    %p73 = scmp.eq.s32.totalorder %s16, 1
    %p74 = por %p72, %p73
    %p76 = scmp.ne.s32.totalorder %s61, %s75
    %p77 = scmp.eq.s32.totalorder %s16, 0
    %p78 = por %p76, %p77
    %s80 = sadd.s32 %s79, 1
    %p83 = scmp.eq.s32.totalorder %s10, 1
    %p84 = scmp.ne.s32.totalorder %s79, %s81
    %p85 = scmp.eq.s32.totalorder %s10, 0
    %p86 = por %p84, %p85
    %p87 = scmp.ne.s32.totalorder %s79, %s81
    %p88 = scmp.eq.s32.totalorder %s15, 1
    %p89 = por %p87, %p88
    %p90 = scmp.ne.s32.totalorder %s81, %s82
    %p91 = scmp.eq.s32.totalorder %s15, 0
    %p92 = por %p90, %p91
    %p93 = scmp.ne.s32.totalorder %s81, %s82
    %p94 = scmp.eq.s32.totalorder %s16, 1
    %p95 = por %p93, %p94
    %p97 = scmp.ne.s32.totalorder %s82, %s96
    %p98 = scmp.eq.s32.totalorder %s16, 0
    %p99 = por %p97, %p98
    %s100 = ssub.s32 %s17, %s29
    %s101 = ssub.s32 %s18, %s25
    %s102 = sor.u32 %s100, %s101
    %p103 = scmp.eq.s32.totalorder %s102, 0
    %s105 = sadd.s32 %s104, 1
    %s106 = scalar_select %p103, %s104, %s105
    %p109 = pneg %p103
    %p110 = scmp.eq.s32.totalorder %s10, 1
    %p111 = por %p109, %p110
    %p112 = scmp.ne.s32.totalorder %s104, %s107
    %p113 = scmp.eq.s32.totalorder %s10, 0
    %p114 = por %p112, %p113
    %p115 = scmp.ne.s32.totalorder %s104, %s107
    %p116 = scmp.eq.s32.totalorder %s15, 1
    %p117 = por %p115, %p116
    %p118 = scmp.ne.s32.totalorder %s107, %s108
    %p119 = scmp.eq.s32.totalorder %s15, 0
    %p120 = por %p118, %p119
    %p121 = scmp.ne.s32.totalorder %s107, %s108
    %p122 = scmp.eq.s32.totalorder %s16, 1
    %p123 = por %p121, %p122
    %p125 = scmp.ne.s32.totalorder %s108, %s124
    %p126 = scmp.eq.s32.totalorder %s16, 0
    %p127 = por %p125, %p126
    %s128 = ssub.s32 %s17, %s29
    %s129 = ssub.s32 %s18, %s25
    %s130 = sor.u32 %s128, %s129
    %p131 = scmp.eq.s32.totalorder %s130, 0
    %s133 = sadd.s32 %s132, 1
    %s134 = scalar_select %p131, %s132, %s133
    %p137 = pneg %p131
    %p138 = scmp.eq.s32.totalorder %s10, 1
    %p139 = por %p137, %p138
    %p140 = scmp.ne.s32.totalorder %s132, %s135
    %p141 = scmp.eq.s32.totalorder %s10, 0
    %p142 = por %p140, %p141
    %p143 = scmp.ne.s32.totalorder %s132, %s135
    %p144 = scmp.eq.s32.totalorder %s15, 1
    %p145 = por %p143, %p144
    %p146 = scmp.ne.s32.totalorder %s135, %s136
    %p147 = scmp.eq.s32.totalorder %s15, 0
    %p148 = por %p146, %p147
    %p149 = scmp.ne.s32.totalorder %s135, %s136
    %p150 = scmp.eq.s32.totalorder %s16, 1
    %p151 = por %p149, %p150
    %p153 = scmp.ne.s32.totalorder %s136, %s152
    %p154 = scmp.eq.s32.totalorder %s16, 0
    %p155 = por %p153, %p154
    %p156 = scmp.le.s32.totalorder 1, %s10
    %p157 = scmp.lt.s32.totalorder %s10, 3
    %p158 = pnand %p156, %p157
    %p159 = pneg %p158
    // Predicated region
    $region9: #{mae_forward.9} parent=5 // pred_check
      _
    $region10: #{mae_forward.9} parent=5 // pred_check_branch
      %161 = sbr.rel (%p158) target = $region12
    $region11: #{mae_forward.9} parent=5 // pred_region
      %s162 = ssub.s32 %s10, 1
      // Predicated region
      $region13: #{mae_forward.9} parent=11 // pred_check
        %p163 = pneg %p71
      $region14: #{mae_forward.9} parent=11 // pred_check_branch
        %165 = sbr.rel (%p163) target = $region16
      $region15: #{mae_forward.9} parent=11 // pred_region
        _
      $region16: #{mae_forward.9} parent=11 // pred_fallthru
        _
      // Predicated region
      $region17: #{mae_forward.9} parent=11 // pred_check
        %p166 = pneg %p92
      $region18: #{mae_forward.9} parent=11 // pred_check_branch
        %168 = sbr.rel (%p166) target = $region20
      $region19: #{mae_forward.9} parent=11 // pred_region
        _
      $region20: #{mae_forward.9} parent=11 // pred_fallthru
        _
    $region12: #{mae_forward.9} parent=5 // pred_fallthru
      _
    %p169 = scmp.lt.s32.totalorder %s10, 2
    // Predicated region
    $region21: #{mae_forward.9} parent=5 // pred_check
      %p170 = pneg %p169
    $region22: #{mae_forward.9} parent=5 // pred_check_branch
      %172 = sbr.rel (%p170) target = $region24
    $region23: #{mae_forward.9} parent=5 // pred_region
      // Predicated region
      $region25: #{mae_forward.9} parent=23 // pred_check
        %p173 = pneg %p44
      $region26: #{mae_forward.9} parent=23 // pred_check_branch
        %175 = sbr.rel (%p173) target = $region28
      $region27: #{mae_forward.9} parent=23 // pred_region
        %p176 = scmp.lt.s32.totalorder %s17, 1
        %s177 = scalar_select %p176, %s17, 1
        %p178 = scmp.lt.s32.totalorder %s18, 0
        %s179 = scalar_select %p178, %s18, 0
        %s180 = sadd.s32 %s179, %s177
        %s181 = smul.addr %s180, 4
        %s182 = scalar_lea.vmem %s0, %s181
      $region28: #{mae_forward.9} parent=23 // pred_fallthru
        _
      // Predicated region
      $region29: #{mae_forward.9} parent=23 // pred_check
        %p183 = pneg %p114
      $region30: #{mae_forward.9} parent=23 // pred_check_branch
        %185 = sbr.rel (%p183) target = $region32
      $region31: #{mae_forward.9} parent=23 // pred_region
        %p186 = scmp.lt.s32.totalorder %s17, 1
        %s187 = scalar_select %p186, %s17, 1
        %p188 = scmp.lt.s32.totalorder %s18, 0
        %s189 = scalar_select %p188, %s18, 0
        %s190 = sadd.s32 %s189, %s187
        %s191 = smul.addr %s190, 4
        %s192 = scalar_lea.vmem %s3, %s191
      $region32: #{mae_forward.9} parent=23 // pred_fallthru
        _
    $region24: #{mae_forward.9} parent=5 // pred_fallthru
      _
    %p193 = scmp.le.s32.totalorder 1, %s10
    %p194 = scmp.lt.s32.totalorder %s10, 3
    %p195 = pnand %p193, %p194
    %p196 = pneg %p195
    // Predicated region
    $region33: #{mae_forward.9} parent=5 // pred_check
      _
    $region34: #{mae_forward.9} parent=5 // pred_check_branch
      %198 = sbr.rel (%p195) target = $region36
    $region35: #{mae_forward.9} parent=5 // pred_region
      %s199 = ssub.s32 %s10, 1
      %p200 = scmp.lt.s32.totalorder %s19, 1
      %s201 = scalar_select %p200, %s19, 1
      %p202 = scmp.lt.s32.totalorder %s20, 0
      %s203 = scalar_select %p202, %s20, 0
      %s204 = sadd.s32 %s203, %s201
      %s205 = smul.addr %s204, 4
      %s206 = scalar_lea.vmem %s0, %s205
      %p207 = pneg %p50
      %p208 = pneg %p47
      %p209 = pneg %p71
      %p210 = pneg %p68
      %p211 = pneg %p92
      %p212 = pneg %p89
      %p213 = scmp.lt.s32.totalorder %s19, 1
      %s214 = scalar_select %p213, %s19, 1
      %p215 = scmp.lt.s32.totalorder %s20, 0
      %s216 = scalar_select %p215, %s20, 0
      %s217 = sadd.s32 %s216, %s214
      %s218 = smul.addr %s217, 4
      %s219 = scalar_lea.vmem %s3, %s218
      %p220 = pneg %p120
      %p221 = pneg %p117
      %p222 = pneg %p148
      %p223 = pneg %p145
      %p224 = scmp.lt.s32.totalorder %s19, 1
      %s225 = scalar_select %p224, %s19, 1
      %p226 = scmp.lt.s32.totalorder %s20, 0
      %s227 = scalar_select %p226, %s20, 0
      %s228 = sadd.s32 %s227, %s225
      %s229 = smul.addr %s228, 4
      %s230 = scalar_lea.vmem %s4, %s229
      %p231 = scmp.lt.s32.totalorder %s19, 1
      %s232 = scalar_select %p231, %s19, 1
      %p233 = scmp.lt.s32.totalorder %s20, 0
      %s234 = scalar_select %p233, %s20, 0
      %s235 = sadd.s32 %s234, %s232
      %s236 = smul.addr %s235, 4
      %s237 = scalar_lea.vmem %s0, %s236
      %p238 = scmp.lt.s32.totalorder %s19, 1
      %s239 = scalar_select %p238, %s19, 1
      %p240 = scmp.lt.s32.totalorder %s20, 0
      %s241 = scalar_select %p240, %s20, 0
      %s242 = sadd.s32 %s241, %s239
      %s243 = smul.addr %s242, 4
      %s244 = scalar_lea.vmem %s3, %s243
      %p245 = scmp.lt.s32.totalorder %s19, 1
      %s246 = scalar_select %p245, %s19, 1
      %p247 = scmp.lt.s32.totalorder %s20, 0
      %s248 = scalar_select %p247, %s20, 0
      %s249 = sadd.s32 %s248, %s246
      %s250 = smul.addr %s249, 4
      %s251 = scalar_lea.vmem %s4, %s250
      %v253 = vld [vmem:[%s237] sm:$0xf]
      %v254 = vpack.c.bf16 %v253, %v253
      %v255 = vld [vmem:[%s1] sm:$0xf]
      %v256 = vld [vmem:[%s1 + $0x4] sm:$0xf]
      %v257 = vld [vmem:[%s1 + $0x8] sm:$0xf]
      %v258 = vld [vmem:[%s1 + $0xc] sm:$0xf]
      %v259 = vld [vmem:[%s2] sm:$0x1]
      %v261 = vperm.slane %v259, 0
      %v267 = vunpack.c.l.b16 %v255
      %v268 = vunpack.c.l.b16 %v256
      %v269 = vunpack.c.l.b16 %v257
      %v270 = vunpack.c.l.b16 %v258
      %v271 = vpack.c.b16 %v268, %v267
      %v272 = vpack.c.b16 %v270, %v269
      %vm275 = vcmask 261120
      %v277 = vsel %vm275, %v254, 0
      %279 = vmatpush.bf16.msra.mxu0 0
      %280 = vmatpush.bf16.msra.mxu0 0
      %281 = vmatpush.bf16.msra.mxu0 0
      %282 = vmatpush.bf16.msra.mxu0 0
      %283 = vmatpush.bf16.msra.mxu0 0
      %284 = vmatpush.bf16.msra.mxu0 0
      %285 = vmatpush.bf16.msra.mxu0 %v272
      %286 = vmatpush.bf16.msra.mxu0 %v271
      %287 = vmatmul.bf16.gmra.mxu0 %v277
      %v288 = vpop.f32.mrf.mxu0
      %v289 = vadd.f32 %v261, %v288
      %v290 = vpop.f32.mrf.mxu0
      %291 = vdwg.mxu0
      %v292 = vld [vmem:[%s244] sm:$0xf]
      %v293 = vadd.f32 %v289, %v292
      %vm294 = vcmask 519168
      %295 = vst.msk [vmem:[%s251] sm:$0xf] %vm294, %v293
      %p296 = scmp.lt.s32.totalorder %s19, 1
      %s297 = scalar_select %p296, %s19, 1
      %p298 = scmp.lt.s32.totalorder %s20, 0
      %s299 = scalar_select %p298, %s20, 0
      %s300 = sadd.s32 %s299, %s297
      %s301 = smul.addr %s300, 4
      %s302 = scalar_lea.vmem %s4, %s301
      // Predicated region
      $region37: #{mae_forward.9} parent=35 // pred_check
        %p303 = pneg %p145
      $region38: #{mae_forward.9} parent=35 // pred_check_branch
        %305 = sbr.rel (%p303) target = $region40
      $region39: #{mae_forward.9} parent=35 // pred_region
        _
      $region40: #{mae_forward.9} parent=35 // pred_fallthru
        _
    $region36: #{mae_forward.9} parent=5 // pred_fallthru
      _
    %p306 = scmp.le.s32.totalorder 2, %s10
    // Predicated region
    $region41: #{mae_forward.9} parent=5 // pred_check
      %p307 = pneg %p306
    $region42: #{mae_forward.9} parent=5 // pred_check_branch
      %309 = sbr.rel (%p307) target = $region44
    $region43: #{mae_forward.9} parent=5 // pred_region
      %s310 = ssub.s32 %s10, 2
      // Predicated region
      $region45: #{mae_forward.9} parent=43 // pred_check
        %p311 = pneg %p151
      $region46: #{mae_forward.9} parent=43 // pred_check_branch
        %313 = sbr.rel (%p311) target = $region48
      $region47: #{mae_forward.9} parent=43 // pred_region
        %p314 = scmp.lt.s32.totalorder %s21, 1
        %s315 = scalar_select %p314, %s21, 1
        %p316 = scmp.lt.s32.totalorder %s22, 0
        %s317 = scalar_select %p316, %s22, 0
        %s318 = sadd.s32 %s317, %s315
        %s319 = smul.addr %s318, 4
        %s320 = scalar_lea.vmem %s4, %s319
      $region48: #{mae_forward.9} parent=43 // pred_fallthru
        _
    $region44: #{mae_forward.9} parent=5 // pred_fallthru
      _
  $region6: #{mae_forward.9} parent=0 // loop_footer
    %s14 = sadd.s32 1, %s10
  $region7: #{mae_forward.9} parent=0 // loop_footer_branch
    %9 = sbr.rel target = $region3
  $region8: #{mae_forward.9} parent=0 // loop_exit
    _

// kernel: mae_forward.7
$region0: #{mae_forward.7}
  #allocation0 [shape = 'u32[]', space=smem, size = 0x4, offset = 0x4, fixed_abs, tag = 'smem constant byte address 0x4 - core index']
  #allocation1 [shape = 'u32[72,128]{1,0:T(1,128)}', space=vmem, size = 0x9000, scoped, tag = 'internal scratch']
  #allocation2 [shape = 'f32[8,96]{1,0:T(8,128)}', space=vmem, size = 0x1000, scoped, tag = 'scratch operand']
  #allocation3 [shape = 'f32[8,32]{1,0:T(8,128)}', space=vmem, size = 0x1000, scoped, tag = 'scratch operand']
  %s0 = inlined_call_operand.vmem [shape: f32[8,32], index: 0, kind: input, shape index: {}]
  %s1 = inlined_call_operand.vmem [shape: f32[1,32], index: 1, kind: input, shape index: {}]
  %s2 = inlined_call_operand.vmem [shape: f32[1,32], index: 2, kind: input, shape index: {}]
  %s3 = inlined_call_operand.vmem [shape: bf16[32,96], index: 3, kind: input, shape index: {}]
  %s4 = inlined_call_operand.vmem [shape: bf16[32,32], index: 4, kind: input, shape index: {}]
  %s5 = inlined_call_operand.vmem [shape: f32[1,32], index: 5, kind: input, shape index: {}]
  %s6 = inlined_call_operand.vmem [shape: f32[1,32], index: 6, kind: input, shape index: {}]
  %s7 = inlined_call_operand.vmem [shape: f32[1,32], index: 7, kind: input, shape index: {}]
  %s8 = inlined_call_operand.vmem [shape: bf16[32,64], index: 8, kind: input, shape index: {}]
  %s9 = inlined_call_operand.vmem [shape: f32[1,64], index: 9, kind: input, shape index: {}]
  %s10 = inlined_call_operand.vmem [shape: bf16[64,32], index: 10, kind: input, shape index: {}]
  %s11 = inlined_call_operand.vmem [shape: f32[1,32], index: 11, kind: input, shape index: {}]
  %s12 = inlined_call_operand.vmem [shape: f32[8,32], index: 12, kind: output, shape index: {}]
  %s13 = sld [smem:[#allocation0]]
  $region58: #{mae_forward.7} parent=0
    _
  %s15 = ssub.s32 1, %s13
  %s16 = scalar_select 0, %s15, %s13
  // Predicated region
  $region2: #{mae_forward.7} parent=0 // pred_check
    _
  $region3: #{mae_forward.7} parent=0 // pred_check_branch
    %18 = sbr.rel (0) target = $region5
  $region4: #{mae_forward.7} parent=0 // pred_region
    _
  $region5: #{mae_forward.7} parent=0 // pred_fallthru
    _
  // Predicated region
  $region6: #{mae_forward.7} parent=0 // pred_check
    _
  $region7: #{mae_forward.7} parent=0 // pred_check_branch
    %20 = sbr.rel (0) target = $region9
  $region8: #{mae_forward.7} parent=0 // pred_region
    _
  $region9: #{mae_forward.7} parent=0 // pred_fallthru
    _
  // Predicated region
  $region10: #{mae_forward.7} parent=0 // pred_check
    _
  $region11: #{mae_forward.7} parent=0 // pred_check_branch
    %22 = sbr.rel (0) target = $region13
  $region12: #{mae_forward.7} parent=0 // pred_region
    _
  $region13: #{mae_forward.7} parent=0 // pred_fallthru
    _
  // Predicated region
  $region14: #{mae_forward.7} parent=0 // pred_check
    _
  $region15: #{mae_forward.7} parent=0 // pred_check_branch
    %24 = sbr.rel (0) target = $region17
  $region16: #{mae_forward.7} parent=0 // pred_region
    _
  $region17: #{mae_forward.7} parent=0 // pred_fallthru
    _
  // Predicated region
  $region18: #{mae_forward.7} parent=0 // pred_check
    _
  $region19: #{mae_forward.7} parent=0 // pred_check_branch
    %26 = sbr.rel (0) target = $region21
  $region20: #{mae_forward.7} parent=0 // pred_region
    _
  $region21: #{mae_forward.7} parent=0 // pred_fallthru
    _
  // Predicated region
  $region22: #{mae_forward.7} parent=0 // pred_check
    _
  $region23: #{mae_forward.7} parent=0 // pred_check_branch
    %28 = sbr.rel (0) target = $region25
  $region24: #{mae_forward.7} parent=0 // pred_region
    _
  $region25: #{mae_forward.7} parent=0 // pred_fallthru
    _
  // Predicated region
  $region26: #{mae_forward.7} parent=0 // pred_check
    _
  $region27: #{mae_forward.7} parent=0 // pred_check_branch
    %30 = sbr.rel (0) target = $region29
  $region28: #{mae_forward.7} parent=0 // pred_region
    _
  $region29: #{mae_forward.7} parent=0 // pred_fallthru
    _
  // Predicated region
  $region30: #{mae_forward.7} parent=0 // pred_check
    _
  $region31: #{mae_forward.7} parent=0 // pred_check_branch
    %32 = sbr.rel (0) target = $region33
  $region32: #{mae_forward.7} parent=0 // pred_region
    _
  $region33: #{mae_forward.7} parent=0 // pred_fallthru
    _
  // Predicated region
  $region34: #{mae_forward.7} parent=0 // pred_check
    _
  $region35: #{mae_forward.7} parent=0 // pred_check_branch
    %34 = sbr.rel (0) target = $region37
  $region36: #{mae_forward.7} parent=0 // pred_region
    _
  $region37: #{mae_forward.7} parent=0 // pred_fallthru
    _
  // Predicated region
  $region38: #{mae_forward.7} parent=0 // pred_check
    _
  $region39: #{mae_forward.7} parent=0 // pred_check_branch
    %36 = sbr.rel (0) target = $region41
  $region40: #{mae_forward.7} parent=0 // pred_region
    _
  $region41: #{mae_forward.7} parent=0 // pred_fallthru
    _
  // Predicated region
  $region42: #{mae_forward.7} parent=0 // pred_check
    _
  $region43: #{mae_forward.7} parent=0 // pred_check_branch
    %38 = sbr.rel (0) target = $region45
  $region44: #{mae_forward.7} parent=0 // pred_region
    _
  $region45: #{mae_forward.7} parent=0 // pred_fallthru
    _
  // Predicated region
  $region46: #{mae_forward.7} parent=0 // pred_check
    _
  $region47: #{mae_forward.7} parent=0 // pred_check_branch
    %40 = sbr.rel (0) target = $region49
  $region48: #{mae_forward.7} parent=0 // pred_region
    _
  $region49: #{mae_forward.7} parent=0 // pred_fallthru
    _
  %v42 = vld [vmem:[%s0] sm:$0xff]
  %vm43 = vcmask 261120
  %v44 = vsel %vm43, %v42, 0.0
  %45 = vadd.xlane.f32.xlu0 %v44
  %v46 = vpop.xlane.xlu0 %45
  %v47 = vrcp.pop 32.0
  %v48 = vmul.f32 32.0, %v47
  %v49 = vsub.f32 1.0, %v48
  %v50 = vmul.f32 %v47, %v49
  %v51 = vadd.f32 %v47, %v50
  %vm52 = vweird.f32 %v47
  %v53 = vsel %vm52, %v47, %v51
  %v54 = vmul.f32 %v46, %v53
  %v55 = vsub.f32 %v42, %v54
  %v56 = vmul.f32 %v55, %v55
  %v57 = vsel %vm43, %v56, 0.0
  %58 = vadd.xlane.f32.xlu0 %v57
  %v59 = vpop.xlane.xlu0 %58
  %v60 = vmul.f32 %v59, %v53
  %v61 = vadd.f32 %v60, 1e-05
  %v62 = vrsqrt.pop %v61
  %v63 = vmul.f32 %v62, %v61
  %v64 = vmul.f32 %v63, %v62
  %v65 = vmul.f32 0.5, %v64
  %v66 = vsub.f32 1.5, %v65
  %v67 = vmul.f32 %v62, %v66
  %vm68 = vweird.f32 %v61
  %vm69 = vweird.f32 %v62
  %vm70 = vmor %vm68, %vm69
  %v71 = vsel %vm70, %v62, %v67
  %v72 = vmul.f32 %v55, %v71
  %v73 = vld [vmem:[%s1] sm:$0x1]
  %v75 = vperm.slane %v73, 0
  %v77 = vmul.f32 %v72, %v75
  %v78 = vld [vmem:[%s2] sm:$0x1]
  %v80 = vperm.slane %v78, 0
  %v82 = vadd.f32 %v77, %v80
  %v83 = vpack.c.bf16 %v82, %v82
  %v84 = vld [vmem:[%s3] sm:$0xf]
  %v85 = vld [vmem:[%s3 + $0x4] sm:$0xf]
  %v86 = vld [vmem:[%s3 + $0x8] sm:$0xf]
  %v87 = vld [vmem:[%s3 + $0xc] sm:$0xf]
  %v92 = vunpack.c.l.b16 %v84
  %v93 = vunpack.c.l.b16 %v85
  %v94 = vunpack.c.l.b16 %v86
  %v95 = vunpack.c.l.b16 %v87
  %v96 = vpack.c.b16 %v93, %v92
  %v97 = vpack.c.b16 %v95, %v94
  %v101 = vsel %vm43, %v83, 0
  %103 = vmatpush.bf16.msra.mxu0 0
  %104 = vmatpush.bf16.msra.mxu0 0
  %105 = vmatpush.bf16.msra.mxu0 0
  %106 = vmatpush.bf16.msra.mxu0 0
  %107 = vmatpush.bf16.msra.mxu0 0
  %108 = vmatpush.bf16.msra.mxu0 0
  %109 = vmatpush.bf16.msra.mxu0 %v97
  %110 = vmatpush.bf16.msra.mxu0 %v96
  %111 = vmatmul.bf16.gmra.mxu0 %v101
  %v112 = vpop.f32.mrf.mxu0
  %v113 = vadd.f32 0.0, %v112
  %v114 = vpop.f32.mrf.mxu0
  %115 = vdwg.mxu0
  %vm116 = vcmask 785408
  %117 = vst.msk [vmem:[#allocation2] sm:$0xff] %vm116, %v113
  %v118 = vld [vmem:[#allocation2] sm:$0xf]
  %120 = vrot.lane.b32.xlu0 %v118, 120
  %v121 = vpop.permute.xlu0 %120
  %123 = vrot.lane.b32.xlu0 %v118, 112
  %v124 = vpop.permute.xlu0 %123
  %126 = vrot.lane.b32.xlu0 %v118, 104
  %v127 = vpop.permute.xlu0 %126
  %v129 = vrot.slane %v124, 4
  %vm130 = vcmask 1047556
  %v131 = vsel %vm130, %v129, %v118
  %v133 = vunpack.c.l.s4 1983009808
  %v134 = vunpack.c.0.s8 %v133
  %v135 = vperm.slane %v131, %v134
  %v136 = vrot.slane %v127, 4
  %v137 = vsel %vm130, %v136, %v121
  %v139 = vunpack.c.l.s4 1983009808
  %v140 = vunpack.c.0.s8 %v139
  %v141 = vperm.slane %v137, %v140
  %v142 = vrot.slane %v141, 4
  %v143 = vsel %vm130, %v142, %v135
  %v144 = vrot.slane %v135, 4
  %v145 = vsel %vm130, %v141, %v144
  %v147 = vunpack.c.l.s4 1934713408
  %v148 = vunpack.c.0.s8 %v147
  %v149 = vperm.slane %v143, %v148
  %v151 = vunpack.c.l.s4 1934713408
  %v152 = vunpack.c.0.s8 %v151
  %v153 = vperm.slane %v145, %v152
  %v154 = vrot.slane %v149, 4
  %v155 = vsel %vm130, 0.0, %v154
  %v156 = vrot.slane %v153, 4
  %v157 = vsel %vm130, 0.0, %v156
  %v158 = vsel %vm130, %v156, %v149
  %v160 = vunpack.c.l.s4 1983009808
  %v161 = vunpack.c.0.s8 %v160
  %v162 = vperm.slane %v158, %v161
  %v163 = vrot.slane %v157, 4
  %v164 = vsel %vm130, %v163, %v155
  %v166 = vunpack.c.l.s4 1983009808
  %v167 = vunpack.c.0.s8 %v166
  %v168 = vperm.slane %v164, %v167
  %v169 = vrot.slane %v168, 4
  %v170 = vsel %vm130, %v169, %v162
  %v171 = vrot.slane %v162, 4
  %v172 = vsel %vm130, %v168, %v171
  %v174 = vunpack.c.l.s4 1934713408
  %v175 = vunpack.c.0.s8 %v174
  %v176 = vperm.slane %v170, %v175
  %v178 = vunpack.c.l.s4 1934713408
  %v179 = vunpack.c.0.s8 %v178
  %v180 = vperm.slane %v172, %v179
  %v181 = vrot.slane %v176, 4
  %v182 = vsel %vm130, 0.0, %v181
  %v183 = vrot.slane %v180, 4
  %v184 = vsel %vm130, 0.0, %v183
  %185 = vrot.lane.b32.xlu0 %v118, 96
  %v186 = vpop.permute.xlu0 %185
  %187 = vrot.lane.b32.xlu0 %v121, 96
  %v188 = vpop.permute.xlu0 %187
  %189 = vrot.lane.b32.xlu0 %v124, 96
  %v190 = vpop.permute.xlu0 %189
  %191 = vrot.lane.b32.xlu0 %v127, 96
  %v192 = vpop.permute.xlu0 %191
  %v197 = vrot.slane %v190, 4
  %v198 = vsel %vm130, %v197, %v186
  %v200 = vunpack.c.l.s4 1983009808
  %v201 = vunpack.c.0.s8 %v200
  %v202 = vperm.slane %v198, %v201
  %v203 = vrot.slane %v192, 4
  %v204 = vsel %vm130, %v203, %v188
  %v206 = vunpack.c.l.s4 1983009808
  %v207 = vunpack.c.0.s8 %v206
  %v208 = vperm.slane %v204, %v207
  %v209 = vrot.slane %v208, 4
  %v210 = vsel %vm130, %v209, %v202
  %v211 = vrot.slane %v202, 4
  %v212 = vsel %vm130, %v208, %v211
  %v214 = vunpack.c.l.s4 1934713408
  %v215 = vunpack.c.0.s8 %v214
  %v216 = vperm.slane %v210, %v215
  %v218 = vunpack.c.l.s4 1934713408
  %v219 = vunpack.c.0.s8 %v218
  %v220 = vperm.slane %v212, %v219
  %v221 = vrot.slane %v216, 4
  %v222 = vsel %vm130, 0.0, %v221
  %v223 = vrot.slane %v220, 4
  %v224 = vsel %vm130, 0.0, %v223
  %v225 = vsel %vm130, %v223, %v216
  %v227 = vunpack.c.l.s4 1983009808
  %v228 = vunpack.c.0.s8 %v227
  %v229 = vperm.slane %v225, %v228
  %v230 = vrot.slane %v224, 4
  %v231 = vsel %vm130, %v230, %v222
  %v233 = vunpack.c.l.s4 1983009808
  %v234 = vunpack.c.0.s8 %v233
  %v235 = vperm.slane %v231, %v234
  %v236 = vrot.slane %v235, 4
  %v237 = vsel %vm130, %v236, %v229
  %v238 = vrot.slane %v229, 4
  %v239 = vsel %vm130, %v235, %v238
  %v241 = vunpack.c.l.s4 1934713408
  %v242 = vunpack.c.0.s8 %v241
  %v243 = vperm.slane %v237, %v242
  %v245 = vunpack.c.l.s4 1934713408
  %v246 = vunpack.c.0.s8 %v245
  %v247 = vperm.slane %v239, %v246
  %v248 = vrot.slane %v243, 4
  %v249 = vsel %vm130, 0.0, %v248
  %v250 = vrot.slane %v247, 4
  %v251 = vsel %vm130, 0.0, %v250
  %252 = vrot.lane.b32.xlu0 %v118, 64
  %v253 = vpop.permute.xlu0 %252
  %254 = vrot.lane.b32.xlu0 %v121, 64
  %v255 = vpop.permute.xlu0 %254
  %256 = vrot.lane.b32.xlu0 %v124, 64
  %v257 = vpop.permute.xlu0 %256
  %258 = vrot.lane.b32.xlu0 %v127, 64
  %v259 = vpop.permute.xlu0 %258
  %v264 = vrot.slane %v257, 4
  %v265 = vsel %vm130, %v264, %v253
  %v267 = vunpack.c.l.s4 1983009808
  %v268 = vunpack.c.0.s8 %v267
  %v269 = vperm.slane %v265, %v268
  %v270 = vrot.slane %v259, 4
  %v271 = vsel %vm130, %v270, %v255
  %v273 = vunpack.c.l.s4 1983009808
  %v274 = vunpack.c.0.s8 %v273
  %v275 = vperm.slane %v271, %v274
  %v276 = vrot.slane %v275, 4
  %v277 = vsel %vm130, %v276, %v269
  %v278 = vrot.slane %v269, 4
  %v279 = vsel %vm130, %v275, %v278
  %v281 = vunpack.c.l.s4 1934713408
  %v282 = vunpack.c.0.s8 %v281
  %v283 = vperm.slane %v277, %v282
  %v285 = vunpack.c.l.s4 1934713408
  %v286 = vunpack.c.0.s8 %v285
  %v287 = vperm.slane %v279, %v286
  %v288 = vrot.slane %v283, 4
  %v289 = vsel %vm130, 0.0, %v288
  %v290 = vrot.slane %v287, 4
  %v291 = vsel %vm130, 0.0, %v290
  %v292 = vsel %vm130, %v290, %v283
  %v294 = vunpack.c.l.s4 1983009808
  %v295 = vunpack.c.0.s8 %v294
  %v296 = vperm.slane %v292, %v295
  %v297 = vrot.slane %v291, 4
  %v298 = vsel %vm130, %v297, %v289
  %v300 = vunpack.c.l.s4 1983009808
  %v301 = vunpack.c.0.s8 %v300
  %v302 = vperm.slane %v298, %v301
  %v303 = vrot.slane %v302, 4
  %v304 = vsel %vm130, %v303, %v296
  %v305 = vrot.slane %v296, 4
  %v306 = vsel %vm130, %v302, %v305
  %v308 = vunpack.c.l.s4 1934713408
  %v309 = vunpack.c.0.s8 %v308
  %v310 = vperm.slane %v304, %v309
  %v312 = vunpack.c.l.s4 1934713408
  %v313 = vunpack.c.0.s8 %v312
  %v314 = vperm.slane %v306, %v313
  %v315 = vrot.slane %v310, 4
  %v316 = vsel %vm130, 0.0, %v315
  %v317 = vrot.slane %v314, 4
  %v318 = vsel %vm130, 0.0, %v317
  %v319 = vpack.c.bf16 %v176, %v176
  %v320 = vpack.c.bf16 %v182, %v182
  %v321 = vpack.c.bf16 %v180, %v180
  %v322 = vpack.c.bf16 %v184, %v184
  %v323 = vpack.c.bf16 %v243, %v243
  %v324 = vpack.c.bf16 %v249, %v249
  %v325 = vpack.c.bf16 %v247, %v247
  %v326 = vpack.c.bf16 %v251, %v251
  %vm327 = vcmask 64512
  %v329 = vsel %vm327, %v319, 0
  %v332 = vsel %vm327, %v323, 0
  %334 = vmatpush.bf16.xpose.msra.mxu0 0
  %335 = vmatpush.bf16.xpose.msra.mxu0 0
  %336 = vmatpush.bf16.xpose.msra.mxu0 0
  %337 = vmatpush.bf16.xpose.msra.mxu0 0
  %338 = vmatpush.bf16.xpose.msra.mxu0 0
  %339 = vmatpush.bf16.xpose.msra.mxu0 0
  %340 = vmatpush.bf16.xpose.msra.mxu0 0
  %341 = vmatpush.bf16.xpose.msra.mxu0 %v332
  %342 = vmatmul.bf16.gmra.mxu0 %v329
  %v343 = vpop.f32.mrf.mxu0
  %v344 = vadd.f32 0.0, %v343
  %v345 = vpop.f32.mrf.mxu0
  %346 = vdwg.mxu0
  %v348 = vsel %vm327, %v320, 0
  %v351 = vsel %vm327, %v324, 0
  %353 = vmatpush.bf16.xpose.msra.mxu0 0
  %354 = vmatpush.bf16.xpose.msra.mxu0 0
  %355 = vmatpush.bf16.xpose.msra.mxu0 0
  %356 = vmatpush.bf16.xpose.msra.mxu0 0
  %357 = vmatpush.bf16.xpose.msra.mxu0 0
  %358 = vmatpush.bf16.xpose.msra.mxu0 0
  %359 = vmatpush.bf16.xpose.msra.mxu0 0
  %360 = vmatpush.bf16.xpose.msra.mxu0 %v351
  %361 = vmatmul.bf16.gmra.mxu0 %v348
  %v362 = vpop.f32.mrf.mxu0
  %v363 = vadd.f32 0.0, %v362
  %v364 = vpop.f32.mrf.mxu0
  %365 = vdwg.mxu0
  %v367 = vsel %vm327, %v321, 0
  %v370 = vsel %vm327, %v325, 0
  %372 = vmatpush.bf16.xpose.msra.mxu0 0
  %373 = vmatpush.bf16.xpose.msra.mxu0 0
  %374 = vmatpush.bf16.xpose.msra.mxu0 0
  %375 = vmatpush.bf16.xpose.msra.mxu0 0
  %376 = vmatpush.bf16.xpose.msra.mxu0 0
  %377 = vmatpush.bf16.xpose.msra.mxu0 0
  %378 = vmatpush.bf16.xpose.msra.mxu0 0
  %379 = vmatpush.bf16.xpose.msra.mxu0 %v370
  %380 = vmatmul.bf16.gmra.mxu0 %v367
  %v381 = vpop.f32.mrf.mxu0
  %v382 = vadd.f32 0.0, %v381
  %v383 = vpop.f32.mrf.mxu0
  %384 = vdwg.mxu0
  %v386 = vsel %vm327, %v322, 0
  %v389 = vsel %vm327, %v326, 0
  %391 = vmatpush.bf16.xpose.msra.mxu0 0
  %392 = vmatpush.bf16.xpose.msra.mxu0 0
  %393 = vmatpush.bf16.xpose.msra.mxu0 0
  %394 = vmatpush.bf16.xpose.msra.mxu0 0
  %395 = vmatpush.bf16.xpose.msra.mxu0 0
  %396 = vmatpush.bf16.xpose.msra.mxu0 0
  %397 = vmatpush.bf16.xpose.msra.mxu0 0
  %398 = vmatpush.bf16.xpose.msra.mxu0 %v389
  %399 = vmatmul.bf16.gmra.mxu0 %v386
  %v400 = vpop.f32.mrf.mxu0
  %v401 = vadd.f32 0.0, %v400
  %v402 = vpop.f32.mrf.mxu0
  %403 = vdwg.mxu0
  %v404 = vmul.f32 %v344, 0.35355338
  %v405 = vmul.f32 %v363, 0.35355338
  %v406 = vmul.f32 %v382, 0.35355338
  %v407 = vmul.f32 %v401, 0.35355338
  %vm408 = vcmask 27648
  %v409 = vsel %vm408, %v404, -inf
  %410 = vmax.xlane.f32.xlu0 %v409
  %v411 = vpop.xlane.xlu0 %410
  %v412 = vsel %vm408, %v405, -inf
  %413 = vmax.xlane.f32.xlu0 %v412
  %v414 = vpop.xlane.xlu0 %413
  %v415 = vsel %vm408, %v406, -inf
  %416 = vmax.xlane.f32.xlu0 %v415
  %v417 = vpop.xlane.xlu0 %416
  %v418 = vsel %vm408, %v407, -inf
  %419 = vmax.xlane.f32.xlu0 %v418
  %v420 = vpop.xlane.xlu0 %419
  %v421 = vsub.f32 %v404, %v411
  %v422 = vsub.f32 %v405, %v414
  %v423 = vsub.f32 %v406, %v417
  %v424 = vsub.f32 %v407, %v420
  %v425 = vmul.f32 %v421, 1.442695
  %v426 = vpow.pop %v425
  %v427 = vmul.f32 %v422, 1.442695
  %v428 = vpow.pop %v427
  %v429 = vmul.f32 %v423, 1.442695
  %v430 = vpow.pop %v429
  %v431 = vmul.f32 %v424, 1.442695
  %v432 = vpow.pop %v431
  %v433 = vsel %vm408, %v426, 0.0
  %434 = vadd.xlane.f32.xlu0 %v433
  %v435 = vpop.xlane.xlu0 %434
  %v436 = vsel %vm408, %v428, 0.0
  %437 = vadd.xlane.f32.xlu0 %v436
  %v438 = vpop.xlane.xlu0 %437
  %v439 = vsel %vm408, %v430, 0.0
  %440 = vadd.xlane.f32.xlu0 %v439
  %v441 = vpop.xlane.xlu0 %440
  %v442 = vsel %vm408, %v432, 0.0
  %443 = vadd.xlane.f32.xlu0 %v442
  %v444 = vpop.xlane.xlu0 %443
  %v445 = vrcp.pop %v435
  %v446 = vrcp.pop %v438
  %v447 = vrcp.pop %v441
  %v448 = vrcp.pop %v444
  %v449 = vmul.f32 %v426, %v445
  %v450 = vmul.f32 %v428, %v446
  %v451 = vmul.f32 %v430, %v447
  %v452 = vmul.f32 %v432, %v448
  %v453 = vpack.c.bf16 %v449, %v449
  %v454 = vpack.c.bf16 %v450, %v450
  %v455 = vpack.c.bf16 %v451, %v451
  %v456 = vpack.c.bf16 %v452, %v452
  %v457 = vpack.c.bf16 %v310, %v310
  %v458 = vpack.c.bf16 %v316, %v316
  %v459 = vpack.c.bf16 %v314, %v314
  %v460 = vpack.c.bf16 %v318, %v318
  %vm461 = vcmask 31744
  %v463 = vsel %vm461, %v453, 0
  %vm465 = vcmask 1041408
  %v467 = vsel %vm465, %v457, 0
  %469 = vmatpush.bf16.msra.mxu0 0
  %470 = vmatpush.bf16.msra.mxu0 0
  %471 = vmatpush.bf16.msra.mxu0 0
  %472 = vmatpush.bf16.msra.mxu0 0
  %473 = vmatpush.bf16.msra.mxu0 0
  %474 = vmatpush.bf16.msra.mxu0 0
  %475 = vmatpush.bf16.msra.mxu0 0
  %476 = vmatpush.bf16.msra.mxu0 %v467
  %477 = vmatmul.bf16.gmra.mxu0 %v463
  %v478 = vpop.f32.mrf.mxu0
  %v479 = vadd.f32 0.0, %v478
  %v480 = vpop.f32.mrf.mxu0
  %481 = vdwg.mxu0
  %v483 = vsel %vm461, %v454, 0
  %v486 = vsel %vm465, %v458, 0
  %488 = vmatpush.bf16.msra.mxu0 0
  %489 = vmatpush.bf16.msra.mxu0 0
  %490 = vmatpush.bf16.msra.mxu0 0
  %491 = vmatpush.bf16.msra.mxu0 0
  %492 = vmatpush.bf16.msra.mxu0 0
  %493 = vmatpush.bf16.msra.mxu0 0
  %494 = vmatpush.bf16.msra.mxu0 0
  %495 = vmatpush.bf16.msra.mxu0 %v486
  %496 = vmatmul.bf16.gmra.mxu0 %v483
  %v497 = vpop.f32.mrf.mxu0
  %v498 = vadd.f32 0.0, %v497
  %v499 = vpop.f32.mrf.mxu0
  %500 = vdwg.mxu0
  %v502 = vsel %vm461, %v455, 0
  %v505 = vsel %vm465, %v459, 0
  %507 = vmatpush.bf16.msra.mxu0 0
  %508 = vmatpush.bf16.msra.mxu0 0
  %509 = vmatpush.bf16.msra.mxu0 0
  %510 = vmatpush.bf16.msra.mxu0 0
  %511 = vmatpush.bf16.msra.mxu0 0
  %512 = vmatpush.bf16.msra.mxu0 0
  %513 = vmatpush.bf16.msra.mxu0 0
  %514 = vmatpush.bf16.msra.mxu0 %v505
  %515 = vmatmul.bf16.gmra.mxu0 %v502
  %v516 = vpop.f32.mrf.mxu0
  %v517 = vadd.f32 0.0, %v516
  %v518 = vpop.f32.mrf.mxu0
  %519 = vdwg.mxu0
  %v521 = vsel %vm461, %v456, 0
  %v524 = vsel %vm465, %v460, 0
  %526 = vmatpush.bf16.msra.mxu0 0
  %527 = vmatpush.bf16.msra.mxu0 0
  %528 = vmatpush.bf16.msra.mxu0 0
  %529 = vmatpush.bf16.msra.mxu0 0
  %530 = vmatpush.bf16.msra.mxu0 0
  %531 = vmatpush.bf16.msra.mxu0 0
  %532 = vmatpush.bf16.msra.mxu0 0
  %533 = vmatpush.bf16.msra.mxu0 %v524
  %534 = vmatmul.bf16.gmra.mxu0 %v521
  %v535 = vpop.f32.mrf.mxu0
  %v536 = vadd.f32 0.0, %v535
  %v537 = vpop.f32.mrf.mxu0
  %538 = vdwg.mxu0
  %v539 = vrot.slane %v517, 4
  %v540 = vsel %vm130, %v539, %v479
  %v542 = vunpack.c.l.s4 1983009808
  %v543 = vunpack.c.0.s8 %v542
  %v544 = vperm.slane %v540, %v543
  %v545 = vrot.slane %v536, 4
  %v546 = vsel %vm130, %v545, %v498
  %v548 = vunpack.c.l.s4 1983009808
  %v549 = vunpack.c.0.s8 %v548
  %v550 = vperm.slane %v546, %v549
  %v551 = vrot.slane %v550, 4
  %v552 = vsel %vm130, %v551, %v544
  %v553 = vrot.slane %v544, 4
  %v554 = vsel %vm130, %v550, %v553
  %v556 = vunpack.c.l.s4 1934713408
  %v557 = vunpack.c.0.s8 %v556
  %v558 = vperm.slane %v552, %v557
  %v560 = vunpack.c.l.s4 1934713408
  %v561 = vunpack.c.0.s8 %v560
  %v562 = vperm.slane %v554, %v561
  %v563 = vrot.slane %v558, 4
  %v564 = vsel %vm130, 0.0, %v563
  %v565 = vrot.slane %v562, 4
  %v566 = vsel %vm130, 0.0, %v565
  %v567 = vsel %vm130, %v565, %v558
  %v569 = vunpack.c.l.s4 1983009808
  %v570 = vunpack.c.0.s8 %v569
  %v571 = vperm.slane %v567, %v570
  %v572 = vrot.slane %v566, 4
  %v573 = vsel %vm130, %v572, %v564
  %v575 = vunpack.c.l.s4 1983009808
  %v576 = vunpack.c.0.s8 %v575
  %v577 = vperm.slane %v573, %v576
  %v578 = vrot.slane %v577, 4
  %v579 = vsel %vm130, %v578, %v571
  %v580 = vrot.slane %v571, 4
  %v581 = vsel %vm130, %v577, %v580
  %v583 = vunpack.c.l.s4 1934713408
  %v584 = vunpack.c.0.s8 %v583
  %v585 = vperm.slane %v579, %v584
  %v587 = vunpack.c.l.s4 1934713408
  %v588 = vunpack.c.0.s8 %v587
  %v589 = vperm.slane %v581, %v588
  %v590 = vrot.slane %v585, 4
  %v591 = vsel %vm130, 0.0, %v590
  %v592 = vrot.slane %v589, 4
  %v593 = vsel %vm130, 0.0, %v592
  %595 = vrot.lane.b32.xlu0 %v591, 8
  %v596 = vpop.permute.xlu0 %595
  %599 = vrot.lane.b32.xlu0 %v589, 16
  %v600 = vpop.permute.xlu0 %599
  %603 = vrot.lane.b32.xlu0 %v593, 24
  %v604 = vpop.permute.xlu0 %603
  %v606 = vsel %vm327, %v585, %v596
  %vm607 = vcmask 130048
  %v608 = vsel %vm607, %v606, %v600
  %vm609 = vcmask 195584
  %v610 = vsel %vm609, %v608, %v604
  %vm611 = vcmask 257024
  %612 = vst.msk [vmem:[#allocation3] sm:$0xf] %vm611, %v610
  %v613 = vld [vmem:[#allocation2 + $0x4] sm:$0xf]
  %615 = vrot.lane.b32.xlu0 %v613, 120
  %v616 = vpop.permute.xlu0 %615
  %618 = vrot.lane.b32.xlu0 %v613, 112
  %v619 = vpop.permute.xlu0 %618
  %621 = vrot.lane.b32.xlu0 %v613, 104
  %v622 = vpop.permute.xlu0 %621
  %v624 = vrot.slane %v619, 4
  %v625 = vsel %vm130, %v624, %v613
  %v627 = vunpack.c.l.s4 1983009808
  %v628 = vunpack.c.0.s8 %v627
  %v629 = vperm.slane %v625, %v628
  %v630 = vrot.slane %v622, 4
  %v631 = vsel %vm130, %v630, %v616
  %v633 = vunpack.c.l.s4 1983009808
  %v634 = vunpack.c.0.s8 %v633
  %v635 = vperm.slane %v631, %v634
  %v636 = vrot.slane %v635, 4
  %v637 = vsel %vm130, %v636, %v629
  %v638 = vrot.slane %v629, 4
  %v639 = vsel %vm130, %v635, %v638
  %v641 = vunpack.c.l.s4 1934713408
  %v642 = vunpack.c.0.s8 %v641
  %v643 = vperm.slane %v637, %v642
  %v645 = vunpack.c.l.s4 1934713408
  %v646 = vunpack.c.0.s8 %v645
  %v647 = vperm.slane %v639, %v646
  %v648 = vrot.slane %v643, 4
  %v649 = vsel %vm130, 0.0, %v648
  %v650 = vrot.slane %v647, 4
  %v651 = vsel %vm130, 0.0, %v650
  %v652 = vsel %vm130, %v650, %v643
  %v654 = vunpack.c.l.s4 1983009808
  %v655 = vunpack.c.0.s8 %v654
  %v656 = vperm.slane %v652, %v655
  %v657 = vrot.slane %v651, 4
  %v658 = vsel %vm130, %v657, %v649
  %v660 = vunpack.c.l.s4 1983009808
  %v661 = vunpack.c.0.s8 %v660
  %v662 = vperm.slane %v658, %v661
  %v663 = vrot.slane %v662, 4
  %v664 = vsel %vm130, %v663, %v656
  %v665 = vrot.slane %v656, 4
  %v666 = vsel %vm130, %v662, %v665
  %v668 = vunpack.c.l.s4 1934713408
  %v669 = vunpack.c.0.s8 %v668
  %v670 = vperm.slane %v664, %v669
  %v672 = vunpack.c.l.s4 1934713408
  %v673 = vunpack.c.0.s8 %v672
  %v674 = vperm.slane %v666, %v673
  %v675 = vrot.slane %v670, 4
  %v676 = vsel %vm130, 0.0, %v675
  %v677 = vrot.slane %v674, 4
  %v678 = vsel %vm130, 0.0, %v677
  %679 = vrot.lane.b32.xlu0 %v613, 96
  %v680 = vpop.permute.xlu0 %679
  %681 = vrot.lane.b32.xlu0 %v616, 96
  %v682 = vpop.permute.xlu0 %681
  %683 = vrot.lane.b32.xlu0 %v619, 96
  %v684 = vpop.permute.xlu0 %683
  %685 = vrot.lane.b32.xlu0 %v622, 96
  %v686 = vpop.permute.xlu0 %685
  %v691 = vrot.slane %v684, 4
  %v692 = vsel %vm130, %v691, %v680
  %v694 = vunpack.c.l.s4 1983009808
  %v695 = vunpack.c.0.s8 %v694
  %v696 = vperm.slane %v692, %v695
  %v697 = vrot.slane %v686, 4
  %v698 = vsel %vm130, %v697, %v682
  %v700 = vunpack.c.l.s4 1983009808
  %v701 = vunpack.c.0.s8 %v700
  %v702 = vperm.slane %v698, %v701
  %v703 = vrot.slane %v702, 4
  %v704 = vsel %vm130, %v703, %v696
  %v705 = vrot.slane %v696, 4
  %v706 = vsel %vm130, %v702, %v705
  %v708 = vunpack.c.l.s4 1934713408
  %v709 = vunpack.c.0.s8 %v708
  %v710 = vperm.slane %v704, %v709
  %v712 = vunpack.c.l.s4 1934713408
  %v713 = vunpack.c.0.s8 %v712
  %v714 = vperm.slane %v706, %v713
  %v715 = vrot.slane %v710, 4
  %v716 = vsel %vm130, 0.0, %v715
  %v717 = vrot.slane %v714, 4
  %v718 = vsel %vm130, 0.0, %v717
  %v719 = vsel %vm130, %v717, %v710
  %v721 = vunpack.c.l.s4 1983009808
  %v722 = vunpack.c.0.s8 %v721
  %v723 = vperm.slane %v719, %v722
  %v724 = vrot.slane %v718, 4
  %v725 = vsel %vm130, %v724, %v716
  %v727 = vunpack.c.l.s4 1983009808
  %v728 = vunpack.c.0.s8 %v727
  %v729 = vperm.slane %v725, %v728
  %v730 = vrot.slane %v729, 4
  %v731 = vsel %vm130, %v730, %v723
  %v732 = vrot.slane %v723, 4
  %v733 = vsel %vm130, %v729, %v732
  %v735 = vunpack.c.l.s4 1934713408
  %v736 = vunpack.c.0.s8 %v735
  %v737 = vperm.slane %v731, %v736
  %v739 = vunpack.c.l.s4 1934713408
  %v740 = vunpack.c.0.s8 %v739
  %v741 = vperm.slane %v733, %v740
  %v742 = vrot.slane %v737, 4
  %v743 = vsel %vm130, 0.0, %v742
  %v744 = vrot.slane %v741, 4
  %v745 = vsel %vm130, 0.0, %v744
  %746 = vrot.lane.b32.xlu0 %v613, 64
  %v747 = vpop.permute.xlu0 %746
  %748 = vrot.lane.b32.xlu0 %v616, 64
  %v749 = vpop.permute.xlu0 %748
  %750 = vrot.lane.b32.xlu0 %v619, 64
  %v751 = vpop.permute.xlu0 %750
  %752 = vrot.lane.b32.xlu0 %v622, 64
  %v753 = vpop.permute.xlu0 %752
  %v758 = vrot.slane %v751, 4
  %v759 = vsel %vm130, %v758, %v747
  %v761 = vunpack.c.l.s4 1983009808
  %v762 = vunpack.c.0.s8 %v761
  %v763 = vperm.slane %v759, %v762
  %v764 = vrot.slane %v753, 4
  %v765 = vsel %vm130, %v764, %v749
  %v767 = vunpack.c.l.s4 1983009808
  %v768 = vunpack.c.0.s8 %v767
  %v769 = vperm.slane %v765, %v768
  %v770 = vrot.slane %v769, 4
  %v771 = vsel %vm130, %v770, %v763
  %v772 = vrot.slane %v763, 4
  %v773 = vsel %vm130, %v769, %v772
  %v775 = vunpack.c.l.s4 1934713408
  %v776 = vunpack.c.0.s8 %v775
  %v777 = vperm.slane %v771, %v776
  %v779 = vunpack.c.l.s4 1934713408
  %v780 = vunpack.c.0.s8 %v779
  %v781 = vperm.slane %v773, %v780
  %v782 = vrot.slane %v777, 4
  %v783 = vsel %vm130, 0.0, %v782
  %v784 = vrot.slane %v781, 4
  %v785 = vsel %vm130, 0.0, %v784
  %v786 = vsel %vm130, %v784, %v777
  %v788 = vunpack.c.l.s4 1983009808
  %v789 = vunpack.c.0.s8 %v788
  %v790 = vperm.slane %v786, %v789
  %v791 = vrot.slane %v785, 4
  %v792 = vsel %vm130, %v791, %v783
  %v794 = vunpack.c.l.s4 1983009808
  %v795 = vunpack.c.0.s8 %v794
  %v796 = vperm.slane %v792, %v795
  %v797 = vrot.slane %v796, 4
  %v798 = vsel %vm130, %v797, %v790
  %v799 = vrot.slane %v790, 4
  %v800 = vsel %vm130, %v796, %v799
  %v802 = vunpack.c.l.s4 1934713408
  %v803 = vunpack.c.0.s8 %v802
  %v804 = vperm.slane %v798, %v803
  %v806 = vunpack.c.l.s4 1934713408
  %v807 = vunpack.c.0.s8 %v806
  %v808 = vperm.slane %v800, %v807
  %v809 = vrot.slane %v804, 4
  %v810 = vsel %vm130, 0.0, %v809
  %v811 = vrot.slane %v808, 4
  %v812 = vsel %vm130, 0.0, %v811
  %v813 = vpack.c.bf16 %v670, %v670
  %v814 = vpack.c.bf16 %v676, %v676
  %v815 = vpack.c.bf16 %v674, %v674
  %v816 = vpack.c.bf16 %v678, %v678
  %v817 = vpack.c.bf16 %v737, %v737
  %v818 = vpack.c.bf16 %v743, %v743
  %v819 = vpack.c.bf16 %v741, %v741
  %v820 = vpack.c.bf16 %v745, %v745
  %v822 = vsel %vm327, %v813, 0
  %v825 = vsel %vm327, %v817, 0
  %827 = vmatpush.bf16.xpose.msra.mxu0 0
  %828 = vmatpush.bf16.xpose.msra.mxu0 0
  %829 = vmatpush.bf16.xpose.msra.mxu0 0
  %830 = vmatpush.bf16.xpose.msra.mxu0 0
  %831 = vmatpush.bf16.xpose.msra.mxu0 0
  %832 = vmatpush.bf16.xpose.msra.mxu0 0
  %833 = vmatpush.bf16.xpose.msra.mxu0 0
  %834 = vmatpush.bf16.xpose.msra.mxu0 %v825
  %835 = vmatmul.bf16.gmra.mxu0 %v822
  %v836 = vpop.f32.mrf.mxu0
  %v837 = vadd.f32 0.0, %v836
  %v838 = vpop.f32.mrf.mxu0
  %839 = vdwg.mxu0
  %v841 = vsel %vm327, %v814, 0
  %v844 = vsel %vm327, %v818, 0
  %846 = vmatpush.bf16.xpose.msra.mxu0 0
  %847 = vmatpush.bf16.xpose.msra.mxu0 0
  %848 = vmatpush.bf16.xpose.msra.mxu0 0
  %849 = vmatpush.bf16.xpose.msra.mxu0 0
  %850 = vmatpush.bf16.xpose.msra.mxu0 0
  %851 = vmatpush.bf16.xpose.msra.mxu0 0
  %852 = vmatpush.bf16.xpose.msra.mxu0 0
  %853 = vmatpush.bf16.xpose.msra.mxu0 %v844
  %854 = vmatmul.bf16.gmra.mxu0 %v841
  %v855 = vpop.f32.mrf.mxu0
  %v856 = vadd.f32 0.0, %v855
  %v857 = vpop.f32.mrf.mxu0
  %858 = vdwg.mxu0
  %v860 = vsel %vm327, %v815, 0
  %v863 = vsel %vm327, %v819, 0
  %865 = vmatpush.bf16.xpose.msra.mxu0 0
  %866 = vmatpush.bf16.xpose.msra.mxu0 0
  %867 = vmatpush.bf16.xpose.msra.mxu0 0
  %868 = vmatpush.bf16.xpose.msra.mxu0 0
  %869 = vmatpush.bf16.xpose.msra.mxu0 0
  %870 = vmatpush.bf16.xpose.msra.mxu0 0
  %871 = vmatpush.bf16.xpose.msra.mxu0 0
  %872 = vmatpush.bf16.xpose.msra.mxu0 %v863
  %873 = vmatmul.bf16.gmra.mxu0 %v860
  %v874 = vpop.f32.mrf.mxu0
  %v875 = vadd.f32 0.0, %v874
  %v876 = vpop.f32.mrf.mxu0
  %877 = vdwg.mxu0
  %v879 = vsel %vm327, %v816, 0
  %v882 = vsel %vm327, %v820, 0
  %884 = vmatpush.bf16.xpose.msra.mxu0 0
  %885 = vmatpush.bf16.xpose.msra.mxu0 0
  %886 = vmatpush.bf16.xpose.msra.mxu0 0
  %887 = vmatpush.bf16.xpose.msra.mxu0 0
  %888 = vmatpush.bf16.xpose.msra.mxu0 0
  %889 = vmatpush.bf16.xpose.msra.mxu0 0
  %890 = vmatpush.bf16.xpose.msra.mxu0 0
  %891 = vmatpush.bf16.xpose.msra.mxu0 %v882
  %892 = vmatmul.bf16.gmra.mxu0 %v879
  %v893 = vpop.f32.mrf.mxu0
  %v894 = vadd.f32 0.0, %v893
  %v895 = vpop.f32.mrf.mxu0
  %896 = vdwg.mxu0
  %v897 = vmul.f32 %v837, 0.35355338
  %v898 = vmul.f32 %v856, 0.35355338
  %v899 = vmul.f32 %v875, 0.35355338
  %v900 = vmul.f32 %v894, 0.35355338
  %v901 = vsel %vm408, %v897, -inf
  %902 = vmax.xlane.f32.xlu0 %v901
  %v903 = vpop.xlane.xlu0 %902
  %v904 = vsel %vm408, %v898, -inf
  %905 = vmax.xlane.f32.xlu0 %v904
  %v906 = vpop.xlane.xlu0 %905
  %v907 = vsel %vm408, %v899, -inf
  %908 = vmax.xlane.f32.xlu0 %v907
  %v909 = vpop.xlane.xlu0 %908
  %v910 = vsel %vm408, %v900, -inf
  %911 = vmax.xlane.f32.xlu0 %v910
  %v912 = vpop.xlane.xlu0 %911
  %v913 = vsub.f32 %v897, %v903
  %v914 = vsub.f32 %v898, %v906
  %v915 = vsub.f32 %v899, %v909
  %v916 = vsub.f32 %v900, %v912
  %v917 = vmul.f32 %v913, 1.442695
  %v918 = vpow.pop %v917
  %v919 = vmul.f32 %v914, 1.442695
  %v920 = vpow.pop %v919
  %v921 = vmul.f32 %v915, 1.442695
  %v922 = vpow.pop %v921
  %v923 = vmul.f32 %v916, 1.442695
  %v924 = vpow.pop %v923
  %v925 = vsel %vm408, %v918, 0.0
  %926 = vadd.xlane.f32.xlu0 %v925
  %v927 = vpop.xlane.xlu0 %926
  %v928 = vsel %vm408, %v920, 0.0
  %929 = vadd.xlane.f32.xlu0 %v928
  %v930 = vpop.xlane.xlu0 %929
  %v931 = vsel %vm408, %v922, 0.0
  %932 = vadd.xlane.f32.xlu0 %v931
  %v933 = vpop.xlane.xlu0 %932
  %v934 = vsel %vm408, %v924, 0.0
  %935 = vadd.xlane.f32.xlu0 %v934
  %v936 = vpop.xlane.xlu0 %935
  %v937 = vrcp.pop %v927
  %v938 = vrcp.pop %v930
  %v939 = vrcp.pop %v933
  %v940 = vrcp.pop %v936
  %v941 = vmul.f32 %v918, %v937
  %v942 = vmul.f32 %v920, %v938
  %v943 = vmul.f32 %v922, %v939
  %v944 = vmul.f32 %v924, %v940
  %v945 = vpack.c.bf16 %v941, %v941
  %v946 = vpack.c.bf16 %v942, %v942
  %v947 = vpack.c.bf16 %v943, %v943
  %v948 = vpack.c.bf16 %v944, %v944
  %v949 = vpack.c.bf16 %v804, %v804
  %v950 = vpack.c.bf16 %v810, %v810
  %v951 = vpack.c.bf16 %v808, %v808
  %v952 = vpack.c.bf16 %v812, %v812
  %v954 = vsel %vm461, %v945, 0
  %v957 = vsel %vm465, %v949, 0
  %959 = vmatpush.bf16.msra.mxu0 0
  %960 = vmatpush.bf16.msra.mxu0 0
  %961 = vmatpush.bf16.msra.mxu0 0
  %962 = vmatpush.bf16.msra.mxu0 0
  %963 = vmatpush.bf16.msra.mxu0 0
  %964 = vmatpush.bf16.msra.mxu0 0
  %965 = vmatpush.bf16.msra.mxu0 0
  %966 = vmatpush.bf16.msra.mxu0 %v957
  %967 = vmatmul.bf16.gmra.mxu0 %v954
  %v968 = vpop.f32.mrf.mxu0
  %v969 = vadd.f32 0.0, %v968
  %v970 = vpop.f32.mrf.mxu0
  %971 = vdwg.mxu0
  %v973 = vsel %vm461, %v946, 0
  %v976 = vsel %vm465, %v950, 0
  %978 = vmatpush.bf16.msra.mxu0 0
  %979 = vmatpush.bf16.msra.mxu0 0
  %980 = vmatpush.bf16.msra.mxu0 0
  %981 = vmatpush.bf16.msra.mxu0 0
  %982 = vmatpush.bf16.msra.mxu0 0
  %983 = vmatpush.bf16.msra.mxu0 0
  %984 = vmatpush.bf16.msra.mxu0 0
  %985 = vmatpush.bf16.msra.mxu0 %v976
  %986 = vmatmul.bf16.gmra.mxu0 %v973
  %v987 = vpop.f32.mrf.mxu0
  %v988 = vadd.f32 0.0, %v987
  %v989 = vpop.f32.mrf.mxu0
  %990 = vdwg.mxu0
  %v992 = vsel %vm461, %v947, 0
  %v995 = vsel %vm465, %v951, 0
  %997 = vmatpush.bf16.msra.mxu0 0
  %998 = vmatpush.bf16.msra.mxu0 0
  %999 = vmatpush.bf16.msra.mxu0 0
  %1000 = vmatpush.bf16.msra.mxu0 0
  %1001 = vmatpush.bf16.msra.mxu0 0
  %1002 = vmatpush.bf16.msra.mxu0 0
  %1003 = vmatpush.bf16.msra.mxu0 0
  %1004 = vmatpush.bf16.msra.mxu0 %v995
  %1005 = vmatmul.bf16.gmra.mxu0 %v992
  %v1006 = vpop.f32.mrf.mxu0
  %v1007 = vadd.f32 0.0, %v1006
  %v1008 = vpop.f32.mrf.mxu0
  %1009 = vdwg.mxu0
  %v1011 = vsel %vm461, %v948, 0
  %v1014 = vsel %vm465, %v952, 0
  %1016 = vmatpush.bf16.msra.mxu0 0
  %1017 = vmatpush.bf16.msra.mxu0 0
  %1018 = vmatpush.bf16.msra.mxu0 0
  %1019 = vmatpush.bf16.msra.mxu0 0
  %1020 = vmatpush.bf16.msra.mxu0 0
  %1021 = vmatpush.bf16.msra.mxu0 0
  %1022 = vmatpush.bf16.msra.mxu0 0
  %1023 = vmatpush.bf16.msra.mxu0 %v1014
  %1024 = vmatmul.bf16.gmra.mxu0 %v1011
  %v1025 = vpop.f32.mrf.mxu0
  %v1026 = vadd.f32 0.0, %v1025
  %v1027 = vpop.f32.mrf.mxu0
  %1028 = vdwg.mxu0
  %v1029 = vrot.slane %v1007, 4
  %v1030 = vsel %vm130, %v1029, %v969
  %v1032 = vunpack.c.l.s4 1983009808
  %v1033 = vunpack.c.0.s8 %v1032
  %v1034 = vperm.slane %v1030, %v1033
  %v1035 = vrot.slane %v1026, 4
  %v1036 = vsel %vm130, %v1035, %v988
  %v1038 = vunpack.c.l.s4 1983009808
  %v1039 = vunpack.c.0.s8 %v1038
  %v1040 = vperm.slane %v1036, %v1039
  %v1041 = vrot.slane %v1040, 4
  %v1042 = vsel %vm130, %v1041, %v1034
  %v1043 = vrot.slane %v1034, 4
  %v1044 = vsel %vm130, %v1040, %v1043
  %v1046 = vunpack.c.l.s4 1934713408
  %v1047 = vunpack.c.0.s8 %v1046
  %v1048 = vperm.slane %v1042, %v1047
  %v1050 = vunpack.c.l.s4 1934713408
  %v1051 = vunpack.c.0.s8 %v1050
  %v1052 = vperm.slane %v1044, %v1051
  %v1053 = vrot.slane %v1048, 4
  %v1054 = vsel %vm130, 0.0, %v1053
  %v1055 = vrot.slane %v1052, 4
  %v1056 = vsel %vm130, 0.0, %v1055
  %v1057 = vsel %vm130, %v1055, %v1048
  %v1059 = vunpack.c.l.s4 1983009808
  %v1060 = vunpack.c.0.s8 %v1059
  %v1061 = vperm.slane %v1057, %v1060
  %v1062 = vrot.slane %v1056, 4
  %v1063 = vsel %vm130, %v1062, %v1054
  %v1065 = vunpack.c.l.s4 1983009808
  %v1066 = vunpack.c.0.s8 %v1065
  %v1067 = vperm.slane %v1063, %v1066
  %v1068 = vrot.slane %v1067, 4
  %v1069 = vsel %vm130, %v1068, %v1061
  %v1070 = vrot.slane %v1061, 4
  %v1071 = vsel %vm130, %v1067, %v1070
  %v1073 = vunpack.c.l.s4 1934713408
  %v1074 = vunpack.c.0.s8 %v1073
  %v1075 = vperm.slane %v1069, %v1074
  %v1077 = vunpack.c.l.s4 1934713408
  %v1078 = vunpack.c.0.s8 %v1077
  %v1079 = vperm.slane %v1071, %v1078
  %v1080 = vrot.slane %v1075, 4
  %v1081 = vsel %vm130, 0.0, %v1080
  %v1082 = vrot.slane %v1079, 4
  %v1083 = vsel %vm130, 0.0, %v1082
  %1085 = vrot.lane.b32.xlu0 %v1081, 8
  %v1086 = vpop.permute.xlu0 %1085
  %1089 = vrot.lane.b32.xlu0 %v1079, 16
  %v1090 = vpop.permute.xlu0 %1089
  %1093 = vrot.lane.b32.xlu0 %v1083, 24
  %v1094 = vpop.permute.xlu0 %1093
  %v1096 = vsel %vm327, %v1075, %v1086
  %v1097 = vsel %vm607, %v1096, %v1090
  %v1098 = vsel %vm609, %v1097, %v1094
  %1099 = vst.msk [vmem:[#allocation3 + $0x4] sm:$0xf] %vm611, %v1098
  %v1100 = vld [vmem:[#allocation3] sm:$0xff]
  %v1101 = vpack.c.bf16 %v1100, %v1100
  %v1102 = vld [vmem:[%s4] sm:$0xf]
  %v1103 = vld [vmem:[%s4 + $0x4] sm:$0xf]
  %v1104 = vld [vmem:[%s4 + $0x8] sm:$0xf]
  %v1105 = vld [vmem:[%s4 + $0xc] sm:$0xf]
  %v1106 = vld [vmem:[%s5] sm:$0x1]
  %v1108 = vperm.slane %v1106, 0
  %v1114 = vunpack.c.l.b16 %v1102
  %v1115 = vunpack.c.l.b16 %v1103
  %v1116 = vunpack.c.l.b16 %v1104
  %v1117 = vunpack.c.l.b16 %v1105
  %v1118 = vpack.c.b16 %v1115, %v1114
  %v1119 = vpack.c.b16 %v1117, %v1116
  %v1123 = vsel %vm43, %v1101, 0
  %1125 = vmatpush.bf16.msra.mxu0 0
  %1126 = vmatpush.bf16.msra.mxu0 0
  %1127 = vmatpush.bf16.msra.mxu0 0
  %1128 = vmatpush.bf16.msra.mxu0 0
  %1129 = vmatpush.bf16.msra.mxu0 0
  %1130 = vmatpush.bf16.msra.mxu0 0
  %1131 = vmatpush.bf16.msra.mxu0 %v1119
  %1132 = vmatpush.bf16.msra.mxu0 %v1118
  %1133 = vmatmul.bf16.gmra.mxu0 %v1123
  %v1134 = vpop.f32.mrf.mxu0
  %v1135 = vadd.f32 %v1108, %v1134
  %v1136 = vpop.f32.mrf.mxu0
  %1137 = vdwg.mxu0
  %v1138 = vadd.f32 %v42, %v1135
  %v1139 = vsel %vm43, %v1138, 0.0
  %1140 = vadd.xlane.f32.xlu0 %v1139
  %v1141 = vpop.xlane.xlu0 %1140
  %v1142 = vmul.f32 %v1141, %v53
  %v1143 = vsub.f32 %v1138, %v1142
  %v1144 = vmul.f32 %v1143, %v1143
  %v1145 = vsel %vm43, %v1144, 0.0
  %1146 = vadd.xlane.f32.xlu0 %v1145
  %v1147 = vpop.xlane.xlu0 %1146
  %v1148 = vmul.f32 %v1147, %v53
  %v1149 = vadd.f32 %v1148, 1e-05
  %v1150 = vrsqrt.pop %v1149
  %v1151 = vmul.f32 %v1150, %v1149
  %v1152 = vmul.f32 %v1151, %v1150
  %v1153 = vmul.f32 0.5, %v1152
  %v1154 = vsub.f32 1.5, %v1153
  %v1155 = vmul.f32 %v1150, %v1154
  %vm1156 = vweird.f32 %v1149
  %vm1157 = vweird.f32 %v1150
  %vm1158 = vmor %vm1156, %vm1157
  %v1159 = vsel %vm1158, %v1150, %v1155
  %v1160 = vmul.f32 %v1143, %v1159
  %v1161 = vld [vmem:[%s6] sm:$0x1]
  %v1163 = vperm.slane %v1161, 0
  %v1165 = vmul.f32 %v1160, %v1163
  %v1166 = vld [vmem:[%s7] sm:$0x1]
  %v1168 = vperm.slane %v1166, 0
  %v1170 = vadd.f32 %v1165, %v1168
  %v1171 = vpack.c.bf16 %v1170, %v1170
  %v1172 = vld [vmem:[%s8] sm:$0xf]
  %v1173 = vld [vmem:[%s8 + $0x4] sm:$0xf]
  %v1174 = vld [vmem:[%s8 + $0x8] sm:$0xf]
  %v1175 = vld [vmem:[%s8 + $0xc] sm:$0xf]
  %v1176 = vld [vmem:[%s9] sm:$0x1]
  %v1178 = vperm.slane %v1176, 0
  %v1184 = vunpack.c.l.b16 %v1172
  %v1185 = vunpack.c.l.b16 %v1173
  %v1186 = vunpack.c.l.b16 %v1174
  %v1187 = vunpack.c.l.b16 %v1175
  %v1188 = vpack.c.b16 %v1185, %v1184
  %v1189 = vpack.c.b16 %v1187, %v1186
  %v1193 = vsel %vm43, %v1171, 0
  %1195 = vmatpush.bf16.msra.mxu0 0
  %1196 = vmatpush.bf16.msra.mxu0 0
  %1197 = vmatpush.bf16.msra.mxu0 0
  %1198 = vmatpush.bf16.msra.mxu0 0
  %1199 = vmatpush.bf16.msra.mxu0 0
  %1200 = vmatpush.bf16.msra.mxu0 0
  %1201 = vmatpush.bf16.msra.mxu0 %v1189
  %1202 = vmatpush.bf16.msra.mxu0 %v1188
  %1203 = vmatmul.bf16.gmra.mxu0 %v1193
  %v1204 = vpop.f32.mrf.mxu0
  %v1205 = vadd.f32 %v1178, %v1204
  %v1206 = vpop.f32.mrf.mxu0
  %1207 = vdwg.mxu0
  %v1208 = vmul.f32 %v1205, %v1205
  %v1209 = vmul.f32 %v1205, %v1208
  %v1210 = vmul.f32 %v1209, 0.044715
  %v1211 = vadd.f32 %v1205, %v1210
  %v1212 = vmul.f32 %v1211, 0.7978846
  %v1213 = vtanh.pop %v1212
  %v1214 = vadd.f32 %v1213, 1.0
  %v1215 = vmul.f32 %v1214, 0.5
  %v1216 = vmul.f32 %v1205, %v1215
  %v1217 = vpack.c.bf16 %v1216, %v1216
  %v1218 = vld [vmem:[%s10] sm:$0xf]
  %v1219 = vld [vmem:[%s10 + $0x4] sm:$0xf]
  %v1220 = vld [vmem:[%s10 + $0x8] sm:$0xf]
  %v1221 = vld [vmem:[%s10 + $0xc] sm:$0xf]
  %v1222 = vld [vmem:[%s10 + $0x10] sm:$0xf]
  %v1223 = vld [vmem:[%s10 + $0x14] sm:$0xf]
  %v1224 = vld [vmem:[%s10 + $0x18] sm:$0xf]
  %v1225 = vld [vmem:[%s10 + $0x1c] sm:$0xf]
  %v1226 = vld [vmem:[%s11] sm:$0x1]
  %v1228 = vperm.slane %v1226, 0
  %v1238 = vunpack.c.l.b16 %v1218
  %v1239 = vunpack.c.l.b16 %v1219
  %v1240 = vunpack.c.l.b16 %v1220
  %v1241 = vunpack.c.l.b16 %v1221
  %v1242 = vunpack.c.l.b16 %v1222
  %v1243 = vunpack.c.l.b16 %v1223
  %v1244 = vunpack.c.l.b16 %v1224
  %v1245 = vunpack.c.l.b16 %v1225
  %v1246 = vpack.c.b16 %v1239, %v1238
  %v1247 = vpack.c.b16 %v1241, %v1240
  %v1248 = vpack.c.b16 %v1243, %v1242
  %v1249 = vpack.c.b16 %v1245, %v1244
  %vm1254 = vcmask 523264
  %v1256 = vsel %vm1254, %v1217, 0
  %1258 = vmatpush.bf16.msra.mxu0 0
  %1259 = vmatpush.bf16.msra.mxu0 0
  %1260 = vmatpush.bf16.msra.mxu0 0
  %1261 = vmatpush.bf16.msra.mxu0 0
  %1262 = vmatpush.bf16.msra.mxu0 %v1249
  %1263 = vmatpush.bf16.msra.mxu0 %v1248
  %1264 = vmatpush.bf16.msra.mxu0 %v1247
  %1265 = vmatpush.bf16.msra.mxu0 %v1246
  %1266 = vmatmul.bf16.gmra.mxu0 %v1256
  %v1267 = vpop.f32.mrf.mxu0
  %v1268 = vadd.f32 %v1228, %v1267
  %v1269 = vpop.f32.mrf.mxu0
  %1270 = vdwg.mxu0
  %v1271 = vadd.f32 %v1138, %v1268
  %1272 = vst.msk [vmem:[%s12] sm:$0xff] %vm43, %v1271
  // Predicated region
  $region50: #{mae_forward.7} parent=0 // pred_check
    _
  $region51: #{mae_forward.7} parent=0 // pred_check_branch
    %1274 = sbr.rel (0) target = $region53
  $region52: #{mae_forward.7} parent=0 // pred_region
    _
  $region53: #{mae_forward.7} parent=0 // pred_fallthru
    _
  // Predicated region
  $region54: #{mae_forward.7} parent=0 // pred_check
    _
  $region55: #{mae_forward.7} parent=0 // pred_check_branch
    %1276 = sbr.rel (0) target = $region57
  $region56: #{mae_forward.7} parent=0 // pred_region
    _
  $region57: #{mae_forward.7} parent=0 // pred_fallthru
    _

// kernel: mae_forward.11
$region0: #{mae_forward.11}
  #allocation0 [shape = 'u32[]', space=smem, size = 0x4, offset = 0x4, fixed_abs, tag = 'smem constant byte address 0x4 - core index']
  #allocation1 [shape = 'u32[72,128]{1,0:T(1,128)}', space=vmem, size = 0x9000, scoped, tag = 'internal scratch']
  %s0 = inlined_call_operand.vmem [shape: f32[2,12,64], index: 0, kind: input, shape index: {}]
  %s1 = inlined_call_operand.vmem [shape: f32[1,64], index: 1, kind: input, shape index: {}]
  %s2 = inlined_call_operand.vmem [shape: f32[1,64], index: 2, kind: input, shape index: {}]
  %s3 = inlined_call_operand.vmem [shape: bf16[64,256], index: 3, kind: input, shape index: {}]
  %s4 = inlined_call_operand.vmem [shape: f32[1,256], index: 4, kind: input, shape index: {}]
  %s5 = inlined_call_operand.vmem [shape: f32[2,12,256], index: 5, kind: output, shape index: {}]
  %s6 = sld [smem:[#allocation0]]
  $region53: #{mae_forward.11} parent=0
    _
  %s8 = ssub.s32 1, %s6
  %s9 = scalar_select 0, %s8, %s6
  loop: start=0, step=1, limit=4
  $region2: #{mae_forward.11} parent=0 // loop_pre_header
    _
  $region3: #{mae_forward.11} parent=0 // loop_header
    %s11 = sphi 0, %s15
    %p12 = scmp.ge.s32.totalorder %s11, 4
    %s18 = sphi 0, %s30
    %s19 = sphi 0, %s26
    %s20 = sphi 0, %s18
    %s21 = sphi 0, %s19
    %s22 = sphi 0, %s20
    %s23 = sphi 0, %s21
    %s35 = sphi 0, %s37
    %s38 = sphi 0, %s35
    %s39 = sphi 0, %s38
    %s55 = sphi 0, %s39
    %s59 = sphi 0, %s59
    %s61 = sphi 0, %s59
    %s62 = sphi 0, %s61
    %s76 = sphi 0, %s62
    %s80 = sphi 0, %s80
    %s82 = sphi 0, %s80
    %s83 = sphi 0, %s82
    %s97 = sphi 0, %s83
    %s101 = sphi 0, %s101
    %s103 = sphi 0, %s101
    %s104 = sphi 0, %s103
    %s118 = sphi 0, %s104
    %s122 = sphi 0, %s122
    %s124 = sphi 0, %s122
    %s125 = sphi 0, %s124
    %s139 = sphi 0, %s125
    %s147 = sphi 0, %s149
    %s150 = sphi 0, %s147
    %s151 = sphi 0, %s150
    %s167 = sphi 0, %s151
  $region4: #{mae_forward.11} parent=0 // loop_header_branch
    %14 = sbr.rel (%p12) target = $region8
  $region5: #{mae_forward.11} parent=0 // loop_body
    %s16 = ssub.s32 %s11, 1
    %s17 = ssub.s32 %s11, 2
    %s24 = sadd.s32 1, %s19
    %p25 = scmp.ge.s32.totalorder %s24, 1
    %s26 = scalar_select %p25, 0, %s24
    %s27 = sadd.s32 1, %s18
    %s28 = scalar_select %p25, %s27, %s18
    %p29 = scmp.ge.s32.totalorder %s28, 2
    %s30 = scalar_select %p29, 0, %s28
    %s31 = ssub.s32 %s18, %s30
    %s32 = ssub.s32 %s19, %s26
    %s33 = sor.u32 %s31, %s32
    %p34 = scmp.eq.s32.totalorder %s33, 0
    %s36 = sadd.s32 %s35, 1
    %s37 = scalar_select %p34, %s35, %s36
    %p40 = pneg %p34
    %p41 = scmp.eq.s32.totalorder %s11, 1
    %p42 = por %p40, %p41
    %p43 = scmp.ne.s32.totalorder %s35, %s38
    %p44 = scmp.eq.s32.totalorder %s11, 0
    %p45 = por %p43, %p44
    %p46 = scmp.ne.s32.totalorder %s35, %s38
    %p47 = scmp.eq.s32.totalorder %s16, 1
    %p48 = por %p46, %p47
    %p49 = scmp.ne.s32.totalorder %s38, %s39
    %p50 = scmp.eq.s32.totalorder %s16, 0
    %p51 = por %p49, %p50
    %p52 = scmp.ne.s32.totalorder %s38, %s39
    %p53 = scmp.eq.s32.totalorder %s17, 1
    %p54 = por %p52, %p53
    %p56 = scmp.ne.s32.totalorder %s39, %s55
    %p57 = scmp.eq.s32.totalorder %s17, 0
    %p58 = por %p56, %p57
    %s60 = sadd.s32 %s59, 1
    %p63 = scmp.eq.s32.totalorder %s11, 1
    %p64 = scmp.ne.s32.totalorder %s59, %s61
    %p65 = scmp.eq.s32.totalorder %s11, 0
    %p66 = por %p64, %p65
    %p67 = scmp.ne.s32.totalorder %s59, %s61
    %p68 = scmp.eq.s32.totalorder %s16, 1
    %p69 = por %p67, %p68
    %p70 = scmp.ne.s32.totalorder %s61, %s62
    %p71 = scmp.eq.s32.totalorder %s16, 0
    %p72 = por %p70, %p71
    %p73 = scmp.ne.s32.totalorder %s61, %s62
    %p74 = scmp.eq.s32.totalorder %s17, 1
    %p75 = por %p73, %p74
    %p77 = scmp.ne.s32.totalorder %s62, %s76
    %p78 = scmp.eq.s32.totalorder %s17, 0
    %p79 = por %p77, %p78
    %s81 = sadd.s32 %s80, 1
    %p84 = scmp.eq.s32.totalorder %s11, 1
    %p85 = scmp.ne.s32.totalorder %s80, %s82
    %p86 = scmp.eq.s32.totalorder %s11, 0
    %p87 = por %p85, %p86
    %p88 = scmp.ne.s32.totalorder %s80, %s82
    %p89 = scmp.eq.s32.totalorder %s16, 1
    %p90 = por %p88, %p89
    %p91 = scmp.ne.s32.totalorder %s82, %s83
    %p92 = scmp.eq.s32.totalorder %s16, 0
    %p93 = por %p91, %p92
    %p94 = scmp.ne.s32.totalorder %s82, %s83
    %p95 = scmp.eq.s32.totalorder %s17, 1
    %p96 = por %p94, %p95
    %p98 = scmp.ne.s32.totalorder %s83, %s97
    %p99 = scmp.eq.s32.totalorder %s17, 0
    %p100 = por %p98, %p99
    %s102 = sadd.s32 %s101, 1
    %p105 = scmp.eq.s32.totalorder %s11, 1
    %p106 = scmp.ne.s32.totalorder %s101, %s103
    %p107 = scmp.eq.s32.totalorder %s11, 0
    %p108 = por %p106, %p107
    %p109 = scmp.ne.s32.totalorder %s101, %s103
    %p110 = scmp.eq.s32.totalorder %s16, 1
    %p111 = por %p109, %p110
    %p112 = scmp.ne.s32.totalorder %s103, %s104
    %p113 = scmp.eq.s32.totalorder %s16, 0
    %p114 = por %p112, %p113
    %p115 = scmp.ne.s32.totalorder %s103, %s104
    %p116 = scmp.eq.s32.totalorder %s17, 1
    %p117 = por %p115, %p116
    %p119 = scmp.ne.s32.totalorder %s104, %s118
    %p120 = scmp.eq.s32.totalorder %s17, 0
    %p121 = por %p119, %p120
    %s123 = sadd.s32 %s122, 1
    %p126 = scmp.eq.s32.totalorder %s11, 1
    %p127 = scmp.ne.s32.totalorder %s122, %s124
    %p128 = scmp.eq.s32.totalorder %s11, 0
    %p129 = por %p127, %p128
    %p130 = scmp.ne.s32.totalorder %s122, %s124
    %p131 = scmp.eq.s32.totalorder %s16, 1
    %p132 = por %p130, %p131
    %p133 = scmp.ne.s32.totalorder %s124, %s125
    %p134 = scmp.eq.s32.totalorder %s16, 0
    %p135 = por %p133, %p134
    %p136 = scmp.ne.s32.totalorder %s124, %s125
    %p137 = scmp.eq.s32.totalorder %s17, 1
    %p138 = por %p136, %p137
    %p140 = scmp.ne.s32.totalorder %s125, %s139
    %p141 = scmp.eq.s32.totalorder %s17, 0
    %p142 = por %p140, %p141
    %s143 = ssub.s32 %s18, %s30
    %s144 = ssub.s32 %s19, %s26
    %s145 = sor.u32 %s143, %s144
    %p146 = scmp.eq.s32.totalorder %s145, 0
    %s148 = sadd.s32 %s147, 1
    %s149 = scalar_select %p146, %s147, %s148
    %p152 = pneg %p146
    %p153 = scmp.eq.s32.totalorder %s11, 1
    %p154 = por %p152, %p153
    %p155 = scmp.ne.s32.totalorder %s147, %s150
    %p156 = scmp.eq.s32.totalorder %s11, 0
    %p157 = por %p155, %p156
    %p158 = scmp.ne.s32.totalorder %s147, %s150
    %p159 = scmp.eq.s32.totalorder %s16, 1
    %p160 = por %p158, %p159
    %p161 = scmp.ne.s32.totalorder %s150, %s151
    %p162 = scmp.eq.s32.totalorder %s16, 0
    %p163 = por %p161, %p162
    %p164 = scmp.ne.s32.totalorder %s150, %s151
    %p165 = scmp.eq.s32.totalorder %s17, 1
    %p166 = por %p164, %p165
    %p168 = scmp.ne.s32.totalorder %s151, %s167
    %p169 = scmp.eq.s32.totalorder %s17, 0
    %p170 = por %p168, %p169
    %p171 = scmp.le.s32.totalorder 1, %s11
    %p172 = scmp.lt.s32.totalorder %s11, 3
    %p173 = pnand %p171, %p172
    %p174 = pneg %p173
    // Predicated region
    $region9: #{mae_forward.11} parent=5 // pred_check
      _
    $region10: #{mae_forward.11} parent=5 // pred_check_branch
      %176 = sbr.rel (%p173) target = $region12
    $region11: #{mae_forward.11} parent=5 // pred_region
      %s177 = ssub.s32 %s11, 1
      // Predicated region
      $region13: #{mae_forward.11} parent=11 // pred_check
        %p178 = pneg %p72
      $region14: #{mae_forward.11} parent=11 // pred_check_branch
        %180 = sbr.rel (%p178) target = $region16
      $region15: #{mae_forward.11} parent=11 // pred_region
        _
      $region16: #{mae_forward.11} parent=11 // pred_fallthru
        _
      // Predicated region
      $region17: #{mae_forward.11} parent=11 // pred_check
        %p181 = pneg %p93
      $region18: #{mae_forward.11} parent=11 // pred_check_branch
        %183 = sbr.rel (%p181) target = $region20
      $region19: #{mae_forward.11} parent=11 // pred_region
        _
      $region20: #{mae_forward.11} parent=11 // pred_fallthru
        _
      // Predicated region
      $region21: #{mae_forward.11} parent=11 // pred_check
        %p184 = pneg %p114
      $region22: #{mae_forward.11} parent=11 // pred_check_branch
        %186 = sbr.rel (%p184) target = $region24
      $region23: #{mae_forward.11} parent=11 // pred_region
        _
      $region24: #{mae_forward.11} parent=11 // pred_fallthru
        _
      // Predicated region
      $region25: #{mae_forward.11} parent=11 // pred_check
        %p187 = pneg %p135
      $region26: #{mae_forward.11} parent=11 // pred_check_branch
        %189 = sbr.rel (%p187) target = $region28
      $region27: #{mae_forward.11} parent=11 // pred_region
        _
      $region28: #{mae_forward.11} parent=11 // pred_fallthru
        _
    $region12: #{mae_forward.11} parent=5 // pred_fallthru
      _
    %p190 = scmp.lt.s32.totalorder %s11, 2
    // Predicated region
    $region29: #{mae_forward.11} parent=5 // pred_check
      %p191 = pneg %p190
    $region30: #{mae_forward.11} parent=5 // pred_check_branch
      %193 = sbr.rel (%p191) target = $region32
    $region31: #{mae_forward.11} parent=5 // pred_region
      // Predicated region
      $region33: #{mae_forward.11} parent=31 // pred_check
        %p194 = pneg %p45
      $region34: #{mae_forward.11} parent=31 // pred_check_branch
        %196 = sbr.rel (%p194) target = $region36
      $region35: #{mae_forward.11} parent=31 // pred_region
        %s197 = smul.u32 2, %s19
        %p198 = scmp.lt.s32.totalorder %s18, 1
        %s199 = scalar_select %p198, %s18, 1
        %p200 = scmp.lt.s32.totalorder %s197, 1
        %s201 = scalar_select %p200, %s197, 1
        %s202 = smul.addr %s199, 2
        %s203 = sadd.s32 %s201, %s202
        %s204 = smul.addr %s203, 8
        %s205 = scalar_lea.vmem %s0, %s204
        %s206 = smul.u32 2, %s19
      $region36: #{mae_forward.11} parent=31 // pred_fallthru
        _
    $region32: #{mae_forward.11} parent=5 // pred_fallthru
      _
    %p207 = scmp.le.s32.totalorder 1, %s11
    %p208 = scmp.lt.s32.totalorder %s11, 3
    %p209 = pnand %p207, %p208
    %p210 = pneg %p209
    // Predicated region
    $region37: #{mae_forward.11} parent=5 // pred_check
      _
    $region38: #{mae_forward.11} parent=5 // pred_check_branch
      %212 = sbr.rel (%p209) target = $region40
    $region39: #{mae_forward.11} parent=5 // pred_region
      %s213 = ssub.s32 %s11, 1
      %s214 = smul.u32 2, %s21
      %p215 = scmp.lt.s32.totalorder %s20, 1
      %s216 = scalar_select %p215, %s20, 1
      %p217 = scmp.lt.s32.totalorder %s214, 1
      %s218 = scalar_select %p217, %s214, 1
      %s219 = smul.addr %s216, 2
      %s220 = sadd.s32 %s218, %s219
      %s221 = smul.addr %s220, 8
      %s222 = scalar_lea.vmem %s0, %s221
      %p223 = pneg %p51
      %p224 = pneg %p48
      %p225 = pneg %p72
      %p226 = pneg %p69
      %p227 = pneg %p93
      %p228 = pneg %p90
      %p229 = pneg %p114
      %p230 = pneg %p111
      %p231 = pneg %p135
      %p232 = pneg %p132
      %p233 = pneg %p163
      %p234 = pneg %p160
      %s235 = smul.u32 2, %s21
      %p236 = scmp.lt.s32.totalorder %s20, 1
      %s237 = scalar_select %p236, %s20, 1
      %p238 = scmp.lt.s32.totalorder %s235, 1
      %s239 = scalar_select %p238, %s235, 1
      %s240 = smul.addr %s239, 2
      %s241 = smul.addr %s237, 4
      %s242 = sadd.s32 %s240, %s241
      %s243 = smul.addr %s242, 8
      %s244 = scalar_lea.vmem %s5, %s243
      %s245 = smul.u32 2, %s21
      %p246 = scmp.lt.s32.totalorder %s20, 1
      %s247 = scalar_select %p246, %s20, 1
      %p248 = scmp.lt.s32.totalorder %s245, 1
      %s249 = scalar_select %p248, %s245, 1
      %s250 = smul.addr %s247, 2
      %s251 = sadd.s32 %s249, %s250
      %s252 = smul.addr %s251, 8
      %s253 = scalar_lea.vmem %s0, %s252
      %s254 = smul.u32 2, %s21
      %s255 = smul.u32 2, %s21
      %p256 = scmp.lt.s32.totalorder %s20, 1
      %s257 = scalar_select %p256, %s20, 1
      %p258 = scmp.lt.s32.totalorder %s255, 1
      %s259 = scalar_select %p258, %s255, 1
      %s260 = smul.addr %s259, 2
      %s261 = smul.addr %s257, 4
      %s262 = sadd.s32 %s260, %s261
      %s263 = smul.addr %s262, 8
      %s264 = scalar_lea.vmem %s5, %s263
      %s265 = smul.u32 2, %s21
      %v267 = vld [vmem:[%s253] sm:$0xff]
      %v268 = vld [vmem:[%s253 + $0x8] sm:$0xf]
      %vm269 = vcmask 523264
      %v270 = vsel %vm269, %v267, 0.0
      %271 = vadd.xlane.f32.xlu0 %v270
      %v272 = vpop.xlane.xlu0 %271
      %vm273 = vcmask 519168
      %v274 = vsel %vm273, %v268, 0.0
      %275 = vadd.xlane.f32.xlu0 %v274
      %v276 = vpop.xlane.xlu0 %275
      %v277 = vrcp.pop 64.0
      %v278 = vmul.f32 64.0, %v277
      %v279 = vsub.f32 1.0, %v278
      %v280 = vmul.f32 %v277, %v279
      %v281 = vadd.f32 %v277, %v280
      %vm282 = vweird.f32 %v277
      %v283 = vsel %vm282, %v277, %v281
      %v284 = vmul.f32 %v272, %v283
      %v285 = vmul.f32 %v276, %v283
      %v286 = vsub.f32 %v267, %v284
      %v287 = vsub.f32 %v268, %v285
      %v288 = vmul.f32 %v286, %v286
      %v289 = vmul.f32 %v287, %v287
      %v290 = vsel %vm269, %v288, 0.0
      %291 = vadd.xlane.f32.xlu0 %v290
      %v292 = vpop.xlane.xlu0 %291
      %v293 = vsel %vm273, %v289, 0.0
      %294 = vadd.xlane.f32.xlu0 %v293
      %v295 = vpop.xlane.xlu0 %294
      %v296 = vmul.f32 %v292, %v283
      %v297 = vmul.f32 %v295, %v283
      %v298 = vadd.f32 %v296, 1e-05
      %v299 = vadd.f32 %v297, 1e-05
      %v300 = vrsqrt.pop %v298
      %v301 = vmul.f32 %v300, %v298
      %v302 = vmul.f32 %v301, %v300
      %v303 = vmul.f32 0.5, %v302
      %v304 = vsub.f32 1.5, %v303
      %v305 = vmul.f32 %v300, %v304
      %vm306 = vweird.f32 %v298
      %vm307 = vweird.f32 %v300
      %vm308 = vmor %vm306, %vm307
      %v309 = vsel %vm308, %v300, %v305
      %v310 = vrsqrt.pop %v299
      %v311 = vmul.f32 %v310, %v299
      %v312 = vmul.f32 %v311, %v310
      %v313 = vmul.f32 0.5, %v312
      %v314 = vsub.f32 1.5, %v313
      %v315 = vmul.f32 %v310, %v314
      %vm316 = vweird.f32 %v299
      %vm317 = vweird.f32 %v310
      %vm318 = vmor %vm316, %vm317
      %v319 = vsel %vm318, %v310, %v315
      %v320 = vmul.f32 %v286, %v309
      %v321 = vmul.f32 %v287, %v319
      %v322 = vld [vmem:[%s1] sm:$0x1]
      %v324 = vperm.slane %v322, 0
      %v326 = vmul.f32 %v320, %v324
      %v327 = vmul.f32 %v321, %v324
      %v328 = vld [vmem:[%s2] sm:$0x1]
      %v330 = vperm.slane %v328, 0
      %v332 = vadd.f32 %v326, %v330
      %v333 = vadd.f32 %v327, %v330
      %v334 = vpack.c.bf16 %v333, %v332
      %v335 = vld [vmem:[%s3] sm:$0xff]
      %v336 = vld [vmem:[%s3 + $0x8] sm:$0xff]
      %v337 = vld [vmem:[%s3 + $0x10] sm:$0xff]
      %v338 = vld [vmem:[%s3 + $0x18] sm:$0xff]
      %v339 = vld [vmem:[%s3 + $0x20] sm:$0xff]
      %v340 = vld [vmem:[%s3 + $0x28] sm:$0xff]
      %v341 = vld [vmem:[%s3 + $0x30] sm:$0xff]
      %v342 = vld [vmem:[%s3 + $0x38] sm:$0xff]
      %v343 = vld [vmem:[%s4] sm:$0x3]
      %v345 = vperm.slane %v343, 0
      %v346 = vperm.slane %v343, 1
      %v357 = vunpack.c.l.b16 %v335
      %v358 = vunpack.c.h.b16 %v335
      %v359 = vunpack.c.l.b16 %v336
      %v360 = vunpack.c.h.b16 %v336
      %v361 = vunpack.c.l.b16 %v337
      %v362 = vunpack.c.h.b16 %v337
      %v363 = vunpack.c.l.b16 %v338
      %v364 = vunpack.c.h.b16 %v338
      %v365 = vunpack.c.l.b16 %v339
      %v366 = vunpack.c.h.b16 %v339
      %v367 = vunpack.c.l.b16 %v340
      %v368 = vunpack.c.h.b16 %v340
      %v369 = vunpack.c.l.b16 %v341
      %v370 = vunpack.c.h.b16 %v341
      %v371 = vunpack.c.l.b16 %v342
      %v372 = vunpack.c.h.b16 %v342
      %v373 = vpack.c.b16 %v359, %v357
      %v374 = vpack.c.b16 %v360, %v358
      %v375 = vpack.c.b16 %v363, %v361
      %v376 = vpack.c.b16 %v364, %v362
      %v377 = vpack.c.b16 %v367, %v365
      %v378 = vpack.c.b16 %v368, %v366
      %v379 = vpack.c.b16 %v371, %v369
      %v380 = vpack.c.b16 %v372, %v370
      %v390 = vsel %vm269, %v334, 0
      %392 = vmatpush.bf16.msra.mxu0 0
      %393 = vmatpush.bf16.msra.mxu0 0
      %394 = vmatpush.bf16.msra.mxu0 0
      %395 = vmatpush.bf16.msra.mxu0 0
      %396 = vmatpush.bf16.msra.mxu0 %v379
      %397 = vmatpush.bf16.msra.mxu0 %v377
      %398 = vmatpush.bf16.msra.mxu0 %v375
      %399 = vmatpush.bf16.msra.mxu0 %v373
      %400 = vmatmul.bf16.gmra.mxu0 %v390
      %v401 = vpop.f32.mrf.mxu0
      %v402 = vadd.f32 %v345, %v401
      %v403 = vpop.f32.mrf.mxu0
      %v404 = vadd.f32 %v345, %v403
      %405 = vdwg.mxu0
      %406 = vmatpush.bf16.msra.mxu0 0
      %407 = vmatpush.bf16.msra.mxu0 0
      %408 = vmatpush.bf16.msra.mxu0 0
      %409 = vmatpush.bf16.msra.mxu0 0
      %410 = vmatpush.bf16.msra.mxu0 %v380
      %411 = vmatpush.bf16.msra.mxu0 %v378
      %412 = vmatpush.bf16.msra.mxu0 %v376
      %413 = vmatpush.bf16.msra.mxu0 %v374
      %414 = vmatmul.bf16.gmra.mxu0 %v390
      %v415 = vpop.f32.mrf.mxu0
      %v416 = vadd.f32 %v346, %v415
      %v417 = vpop.f32.mrf.mxu0
      %v418 = vadd.f32 %v346, %v417
      %419 = vdwg.mxu0
      %420 = vst [vmem:[%s264] sm:$0xff] %v402
      %421 = vst [vmem:[%s264 + $0x8] sm:$0xff] %v416
      %422 = vst [vmem:[%s264 + $0x10] sm:$0xf] %v404
      %423 = vst [vmem:[%s264 + $0x18] sm:$0xf] %v418
      %s424 = smul.u32 2, %s21
      %p425 = scmp.lt.s32.totalorder %s20, 1
      %s426 = scalar_select %p425, %s20, 1
      %p427 = scmp.lt.s32.totalorder %s424, 1
      %s428 = scalar_select %p427, %s424, 1
      %s429 = smul.addr %s428, 2
      %s430 = smul.addr %s426, 4
      %s431 = sadd.s32 %s429, %s430
      %s432 = smul.addr %s431, 8
      %s433 = scalar_lea.vmem %s5, %s432
      // Predicated region
      $region41: #{mae_forward.11} parent=39 // pred_check
        %p434 = pneg %p160
      $region42: #{mae_forward.11} parent=39 // pred_check_branch
        %436 = sbr.rel (%p434) target = $region44
      $region43: #{mae_forward.11} parent=39 // pred_region
        %s437 = smul.u32 2, %s21
      $region44: #{mae_forward.11} parent=39 // pred_fallthru
        _
    $region40: #{mae_forward.11} parent=5 // pred_fallthru
      _
    %p438 = scmp.le.s32.totalorder 2, %s11
    // Predicated region
    $region45: #{mae_forward.11} parent=5 // pred_check
      %p439 = pneg %p438
    $region46: #{mae_forward.11} parent=5 // pred_check_branch
      %441 = sbr.rel (%p439) target = $region48
    $region47: #{mae_forward.11} parent=5 // pred_region
      %s442 = ssub.s32 %s11, 2
      // Predicated region
      $region49: #{mae_forward.11} parent=47 // pred_check
        %p443 = pneg %p166
      $region50: #{mae_forward.11} parent=47 // pred_check_branch
        %445 = sbr.rel (%p443) target = $region52
      $region51: #{mae_forward.11} parent=47 // pred_region
        %s446 = smul.u32 2, %s23
        %p447 = scmp.lt.s32.totalorder %s22, 1
        %s448 = scalar_select %p447, %s22, 1
        %p449 = scmp.lt.s32.totalorder %s446, 1
        %s450 = scalar_select %p449, %s446, 1
        %s451 = smul.addr %s450, 2
        %s452 = smul.addr %s448, 4
        %s453 = sadd.s32 %s451, %s452
        %s454 = smul.addr %s453, 8
        %s455 = scalar_lea.vmem %s5, %s454
      $region52: #{mae_forward.11} parent=47 // pred_fallthru
        _
    $region48: #{mae_forward.11} parent=5 // pred_fallthru
      _
  $region6: #{mae_forward.11} parent=0 // loop_footer
    %s15 = sadd.s32 1, %s11
  $region7: #{mae_forward.11} parent=0 // loop_footer_branch
    %10 = sbr.rel target = $region3
  $region8: #{mae_forward.11} parent=0 // loop_exit
    _

// kernel: mae_forward.10
$region0: #{mae_forward.10}
  #allocation0 [shape = 'u32[]', space=smem, size = 0x4, offset = 0x4, fixed_abs, tag = 'smem constant byte address 0x4 - core index']
  #allocation1 [shape = 'u32[72,128]{1,0:T(1,128)}', space=vmem, size = 0x9000, scoped, tag = 'internal scratch']
  #allocation2 [shape = 'f32[32,192]{1,0:T(8,128)}', space=vmem, size = 0x8000, scoped, tag = 'scratch operand']
  #allocation3 [shape = 'f32[32,64]{1,0:T(8,128)}', space=vmem, size = 0x4000, scoped, tag = 'scratch operand']
  %s0 = inlined_call_operand.vmem [shape: f32[32,64], index: 0, kind: input, shape index: {}]
  %s1 = inlined_call_operand.vmem [shape: f32[1,64], index: 1, kind: input, shape index: {}]
  %s2 = inlined_call_operand.vmem [shape: f32[1,64], index: 2, kind: input, shape index: {}]
  %s3 = inlined_call_operand.vmem [shape: bf16[64,192], index: 3, kind: input, shape index: {}]
  %s4 = inlined_call_operand.vmem [shape: bf16[64,64], index: 4, kind: input, shape index: {}]
  %s5 = inlined_call_operand.vmem [shape: f32[1,64], index: 5, kind: input, shape index: {}]
  %s6 = inlined_call_operand.vmem [shape: f32[1,64], index: 6, kind: input, shape index: {}]
  %s7 = inlined_call_operand.vmem [shape: f32[1,64], index: 7, kind: input, shape index: {}]
  %s8 = inlined_call_operand.vmem [shape: bf16[64,256], index: 8, kind: input, shape index: {}]
  %s9 = inlined_call_operand.vmem [shape: f32[1,256], index: 9, kind: input, shape index: {}]
  %s10 = inlined_call_operand.vmem [shape: bf16[256,64], index: 10, kind: input, shape index: {}]
  %s11 = inlined_call_operand.vmem [shape: f32[1,64], index: 11, kind: input, shape index: {}]
  %s12 = inlined_call_operand.vmem [shape: f32[32,64], index: 12, kind: output, shape index: {}]
  %s13 = sld [smem:[#allocation0]]
  $region58: #{mae_forward.10} parent=0
    _
  %s15 = ssub.s32 1, %s13
  %s16 = scalar_select 0, %s15, %s13
  // Predicated region
  $region2: #{mae_forward.10} parent=0 // pred_check
    _
  $region3: #{mae_forward.10} parent=0 // pred_check_branch
    %18 = sbr.rel (0) target = $region5
  $region4: #{mae_forward.10} parent=0 // pred_region
    _
  $region5: #{mae_forward.10} parent=0 // pred_fallthru
    _
  // Predicated region
  $region6: #{mae_forward.10} parent=0 // pred_check
    _
  $region7: #{mae_forward.10} parent=0 // pred_check_branch
    %20 = sbr.rel (0) target = $region9
  $region8: #{mae_forward.10} parent=0 // pred_region
    _
  $region9: #{mae_forward.10} parent=0 // pred_fallthru
    _
  // Predicated region
  $region10: #{mae_forward.10} parent=0 // pred_check
    _
  $region11: #{mae_forward.10} parent=0 // pred_check_branch
    %22 = sbr.rel (0) target = $region13
  $region12: #{mae_forward.10} parent=0 // pred_region
    _
  $region13: #{mae_forward.10} parent=0 // pred_fallthru
    _
  // Predicated region
  $region14: #{mae_forward.10} parent=0 // pred_check
    _
  $region15: #{mae_forward.10} parent=0 // pred_check_branch
    %24 = sbr.rel (0) target = $region17
  $region16: #{mae_forward.10} parent=0 // pred_region
    _
  $region17: #{mae_forward.10} parent=0 // pred_fallthru
    _
  // Predicated region
  $region18: #{mae_forward.10} parent=0 // pred_check
    _
  $region19: #{mae_forward.10} parent=0 // pred_check_branch
    %26 = sbr.rel (0) target = $region21
  $region20: #{mae_forward.10} parent=0 // pred_region
    _
  $region21: #{mae_forward.10} parent=0 // pred_fallthru
    _
  // Predicated region
  $region22: #{mae_forward.10} parent=0 // pred_check
    _
  $region23: #{mae_forward.10} parent=0 // pred_check_branch
    %28 = sbr.rel (0) target = $region25
  $region24: #{mae_forward.10} parent=0 // pred_region
    _
  $region25: #{mae_forward.10} parent=0 // pred_fallthru
    _
  // Predicated region
  $region26: #{mae_forward.10} parent=0 // pred_check
    _
  $region27: #{mae_forward.10} parent=0 // pred_check_branch
    %30 = sbr.rel (0) target = $region29
  $region28: #{mae_forward.10} parent=0 // pred_region
    _
  $region29: #{mae_forward.10} parent=0 // pred_fallthru
    _
  // Predicated region
  $region30: #{mae_forward.10} parent=0 // pred_check
    _
  $region31: #{mae_forward.10} parent=0 // pred_check_branch
    %32 = sbr.rel (0) target = $region33
  $region32: #{mae_forward.10} parent=0 // pred_region
    _
  $region33: #{mae_forward.10} parent=0 // pred_fallthru
    _
  // Predicated region
  $region34: #{mae_forward.10} parent=0 // pred_check
    _
  $region35: #{mae_forward.10} parent=0 // pred_check_branch
    %34 = sbr.rel (0) target = $region37
  $region36: #{mae_forward.10} parent=0 // pred_region
    _
  $region37: #{mae_forward.10} parent=0 // pred_fallthru
    _
  // Predicated region
  $region38: #{mae_forward.10} parent=0 // pred_check
    _
  $region39: #{mae_forward.10} parent=0 // pred_check_branch
    %36 = sbr.rel (0) target = $region41
  $region40: #{mae_forward.10} parent=0 // pred_region
    _
  $region41: #{mae_forward.10} parent=0 // pred_fallthru
    _
  // Predicated region
  $region42: #{mae_forward.10} parent=0 // pred_check
    _
  $region43: #{mae_forward.10} parent=0 // pred_check_branch
    %38 = sbr.rel (0) target = $region45
  $region44: #{mae_forward.10} parent=0 // pred_region
    _
  $region45: #{mae_forward.10} parent=0 // pred_fallthru
    _
  // Predicated region
  $region46: #{mae_forward.10} parent=0 // pred_check
    _
  $region47: #{mae_forward.10} parent=0 // pred_check_branch
    %40 = sbr.rel (0) target = $region49
  $region48: #{mae_forward.10} parent=0 // pred_region
    _
  $region49: #{mae_forward.10} parent=0 // pred_fallthru
    _
  %v42 = vld [vmem:[%s0] sm:$0xff]
  %v43 = vld [vmem:[%s0 + $0x8] sm:$0xff]
  %v44 = vld [vmem:[%s0 + $0x10] sm:$0xff]
  %v45 = vld [vmem:[%s0 + $0x18] sm:$0xff]
  %vm46 = vcmask 523264
  %v47 = vsel %vm46, %v42, 0.0
  %48 = vadd.xlane.f32.xlu0 %v47
  %v49 = vpop.xlane.xlu0 %48
  %v50 = vsel %vm46, %v43, 0.0
  %51 = vadd.xlane.f32.xlu0 %v50
  %v52 = vpop.xlane.xlu0 %51
  %v53 = vsel %vm46, %v44, 0.0
  %54 = vadd.xlane.f32.xlu0 %v53
  %v55 = vpop.xlane.xlu0 %54
  %v56 = vsel %vm46, %v45, 0.0
  %57 = vadd.xlane.f32.xlu0 %v56
  %v58 = vpop.xlane.xlu0 %57
  %v59 = vrcp.pop 64.0
  %v60 = vmul.f32 64.0, %v59
  %v61 = vsub.f32 1.0, %v60
  %v62 = vmul.f32 %v59, %v61
  %v63 = vadd.f32 %v59, %v62
  %vm64 = vweird.f32 %v59
  %v65 = vsel %vm64, %v59, %v63
  %v66 = vmul.f32 %v49, %v65
  %v67 = vmul.f32 %v52, %v65
  %v68 = vmul.f32 %v55, %v65
  %v69 = vmul.f32 %v58, %v65
  %v70 = vsub.f32 %v42, %v66
  %v71 = vsub.f32 %v43, %v67
  %v72 = vsub.f32 %v44, %v68
  %v73 = vsub.f32 %v45, %v69
  %v74 = vmul.f32 %v70, %v70
  %v75 = vmul.f32 %v71, %v71
  %v76 = vmul.f32 %v72, %v72
  %v77 = vmul.f32 %v73, %v73
  %v78 = vsel %vm46, %v74, 0.0
  %79 = vadd.xlane.f32.xlu0 %v78
  %v80 = vpop.xlane.xlu0 %79
  %v81 = vsel %vm46, %v75, 0.0
  %82 = vadd.xlane.f32.xlu0 %v81
  %v83 = vpop.xlane.xlu0 %82
  %v84 = vsel %vm46, %v76, 0.0
  %85 = vadd.xlane.f32.xlu0 %v84
  %v86 = vpop.xlane.xlu0 %85
  %v87 = vsel %vm46, %v77, 0.0
  %88 = vadd.xlane.f32.xlu0 %v87
  %v89 = vpop.xlane.xlu0 %88
  %v90 = vmul.f32 %v80, %v65
  %v91 = vmul.f32 %v83, %v65
  %v92 = vmul.f32 %v86, %v65
  %v93 = vmul.f32 %v89, %v65
  %v94 = vadd.f32 %v90, 1e-05
  %v95 = vadd.f32 %v91, 1e-05
  %v96 = vadd.f32 %v92, 1e-05
  %v97 = vadd.f32 %v93, 1e-05
  %v98 = vrsqrt.pop %v94
  %v99 = vmul.f32 %v98, %v94
  %v100 = vmul.f32 %v99, %v98
  %v101 = vmul.f32 0.5, %v100
  %v102 = vsub.f32 1.5, %v101
  %v103 = vmul.f32 %v98, %v102
  %vm104 = vweird.f32 %v94
  %vm105 = vweird.f32 %v98
  %vm106 = vmor %vm104, %vm105
  %v107 = vsel %vm106, %v98, %v103
  %v108 = vrsqrt.pop %v95
  %v109 = vmul.f32 %v108, %v95
  %v110 = vmul.f32 %v109, %v108
  %v111 = vmul.f32 0.5, %v110
  %v112 = vsub.f32 1.5, %v111
  %v113 = vmul.f32 %v108, %v112
  %vm114 = vweird.f32 %v95
  %vm115 = vweird.f32 %v108
  %vm116 = vmor %vm114, %vm115
  %v117 = vsel %vm116, %v108, %v113
  %v118 = vrsqrt.pop %v96
  %v119 = vmul.f32 %v118, %v96
  %v120 = vmul.f32 %v119, %v118
  %v121 = vmul.f32 0.5, %v120
  %v122 = vsub.f32 1.5, %v121
  %v123 = vmul.f32 %v118, %v122
  %vm124 = vweird.f32 %v96
  %vm125 = vweird.f32 %v118
  %vm126 = vmor %vm124, %vm125
  %v127 = vsel %vm126, %v118, %v123
  %v128 = vrsqrt.pop %v97
  %v129 = vmul.f32 %v128, %v97
  %v130 = vmul.f32 %v129, %v128
  %v131 = vmul.f32 0.5, %v130
  %v132 = vsub.f32 1.5, %v131
  %v133 = vmul.f32 %v128, %v132
  %vm134 = vweird.f32 %v97
  %vm135 = vweird.f32 %v128
  %vm136 = vmor %vm134, %vm135
  %v137 = vsel %vm136, %v128, %v133
  %v138 = vmul.f32 %v70, %v107
  %v139 = vmul.f32 %v71, %v117
  %v140 = vmul.f32 %v72, %v127
  %v141 = vmul.f32 %v73, %v137
  %v142 = vld [vmem:[%s1] sm:$0x1]
  %v144 = vperm.slane %v142, 0
  %v146 = vmul.f32 %v138, %v144
  %v147 = vmul.f32 %v139, %v144
  %v148 = vmul.f32 %v140, %v144
  %v149 = vmul.f32 %v141, %v144
  %v150 = vld [vmem:[%s2] sm:$0x1]
  %v152 = vperm.slane %v150, 0
  %v154 = vadd.f32 %v146, %v152
  %v155 = vadd.f32 %v147, %v152
  %v156 = vadd.f32 %v148, %v152
  %v157 = vadd.f32 %v149, %v152
  %v158 = vpack.c.bf16 %v155, %v154
  %v159 = vpack.c.bf16 %v157, %v156
  %v160 = vld [vmem:[%s3] sm:$0xff]
  %v161 = vld [vmem:[%s3 + $0x8] sm:$0xff]
  %v162 = vld [vmem:[%s3 + $0x10] sm:$0xff]
  %v163 = vld [vmem:[%s3 + $0x18] sm:$0xff]
  %v164 = vld [vmem:[%s3 + $0x20] sm:$0xff]
  %v165 = vld [vmem:[%s3 + $0x28] sm:$0xff]
  %v166 = vld [vmem:[%s3 + $0x30] sm:$0xff]
  %v167 = vld [vmem:[%s3 + $0x38] sm:$0xff]
  %v176 = vunpack.c.l.b16 %v160
  %v177 = vunpack.c.h.b16 %v160
  %v178 = vunpack.c.l.b16 %v161
  %v179 = vunpack.c.h.b16 %v161
  %v180 = vunpack.c.l.b16 %v162
  %v181 = vunpack.c.h.b16 %v162
  %v182 = vunpack.c.l.b16 %v163
  %v183 = vunpack.c.h.b16 %v163
  %v184 = vunpack.c.l.b16 %v164
  %v185 = vunpack.c.h.b16 %v164
  %v186 = vunpack.c.l.b16 %v165
  %v187 = vunpack.c.h.b16 %v165
  %v188 = vunpack.c.l.b16 %v166
  %v189 = vunpack.c.h.b16 %v166
  %v190 = vunpack.c.l.b16 %v167
  %v191 = vunpack.c.h.b16 %v167
  %v192 = vpack.c.b16 %v178, %v176
  %v193 = vpack.c.b16 %v179, %v177
  %v194 = vpack.c.b16 %v182, %v180
  %v195 = vpack.c.b16 %v183, %v181
  %v196 = vpack.c.b16 %v186, %v184
  %v197 = vpack.c.b16 %v187, %v185
  %v198 = vpack.c.b16 %v190, %v188
  %v199 = vpack.c.b16 %v191, %v189
  %v209 = vsel %vm46, %v158, 0
  %v212 = vsel %vm46, %v159, 0
  %214 = vmatpush.bf16.msra.mxu0 0
  %215 = vmatpush.bf16.msra.mxu0 0
  %216 = vmatpush.bf16.msra.mxu0 0
  %217 = vmatpush.bf16.msra.mxu0 0
  %218 = vmatpush.bf16.msra.mxu0 %v198
  %219 = vmatpush.bf16.msra.mxu0 %v196
  %220 = vmatpush.bf16.msra.mxu0 %v194
  %221 = vmatpush.bf16.msra.mxu0 %v192
  %222 = vmatmul.bf16.gmra.mxu0 %v209
  %v223 = vpop.f32.mrf.mxu0
  %v224 = vadd.f32 0.0, %v223
  %v225 = vpop.f32.mrf.mxu0
  %v226 = vadd.f32 0.0, %v225
  %227 = vmatmul.bf16.gmra.mxu0 %v212
  %v228 = vpop.f32.mrf.mxu0
  %v229 = vadd.f32 0.0, %v228
  %v230 = vpop.f32.mrf.mxu0
  %v231 = vadd.f32 0.0, %v230
  %232 = vdwg.mxu0
  %233 = vmatpush.bf16.msra.mxu0 0
  %234 = vmatpush.bf16.msra.mxu0 0
  %235 = vmatpush.bf16.msra.mxu0 0
  %236 = vmatpush.bf16.msra.mxu0 0
  %237 = vmatpush.bf16.msra.mxu0 %v199
  %238 = vmatpush.bf16.msra.mxu0 %v197
  %239 = vmatpush.bf16.msra.mxu0 %v195
  %240 = vmatpush.bf16.msra.mxu0 %v193
  %241 = vmatmul.bf16.gmra.mxu0 %v209
  %v242 = vpop.f32.mrf.mxu0
  %v243 = vadd.f32 0.0, %v242
  %v244 = vpop.f32.mrf.mxu0
  %v245 = vadd.f32 0.0, %v244
  %246 = vmatmul.bf16.gmra.mxu0 %v212
  %v247 = vpop.f32.mrf.mxu0
  %v248 = vadd.f32 0.0, %v247
  %v249 = vpop.f32.mrf.mxu0
  %v250 = vadd.f32 0.0, %v249
  %251 = vdwg.mxu0
  %252 = vst [vmem:[#allocation2] sm:$0xff] %v224
  %253 = vst.msk [vmem:[#allocation2 + $0x8] sm:$0xff] %vm46, %v243
  %254 = vst [vmem:[#allocation2 + $0x10] sm:$0xff] %v226
  %255 = vst.msk [vmem:[#allocation2 + $0x18] sm:$0xff] %vm46, %v245
  %256 = vst [vmem:[#allocation2 + $0x20] sm:$0xff] %v229
  %257 = vst.msk [vmem:[#allocation2 + $0x28] sm:$0xff] %vm46, %v248
  %258 = vst [vmem:[#allocation2 + $0x30] sm:$0xff] %v231
  %259 = vst.msk [vmem:[#allocation2 + $0x38] sm:$0xff] %vm46, %v250
  %v260 = vld [vmem:[#allocation2] sm:$0xff]
  %v261 = vld [vmem:[#allocation2 + $0x8] sm:$0xff]
  %v262 = vld [vmem:[#allocation2 + $0x10] sm:$0xff]
  %v263 = vld [vmem:[#allocation2 + $0x18] sm:$0xff]
  %266 = vrot.lane.b32.xlu0 %v260, 112
  %v267 = vpop.permute.xlu0 %266
  %268 = vrot.lane.b32.xlu0 %v262, 112
  %v269 = vpop.permute.xlu0 %268
  %272 = vrot.lane.b32.xlu0 %v260, 96
  %v273 = vpop.permute.xlu0 %272
  %274 = vrot.lane.b32.xlu0 %v262, 96
  %v275 = vpop.permute.xlu0 %274
  %278 = vrot.lane.b32.xlu0 %v260, 80
  %v279 = vpop.permute.xlu0 %278
  %280 = vrot.lane.b32.xlu0 %v262, 80
  %v281 = vpop.permute.xlu0 %280
  %v284 = vrot.slane %v273, 4
  %vm285 = vcmask 1047556
  %v286 = vsel %vm285, %v284, %v260
  %v287 = vrot.slane %v260, 4
  %v288 = vsel %vm285, %v273, %v287
  %v290 = vunpack.c.l.s4 1983009808
  %v291 = vunpack.c.0.s8 %v290
  %v292 = vperm.slane %v286, %v291
  %v294 = vunpack.c.l.s4 1983009808
  %v295 = vunpack.c.0.s8 %v294
  %v296 = vperm.slane %v288, %v295
  %v297 = vrot.slane %v279, 4
  %v298 = vsel %vm285, %v297, %v267
  %v299 = vrot.slane %v267, 4
  %v300 = vsel %vm285, %v279, %v299
  %v302 = vunpack.c.l.s4 1983009808
  %v303 = vunpack.c.0.s8 %v302
  %v304 = vperm.slane %v298, %v303
  %v306 = vunpack.c.l.s4 1983009808
  %v307 = vunpack.c.0.s8 %v306
  %v308 = vperm.slane %v300, %v307
  %v309 = vrot.slane %v304, 4
  %v310 = vsel %vm285, %v309, %v292
  %v311 = vrot.slane %v292, 4
  %v312 = vsel %vm285, %v304, %v311
  %v314 = vunpack.c.l.s4 1934713408
  %v315 = vunpack.c.0.s8 %v314
  %v316 = vperm.slane %v310, %v315
  %v318 = vunpack.c.l.s4 1934713408
  %v319 = vunpack.c.0.s8 %v318
  %v320 = vperm.slane %v312, %v319
  %v321 = vrot.slane %v308, 4
  %v322 = vsel %vm285, %v321, %v296
  %v323 = vrot.slane %v296, 4
  %v324 = vsel %vm285, %v308, %v323
  %v326 = vunpack.c.l.s4 1934713408
  %v327 = vunpack.c.0.s8 %v326
  %v328 = vperm.slane %v322, %v327
  %v330 = vunpack.c.l.s4 1934713408
  %v331 = vunpack.c.0.s8 %v330
  %v332 = vperm.slane %v324, %v331
  %v333 = vrot.slane %v316, 4
  %v334 = vsel %vm285, 0.0, %v333
  %v335 = vrot.slane %v320, 4
  %v336 = vsel %vm285, 0.0, %v335
  %v337 = vrot.slane %v328, 4
  %v338 = vsel %vm285, 0.0, %v337
  %v339 = vrot.slane %v332, 4
  %v340 = vsel %vm285, 0.0, %v339
  %v341 = vrot.slane %v275, 4
  %v342 = vsel %vm285, %v341, %v262
  %v343 = vrot.slane %v262, 4
  %v344 = vsel %vm285, %v275, %v343
  %v346 = vunpack.c.l.s4 1983009808
  %v347 = vunpack.c.0.s8 %v346
  %v348 = vperm.slane %v342, %v347
  %v350 = vunpack.c.l.s4 1983009808
  %v351 = vunpack.c.0.s8 %v350
  %v352 = vperm.slane %v344, %v351
  %v353 = vrot.slane %v281, 4
  %v354 = vsel %vm285, %v353, %v269
  %v355 = vrot.slane %v269, 4
  %v356 = vsel %vm285, %v281, %v355
  %v358 = vunpack.c.l.s4 1983009808
  %v359 = vunpack.c.0.s8 %v358
  %v360 = vperm.slane %v354, %v359
  %v362 = vunpack.c.l.s4 1983009808
  %v363 = vunpack.c.0.s8 %v362
  %v364 = vperm.slane %v356, %v363
  %v365 = vrot.slane %v360, 4
  %v366 = vsel %vm285, %v365, %v348
  %v367 = vrot.slane %v348, 4
  %v368 = vsel %vm285, %v360, %v367
  %v370 = vunpack.c.l.s4 1934713408
  %v371 = vunpack.c.0.s8 %v370
  %v372 = vperm.slane %v366, %v371
  %v374 = vunpack.c.l.s4 1934713408
  %v375 = vunpack.c.0.s8 %v374
  %v376 = vperm.slane %v368, %v375
  %v377 = vrot.slane %v364, 4
  %v378 = vsel %vm285, %v377, %v352
  %v379 = vrot.slane %v352, 4
  %v380 = vsel %vm285, %v364, %v379
  %v382 = vunpack.c.l.s4 1934713408
  %v383 = vunpack.c.0.s8 %v382
  %v384 = vperm.slane %v378, %v383
  %v386 = vunpack.c.l.s4 1934713408
  %v387 = vunpack.c.0.s8 %v386
  %v388 = vperm.slane %v380, %v387
  %v389 = vrot.slane %v372, 4
  %v390 = vsel %vm285, 0.0, %v389
  %v391 = vrot.slane %v376, 4
  %v392 = vsel %vm285, 0.0, %v391
  %v393 = vrot.slane %v384, 4
  %v394 = vsel %vm285, 0.0, %v393
  %v395 = vrot.slane %v388, 4
  %v396 = vsel %vm285, 0.0, %v395
  %v397 = vsel %vm285, %v335, %v316
  %v399 = vunpack.c.l.s4 1983009808
  %v400 = vunpack.c.0.s8 %v399
  %v401 = vperm.slane %v397, %v400
  %v402 = vrot.slane %v336, 4
  %v403 = vsel %vm285, %v402, %v334
  %v405 = vunpack.c.l.s4 1983009808
  %v406 = vunpack.c.0.s8 %v405
  %v407 = vperm.slane %v403, %v406
  %v408 = vsel %vm285, %v339, %v328
  %v410 = vunpack.c.l.s4 1983009808
  %v411 = vunpack.c.0.s8 %v410
  %v412 = vperm.slane %v408, %v411
  %v413 = vrot.slane %v340, 4
  %v414 = vsel %vm285, %v413, %v338
  %v416 = vunpack.c.l.s4 1983009808
  %v417 = vunpack.c.0.s8 %v416
  %v418 = vperm.slane %v414, %v417
  %v419 = vrot.slane %v407, 4
  %v420 = vsel %vm285, %v419, %v401
  %v421 = vrot.slane %v401, 4
  %v422 = vsel %vm285, %v407, %v421
  %v424 = vunpack.c.l.s4 1934713408
  %v425 = vunpack.c.0.s8 %v424
  %v426 = vperm.slane %v420, %v425
  %v428 = vunpack.c.l.s4 1934713408
  %v429 = vunpack.c.0.s8 %v428
  %v430 = vperm.slane %v422, %v429
  %v431 = vrot.slane %v418, 4
  %v432 = vsel %vm285, %v431, %v412
  %v433 = vrot.slane %v412, 4
  %v434 = vsel %vm285, %v418, %v433
  %v436 = vunpack.c.l.s4 1934713408
  %v437 = vunpack.c.0.s8 %v436
  %v438 = vperm.slane %v432, %v437
  %v440 = vunpack.c.l.s4 1934713408
  %v441 = vunpack.c.0.s8 %v440
  %v442 = vperm.slane %v434, %v441
  %v443 = vrot.slane %v438, 4
  %v444 = vsel %vm285, %v443, %v426
  %v445 = vrot.slane %v426, 4
  %v446 = vsel %vm285, %v438, %v445
  %v447 = vrot.slane %v442, 4
  %v448 = vsel %vm285, %v447, %v430
  %v449 = vrot.slane %v430, 4
  %v450 = vsel %vm285, %v442, %v449
  %v451 = vsel %vm285, %v391, %v372
  %v453 = vunpack.c.l.s4 1983009808
  %v454 = vunpack.c.0.s8 %v453
  %v455 = vperm.slane %v451, %v454
  %v456 = vrot.slane %v392, 4
  %v457 = vsel %vm285, %v456, %v390
  %v459 = vunpack.c.l.s4 1983009808
  %v460 = vunpack.c.0.s8 %v459
  %v461 = vperm.slane %v457, %v460
  %v462 = vsel %vm285, %v395, %v384
  %v464 = vunpack.c.l.s4 1983009808
  %v465 = vunpack.c.0.s8 %v464
  %v466 = vperm.slane %v462, %v465
  %v467 = vrot.slane %v396, 4
  %v468 = vsel %vm285, %v467, %v394
  %v470 = vunpack.c.l.s4 1983009808
  %v471 = vunpack.c.0.s8 %v470
  %v472 = vperm.slane %v468, %v471
  %v473 = vrot.slane %v461, 4
  %v474 = vsel %vm285, %v473, %v455
  %v475 = vrot.slane %v455, 4
  %v476 = vsel %vm285, %v461, %v475
  %v478 = vunpack.c.l.s4 1934713408
  %v479 = vunpack.c.0.s8 %v478
  %v480 = vperm.slane %v474, %v479
  %v482 = vunpack.c.l.s4 1934713408
  %v483 = vunpack.c.0.s8 %v482
  %v484 = vperm.slane %v476, %v483
  %v485 = vrot.slane %v472, 4
  %v486 = vsel %vm285, %v485, %v466
  %v487 = vrot.slane %v466, 4
  %v488 = vsel %vm285, %v472, %v487
  %v490 = vunpack.c.l.s4 1934713408
  %v491 = vunpack.c.0.s8 %v490
  %v492 = vperm.slane %v486, %v491
  %v494 = vunpack.c.l.s4 1934713408
  %v495 = vunpack.c.0.s8 %v494
  %v496 = vperm.slane %v488, %v495
  %v497 = vrot.slane %v492, 4
  %v498 = vsel %vm285, %v497, %v480
  %v499 = vrot.slane %v480, 4
  %v500 = vsel %vm285, %v492, %v499
  %v501 = vrot.slane %v496, 4
  %v502 = vsel %vm285, %v501, %v484
  %v503 = vrot.slane %v484, 4
  %v504 = vsel %vm285, %v496, %v503
  %505 = vrot.lane.b32.xlu0 %v260, 64
  %v506 = vpop.permute.xlu0 %505
  %507 = vrot.lane.b32.xlu0 %v262, 64
  %v508 = vpop.permute.xlu0 %507
  %509 = vrot.lane.b32.xlu0 %v267, 64
  %v510 = vpop.permute.xlu0 %509
  %511 = vrot.lane.b32.xlu0 %v269, 64
  %v512 = vpop.permute.xlu0 %511
  %513 = vrot.lane.b32.xlu0 %v273, 64
  %v514 = vpop.permute.xlu0 %513
  %515 = vrot.lane.b32.xlu0 %v275, 64
  %v516 = vpop.permute.xlu0 %515
  %517 = vrot.lane.b32.xlu0 %v279, 64
  %v518 = vpop.permute.xlu0 %517
  %519 = vrot.lane.b32.xlu0 %v281, 64
  %v520 = vpop.permute.xlu0 %519
  %v529 = vrot.slane %v514, 4
  %v530 = vsel %vm285, %v529, %v506
  %v531 = vrot.slane %v506, 4
  %v532 = vsel %vm285, %v514, %v531
  %v534 = vunpack.c.l.s4 1983009808
  %v535 = vunpack.c.0.s8 %v534
  %v536 = vperm.slane %v530, %v535
  %v538 = vunpack.c.l.s4 1983009808
  %v539 = vunpack.c.0.s8 %v538
  %v540 = vperm.slane %v532, %v539
  %v541 = vrot.slane %v518, 4
  %v542 = vsel %vm285, %v541, %v510
  %v543 = vrot.slane %v510, 4
  %v544 = vsel %vm285, %v518, %v543
  %v546 = vunpack.c.l.s4 1983009808
  %v547 = vunpack.c.0.s8 %v546
  %v548 = vperm.slane %v542, %v547
  %v550 = vunpack.c.l.s4 1983009808
  %v551 = vunpack.c.0.s8 %v550
  %v552 = vperm.slane %v544, %v551
  %v553 = vrot.slane %v548, 4
  %v554 = vsel %vm285, %v553, %v536
  %v555 = vrot.slane %v536, 4
  %v556 = vsel %vm285, %v548, %v555
  %v558 = vunpack.c.l.s4 1934713408
  %v559 = vunpack.c.0.s8 %v558
  %v560 = vperm.slane %v554, %v559
  %v562 = vunpack.c.l.s4 1934713408
  %v563 = vunpack.c.0.s8 %v562
  %v564 = vperm.slane %v556, %v563
  %v565 = vrot.slane %v552, 4
  %v566 = vsel %vm285, %v565, %v540
  %v567 = vrot.slane %v540, 4
  %v568 = vsel %vm285, %v552, %v567
  %v570 = vunpack.c.l.s4 1934713408
  %v571 = vunpack.c.0.s8 %v570
  %v572 = vperm.slane %v566, %v571
  %v574 = vunpack.c.l.s4 1934713408
  %v575 = vunpack.c.0.s8 %v574
  %v576 = vperm.slane %v568, %v575
  %v577 = vrot.slane %v560, 4
  %v578 = vsel %vm285, 0.0, %v577
  %v579 = vrot.slane %v564, 4
  %v580 = vsel %vm285, 0.0, %v579
  %v581 = vrot.slane %v572, 4
  %v582 = vsel %vm285, 0.0, %v581
  %v583 = vrot.slane %v576, 4
  %v584 = vsel %vm285, 0.0, %v583
  %v585 = vrot.slane %v516, 4
  %v586 = vsel %vm285, %v585, %v508
  %v587 = vrot.slane %v508, 4
  %v588 = vsel %vm285, %v516, %v587
  %v590 = vunpack.c.l.s4 1983009808
  %v591 = vunpack.c.0.s8 %v590
  %v592 = vperm.slane %v586, %v591
  %v594 = vunpack.c.l.s4 1983009808
  %v595 = vunpack.c.0.s8 %v594
  %v596 = vperm.slane %v588, %v595
  %v597 = vrot.slane %v520, 4
  %v598 = vsel %vm285, %v597, %v512
  %v599 = vrot.slane %v512, 4
  %v600 = vsel %vm285, %v520, %v599
  %v602 = vunpack.c.l.s4 1983009808
  %v603 = vunpack.c.0.s8 %v602
  %v604 = vperm.slane %v598, %v603
  %v606 = vunpack.c.l.s4 1983009808
  %v607 = vunpack.c.0.s8 %v606
  %v608 = vperm.slane %v600, %v607
  %v609 = vrot.slane %v604, 4
  %v610 = vsel %vm285, %v609, %v592
  %v611 = vrot.slane %v592, 4
  %v612 = vsel %vm285, %v604, %v611
  %v614 = vunpack.c.l.s4 1934713408
  %v615 = vunpack.c.0.s8 %v614
  %v616 = vperm.slane %v610, %v615
  %v618 = vunpack.c.l.s4 1934713408
  %v619 = vunpack.c.0.s8 %v618
  %v620 = vperm.slane %v612, %v619
  %v621 = vrot.slane %v608, 4
  %v622 = vsel %vm285, %v621, %v596
  %v623 = vrot.slane %v596, 4
  %v624 = vsel %vm285, %v608, %v623
  %v626 = vunpack.c.l.s4 1934713408
  %v627 = vunpack.c.0.s8 %v626
  %v628 = vperm.slane %v622, %v627
  %v630 = vunpack.c.l.s4 1934713408
  %v631 = vunpack.c.0.s8 %v630
  %v632 = vperm.slane %v624, %v631
  %v633 = vrot.slane %v616, 4
  %v634 = vsel %vm285, 0.0, %v633
  %v635 = vrot.slane %v620, 4
  %v636 = vsel %vm285, 0.0, %v635
  %v637 = vrot.slane %v628, 4
  %v638 = vsel %vm285, 0.0, %v637
  %v639 = vrot.slane %v632, 4
  %v640 = vsel %vm285, 0.0, %v639
  %v641 = vsel %vm285, %v579, %v560
  %v643 = vunpack.c.l.s4 1983009808
  %v644 = vunpack.c.0.s8 %v643
  %v645 = vperm.slane %v641, %v644
  %v646 = vrot.slane %v580, 4
  %v647 = vsel %vm285, %v646, %v578
  %v649 = vunpack.c.l.s4 1983009808
  %v650 = vunpack.c.0.s8 %v649
  %v651 = vperm.slane %v647, %v650
  %v652 = vsel %vm285, %v583, %v572
  %v654 = vunpack.c.l.s4 1983009808
  %v655 = vunpack.c.0.s8 %v654
  %v656 = vperm.slane %v652, %v655
  %v657 = vrot.slane %v584, 4
  %v658 = vsel %vm285, %v657, %v582
  %v660 = vunpack.c.l.s4 1983009808
  %v661 = vunpack.c.0.s8 %v660
  %v662 = vperm.slane %v658, %v661
  %v663 = vrot.slane %v651, 4
  %v664 = vsel %vm285, %v663, %v645
  %v665 = vrot.slane %v645, 4
  %v666 = vsel %vm285, %v651, %v665
  %v668 = vunpack.c.l.s4 1934713408
  %v669 = vunpack.c.0.s8 %v668
  %v670 = vperm.slane %v664, %v669
  %v672 = vunpack.c.l.s4 1934713408
  %v673 = vunpack.c.0.s8 %v672
  %v674 = vperm.slane %v666, %v673
  %v675 = vrot.slane %v662, 4
  %v676 = vsel %vm285, %v675, %v656
  %v677 = vrot.slane %v656, 4
  %v678 = vsel %vm285, %v662, %v677
  %v680 = vunpack.c.l.s4 1934713408
  %v681 = vunpack.c.0.s8 %v680
  %v682 = vperm.slane %v676, %v681
  %v684 = vunpack.c.l.s4 1934713408
  %v685 = vunpack.c.0.s8 %v684
  %v686 = vperm.slane %v678, %v685
  %v687 = vrot.slane %v682, 4
  %v688 = vsel %vm285, %v687, %v670
  %v689 = vrot.slane %v670, 4
  %v690 = vsel %vm285, %v682, %v689
  %v691 = vrot.slane %v686, 4
  %v692 = vsel %vm285, %v691, %v674
  %v693 = vrot.slane %v674, 4
  %v694 = vsel %vm285, %v686, %v693
  %v695 = vsel %vm285, %v635, %v616
  %v697 = vunpack.c.l.s4 1983009808
  %v698 = vunpack.c.0.s8 %v697
  %v699 = vperm.slane %v695, %v698
  %v700 = vrot.slane %v636, 4
  %v701 = vsel %vm285, %v700, %v634
  %v703 = vunpack.c.l.s4 1983009808
  %v704 = vunpack.c.0.s8 %v703
  %v705 = vperm.slane %v701, %v704
  %v706 = vsel %vm285, %v639, %v628
  %v708 = vunpack.c.l.s4 1983009808
  %v709 = vunpack.c.0.s8 %v708
  %v710 = vperm.slane %v706, %v709
  %v711 = vrot.slane %v640, 4
  %v712 = vsel %vm285, %v711, %v638
  %v714 = vunpack.c.l.s4 1983009808
  %v715 = vunpack.c.0.s8 %v714
  %v716 = vperm.slane %v712, %v715
  %v717 = vrot.slane %v705, 4
  %v718 = vsel %vm285, %v717, %v699
  %v719 = vrot.slane %v699, 4
  %v720 = vsel %vm285, %v705, %v719
  %v722 = vunpack.c.l.s4 1934713408
  %v723 = vunpack.c.0.s8 %v722
  %v724 = vperm.slane %v718, %v723
  %v726 = vunpack.c.l.s4 1934713408
  %v727 = vunpack.c.0.s8 %v726
  %v728 = vperm.slane %v720, %v727
  %v729 = vrot.slane %v716, 4
  %v730 = vsel %vm285, %v729, %v710
  %v731 = vrot.slane %v710, 4
  %v732 = vsel %vm285, %v716, %v731
  %v734 = vunpack.c.l.s4 1934713408
  %v735 = vunpack.c.0.s8 %v734
  %v736 = vperm.slane %v730, %v735
  %v738 = vunpack.c.l.s4 1934713408
  %v739 = vunpack.c.0.s8 %v738
  %v740 = vperm.slane %v732, %v739
  %v741 = vrot.slane %v736, 4
  %v742 = vsel %vm285, %v741, %v724
  %v743 = vrot.slane %v724, 4
  %v744 = vsel %vm285, %v736, %v743
  %v745 = vrot.slane %v740, 4
  %v746 = vsel %vm285, %v745, %v728
  %v747 = vrot.slane %v728, 4
  %v748 = vsel %vm285, %v740, %v747
  %751 = vrot.lane.b32.xlu0 %v261, 112
  %v752 = vpop.permute.xlu0 %751
  %753 = vrot.lane.b32.xlu0 %v263, 112
  %v754 = vpop.permute.xlu0 %753
  %757 = vrot.lane.b32.xlu0 %v261, 96
  %v758 = vpop.permute.xlu0 %757
  %759 = vrot.lane.b32.xlu0 %v263, 96
  %v760 = vpop.permute.xlu0 %759
  %763 = vrot.lane.b32.xlu0 %v261, 80
  %v764 = vpop.permute.xlu0 %763
  %765 = vrot.lane.b32.xlu0 %v263, 80
  %v766 = vpop.permute.xlu0 %765
  %v769 = vrot.slane %v758, 4
  %v770 = vsel %vm285, %v769, %v261
  %v771 = vrot.slane %v261, 4
  %v772 = vsel %vm285, %v758, %v771
  %v774 = vunpack.c.l.s4 1983009808
  %v775 = vunpack.c.0.s8 %v774
  %v776 = vperm.slane %v770, %v775
  %v778 = vunpack.c.l.s4 1983009808
  %v779 = vunpack.c.0.s8 %v778
  %v780 = vperm.slane %v772, %v779
  %v781 = vrot.slane %v764, 4
  %v782 = vsel %vm285, %v781, %v752
  %v783 = vrot.slane %v752, 4
  %v784 = vsel %vm285, %v764, %v783
  %v786 = vunpack.c.l.s4 1983009808
  %v787 = vunpack.c.0.s8 %v786
  %v788 = vperm.slane %v782, %v787
  %v790 = vunpack.c.l.s4 1983009808
  %v791 = vunpack.c.0.s8 %v790
  %v792 = vperm.slane %v784, %v791
  %v793 = vrot.slane %v788, 4
  %v794 = vsel %vm285, %v793, %v776
  %v795 = vrot.slane %v776, 4
  %v796 = vsel %vm285, %v788, %v795
  %v798 = vunpack.c.l.s4 1934713408
  %v799 = vunpack.c.0.s8 %v798
  %v800 = vperm.slane %v794, %v799
  %v802 = vunpack.c.l.s4 1934713408
  %v803 = vunpack.c.0.s8 %v802
  %v804 = vperm.slane %v796, %v803
  %v805 = vrot.slane %v792, 4
  %v806 = vsel %vm285, %v805, %v780
  %v807 = vrot.slane %v780, 4
  %v808 = vsel %vm285, %v792, %v807
  %v810 = vunpack.c.l.s4 1934713408
  %v811 = vunpack.c.0.s8 %v810
  %v812 = vperm.slane %v806, %v811
  %v814 = vunpack.c.l.s4 1934713408
  %v815 = vunpack.c.0.s8 %v814
  %v816 = vperm.slane %v808, %v815
  %v817 = vrot.slane %v800, 4
  %v818 = vsel %vm285, 0.0, %v817
  %v819 = vrot.slane %v804, 4
  %v820 = vsel %vm285, 0.0, %v819
  %v821 = vrot.slane %v812, 4
  %v822 = vsel %vm285, 0.0, %v821
  %v823 = vrot.slane %v816, 4
  %v824 = vsel %vm285, 0.0, %v823
  %v825 = vrot.slane %v760, 4
  %v826 = vsel %vm285, %v825, %v263
  %v827 = vrot.slane %v263, 4
  %v828 = vsel %vm285, %v760, %v827
  %v830 = vunpack.c.l.s4 1983009808
  %v831 = vunpack.c.0.s8 %v830
  %v832 = vperm.slane %v826, %v831
  %v834 = vunpack.c.l.s4 1983009808
  %v835 = vunpack.c.0.s8 %v834
  %v836 = vperm.slane %v828, %v835
  %v837 = vrot.slane %v766, 4
  %v838 = vsel %vm285, %v837, %v754
  %v839 = vrot.slane %v754, 4
  %v840 = vsel %vm285, %v766, %v839
  %v842 = vunpack.c.l.s4 1983009808
  %v843 = vunpack.c.0.s8 %v842
  %v844 = vperm.slane %v838, %v843
  %v846 = vunpack.c.l.s4 1983009808
  %v847 = vunpack.c.0.s8 %v846
  %v848 = vperm.slane %v840, %v847
  %v849 = vrot.slane %v844, 4
  %v850 = vsel %vm285, %v849, %v832
  %v851 = vrot.slane %v832, 4
  %v852 = vsel %vm285, %v844, %v851
  %v854 = vunpack.c.l.s4 1934713408
  %v855 = vunpack.c.0.s8 %v854
  %v856 = vperm.slane %v850, %v855
  %v858 = vunpack.c.l.s4 1934713408
  %v859 = vunpack.c.0.s8 %v858
  %v860 = vperm.slane %v852, %v859
  %v861 = vrot.slane %v848, 4
  %v862 = vsel %vm285, %v861, %v836
  %v863 = vrot.slane %v836, 4
  %v864 = vsel %vm285, %v848, %v863
  %v866 = vunpack.c.l.s4 1934713408
  %v867 = vunpack.c.0.s8 %v866
  %v868 = vperm.slane %v862, %v867
  %v870 = vunpack.c.l.s4 1934713408
  %v871 = vunpack.c.0.s8 %v870
  %v872 = vperm.slane %v864, %v871
  %v873 = vrot.slane %v856, 4
  %v874 = vsel %vm285, 0.0, %v873
  %v875 = vrot.slane %v860, 4
  %v876 = vsel %vm285, 0.0, %v875
  %v877 = vrot.slane %v868, 4
  %v878 = vsel %vm285, 0.0, %v877
  %v879 = vrot.slane %v872, 4
  %v880 = vsel %vm285, 0.0, %v879
  %v881 = vsel %vm285, %v819, %v800
  %v883 = vunpack.c.l.s4 1983009808
  %v884 = vunpack.c.0.s8 %v883
  %v885 = vperm.slane %v881, %v884
  %v886 = vrot.slane %v820, 4
  %v887 = vsel %vm285, %v886, %v818
  %v889 = vunpack.c.l.s4 1983009808
  %v890 = vunpack.c.0.s8 %v889
  %v891 = vperm.slane %v887, %v890
  %v892 = vsel %vm285, %v823, %v812
  %v894 = vunpack.c.l.s4 1983009808
  %v895 = vunpack.c.0.s8 %v894
  %v896 = vperm.slane %v892, %v895
  %v897 = vrot.slane %v824, 4
  %v898 = vsel %vm285, %v897, %v822
  %v900 = vunpack.c.l.s4 1983009808
  %v901 = vunpack.c.0.s8 %v900
  %v902 = vperm.slane %v898, %v901
  %v903 = vrot.slane %v891, 4
  %v904 = vsel %vm285, %v903, %v885
  %v905 = vrot.slane %v885, 4
  %v906 = vsel %vm285, %v891, %v905
  %v908 = vunpack.c.l.s4 1934713408
  %v909 = vunpack.c.0.s8 %v908
  %v910 = vperm.slane %v904, %v909
  %v912 = vunpack.c.l.s4 1934713408
  %v913 = vunpack.c.0.s8 %v912
  %v914 = vperm.slane %v906, %v913
  %v915 = vrot.slane %v902, 4
  %v916 = vsel %vm285, %v915, %v896
  %v917 = vrot.slane %v896, 4
  %v918 = vsel %vm285, %v902, %v917
  %v920 = vunpack.c.l.s4 1934713408
  %v921 = vunpack.c.0.s8 %v920
  %v922 = vperm.slane %v916, %v921
  %v924 = vunpack.c.l.s4 1934713408
  %v925 = vunpack.c.0.s8 %v924
  %v926 = vperm.slane %v918, %v925
  %v927 = vrot.slane %v922, 4
  %v928 = vsel %vm285, %v927, %v910
  %v929 = vrot.slane %v910, 4
  %v930 = vsel %vm285, %v922, %v929
  %v931 = vrot.slane %v926, 4
  %v932 = vsel %vm285, %v931, %v914
  %v933 = vrot.slane %v914, 4
  %v934 = vsel %vm285, %v926, %v933
  %v935 = vsel %vm285, %v875, %v856
  %v937 = vunpack.c.l.s4 1983009808
  %v938 = vunpack.c.0.s8 %v937
  %v939 = vperm.slane %v935, %v938
  %v940 = vrot.slane %v876, 4
  %v941 = vsel %vm285, %v940, %v874
  %v943 = vunpack.c.l.s4 1983009808
  %v944 = vunpack.c.0.s8 %v943
  %v945 = vperm.slane %v941, %v944
  %v946 = vsel %vm285, %v879, %v868
  %v948 = vunpack.c.l.s4 1983009808
  %v949 = vunpack.c.0.s8 %v948
  %v950 = vperm.slane %v946, %v949
  %v951 = vrot.slane %v880, 4
  %v952 = vsel %vm285, %v951, %v878
  %v954 = vunpack.c.l.s4 1983009808
  %v955 = vunpack.c.0.s8 %v954
  %v956 = vperm.slane %v952, %v955
  %v957 = vrot.slane %v945, 4
  %v958 = vsel %vm285, %v957, %v939
  %v959 = vrot.slane %v939, 4
  %v960 = vsel %vm285, %v945, %v959
  %v962 = vunpack.c.l.s4 1934713408
  %v963 = vunpack.c.0.s8 %v962
  %v964 = vperm.slane %v958, %v963
  %v966 = vunpack.c.l.s4 1934713408
  %v967 = vunpack.c.0.s8 %v966
  %v968 = vperm.slane %v960, %v967
  %v969 = vrot.slane %v956, 4
  %v970 = vsel %vm285, %v969, %v950
  %v971 = vrot.slane %v950, 4
  %v972 = vsel %vm285, %v956, %v971
  %v974 = vunpack.c.l.s4 1934713408
  %v975 = vunpack.c.0.s8 %v974
  %v976 = vperm.slane %v970, %v975
  %v978 = vunpack.c.l.s4 1934713408
  %v979 = vunpack.c.0.s8 %v978
  %v980 = vperm.slane %v972, %v979
  %v981 = vrot.slane %v976, 4
  %v982 = vsel %vm285, %v981, %v964
  %v983 = vrot.slane %v964, 4
  %v984 = vsel %vm285, %v976, %v983
  %v985 = vrot.slane %v980, 4
  %v986 = vsel %vm285, %v985, %v968
  %v987 = vrot.slane %v968, 4
  %v988 = vsel %vm285, %v980, %v987
  %v989 = vpack.c.bf16 %v444, %v444
  %v990 = vpack.c.bf16 %v498, %v498
  %v991 = vpack.c.bf16 %v446, %v446
  %v992 = vpack.c.bf16 %v500, %v500
  %v993 = vpack.c.bf16 %v448, %v448
  %v994 = vpack.c.bf16 %v502, %v502
  %v995 = vpack.c.bf16 %v450, %v450
  %v996 = vpack.c.bf16 %v504, %v504
  %v997 = vpack.c.bf16 %v688, %v688
  %v998 = vpack.c.bf16 %v742, %v742
  %v999 = vpack.c.bf16 %v690, %v690
  %v1000 = vpack.c.bf16 %v744, %v744
  %v1001 = vpack.c.bf16 %v692, %v692
  %v1002 = vpack.c.bf16 %v746, %v746
  %v1003 = vpack.c.bf16 %v694, %v694
  %v1004 = vpack.c.bf16 %v748, %v748
  %v1007 = vunpack.c.l.b16 %v989
  %v1008 = vunpack.c.l.b16 %v990
  %v1009 = vpack.c.b16 %v1008, %v1007
  %v1012 = vunpack.c.l.b16 %v997
  %v1013 = vunpack.c.l.b16 %v998
  %v1014 = vpack.c.b16 %v1013, %v1012
  %vm1015 = vcmask 130048
  %v1017 = vsel %vm1015, %v1009, 0
  %v1020 = vsel %vm1015, %v1014, 0
  %1022 = vmatpush.bf16.xpose.msra.mxu0 0
  %1023 = vmatpush.bf16.xpose.msra.mxu0 0
  %1024 = vmatpush.bf16.xpose.msra.mxu0 0
  %1025 = vmatpush.bf16.xpose.msra.mxu0 0
  %1026 = vmatpush.bf16.xpose.msra.mxu0 0
  %1027 = vmatpush.bf16.xpose.msra.mxu0 0
  %1028 = vmatpush.bf16.xpose.msra.mxu0 0
  %1029 = vmatpush.bf16.xpose.msra.mxu0 %v1020
  %1030 = vmatmul.bf16.gmra.mxu0 %v1017
  %v1031 = vpop.f32.mrf.mxu0
  %v1032 = vadd.f32 0.0, %v1031
  %v1033 = vpop.f32.mrf.mxu0
  %v1034 = vadd.f32 0.0, %v1033
  %1035 = vdwg.mxu0
  %v1038 = vunpack.c.l.b16 %v991
  %v1039 = vunpack.c.l.b16 %v992
  %v1040 = vpack.c.b16 %v1039, %v1038
  %v1043 = vunpack.c.l.b16 %v999
  %v1044 = vunpack.c.l.b16 %v1000
  %v1045 = vpack.c.b16 %v1044, %v1043
  %v1047 = vsel %vm1015, %v1040, 0
  %v1050 = vsel %vm1015, %v1045, 0
  %1052 = vmatpush.bf16.xpose.msra.mxu0 0
  %1053 = vmatpush.bf16.xpose.msra.mxu0 0
  %1054 = vmatpush.bf16.xpose.msra.mxu0 0
  %1055 = vmatpush.bf16.xpose.msra.mxu0 0
  %1056 = vmatpush.bf16.xpose.msra.mxu0 0
  %1057 = vmatpush.bf16.xpose.msra.mxu0 0
  %1058 = vmatpush.bf16.xpose.msra.mxu0 0
  %1059 = vmatpush.bf16.xpose.msra.mxu0 %v1050
  %1060 = vmatmul.bf16.gmra.mxu0 %v1047
  %v1061 = vpop.f32.mrf.mxu0
  %v1062 = vadd.f32 0.0, %v1061
  %v1063 = vpop.f32.mrf.mxu0
  %v1064 = vadd.f32 0.0, %v1063
  %1065 = vdwg.mxu0
  %v1068 = vunpack.c.l.b16 %v993
  %v1069 = vunpack.c.l.b16 %v994
  %v1070 = vpack.c.b16 %v1069, %v1068
  %v1073 = vunpack.c.l.b16 %v1001
  %v1074 = vunpack.c.l.b16 %v1002
  %v1075 = vpack.c.b16 %v1074, %v1073
  %v1077 = vsel %vm1015, %v1070, 0
  %v1080 = vsel %vm1015, %v1075, 0
  %1082 = vmatpush.bf16.xpose.msra.mxu0 0
  %1083 = vmatpush.bf16.xpose.msra.mxu0 0
  %1084 = vmatpush.bf16.xpose.msra.mxu0 0
  %1085 = vmatpush.bf16.xpose.msra.mxu0 0
  %1086 = vmatpush.bf16.xpose.msra.mxu0 0
  %1087 = vmatpush.bf16.xpose.msra.mxu0 0
  %1088 = vmatpush.bf16.xpose.msra.mxu0 0
  %1089 = vmatpush.bf16.xpose.msra.mxu0 %v1080
  %1090 = vmatmul.bf16.gmra.mxu0 %v1077
  %v1091 = vpop.f32.mrf.mxu0
  %v1092 = vadd.f32 0.0, %v1091
  %v1093 = vpop.f32.mrf.mxu0
  %v1094 = vadd.f32 0.0, %v1093
  %1095 = vdwg.mxu0
  %v1098 = vunpack.c.l.b16 %v995
  %v1099 = vunpack.c.l.b16 %v996
  %v1100 = vpack.c.b16 %v1099, %v1098
  %v1103 = vunpack.c.l.b16 %v1003
  %v1104 = vunpack.c.l.b16 %v1004
  %v1105 = vpack.c.b16 %v1104, %v1103
  %v1107 = vsel %vm1015, %v1100, 0
  %v1110 = vsel %vm1015, %v1105, 0
  %1112 = vmatpush.bf16.xpose.msra.mxu0 0
  %1113 = vmatpush.bf16.xpose.msra.mxu0 0
  %1114 = vmatpush.bf16.xpose.msra.mxu0 0
  %1115 = vmatpush.bf16.xpose.msra.mxu0 0
  %1116 = vmatpush.bf16.xpose.msra.mxu0 0
  %1117 = vmatpush.bf16.xpose.msra.mxu0 0
  %1118 = vmatpush.bf16.xpose.msra.mxu0 0
  %1119 = vmatpush.bf16.xpose.msra.mxu0 %v1110
  %1120 = vmatmul.bf16.gmra.mxu0 %v1107
  %v1121 = vpop.f32.mrf.mxu0
  %v1122 = vadd.f32 0.0, %v1121
  %v1123 = vpop.f32.mrf.mxu0
  %v1124 = vadd.f32 0.0, %v1123
  %1125 = vdwg.mxu0
  %v1126 = vmul.f32 %v1032, 0.25
  %v1127 = vmul.f32 %v1034, 0.25
  %v1128 = vmul.f32 %v1062, 0.25
  %v1129 = vmul.f32 %v1064, 0.25
  %v1130 = vmul.f32 %v1092, 0.25
  %v1131 = vmul.f32 %v1094, 0.25
  %v1132 = vmul.f32 %v1122, 0.25
  %v1133 = vmul.f32 %v1124, 0.25
  %v1134 = vsel %vm1015, %v1126, -inf
  %1135 = vmax.xlane.f32.xlu0 %v1134
  %v1136 = vpop.xlane.xlu0 %1135
  %v1137 = vsel %vm1015, %v1127, -inf
  %1138 = vmax.xlane.f32.xlu0 %v1137
  %v1139 = vpop.xlane.xlu0 %1138
  %v1140 = vsel %vm1015, %v1128, -inf
  %1141 = vmax.xlane.f32.xlu0 %v1140
  %v1142 = vpop.xlane.xlu0 %1141
  %v1143 = vsel %vm1015, %v1129, -inf
  %1144 = vmax.xlane.f32.xlu0 %v1143
  %v1145 = vpop.xlane.xlu0 %1144
  %v1146 = vsel %vm1015, %v1130, -inf
  %1147 = vmax.xlane.f32.xlu0 %v1146
  %v1148 = vpop.xlane.xlu0 %1147
  %v1149 = vsel %vm1015, %v1131, -inf
  %1150 = vmax.xlane.f32.xlu0 %v1149
  %v1151 = vpop.xlane.xlu0 %1150
  %v1152 = vsel %vm1015, %v1132, -inf
  %1153 = vmax.xlane.f32.xlu0 %v1152
  %v1154 = vpop.xlane.xlu0 %1153
  %v1155 = vsel %vm1015, %v1133, -inf
  %1156 = vmax.xlane.f32.xlu0 %v1155
  %v1157 = vpop.xlane.xlu0 %1156
  %v1158 = vsub.f32 %v1126, %v1136
  %v1159 = vsub.f32 %v1127, %v1139
  %v1160 = vsub.f32 %v1128, %v1142
  %v1161 = vsub.f32 %v1129, %v1145
  %v1162 = vsub.f32 %v1130, %v1148
  %v1163 = vsub.f32 %v1131, %v1151
  %v1164 = vsub.f32 %v1132, %v1154
  %v1165 = vsub.f32 %v1133, %v1157
  %v1166 = vmul.f32 %v1158, 1.442695
  %v1167 = vpow.pop %v1166
  %v1168 = vmul.f32 %v1159, 1.442695
  %v1169 = vpow.pop %v1168
  %v1170 = vmul.f32 %v1160, 1.442695
  %v1171 = vpow.pop %v1170
  %v1172 = vmul.f32 %v1161, 1.442695
  %v1173 = vpow.pop %v1172
  %v1174 = vmul.f32 %v1162, 1.442695
  %v1175 = vpow.pop %v1174
  %v1176 = vmul.f32 %v1163, 1.442695
  %v1177 = vpow.pop %v1176
  %v1178 = vmul.f32 %v1164, 1.442695
  %v1179 = vpow.pop %v1178
  %v1180 = vmul.f32 %v1165, 1.442695
  %v1181 = vpow.pop %v1180
  %v1182 = vsel %vm1015, %v1167, 0.0
  %1183 = vadd.xlane.f32.xlu0 %v1182
  %v1184 = vpop.xlane.xlu0 %1183
  %v1185 = vsel %vm1015, %v1169, 0.0
  %1186 = vadd.xlane.f32.xlu0 %v1185
  %v1187 = vpop.xlane.xlu0 %1186
  %v1188 = vsel %vm1015, %v1171, 0.0
  %1189 = vadd.xlane.f32.xlu0 %v1188
  %v1190 = vpop.xlane.xlu0 %1189
  %v1191 = vsel %vm1015, %v1173, 0.0
  %1192 = vadd.xlane.f32.xlu0 %v1191
  %v1193 = vpop.xlane.xlu0 %1192
  %v1194 = vsel %vm1015, %v1175, 0.0
  %1195 = vadd.xlane.f32.xlu0 %v1194
  %v1196 = vpop.xlane.xlu0 %1195
  %v1197 = vsel %vm1015, %v1177, 0.0
  %1198 = vadd.xlane.f32.xlu0 %v1197
  %v1199 = vpop.xlane.xlu0 %1198
  %v1200 = vsel %vm1015, %v1179, 0.0
  %1201 = vadd.xlane.f32.xlu0 %v1200
  %v1202 = vpop.xlane.xlu0 %1201
  %v1203 = vsel %vm1015, %v1181, 0.0
  %1204 = vadd.xlane.f32.xlu0 %v1203
  %v1205 = vpop.xlane.xlu0 %1204
  %v1206 = vrcp.pop %v1184
  %v1207 = vrcp.pop %v1187
  %v1208 = vrcp.pop %v1190
  %v1209 = vrcp.pop %v1193
  %v1210 = vrcp.pop %v1196
  %v1211 = vrcp.pop %v1199
  %v1212 = vrcp.pop %v1202
  %v1213 = vrcp.pop %v1205
  %v1214 = vmul.f32 %v1167, %v1206
  %v1215 = vmul.f32 %v1169, %v1207
  %v1216 = vmul.f32 %v1171, %v1208
  %v1217 = vmul.f32 %v1173, %v1209
  %v1218 = vmul.f32 %v1175, %v1210
  %v1219 = vmul.f32 %v1177, %v1211
  %v1220 = vmul.f32 %v1179, %v1212
  %v1221 = vmul.f32 %v1181, %v1213
  %v1222 = vpack.c.bf16 %v1214, %v1214
  %v1223 = vpack.c.bf16 %v1215, %v1215
  %v1224 = vpack.c.bf16 %v1216, %v1216
  %v1225 = vpack.c.bf16 %v1217, %v1217
  %v1226 = vpack.c.bf16 %v1218, %v1218
  %v1227 = vpack.c.bf16 %v1219, %v1219
  %v1228 = vpack.c.bf16 %v1220, %v1220
  %v1229 = vpack.c.bf16 %v1221, %v1221
  %v1230 = vpack.c.bf16 %v928, %v928
  %v1231 = vpack.c.bf16 %v982, %v982
  %v1232 = vpack.c.bf16 %v930, %v930
  %v1233 = vpack.c.bf16 %v984, %v984
  %v1234 = vpack.c.bf16 %v932, %v932
  %v1235 = vpack.c.bf16 %v986, %v986
  %v1236 = vpack.c.bf16 %v934, %v934
  %v1237 = vpack.c.bf16 %v988, %v988
  %v1240 = vunpack.c.l.b16 %v1222
  %v1241 = vunpack.c.l.b16 %v1223
  %v1242 = vpack.c.b16 %v1241, %v1240
  %v1245 = vunpack.c.l.b16 %v1230
  %v1246 = vunpack.c.l.b16 %v1231
  %v1247 = vpack.c.b16 %v1246, %v1245
  %v1250 = vsel %vm1015, %v1242, 0
  %1252 = vmatpush.bf16.msra.mxu0 0
  %1253 = vmatpush.bf16.msra.mxu0 0
  %1254 = vmatpush.bf16.msra.mxu0 0
  %1255 = vmatpush.bf16.msra.mxu0 0
  %1256 = vmatpush.bf16.msra.mxu0 0
  %1257 = vmatpush.bf16.msra.mxu0 0
  %1258 = vmatpush.bf16.msra.mxu0 0
  %1259 = vmatpush.bf16.msra.mxu0 %v1247
  %1260 = vmatmul.bf16.gmra.mxu0 %v1250
  %v1261 = vpop.f32.mrf.mxu0
  %v1262 = vadd.f32 0.0, %v1261
  %v1263 = vpop.f32.mrf.mxu0
  %v1264 = vadd.f32 0.0, %v1263
  %1265 = vdwg.mxu0
  %v1268 = vunpack.c.l.b16 %v1224
  %v1269 = vunpack.c.l.b16 %v1225
  %v1270 = vpack.c.b16 %v1269, %v1268
  %v1273 = vunpack.c.l.b16 %v1232
  %v1274 = vunpack.c.l.b16 %v1233
  %v1275 = vpack.c.b16 %v1274, %v1273
  %v1278 = vsel %vm1015, %v1270, 0
  %1280 = vmatpush.bf16.msra.mxu0 0
  %1281 = vmatpush.bf16.msra.mxu0 0
  %1282 = vmatpush.bf16.msra.mxu0 0
  %1283 = vmatpush.bf16.msra.mxu0 0
  %1284 = vmatpush.bf16.msra.mxu0 0
  %1285 = vmatpush.bf16.msra.mxu0 0
  %1286 = vmatpush.bf16.msra.mxu0 0
  %1287 = vmatpush.bf16.msra.mxu0 %v1275
  %1288 = vmatmul.bf16.gmra.mxu0 %v1278
  %v1289 = vpop.f32.mrf.mxu0
  %v1290 = vadd.f32 0.0, %v1289
  %v1291 = vpop.f32.mrf.mxu0
  %v1292 = vadd.f32 0.0, %v1291
  %1293 = vdwg.mxu0
  %v1296 = vunpack.c.l.b16 %v1226
  %v1297 = vunpack.c.l.b16 %v1227
  %v1298 = vpack.c.b16 %v1297, %v1296
  %v1301 = vunpack.c.l.b16 %v1234
  %v1302 = vunpack.c.l.b16 %v1235
  %v1303 = vpack.c.b16 %v1302, %v1301
  %v1306 = vsel %vm1015, %v1298, 0
  %1308 = vmatpush.bf16.msra.mxu0 0
  %1309 = vmatpush.bf16.msra.mxu0 0
  %1310 = vmatpush.bf16.msra.mxu0 0
  %1311 = vmatpush.bf16.msra.mxu0 0
  %1312 = vmatpush.bf16.msra.mxu0 0
  %1313 = vmatpush.bf16.msra.mxu0 0
  %1314 = vmatpush.bf16.msra.mxu0 0
  %1315 = vmatpush.bf16.msra.mxu0 %v1303
  %1316 = vmatmul.bf16.gmra.mxu0 %v1306
  %v1317 = vpop.f32.mrf.mxu0
  %v1318 = vadd.f32 0.0, %v1317
  %v1319 = vpop.f32.mrf.mxu0
  %v1320 = vadd.f32 0.0, %v1319
  %1321 = vdwg.mxu0
  %v1324 = vunpack.c.l.b16 %v1228
  %v1325 = vunpack.c.l.b16 %v1229
  %v1326 = vpack.c.b16 %v1325, %v1324
  %v1329 = vunpack.c.l.b16 %v1236
  %v1330 = vunpack.c.l.b16 %v1237
  %v1331 = vpack.c.b16 %v1330, %v1329
  %v1334 = vsel %vm1015, %v1326, 0
  %1336 = vmatpush.bf16.msra.mxu0 0
  %1337 = vmatpush.bf16.msra.mxu0 0
  %1338 = vmatpush.bf16.msra.mxu0 0
  %1339 = vmatpush.bf16.msra.mxu0 0
  %1340 = vmatpush.bf16.msra.mxu0 0
  %1341 = vmatpush.bf16.msra.mxu0 0
  %1342 = vmatpush.bf16.msra.mxu0 0
  %1343 = vmatpush.bf16.msra.mxu0 %v1331
  %1344 = vmatmul.bf16.gmra.mxu0 %v1334
  %v1345 = vpop.f32.mrf.mxu0
  %v1346 = vadd.f32 0.0, %v1345
  %v1347 = vpop.f32.mrf.mxu0
  %v1348 = vadd.f32 0.0, %v1347
  %1349 = vdwg.mxu0
  %v1350 = vrot.slane %v1318, 4
  %v1351 = vsel %vm285, %v1350, %v1262
  %v1352 = vrot.slane %v1262, 4
  %v1353 = vsel %vm285, %v1318, %v1352
  %v1355 = vunpack.c.l.s4 1983009808
  %v1356 = vunpack.c.0.s8 %v1355
  %v1357 = vperm.slane %v1351, %v1356
  %v1359 = vunpack.c.l.s4 1983009808
  %v1360 = vunpack.c.0.s8 %v1359
  %v1361 = vperm.slane %v1353, %v1360
  %v1362 = vrot.slane %v1346, 4
  %v1363 = vsel %vm285, %v1362, %v1290
  %v1364 = vrot.slane %v1290, 4
  %v1365 = vsel %vm285, %v1346, %v1364
  %v1367 = vunpack.c.l.s4 1983009808
  %v1368 = vunpack.c.0.s8 %v1367
  %v1369 = vperm.slane %v1363, %v1368
  %v1371 = vunpack.c.l.s4 1983009808
  %v1372 = vunpack.c.0.s8 %v1371
  %v1373 = vperm.slane %v1365, %v1372
  %v1374 = vrot.slane %v1369, 4
  %v1375 = vsel %vm285, %v1374, %v1357
  %v1376 = vrot.slane %v1357, 4
  %v1377 = vsel %vm285, %v1369, %v1376
  %v1379 = vunpack.c.l.s4 1934713408
  %v1380 = vunpack.c.0.s8 %v1379
  %v1381 = vperm.slane %v1375, %v1380
  %v1383 = vunpack.c.l.s4 1934713408
  %v1384 = vunpack.c.0.s8 %v1383
  %v1385 = vperm.slane %v1377, %v1384
  %v1386 = vrot.slane %v1373, 4
  %v1387 = vsel %vm285, %v1386, %v1361
  %v1388 = vrot.slane %v1361, 4
  %v1389 = vsel %vm285, %v1373, %v1388
  %v1391 = vunpack.c.l.s4 1934713408
  %v1392 = vunpack.c.0.s8 %v1391
  %v1393 = vperm.slane %v1387, %v1392
  %v1395 = vunpack.c.l.s4 1934713408
  %v1396 = vunpack.c.0.s8 %v1395
  %v1397 = vperm.slane %v1389, %v1396
  %v1398 = vrot.slane %v1381, 4
  %v1399 = vsel %vm285, 0.0, %v1398
  %v1400 = vrot.slane %v1385, 4
  %v1401 = vsel %vm285, 0.0, %v1400
  %v1402 = vrot.slane %v1393, 4
  %v1403 = vsel %vm285, 0.0, %v1402
  %v1404 = vrot.slane %v1397, 4
  %v1405 = vsel %vm285, 0.0, %v1404
  %v1406 = vrot.slane %v1320, 4
  %v1407 = vsel %vm285, %v1406, %v1264
  %v1408 = vrot.slane %v1264, 4
  %v1409 = vsel %vm285, %v1320, %v1408
  %v1411 = vunpack.c.l.s4 1983009808
  %v1412 = vunpack.c.0.s8 %v1411
  %v1413 = vperm.slane %v1407, %v1412
  %v1415 = vunpack.c.l.s4 1983009808
  %v1416 = vunpack.c.0.s8 %v1415
  %v1417 = vperm.slane %v1409, %v1416
  %v1418 = vrot.slane %v1348, 4
  %v1419 = vsel %vm285, %v1418, %v1292
  %v1420 = vrot.slane %v1292, 4
  %v1421 = vsel %vm285, %v1348, %v1420
  %v1423 = vunpack.c.l.s4 1983009808
  %v1424 = vunpack.c.0.s8 %v1423
  %v1425 = vperm.slane %v1419, %v1424
  %v1427 = vunpack.c.l.s4 1983009808
  %v1428 = vunpack.c.0.s8 %v1427
  %v1429 = vperm.slane %v1421, %v1428
  %v1430 = vrot.slane %v1425, 4
  %v1431 = vsel %vm285, %v1430, %v1413
  %v1432 = vrot.slane %v1413, 4
  %v1433 = vsel %vm285, %v1425, %v1432
  %v1435 = vunpack.c.l.s4 1934713408
  %v1436 = vunpack.c.0.s8 %v1435
  %v1437 = vperm.slane %v1431, %v1436
  %v1439 = vunpack.c.l.s4 1934713408
  %v1440 = vunpack.c.0.s8 %v1439
  %v1441 = vperm.slane %v1433, %v1440
  %v1442 = vrot.slane %v1429, 4
  %v1443 = vsel %vm285, %v1442, %v1417
  %v1444 = vrot.slane %v1417, 4
  %v1445 = vsel %vm285, %v1429, %v1444
  %v1447 = vunpack.c.l.s4 1934713408
  %v1448 = vunpack.c.0.s8 %v1447
  %v1449 = vperm.slane %v1443, %v1448
  %v1451 = vunpack.c.l.s4 1934713408
  %v1452 = vunpack.c.0.s8 %v1451
  %v1453 = vperm.slane %v1445, %v1452
  %v1454 = vrot.slane %v1437, 4
  %v1455 = vsel %vm285, 0.0, %v1454
  %v1456 = vrot.slane %v1441, 4
  %v1457 = vsel %vm285, 0.0, %v1456
  %v1458 = vrot.slane %v1449, 4
  %v1459 = vsel %vm285, 0.0, %v1458
  %v1460 = vrot.slane %v1453, 4
  %v1461 = vsel %vm285, 0.0, %v1460
  %v1462 = vsel %vm285, %v1400, %v1381
  %v1464 = vunpack.c.l.s4 1983009808
  %v1465 = vunpack.c.0.s8 %v1464
  %v1466 = vperm.slane %v1462, %v1465
  %v1467 = vrot.slane %v1401, 4
  %v1468 = vsel %vm285, %v1467, %v1399
  %v1470 = vunpack.c.l.s4 1983009808
  %v1471 = vunpack.c.0.s8 %v1470
  %v1472 = vperm.slane %v1468, %v1471
  %v1473 = vsel %vm285, %v1404, %v1393
  %v1475 = vunpack.c.l.s4 1983009808
  %v1476 = vunpack.c.0.s8 %v1475
  %v1477 = vperm.slane %v1473, %v1476
  %v1478 = vrot.slane %v1405, 4
  %v1479 = vsel %vm285, %v1478, %v1403
  %v1481 = vunpack.c.l.s4 1983009808
  %v1482 = vunpack.c.0.s8 %v1481
  %v1483 = vperm.slane %v1479, %v1482
  %v1484 = vrot.slane %v1472, 4
  %v1485 = vsel %vm285, %v1484, %v1466
  %v1486 = vrot.slane %v1466, 4
  %v1487 = vsel %vm285, %v1472, %v1486
  %v1489 = vunpack.c.l.s4 1934713408
  %v1490 = vunpack.c.0.s8 %v1489
  %v1491 = vperm.slane %v1485, %v1490
  %v1493 = vunpack.c.l.s4 1934713408
  %v1494 = vunpack.c.0.s8 %v1493
  %v1495 = vperm.slane %v1487, %v1494
  %v1496 = vrot.slane %v1483, 4
  %v1497 = vsel %vm285, %v1496, %v1477
  %v1498 = vrot.slane %v1477, 4
  %v1499 = vsel %vm285, %v1483, %v1498
  %v1501 = vunpack.c.l.s4 1934713408
  %v1502 = vunpack.c.0.s8 %v1501
  %v1503 = vperm.slane %v1497, %v1502
  %v1505 = vunpack.c.l.s4 1934713408
  %v1506 = vunpack.c.0.s8 %v1505
  %v1507 = vperm.slane %v1499, %v1506
  %v1508 = vrot.slane %v1503, 4
  %v1509 = vsel %vm285, %v1508, %v1491
  %v1510 = vrot.slane %v1491, 4
  %v1511 = vsel %vm285, %v1503, %v1510
  %v1512 = vrot.slane %v1507, 4
  %v1513 = vsel %vm285, %v1512, %v1495
  %v1514 = vrot.slane %v1495, 4
  %v1515 = vsel %vm285, %v1507, %v1514
  %v1516 = vsel %vm285, %v1456, %v1437
  %v1518 = vunpack.c.l.s4 1983009808
  %v1519 = vunpack.c.0.s8 %v1518
  %v1520 = vperm.slane %v1516, %v1519
  %v1521 = vrot.slane %v1457, 4
  %v1522 = vsel %vm285, %v1521, %v1455
  %v1524 = vunpack.c.l.s4 1983009808
  %v1525 = vunpack.c.0.s8 %v1524
  %v1526 = vperm.slane %v1522, %v1525
  %v1527 = vsel %vm285, %v1460, %v1449
  %v1529 = vunpack.c.l.s4 1983009808
  %v1530 = vunpack.c.0.s8 %v1529
  %v1531 = vperm.slane %v1527, %v1530
  %v1532 = vrot.slane %v1461, 4
  %v1533 = vsel %vm285, %v1532, %v1459
  %v1535 = vunpack.c.l.s4 1983009808
  %v1536 = vunpack.c.0.s8 %v1535
  %v1537 = vperm.slane %v1533, %v1536
  %v1538 = vrot.slane %v1526, 4
  %v1539 = vsel %vm285, %v1538, %v1520
  %v1540 = vrot.slane %v1520, 4
  %v1541 = vsel %vm285, %v1526, %v1540
  %v1543 = vunpack.c.l.s4 1934713408
  %v1544 = vunpack.c.0.s8 %v1543
  %v1545 = vperm.slane %v1539, %v1544
  %v1547 = vunpack.c.l.s4 1934713408
  %v1548 = vunpack.c.0.s8 %v1547
  %v1549 = vperm.slane %v1541, %v1548
  %v1550 = vrot.slane %v1537, 4
  %v1551 = vsel %vm285, %v1550, %v1531
  %v1552 = vrot.slane %v1531, 4
  %v1553 = vsel %vm285, %v1537, %v1552
  %v1555 = vunpack.c.l.s4 1934713408
  %v1556 = vunpack.c.0.s8 %v1555
  %v1557 = vperm.slane %v1551, %v1556
  %v1559 = vunpack.c.l.s4 1934713408
  %v1560 = vunpack.c.0.s8 %v1559
  %v1561 = vperm.slane %v1553, %v1560
  %v1562 = vrot.slane %v1557, 4
  %v1563 = vsel %vm285, %v1562, %v1545
  %v1564 = vrot.slane %v1545, 4
  %v1565 = vsel %vm285, %v1557, %v1564
  %v1566 = vrot.slane %v1561, 4
  %v1567 = vsel %vm285, %v1566, %v1549
  %v1568 = vrot.slane %v1549, 4
  %v1569 = vsel %vm285, %v1561, %v1568
  %1572 = vrot.lane.b32.xlu0 %v1511, 16
  %v1573 = vpop.permute.xlu0 %1572
  %1574 = vrot.lane.b32.xlu0 %v1565, 16
  %v1575 = vpop.permute.xlu0 %1574
  %1580 = vrot.lane.b32.xlu0 %v1513, 32
  %v1581 = vpop.permute.xlu0 %1580
  %1582 = vrot.lane.b32.xlu0 %v1567, 32
  %v1583 = vpop.permute.xlu0 %1582
  %1588 = vrot.lane.b32.xlu0 %v1515, 48
  %v1589 = vpop.permute.xlu0 %1588
  %1590 = vrot.lane.b32.xlu0 %v1569, 48
  %v1591 = vpop.permute.xlu0 %1590
  %v1594 = vsel %vm1015, %v1509, %v1573
  %v1595 = vsel %vm1015, %v1563, %v1575
  %vm1596 = vcmask 261120
  %v1597 = vsel %vm1596, %v1594, %v1581
  %v1598 = vsel %vm1596, %v1595, %v1583
  %vm1599 = vcmask 392192
  %v1600 = vsel %vm1599, %v1597, %v1589
  %v1601 = vsel %vm1599, %v1598, %v1591
  %1602 = vst.msk [vmem:[#allocation3] sm:$0xff] %vm46, %v1600
  %1603 = vst.msk [vmem:[#allocation3 + $0x8] sm:$0xff] %vm46, %v1601
  %v1604 = vld [vmem:[#allocation2 + $0x20] sm:$0xff]
  %v1605 = vld [vmem:[#allocation2 + $0x28] sm:$0xff]
  %v1606 = vld [vmem:[#allocation2 + $0x30] sm:$0xff]
  %v1607 = vld [vmem:[#allocation2 + $0x38] sm:$0xff]
  %1610 = vrot.lane.b32.xlu0 %v1604, 112
  %v1611 = vpop.permute.xlu0 %1610
  %1612 = vrot.lane.b32.xlu0 %v1606, 112
  %v1613 = vpop.permute.xlu0 %1612
  %1616 = vrot.lane.b32.xlu0 %v1604, 96
  %v1617 = vpop.permute.xlu0 %1616
  %1618 = vrot.lane.b32.xlu0 %v1606, 96
  %v1619 = vpop.permute.xlu0 %1618
  %1622 = vrot.lane.b32.xlu0 %v1604, 80
  %v1623 = vpop.permute.xlu0 %1622
  %1624 = vrot.lane.b32.xlu0 %v1606, 80
  %v1625 = vpop.permute.xlu0 %1624
  %v1628 = vrot.slane %v1617, 4
  %v1629 = vsel %vm285, %v1628, %v1604
  %v1630 = vrot.slane %v1604, 4
  %v1631 = vsel %vm285, %v1617, %v1630
  %v1633 = vunpack.c.l.s4 1983009808
  %v1634 = vunpack.c.0.s8 %v1633
  %v1635 = vperm.slane %v1629, %v1634
  %v1637 = vunpack.c.l.s4 1983009808
  %v1638 = vunpack.c.0.s8 %v1637
  %v1639 = vperm.slane %v1631, %v1638
  %v1640 = vrot.slane %v1623, 4
  %v1641 = vsel %vm285, %v1640, %v1611
  %v1642 = vrot.slane %v1611, 4
  %v1643 = vsel %vm285, %v1623, %v1642
  %v1645 = vunpack.c.l.s4 1983009808
  %v1646 = vunpack.c.0.s8 %v1645
  %v1647 = vperm.slane %v1641, %v1646
  %v1649 = vunpack.c.l.s4 1983009808
  %v1650 = vunpack.c.0.s8 %v1649
  %v1651 = vperm.slane %v1643, %v1650
  %v1652 = vrot.slane %v1647, 4
  %v1653 = vsel %vm285, %v1652, %v1635
  %v1654 = vrot.slane %v1635, 4
  %v1655 = vsel %vm285, %v1647, %v1654
  %v1657 = vunpack.c.l.s4 1934713408
  %v1658 = vunpack.c.0.s8 %v1657
  %v1659 = vperm.slane %v1653, %v1658
  %v1661 = vunpack.c.l.s4 1934713408
  %v1662 = vunpack.c.0.s8 %v1661
  %v1663 = vperm.slane %v1655, %v1662
  %v1664 = vrot.slane %v1651, 4
  %v1665 = vsel %vm285, %v1664, %v1639
  %v1666 = vrot.slane %v1639, 4
  %v1667 = vsel %vm285, %v1651, %v1666
  %v1669 = vunpack.c.l.s4 1934713408
  %v1670 = vunpack.c.0.s8 %v1669
  %v1671 = vperm.slane %v1665, %v1670
  %v1673 = vunpack.c.l.s4 1934713408
  %v1674 = vunpack.c.0.s8 %v1673
  %v1675 = vperm.slane %v1667, %v1674
  %v1676 = vrot.slane %v1659, 4
  %v1677 = vsel %vm285, 0.0, %v1676
  %v1678 = vrot.slane %v1663, 4
  %v1679 = vsel %vm285, 0.0, %v1678
  %v1680 = vrot.slane %v1671, 4
  %v1681 = vsel %vm285, 0.0, %v1680
  %v1682 = vrot.slane %v1675, 4
  %v1683 = vsel %vm285, 0.0, %v1682
  %v1684 = vrot.slane %v1619, 4
  %v1685 = vsel %vm285, %v1684, %v1606
  %v1686 = vrot.slane %v1606, 4
  %v1687 = vsel %vm285, %v1619, %v1686
  %v1689 = vunpack.c.l.s4 1983009808
  %v1690 = vunpack.c.0.s8 %v1689
  %v1691 = vperm.slane %v1685, %v1690
  %v1693 = vunpack.c.l.s4 1983009808
  %v1694 = vunpack.c.0.s8 %v1693
  %v1695 = vperm.slane %v1687, %v1694
  %v1696 = vrot.slane %v1625, 4
  %v1697 = vsel %vm285, %v1696, %v1613
  %v1698 = vrot.slane %v1613, 4
  %v1699 = vsel %vm285, %v1625, %v1698
  %v1701 = vunpack.c.l.s4 1983009808
  %v1702 = vunpack.c.0.s8 %v1701
  %v1703 = vperm.slane %v1697, %v1702
  %v1705 = vunpack.c.l.s4 1983009808
  %v1706 = vunpack.c.0.s8 %v1705
  %v1707 = vperm.slane %v1699, %v1706
  %v1708 = vrot.slane %v1703, 4
  %v1709 = vsel %vm285, %v1708, %v1691
  %v1710 = vrot.slane %v1691, 4
  %v1711 = vsel %vm285, %v1703, %v1710
  %v1713 = vunpack.c.l.s4 1934713408
  %v1714 = vunpack.c.0.s8 %v1713
  %v1715 = vperm.slane %v1709, %v1714
  %v1717 = vunpack.c.l.s4 1934713408
  %v1718 = vunpack.c.0.s8 %v1717
  %v1719 = vperm.slane %v1711, %v1718
  %v1720 = vrot.slane %v1707, 4
  %v1721 = vsel %vm285, %v1720, %v1695
  %v1722 = vrot.slane %v1695, 4
  %v1723 = vsel %vm285, %v1707, %v1722
  %v1725 = vunpack.c.l.s4 1934713408
  %v1726 = vunpack.c.0.s8 %v1725
  %v1727 = vperm.slane %v1721, %v1726
  %v1729 = vunpack.c.l.s4 1934713408
  %v1730 = vunpack.c.0.s8 %v1729
  %v1731 = vperm.slane %v1723, %v1730
  %v1732 = vrot.slane %v1715, 4
  %v1733 = vsel %vm285, 0.0, %v1732
  %v1734 = vrot.slane %v1719, 4
  %v1735 = vsel %vm285, 0.0, %v1734
  %v1736 = vrot.slane %v1727, 4
  %v1737 = vsel %vm285, 0.0, %v1736
  %v1738 = vrot.slane %v1731, 4
  %v1739 = vsel %vm285, 0.0, %v1738
  %v1740 = vsel %vm285, %v1678, %v1659
  %v1742 = vunpack.c.l.s4 1983009808
  %v1743 = vunpack.c.0.s8 %v1742
  %v1744 = vperm.slane %v1740, %v1743
  %v1745 = vrot.slane %v1679, 4
  %v1746 = vsel %vm285, %v1745, %v1677
  %v1748 = vunpack.c.l.s4 1983009808
  %v1749 = vunpack.c.0.s8 %v1748
  %v1750 = vperm.slane %v1746, %v1749
  %v1751 = vsel %vm285, %v1682, %v1671
  %v1753 = vunpack.c.l.s4 1983009808
  %v1754 = vunpack.c.0.s8 %v1753
  %v1755 = vperm.slane %v1751, %v1754
  %v1756 = vrot.slane %v1683, 4
  %v1757 = vsel %vm285, %v1756, %v1681
  %v1759 = vunpack.c.l.s4 1983009808
  %v1760 = vunpack.c.0.s8 %v1759
  %v1761 = vperm.slane %v1757, %v1760
  %v1762 = vrot.slane %v1750, 4
  %v1763 = vsel %vm285, %v1762, %v1744
  %v1764 = vrot.slane %v1744, 4
  %v1765 = vsel %vm285, %v1750, %v1764
  %v1767 = vunpack.c.l.s4 1934713408
  %v1768 = vunpack.c.0.s8 %v1767
  %v1769 = vperm.slane %v1763, %v1768
  %v1771 = vunpack.c.l.s4 1934713408
  %v1772 = vunpack.c.0.s8 %v1771
  %v1773 = vperm.slane %v1765, %v1772
  %v1774 = vrot.slane %v1761, 4
  %v1775 = vsel %vm285, %v1774, %v1755
  %v1776 = vrot.slane %v1755, 4
  %v1777 = vsel %vm285, %v1761, %v1776
  %v1779 = vunpack.c.l.s4 1934713408
  %v1780 = vunpack.c.0.s8 %v1779
  %v1781 = vperm.slane %v1775, %v1780
  %v1783 = vunpack.c.l.s4 1934713408
  %v1784 = vunpack.c.0.s8 %v1783
  %v1785 = vperm.slane %v1777, %v1784
  %v1786 = vrot.slane %v1781, 4
  %v1787 = vsel %vm285, %v1786, %v1769
  %v1788 = vrot.slane %v1769, 4
  %v1789 = vsel %vm285, %v1781, %v1788
  %v1790 = vrot.slane %v1785, 4
  %v1791 = vsel %vm285, %v1790, %v1773
  %v1792 = vrot.slane %v1773, 4
  %v1793 = vsel %vm285, %v1785, %v1792
  %v1794 = vsel %vm285, %v1734, %v1715
  %v1796 = vunpack.c.l.s4 1983009808
  %v1797 = vunpack.c.0.s8 %v1796
  %v1798 = vperm.slane %v1794, %v1797
  %v1799 = vrot.slane %v1735, 4
  %v1800 = vsel %vm285, %v1799, %v1733
  %v1802 = vunpack.c.l.s4 1983009808
  %v1803 = vunpack.c.0.s8 %v1802
  %v1804 = vperm.slane %v1800, %v1803
  %v1805 = vsel %vm285, %v1738, %v1727
  %v1807 = vunpack.c.l.s4 1983009808
  %v1808 = vunpack.c.0.s8 %v1807
  %v1809 = vperm.slane %v1805, %v1808
  %v1810 = vrot.slane %v1739, 4
  %v1811 = vsel %vm285, %v1810, %v1737
  %v1813 = vunpack.c.l.s4 1983009808
  %v1814 = vunpack.c.0.s8 %v1813
  %v1815 = vperm.slane %v1811, %v1814
  %v1816 = vrot.slane %v1804, 4
  %v1817 = vsel %vm285, %v1816, %v1798
  %v1818 = vrot.slane %v1798, 4
  %v1819 = vsel %vm285, %v1804, %v1818
  %v1821 = vunpack.c.l.s4 1934713408
  %v1822 = vunpack.c.0.s8 %v1821
  %v1823 = vperm.slane %v1817, %v1822
  %v1825 = vunpack.c.l.s4 1934713408
  %v1826 = vunpack.c.0.s8 %v1825
  %v1827 = vperm.slane %v1819, %v1826
  %v1828 = vrot.slane %v1815, 4
  %v1829 = vsel %vm285, %v1828, %v1809
  %v1830 = vrot.slane %v1809, 4
  %v1831 = vsel %vm285, %v1815, %v1830
  %v1833 = vunpack.c.l.s4 1934713408
  %v1834 = vunpack.c.0.s8 %v1833
  %v1835 = vperm.slane %v1829, %v1834
  %v1837 = vunpack.c.l.s4 1934713408
  %v1838 = vunpack.c.0.s8 %v1837
  %v1839 = vperm.slane %v1831, %v1838
  %v1840 = vrot.slane %v1835, 4
  %v1841 = vsel %vm285, %v1840, %v1823
  %v1842 = vrot.slane %v1823, 4
  %v1843 = vsel %vm285, %v1835, %v1842
  %v1844 = vrot.slane %v1839, 4
  %v1845 = vsel %vm285, %v1844, %v1827
  %v1846 = vrot.slane %v1827, 4
  %v1847 = vsel %vm285, %v1839, %v1846
  %1848 = vrot.lane.b32.xlu0 %v1604, 64
  %v1849 = vpop.permute.xlu0 %1848
  %1850 = vrot.lane.b32.xlu0 %v1606, 64
  %v1851 = vpop.permute.xlu0 %1850
  %1852 = vrot.lane.b32.xlu0 %v1611, 64
  %v1853 = vpop.permute.xlu0 %1852
  %1854 = vrot.lane.b32.xlu0 %v1613, 64
  %v1855 = vpop.permute.xlu0 %1854
  %1856 = vrot.lane.b32.xlu0 %v1617, 64
  %v1857 = vpop.permute.xlu0 %1856
  %1858 = vrot.lane.b32.xlu0 %v1619, 64
  %v1859 = vpop.permute.xlu0 %1858
  %1860 = vrot.lane.b32.xlu0 %v1623, 64
  %v1861 = vpop.permute.xlu0 %1860
  %1862 = vrot.lane.b32.xlu0 %v1625, 64
  %v1863 = vpop.permute.xlu0 %1862
  %v1872 = vrot.slane %v1857, 4
  %v1873 = vsel %vm285, %v1872, %v1849
  %v1874 = vrot.slane %v1849, 4
  %v1875 = vsel %vm285, %v1857, %v1874
  %v1877 = vunpack.c.l.s4 1983009808
  %v1878 = vunpack.c.0.s8 %v1877
  %v1879 = vperm.slane %v1873, %v1878
  %v1881 = vunpack.c.l.s4 1983009808
  %v1882 = vunpack.c.0.s8 %v1881
  %v1883 = vperm.slane %v1875, %v1882
  %v1884 = vrot.slane %v1861, 4
  %v1885 = vsel %vm285, %v1884, %v1853
  %v1886 = vrot.slane %v1853, 4
  %v1887 = vsel %vm285, %v1861, %v1886
  %v1889 = vunpack.c.l.s4 1983009808
  %v1890 = vunpack.c.0.s8 %v1889
  %v1891 = vperm.slane %v1885, %v1890
  %v1893 = vunpack.c.l.s4 1983009808
  %v1894 = vunpack.c.0.s8 %v1893
  %v1895 = vperm.slane %v1887, %v1894
  %v1896 = vrot.slane %v1891, 4
  %v1897 = vsel %vm285, %v1896, %v1879
  %v1898 = vrot.slane %v1879, 4
  %v1899 = vsel %vm285, %v1891, %v1898
  %v1901 = vunpack.c.l.s4 1934713408
  %v1902 = vunpack.c.0.s8 %v1901
  %v1903 = vperm.slane %v1897, %v1902
  %v1905 = vunpack.c.l.s4 1934713408
  %v1906 = vunpack.c.0.s8 %v1905
  %v1907 = vperm.slane %v1899, %v1906
  %v1908 = vrot.slane %v1895, 4
  %v1909 = vsel %vm285, %v1908, %v1883
  %v1910 = vrot.slane %v1883, 4
  %v1911 = vsel %vm285, %v1895, %v1910
  %v1913 = vunpack.c.l.s4 1934713408
  %v1914 = vunpack.c.0.s8 %v1913
  %v1915 = vperm.slane %v1909, %v1914
  %v1917 = vunpack.c.l.s4 1934713408
  %v1918 = vunpack.c.0.s8 %v1917
  %v1919 = vperm.slane %v1911, %v1918
  %v1920 = vrot.slane %v1903, 4
  %v1921 = vsel %vm285, 0.0, %v1920
  %v1922 = vrot.slane %v1907, 4
  %v1923 = vsel %vm285, 0.0, %v1922
  %v1924 = vrot.slane %v1915, 4
  %v1925 = vsel %vm285, 0.0, %v1924
  %v1926 = vrot.slane %v1919, 4
  %v1927 = vsel %vm285, 0.0, %v1926
  %v1928 = vrot.slane %v1859, 4
  %v1929 = vsel %vm285, %v1928, %v1851
  %v1930 = vrot.slane %v1851, 4
  %v1931 = vsel %vm285, %v1859, %v1930
  %v1933 = vunpack.c.l.s4 1983009808
  %v1934 = vunpack.c.0.s8 %v1933
  %v1935 = vperm.slane %v1929, %v1934
  %v1937 = vunpack.c.l.s4 1983009808
  %v1938 = vunpack.c.0.s8 %v1937
  %v1939 = vperm.slane %v1931, %v1938
  %v1940 = vrot.slane %v1863, 4
  %v1941 = vsel %vm285, %v1940, %v1855
  %v1942 = vrot.slane %v1855, 4
  %v1943 = vsel %vm285, %v1863, %v1942
  %v1945 = vunpack.c.l.s4 1983009808
  %v1946 = vunpack.c.0.s8 %v1945
  %v1947 = vperm.slane %v1941, %v1946
  %v1949 = vunpack.c.l.s4 1983009808
  %v1950 = vunpack.c.0.s8 %v1949
  %v1951 = vperm.slane %v1943, %v1950
  %v1952 = vrot.slane %v1947, 4
  %v1953 = vsel %vm285, %v1952, %v1935
  %v1954 = vrot.slane %v1935, 4
  %v1955 = vsel %vm285, %v1947, %v1954
  %v1957 = vunpack.c.l.s4 1934713408
  %v1958 = vunpack.c.0.s8 %v1957
  %v1959 = vperm.slane %v1953, %v1958
  %v1961 = vunpack.c.l.s4 1934713408
  %v1962 = vunpack.c.0.s8 %v1961
  %v1963 = vperm.slane %v1955, %v1962
  %v1964 = vrot.slane %v1951, 4
  %v1965 = vsel %vm285, %v1964, %v1939
  %v1966 = vrot.slane %v1939, 4
  %v1967 = vsel %vm285, %v1951, %v1966
  %v1969 = vunpack.c.l.s4 1934713408
  %v1970 = vunpack.c.0.s8 %v1969
  %v1971 = vperm.slane %v1965, %v1970
  %v1973 = vunpack.c.l.s4 1934713408
  %v1974 = vunpack.c.0.s8 %v1973
  %v1975 = vperm.slane %v1967, %v1974
  %v1976 = vrot.slane %v1959, 4
  %v1977 = vsel %vm285, 0.0, %v1976
  %v1978 = vrot.slane %v1963, 4
  %v1979 = vsel %vm285, 0.0, %v1978
  %v1980 = vrot.slane %v1971, 4
  %v1981 = vsel %vm285, 0.0, %v1980
  %v1982 = vrot.slane %v1975, 4
  %v1983 = vsel %vm285, 0.0, %v1982
  %v1984 = vsel %vm285, %v1922, %v1903
  %v1986 = vunpack.c.l.s4 1983009808
  %v1987 = vunpack.c.0.s8 %v1986
  %v1988 = vperm.slane %v1984, %v1987
  %v1989 = vrot.slane %v1923, 4
  %v1990 = vsel %vm285, %v1989, %v1921
  %v1992 = vunpack.c.l.s4 1983009808
  %v1993 = vunpack.c.0.s8 %v1992
  %v1994 = vperm.slane %v1990, %v1993
  %v1995 = vsel %vm285, %v1926, %v1915
  %v1997 = vunpack.c.l.s4 1983009808
  %v1998 = vunpack.c.0.s8 %v1997
  %v1999 = vperm.slane %v1995, %v1998
  %v2000 = vrot.slane %v1927, 4
  %v2001 = vsel %vm285, %v2000, %v1925
  %v2003 = vunpack.c.l.s4 1983009808
  %v2004 = vunpack.c.0.s8 %v2003
  %v2005 = vperm.slane %v2001, %v2004
  %v2006 = vrot.slane %v1994, 4
  %v2007 = vsel %vm285, %v2006, %v1988
  %v2008 = vrot.slane %v1988, 4
  %v2009 = vsel %vm285, %v1994, %v2008
  %v2011 = vunpack.c.l.s4 1934713408
  %v2012 = vunpack.c.0.s8 %v2011
  %v2013 = vperm.slane %v2007, %v2012
  %v2015 = vunpack.c.l.s4 1934713408
  %v2016 = vunpack.c.0.s8 %v2015
  %v2017 = vperm.slane %v2009, %v2016
  %v2018 = vrot.slane %v2005, 4
  %v2019 = vsel %vm285, %v2018, %v1999
  %v2020 = vrot.slane %v1999, 4
  %v2021 = vsel %vm285, %v2005, %v2020
  %v2023 = vunpack.c.l.s4 1934713408
  %v2024 = vunpack.c.0.s8 %v2023
  %v2025 = vperm.slane %v2019, %v2024
  %v2027 = vunpack.c.l.s4 1934713408
  %v2028 = vunpack.c.0.s8 %v2027
  %v2029 = vperm.slane %v2021, %v2028
  %v2030 = vrot.slane %v2025, 4
  %v2031 = vsel %vm285, %v2030, %v2013
  %v2032 = vrot.slane %v2013, 4
  %v2033 = vsel %vm285, %v2025, %v2032
  %v2034 = vrot.slane %v2029, 4
  %v2035 = vsel %vm285, %v2034, %v2017
  %v2036 = vrot.slane %v2017, 4
  %v2037 = vsel %vm285, %v2029, %v2036
  %v2038 = vsel %vm285, %v1978, %v1959
  %v2040 = vunpack.c.l.s4 1983009808
  %v2041 = vunpack.c.0.s8 %v2040
  %v2042 = vperm.slane %v2038, %v2041
  %v2043 = vrot.slane %v1979, 4
  %v2044 = vsel %vm285, %v2043, %v1977
  %v2046 = vunpack.c.l.s4 1983009808
  %v2047 = vunpack.c.0.s8 %v2046
  %v2048 = vperm.slane %v2044, %v2047
  %v2049 = vsel %vm285, %v1982, %v1971
  %v2051 = vunpack.c.l.s4 1983009808
  %v2052 = vunpack.c.0.s8 %v2051
  %v2053 = vperm.slane %v2049, %v2052
  %v2054 = vrot.slane %v1983, 4
  %v2055 = vsel %vm285, %v2054, %v1981
  %v2057 = vunpack.c.l.s4 1983009808
  %v2058 = vunpack.c.0.s8 %v2057
  %v2059 = vperm.slane %v2055, %v2058
  %v2060 = vrot.slane %v2048, 4
  %v2061 = vsel %vm285, %v2060, %v2042
  %v2062 = vrot.slane %v2042, 4
  %v2063 = vsel %vm285, %v2048, %v2062
  %v2065 = vunpack.c.l.s4 1934713408
  %v2066 = vunpack.c.0.s8 %v2065
  %v2067 = vperm.slane %v2061, %v2066
  %v2069 = vunpack.c.l.s4 1934713408
  %v2070 = vunpack.c.0.s8 %v2069
  %v2071 = vperm.slane %v2063, %v2070
  %v2072 = vrot.slane %v2059, 4
  %v2073 = vsel %vm285, %v2072, %v2053
  %v2074 = vrot.slane %v2053, 4
  %v2075 = vsel %vm285, %v2059, %v2074
  %v2077 = vunpack.c.l.s4 1934713408
  %v2078 = vunpack.c.0.s8 %v2077
  %v2079 = vperm.slane %v2073, %v2078
  %v2081 = vunpack.c.l.s4 1934713408
  %v2082 = vunpack.c.0.s8 %v2081
  %v2083 = vperm.slane %v2075, %v2082
  %v2084 = vrot.slane %v2079, 4
  %v2085 = vsel %vm285, %v2084, %v2067
  %v2086 = vrot.slane %v2067, 4
  %v2087 = vsel %vm285, %v2079, %v2086
  %v2088 = vrot.slane %v2083, 4
  %v2089 = vsel %vm285, %v2088, %v2071
  %v2090 = vrot.slane %v2071, 4
  %v2091 = vsel %vm285, %v2083, %v2090
  %2094 = vrot.lane.b32.xlu0 %v1605, 112
  %v2095 = vpop.permute.xlu0 %2094
  %2096 = vrot.lane.b32.xlu0 %v1607, 112
  %v2097 = vpop.permute.xlu0 %2096
  %2100 = vrot.lane.b32.xlu0 %v1605, 96
  %v2101 = vpop.permute.xlu0 %2100
  %2102 = vrot.lane.b32.xlu0 %v1607, 96
  %v2103 = vpop.permute.xlu0 %2102
  %2106 = vrot.lane.b32.xlu0 %v1605, 80
  %v2107 = vpop.permute.xlu0 %2106
  %2108 = vrot.lane.b32.xlu0 %v1607, 80
  %v2109 = vpop.permute.xlu0 %2108
  %v2112 = vrot.slane %v2101, 4
  %v2113 = vsel %vm285, %v2112, %v1605
  %v2114 = vrot.slane %v1605, 4
  %v2115 = vsel %vm285, %v2101, %v2114
  %v2117 = vunpack.c.l.s4 1983009808
  %v2118 = vunpack.c.0.s8 %v2117
  %v2119 = vperm.slane %v2113, %v2118
  %v2121 = vunpack.c.l.s4 1983009808
  %v2122 = vunpack.c.0.s8 %v2121
  %v2123 = vperm.slane %v2115, %v2122
  %v2124 = vrot.slane %v2107, 4
  %v2125 = vsel %vm285, %v2124, %v2095
  %v2126 = vrot.slane %v2095, 4
  %v2127 = vsel %vm285, %v2107, %v2126
  %v2129 = vunpack.c.l.s4 1983009808
  %v2130 = vunpack.c.0.s8 %v2129
  %v2131 = vperm.slane %v2125, %v2130
  %v2133 = vunpack.c.l.s4 1983009808
  %v2134 = vunpack.c.0.s8 %v2133
  %v2135 = vperm.slane %v2127, %v2134
  %v2136 = vrot.slane %v2131, 4
  %v2137 = vsel %vm285, %v2136, %v2119
  %v2138 = vrot.slane %v2119, 4
  %v2139 = vsel %vm285, %v2131, %v2138
  %v2141 = vunpack.c.l.s4 1934713408
  %v2142 = vunpack.c.0.s8 %v2141
  %v2143 = vperm.slane %v2137, %v2142
  %v2145 = vunpack.c.l.s4 1934713408
  %v2146 = vunpack.c.0.s8 %v2145
  %v2147 = vperm.slane %v2139, %v2146
  %v2148 = vrot.slane %v2135, 4
  %v2149 = vsel %vm285, %v2148, %v2123
  %v2150 = vrot.slane %v2123, 4
  %v2151 = vsel %vm285, %v2135, %v2150
  %v2153 = vunpack.c.l.s4 1934713408
  %v2154 = vunpack.c.0.s8 %v2153
  %v2155 = vperm.slane %v2149, %v2154
  %v2157 = vunpack.c.l.s4 1934713408
  %v2158 = vunpack.c.0.s8 %v2157
  %v2159 = vperm.slane %v2151, %v2158
  %v2160 = vrot.slane %v2143, 4
  %v2161 = vsel %vm285, 0.0, %v2160
  %v2162 = vrot.slane %v2147, 4
  %v2163 = vsel %vm285, 0.0, %v2162
  %v2164 = vrot.slane %v2155, 4
  %v2165 = vsel %vm285, 0.0, %v2164
  %v2166 = vrot.slane %v2159, 4
  %v2167 = vsel %vm285, 0.0, %v2166
  %v2168 = vrot.slane %v2103, 4
  %v2169 = vsel %vm285, %v2168, %v1607
  %v2170 = vrot.slane %v1607, 4
  %v2171 = vsel %vm285, %v2103, %v2170
  %v2173 = vunpack.c.l.s4 1983009808
  %v2174 = vunpack.c.0.s8 %v2173
  %v2175 = vperm.slane %v2169, %v2174
  %v2177 = vunpack.c.l.s4 1983009808
  %v2178 = vunpack.c.0.s8 %v2177
  %v2179 = vperm.slane %v2171, %v2178
  %v2180 = vrot.slane %v2109, 4
  %v2181 = vsel %vm285, %v2180, %v2097
  %v2182 = vrot.slane %v2097, 4
  %v2183 = vsel %vm285, %v2109, %v2182
  %v2185 = vunpack.c.l.s4 1983009808
  %v2186 = vunpack.c.0.s8 %v2185
  %v2187 = vperm.slane %v2181, %v2186
  %v2189 = vunpack.c.l.s4 1983009808
  %v2190 = vunpack.c.0.s8 %v2189
  %v2191 = vperm.slane %v2183, %v2190
  %v2192 = vrot.slane %v2187, 4
  %v2193 = vsel %vm285, %v2192, %v2175
  %v2194 = vrot.slane %v2175, 4
  %v2195 = vsel %vm285, %v2187, %v2194
  %v2197 = vunpack.c.l.s4 1934713408
  %v2198 = vunpack.c.0.s8 %v2197
  %v2199 = vperm.slane %v2193, %v2198
  %v2201 = vunpack.c.l.s4 1934713408
  %v2202 = vunpack.c.0.s8 %v2201
  %v2203 = vperm.slane %v2195, %v2202
  %v2204 = vrot.slane %v2191, 4
  %v2205 = vsel %vm285, %v2204, %v2179
  %v2206 = vrot.slane %v2179, 4
  %v2207 = vsel %vm285, %v2191, %v2206
  %v2209 = vunpack.c.l.s4 1934713408
  %v2210 = vunpack.c.0.s8 %v2209
  %v2211 = vperm.slane %v2205, %v2210
  %v2213 = vunpack.c.l.s4 1934713408
  %v2214 = vunpack.c.0.s8 %v2213
  %v2215 = vperm.slane %v2207, %v2214
  %v2216 = vrot.slane %v2199, 4
  %v2217 = vsel %vm285, 0.0, %v2216
  %v2218 = vrot.slane %v2203, 4
  %v2219 = vsel %vm285, 0.0, %v2218
  %v2220 = vrot.slane %v2211, 4
  %v2221 = vsel %vm285, 0.0, %v2220
  %v2222 = vrot.slane %v2215, 4
  %v2223 = vsel %vm285, 0.0, %v2222
  %v2224 = vsel %vm285, %v2162, %v2143
  %v2226 = vunpack.c.l.s4 1983009808
  %v2227 = vunpack.c.0.s8 %v2226
  %v2228 = vperm.slane %v2224, %v2227
  %v2229 = vrot.slane %v2163, 4
  %v2230 = vsel %vm285, %v2229, %v2161
  %v2232 = vunpack.c.l.s4 1983009808
  %v2233 = vunpack.c.0.s8 %v2232
  %v2234 = vperm.slane %v2230, %v2233
  %v2235 = vsel %vm285, %v2166, %v2155
  %v2237 = vunpack.c.l.s4 1983009808
  %v2238 = vunpack.c.0.s8 %v2237
  %v2239 = vperm.slane %v2235, %v2238
  %v2240 = vrot.slane %v2167, 4
  %v2241 = vsel %vm285, %v2240, %v2165
  %v2243 = vunpack.c.l.s4 1983009808
  %v2244 = vunpack.c.0.s8 %v2243
  %v2245 = vperm.slane %v2241, %v2244
  %v2246 = vrot.slane %v2234, 4
  %v2247 = vsel %vm285, %v2246, %v2228
  %v2248 = vrot.slane %v2228, 4
  %v2249 = vsel %vm285, %v2234, %v2248
  %v2251 = vunpack.c.l.s4 1934713408
  %v2252 = vunpack.c.0.s8 %v2251
  %v2253 = vperm.slane %v2247, %v2252
  %v2255 = vunpack.c.l.s4 1934713408
  %v2256 = vunpack.c.0.s8 %v2255
  %v2257 = vperm.slane %v2249, %v2256
  %v2258 = vrot.slane %v2245, 4
  %v2259 = vsel %vm285, %v2258, %v2239
  %v2260 = vrot.slane %v2239, 4
  %v2261 = vsel %vm285, %v2245, %v2260
  %v2263 = vunpack.c.l.s4 1934713408
  %v2264 = vunpack.c.0.s8 %v2263
  %v2265 = vperm.slane %v2259, %v2264
  %v2267 = vunpack.c.l.s4 1934713408
  %v2268 = vunpack.c.0.s8 %v2267
  %v2269 = vperm.slane %v2261, %v2268
  %v2270 = vrot.slane %v2265, 4
  %v2271 = vsel %vm285, %v2270, %v2253
  %v2272 = vrot.slane %v2253, 4
  %v2273 = vsel %vm285, %v2265, %v2272
  %v2274 = vrot.slane %v2269, 4
  %v2275 = vsel %vm285, %v2274, %v2257
  %v2276 = vrot.slane %v2257, 4
  %v2277 = vsel %vm285, %v2269, %v2276
  %v2278 = vsel %vm285, %v2218, %v2199
  %v2280 = vunpack.c.l.s4 1983009808
  %v2281 = vunpack.c.0.s8 %v2280
  %v2282 = vperm.slane %v2278, %v2281
  %v2283 = vrot.slane %v2219, 4
  %v2284 = vsel %vm285, %v2283, %v2217
  %v2286 = vunpack.c.l.s4 1983009808
  %v2287 = vunpack.c.0.s8 %v2286
  %v2288 = vperm.slane %v2284, %v2287
  %v2289 = vsel %vm285, %v2222, %v2211
  %v2291 = vunpack.c.l.s4 1983009808
  %v2292 = vunpack.c.0.s8 %v2291
  %v2293 = vperm.slane %v2289, %v2292
  %v2294 = vrot.slane %v2223, 4
  %v2295 = vsel %vm285, %v2294, %v2221
  %v2297 = vunpack.c.l.s4 1983009808
  %v2298 = vunpack.c.0.s8 %v2297
  %v2299 = vperm.slane %v2295, %v2298
  %v2300 = vrot.slane %v2288, 4
  %v2301 = vsel %vm285, %v2300, %v2282
  %v2302 = vrot.slane %v2282, 4
  %v2303 = vsel %vm285, %v2288, %v2302
  %v2305 = vunpack.c.l.s4 1934713408
  %v2306 = vunpack.c.0.s8 %v2305
  %v2307 = vperm.slane %v2301, %v2306
  %v2309 = vunpack.c.l.s4 1934713408
  %v2310 = vunpack.c.0.s8 %v2309
  %v2311 = vperm.slane %v2303, %v2310
  %v2312 = vrot.slane %v2299, 4
  %v2313 = vsel %vm285, %v2312, %v2293
  %v2314 = vrot.slane %v2293, 4
  %v2315 = vsel %vm285, %v2299, %v2314
  %v2317 = vunpack.c.l.s4 1934713408
  %v2318 = vunpack.c.0.s8 %v2317
  %v2319 = vperm.slane %v2313, %v2318
  %v2321 = vunpack.c.l.s4 1934713408
  %v2322 = vunpack.c.0.s8 %v2321
  %v2323 = vperm.slane %v2315, %v2322
  %v2324 = vrot.slane %v2319, 4
  %v2325 = vsel %vm285, %v2324, %v2307
  %v2326 = vrot.slane %v2307, 4
  %v2327 = vsel %vm285, %v2319, %v2326
  %v2328 = vrot.slane %v2323, 4
  %v2329 = vsel %vm285, %v2328, %v2311
  %v2330 = vrot.slane %v2311, 4
  %v2331 = vsel %vm285, %v2323, %v2330
  %v2332 = vpack.c.bf16 %v1787, %v1787
  %v2333 = vpack.c.bf16 %v1841, %v1841
  %v2334 = vpack.c.bf16 %v1789, %v1789
  %v2335 = vpack.c.bf16 %v1843, %v1843
  %v2336 = vpack.c.bf16 %v1791, %v1791
  %v2337 = vpack.c.bf16 %v1845, %v1845
  %v2338 = vpack.c.bf16 %v1793, %v1793
  %v2339 = vpack.c.bf16 %v1847, %v1847
  %v2340 = vpack.c.bf16 %v2031, %v2031
  %v2341 = vpack.c.bf16 %v2085, %v2085
  %v2342 = vpack.c.bf16 %v2033, %v2033
  %v2343 = vpack.c.bf16 %v2087, %v2087
  %v2344 = vpack.c.bf16 %v2035, %v2035
  %v2345 = vpack.c.bf16 %v2089, %v2089
  %v2346 = vpack.c.bf16 %v2037, %v2037
  %v2347 = vpack.c.bf16 %v2091, %v2091
  %v2350 = vunpack.c.l.b16 %v2332
  %v2351 = vunpack.c.l.b16 %v2333
  %v2352 = vpack.c.b16 %v2351, %v2350
  %v2355 = vunpack.c.l.b16 %v2340
  %v2356 = vunpack.c.l.b16 %v2341
  %v2357 = vpack.c.b16 %v2356, %v2355
  %v2359 = vsel %vm1015, %v2352, 0
  %v2362 = vsel %vm1015, %v2357, 0
  %2364 = vmatpush.bf16.xpose.msra.mxu0 0
  %2365 = vmatpush.bf16.xpose.msra.mxu0 0
  %2366 = vmatpush.bf16.xpose.msra.mxu0 0
  %2367 = vmatpush.bf16.xpose.msra.mxu0 0
  %2368 = vmatpush.bf16.xpose.msra.mxu0 0
  %2369 = vmatpush.bf16.xpose.msra.mxu0 0
  %2370 = vmatpush.bf16.xpose.msra.mxu0 0
  %2371 = vmatpush.bf16.xpose.msra.mxu0 %v2362
  %2372 = vmatmul.bf16.gmra.mxu0 %v2359
  %v2373 = vpop.f32.mrf.mxu0
  %v2374 = vadd.f32 0.0, %v2373
  %v2375 = vpop.f32.mrf.mxu0
  %v2376 = vadd.f32 0.0, %v2375
  %2377 = vdwg.mxu0
  %v2380 = vunpack.c.l.b16 %v2334
  %v2381 = vunpack.c.l.b16 %v2335
  %v2382 = vpack.c.b16 %v2381, %v2380
  %v2385 = vunpack.c.l.b16 %v2342
  %v2386 = vunpack.c.l.b16 %v2343
  %v2387 = vpack.c.b16 %v2386, %v2385
  %v2389 = vsel %vm1015, %v2382, 0
  %v2392 = vsel %vm1015, %v2387, 0
  %2394 = vmatpush.bf16.xpose.msra.mxu0 0
  %2395 = vmatpush.bf16.xpose.msra.mxu0 0
  %2396 = vmatpush.bf16.xpose.msra.mxu0 0
  %2397 = vmatpush.bf16.xpose.msra.mxu0 0
  %2398 = vmatpush.bf16.xpose.msra.mxu0 0
  %2399 = vmatpush.bf16.xpose.msra.mxu0 0
  %2400 = vmatpush.bf16.xpose.msra.mxu0 0
  %2401 = vmatpush.bf16.xpose.msra.mxu0 %v2392
  %2402 = vmatmul.bf16.gmra.mxu0 %v2389
  %v2403 = vpop.f32.mrf.mxu0
  %v2404 = vadd.f32 0.0, %v2403
  %v2405 = vpop.f32.mrf.mxu0
  %v2406 = vadd.f32 0.0, %v2405
  %2407 = vdwg.mxu0
  %v2410 = vunpack.c.l.b16 %v2336
  %v2411 = vunpack.c.l.b16 %v2337
  %v2412 = vpack.c.b16 %v2411, %v2410
  %v2415 = vunpack.c.l.b16 %v2344
  %v2416 = vunpack.c.l.b16 %v2345
  %v2417 = vpack.c.b16 %v2416, %v2415
  %v2419 = vsel %vm1015, %v2412, 0
  %v2422 = vsel %vm1015, %v2417, 0
  %2424 = vmatpush.bf16.xpose.msra.mxu0 0
  %2425 = vmatpush.bf16.xpose.msra.mxu0 0
  %2426 = vmatpush.bf16.xpose.msra.mxu0 0
  %2427 = vmatpush.bf16.xpose.msra.mxu0 0
  %2428 = vmatpush.bf16.xpose.msra.mxu0 0
  %2429 = vmatpush.bf16.xpose.msra.mxu0 0
  %2430 = vmatpush.bf16.xpose.msra.mxu0 0
  %2431 = vmatpush.bf16.xpose.msra.mxu0 %v2422
  %2432 = vmatmul.bf16.gmra.mxu0 %v2419
  %v2433 = vpop.f32.mrf.mxu0
  %v2434 = vadd.f32 0.0, %v2433
  %v2435 = vpop.f32.mrf.mxu0
  %v2436 = vadd.f32 0.0, %v2435
  %2437 = vdwg.mxu0
  %v2440 = vunpack.c.l.b16 %v2338
  %v2441 = vunpack.c.l.b16 %v2339
  %v2442 = vpack.c.b16 %v2441, %v2440
  %v2445 = vunpack.c.l.b16 %v2346
  %v2446 = vunpack.c.l.b16 %v2347
  %v2447 = vpack.c.b16 %v2446, %v2445
  %v2449 = vsel %vm1015, %v2442, 0
  %v2452 = vsel %vm1015, %v2447, 0
  %2454 = vmatpush.bf16.xpose.msra.mxu0 0
  %2455 = vmatpush.bf16.xpose.msra.mxu0 0
  %2456 = vmatpush.bf16.xpose.msra.mxu0 0
  %2457 = vmatpush.bf16.xpose.msra.mxu0 0
  %2458 = vmatpush.bf16.xpose.msra.mxu0 0
  %2459 = vmatpush.bf16.xpose.msra.mxu0 0
  %2460 = vmatpush.bf16.xpose.msra.mxu0 0
  %2461 = vmatpush.bf16.xpose.msra.mxu0 %v2452
  %2462 = vmatmul.bf16.gmra.mxu0 %v2449
  %v2463 = vpop.f32.mrf.mxu0
  %v2464 = vadd.f32 0.0, %v2463
  %v2465 = vpop.f32.mrf.mxu0
  %v2466 = vadd.f32 0.0, %v2465
  %2467 = vdwg.mxu0
  %v2468 = vmul.f32 %v2374, 0.25
  %v2469 = vmul.f32 %v2376, 0.25
  %v2470 = vmul.f32 %v2404, 0.25
  %v2471 = vmul.f32 %v2406, 0.25
  %v2472 = vmul.f32 %v2434, 0.25
  %v2473 = vmul.f32 %v2436, 0.25
  %v2474 = vmul.f32 %v2464, 0.25
  %v2475 = vmul.f32 %v2466, 0.25
  %v2476 = vsel %vm1015, %v2468, -inf
  %2477 = vmax.xlane.f32.xlu0 %v2476
  %v2478 = vpop.xlane.xlu0 %2477
  %v2479 = vsel %vm1015, %v2469, -inf
  %2480 = vmax.xlane.f32.xlu0 %v2479
  %v2481 = vpop.xlane.xlu0 %2480
  %v2482 = vsel %vm1015, %v2470, -inf
  %2483 = vmax.xlane.f32.xlu0 %v2482
  %v2484 = vpop.xlane.xlu0 %2483
  %v2485 = vsel %vm1015, %v2471, -inf
  %2486 = vmax.xlane.f32.xlu0 %v2485
  %v2487 = vpop.xlane.xlu0 %2486
  %v2488 = vsel %vm1015, %v2472, -inf
  %2489 = vmax.xlane.f32.xlu0 %v2488
  %v2490 = vpop.xlane.xlu0 %2489
  %v2491 = vsel %vm1015, %v2473, -inf
  %2492 = vmax.xlane.f32.xlu0 %v2491
  %v2493 = vpop.xlane.xlu0 %2492
  %v2494 = vsel %vm1015, %v2474, -inf
  %2495 = vmax.xlane.f32.xlu0 %v2494
  %v2496 = vpop.xlane.xlu0 %2495
  %v2497 = vsel %vm1015, %v2475, -inf
  %2498 = vmax.xlane.f32.xlu0 %v2497
  %v2499 = vpop.xlane.xlu0 %2498
  %v2500 = vsub.f32 %v2468, %v2478
  %v2501 = vsub.f32 %v2469, %v2481
  %v2502 = vsub.f32 %v2470, %v2484
  %v2503 = vsub.f32 %v2471, %v2487
  %v2504 = vsub.f32 %v2472, %v2490
  %v2505 = vsub.f32 %v2473, %v2493
  %v2506 = vsub.f32 %v2474, %v2496
  %v2507 = vsub.f32 %v2475, %v2499
  %v2508 = vmul.f32 %v2500, 1.442695
  %v2509 = vpow.pop %v2508
  %v2510 = vmul.f32 %v2501, 1.442695
  %v2511 = vpow.pop %v2510
  %v2512 = vmul.f32 %v2502, 1.442695
  %v2513 = vpow.pop %v2512
  %v2514 = vmul.f32 %v2503, 1.442695
  %v2515 = vpow.pop %v2514
  %v2516 = vmul.f32 %v2504, 1.442695
  %v2517 = vpow.pop %v2516
  %v2518 = vmul.f32 %v2505, 1.442695
  %v2519 = vpow.pop %v2518
  %v2520 = vmul.f32 %v2506, 1.442695
  %v2521 = vpow.pop %v2520
  %v2522 = vmul.f32 %v2507, 1.442695
  %v2523 = vpow.pop %v2522
  %v2524 = vsel %vm1015, %v2509, 0.0
  %2525 = vadd.xlane.f32.xlu0 %v2524
  %v2526 = vpop.xlane.xlu0 %2525
  %v2527 = vsel %vm1015, %v2511, 0.0
  %2528 = vadd.xlane.f32.xlu0 %v2527
  %v2529 = vpop.xlane.xlu0 %2528
  %v2530 = vsel %vm1015, %v2513, 0.0
  %2531 = vadd.xlane.f32.xlu0 %v2530
  %v2532 = vpop.xlane.xlu0 %2531
  %v2533 = vsel %vm1015, %v2515, 0.0
  %2534 = vadd.xlane.f32.xlu0 %v2533
  %v2535 = vpop.xlane.xlu0 %2534
  %v2536 = vsel %vm1015, %v2517, 0.0
  %2537 = vadd.xlane.f32.xlu0 %v2536
  %v2538 = vpop.xlane.xlu0 %2537
  %v2539 = vsel %vm1015, %v2519, 0.0
  %2540 = vadd.xlane.f32.xlu0 %v2539
  %v2541 = vpop.xlane.xlu0 %2540
  %v2542 = vsel %vm1015, %v2521, 0.0
  %2543 = vadd.xlane.f32.xlu0 %v2542
  %v2544 = vpop.xlane.xlu0 %2543
  %v2545 = vsel %vm1015, %v2523, 0.0
  %2546 = vadd.xlane.f32.xlu0 %v2545
  %v2547 = vpop.xlane.xlu0 %2546
  %v2548 = vrcp.pop %v2526
  %v2549 = vrcp.pop %v2529
  %v2550 = vrcp.pop %v2532
  %v2551 = vrcp.pop %v2535
  %v2552 = vrcp.pop %v2538
  %v2553 = vrcp.pop %v2541
  %v2554 = vrcp.pop %v2544
  %v2555 = vrcp.pop %v2547
  %v2556 = vmul.f32 %v2509, %v2548
  %v2557 = vmul.f32 %v2511, %v2549
  %v2558 = vmul.f32 %v2513, %v2550
  %v2559 = vmul.f32 %v2515, %v2551
  %v2560 = vmul.f32 %v2517, %v2552
  %v2561 = vmul.f32 %v2519, %v2553
  %v2562 = vmul.f32 %v2521, %v2554
  %v2563 = vmul.f32 %v2523, %v2555
  %v2564 = vpack.c.bf16 %v2556, %v2556
  %v2565 = vpack.c.bf16 %v2557, %v2557
  %v2566 = vpack.c.bf16 %v2558, %v2558
  %v2567 = vpack.c.bf16 %v2559, %v2559
  %v2568 = vpack.c.bf16 %v2560, %v2560
  %v2569 = vpack.c.bf16 %v2561, %v2561
  %v2570 = vpack.c.bf16 %v2562, %v2562
  %v2571 = vpack.c.bf16 %v2563, %v2563
  %v2572 = vpack.c.bf16 %v2271, %v2271
  %v2573 = vpack.c.bf16 %v2325, %v2325
  %v2574 = vpack.c.bf16 %v2273, %v2273
  %v2575 = vpack.c.bf16 %v2327, %v2327
  %v2576 = vpack.c.bf16 %v2275, %v2275
  %v2577 = vpack.c.bf16 %v2329, %v2329
  %v2578 = vpack.c.bf16 %v2277, %v2277
  %v2579 = vpack.c.bf16 %v2331, %v2331
  %v2582 = vunpack.c.l.b16 %v2564
  %v2583 = vunpack.c.l.b16 %v2565
  %v2584 = vpack.c.b16 %v2583, %v2582
  %v2587 = vunpack.c.l.b16 %v2572
  %v2588 = vunpack.c.l.b16 %v2573
  %v2589 = vpack.c.b16 %v2588, %v2587
  %v2592 = vsel %vm1015, %v2584, 0
  %2594 = vmatpush.bf16.msra.mxu0 0
  %2595 = vmatpush.bf16.msra.mxu0 0
  %2596 = vmatpush.bf16.msra.mxu0 0
  %2597 = vmatpush.bf16.msra.mxu0 0
  %2598 = vmatpush.bf16.msra.mxu0 0
  %2599 = vmatpush.bf16.msra.mxu0 0
  %2600 = vmatpush.bf16.msra.mxu0 0
  %2601 = vmatpush.bf16.msra.mxu0 %v2589
  %2602 = vmatmul.bf16.gmra.mxu0 %v2592
  %v2603 = vpop.f32.mrf.mxu0
  %v2604 = vadd.f32 0.0, %v2603
  %v2605 = vpop.f32.mrf.mxu0
  %v2606 = vadd.f32 0.0, %v2605
  %2607 = vdwg.mxu0
  %v2610 = vunpack.c.l.b16 %v2566
  %v2611 = vunpack.c.l.b16 %v2567
  %v2612 = vpack.c.b16 %v2611, %v2610
  %v2615 = vunpack.c.l.b16 %v2574
  %v2616 = vunpack.c.l.b16 %v2575
  %v2617 = vpack.c.b16 %v2616, %v2615
  %v2620 = vsel %vm1015, %v2612, 0
  %2622 = vmatpush.bf16.msra.mxu0 0
  %2623 = vmatpush.bf16.msra.mxu0 0
  %2624 = vmatpush.bf16.msra.mxu0 0
  %2625 = vmatpush.bf16.msra.mxu0 0
  %2626 = vmatpush.bf16.msra.mxu0 0
  %2627 = vmatpush.bf16.msra.mxu0 0
  %2628 = vmatpush.bf16.msra.mxu0 0
  %2629 = vmatpush.bf16.msra.mxu0 %v2617
  %2630 = vmatmul.bf16.gmra.mxu0 %v2620
  %v2631 = vpop.f32.mrf.mxu0
  %v2632 = vadd.f32 0.0, %v2631
  %v2633 = vpop.f32.mrf.mxu0
  %v2634 = vadd.f32 0.0, %v2633
  %2635 = vdwg.mxu0
  %v2638 = vunpack.c.l.b16 %v2568
  %v2639 = vunpack.c.l.b16 %v2569
  %v2640 = vpack.c.b16 %v2639, %v2638
  %v2643 = vunpack.c.l.b16 %v2576
  %v2644 = vunpack.c.l.b16 %v2577
  %v2645 = vpack.c.b16 %v2644, %v2643
  %v2648 = vsel %vm1015, %v2640, 0
  %2650 = vmatpush.bf16.msra.mxu0 0
  %2651 = vmatpush.bf16.msra.mxu0 0
  %2652 = vmatpush.bf16.msra.mxu0 0
  %2653 = vmatpush.bf16.msra.mxu0 0
  %2654 = vmatpush.bf16.msra.mxu0 0
  %2655 = vmatpush.bf16.msra.mxu0 0
  %2656 = vmatpush.bf16.msra.mxu0 0
  %2657 = vmatpush.bf16.msra.mxu0 %v2645
  %2658 = vmatmul.bf16.gmra.mxu0 %v2648
  %v2659 = vpop.f32.mrf.mxu0
  %v2660 = vadd.f32 0.0, %v2659
  %v2661 = vpop.f32.mrf.mxu0
  %v2662 = vadd.f32 0.0, %v2661
  %2663 = vdwg.mxu0
  %v2666 = vunpack.c.l.b16 %v2570
  %v2667 = vunpack.c.l.b16 %v2571
  %v2668 = vpack.c.b16 %v2667, %v2666
  %v2671 = vunpack.c.l.b16 %v2578
  %v2672 = vunpack.c.l.b16 %v2579
  %v2673 = vpack.c.b16 %v2672, %v2671
  %v2676 = vsel %vm1015, %v2668, 0
  %2678 = vmatpush.bf16.msra.mxu0 0
  %2679 = vmatpush.bf16.msra.mxu0 0
  %2680 = vmatpush.bf16.msra.mxu0 0
  %2681 = vmatpush.bf16.msra.mxu0 0
  %2682 = vmatpush.bf16.msra.mxu0 0
  %2683 = vmatpush.bf16.msra.mxu0 0
  %2684 = vmatpush.bf16.msra.mxu0 0
  %2685 = vmatpush.bf16.msra.mxu0 %v2673
  %2686 = vmatmul.bf16.gmra.mxu0 %v2676
  %v2687 = vpop.f32.mrf.mxu0
  %v2688 = vadd.f32 0.0, %v2687
  %v2689 = vpop.f32.mrf.mxu0
  %v2690 = vadd.f32 0.0, %v2689
  %2691 = vdwg.mxu0
  %v2692 = vrot.slane %v2660, 4
  %v2693 = vsel %vm285, %v2692, %v2604
  %v2694 = vrot.slane %v2604, 4
  %v2695 = vsel %vm285, %v2660, %v2694
  %v2697 = vunpack.c.l.s4 1983009808
  %v2698 = vunpack.c.0.s8 %v2697
  %v2699 = vperm.slane %v2693, %v2698
  %v2701 = vunpack.c.l.s4 1983009808
  %v2702 = vunpack.c.0.s8 %v2701
  %v2703 = vperm.slane %v2695, %v2702
  %v2704 = vrot.slane %v2688, 4
  %v2705 = vsel %vm285, %v2704, %v2632
  %v2706 = vrot.slane %v2632, 4
  %v2707 = vsel %vm285, %v2688, %v2706
  %v2709 = vunpack.c.l.s4 1983009808
  %v2710 = vunpack.c.0.s8 %v2709
  %v2711 = vperm.slane %v2705, %v2710
  %v2713 = vunpack.c.l.s4 1983009808
  %v2714 = vunpack.c.0.s8 %v2713
  %v2715 = vperm.slane %v2707, %v2714
  %v2716 = vrot.slane %v2711, 4
  %v2717 = vsel %vm285, %v2716, %v2699
  %v2718 = vrot.slane %v2699, 4
  %v2719 = vsel %vm285, %v2711, %v2718
  %v2721 = vunpack.c.l.s4 1934713408
  %v2722 = vunpack.c.0.s8 %v2721
  %v2723 = vperm.slane %v2717, %v2722
  %v2725 = vunpack.c.l.s4 1934713408
  %v2726 = vunpack.c.0.s8 %v2725
  %v2727 = vperm.slane %v2719, %v2726
  %v2728 = vrot.slane %v2715, 4
  %v2729 = vsel %vm285, %v2728, %v2703
  %v2730 = vrot.slane %v2703, 4
  %v2731 = vsel %vm285, %v2715, %v2730
  %v2733 = vunpack.c.l.s4 1934713408
  %v2734 = vunpack.c.0.s8 %v2733
  %v2735 = vperm.slane %v2729, %v2734
  %v2737 = vunpack.c.l.s4 1934713408
  %v2738 = vunpack.c.0.s8 %v2737
  %v2739 = vperm.slane %v2731, %v2738
  %v2740 = vrot.slane %v2723, 4
  %v2741 = vsel %vm285, 0.0, %v2740
  %v2742 = vrot.slane %v2727, 4
  %v2743 = vsel %vm285, 0.0, %v2742
  %v2744 = vrot.slane %v2735, 4
  %v2745 = vsel %vm285, 0.0, %v2744
  %v2746 = vrot.slane %v2739, 4
  %v2747 = vsel %vm285, 0.0, %v2746
  %v2748 = vrot.slane %v2662, 4
  %v2749 = vsel %vm285, %v2748, %v2606
  %v2750 = vrot.slane %v2606, 4
  %v2751 = vsel %vm285, %v2662, %v2750
  %v2753 = vunpack.c.l.s4 1983009808
  %v2754 = vunpack.c.0.s8 %v2753
  %v2755 = vperm.slane %v2749, %v2754
  %v2757 = vunpack.c.l.s4 1983009808
  %v2758 = vunpack.c.0.s8 %v2757
  %v2759 = vperm.slane %v2751, %v2758
  %v2760 = vrot.slane %v2690, 4
  %v2761 = vsel %vm285, %v2760, %v2634
  %v2762 = vrot.slane %v2634, 4
  %v2763 = vsel %vm285, %v2690, %v2762
  %v2765 = vunpack.c.l.s4 1983009808
  %v2766 = vunpack.c.0.s8 %v2765
  %v2767 = vperm.slane %v2761, %v2766
  %v2769 = vunpack.c.l.s4 1983009808
  %v2770 = vunpack.c.0.s8 %v2769
  %v2771 = vperm.slane %v2763, %v2770
  %v2772 = vrot.slane %v2767, 4
  %v2773 = vsel %vm285, %v2772, %v2755
  %v2774 = vrot.slane %v2755, 4
  %v2775 = vsel %vm285, %v2767, %v2774
  %v2777 = vunpack.c.l.s4 1934713408
  %v2778 = vunpack.c.0.s8 %v2777
  %v2779 = vperm.slane %v2773, %v2778
  %v2781 = vunpack.c.l.s4 1934713408
  %v2782 = vunpack.c.0.s8 %v2781
  %v2783 = vperm.slane %v2775, %v2782
  %v2784 = vrot.slane %v2771, 4
  %v2785 = vsel %vm285, %v2784, %v2759
  %v2786 = vrot.slane %v2759, 4
  %v2787 = vsel %vm285, %v2771, %v2786
  %v2789 = vunpack.c.l.s4 1934713408
  %v2790 = vunpack.c.0.s8 %v2789
  %v2791 = vperm.slane %v2785, %v2790
  %v2793 = vunpack.c.l.s4 1934713408
  %v2794 = vunpack.c.0.s8 %v2793
  %v2795 = vperm.slane %v2787, %v2794
  %v2796 = vrot.slane %v2779, 4
  %v2797 = vsel %vm285, 0.0, %v2796
  %v2798 = vrot.slane %v2783, 4
  %v2799 = vsel %vm285, 0.0, %v2798
  %v2800 = vrot.slane %v2791, 4
  %v2801 = vsel %vm285, 0.0, %v2800
  %v2802 = vrot.slane %v2795, 4
  %v2803 = vsel %vm285, 0.0, %v2802
  %v2804 = vsel %vm285, %v2742, %v2723
  %v2806 = vunpack.c.l.s4 1983009808
  %v2807 = vunpack.c.0.s8 %v2806
  %v2808 = vperm.slane %v2804, %v2807
  %v2809 = vrot.slane %v2743, 4
  %v2810 = vsel %vm285, %v2809, %v2741
  %v2812 = vunpack.c.l.s4 1983009808
  %v2813 = vunpack.c.0.s8 %v2812
  %v2814 = vperm.slane %v2810, %v2813
  %v2815 = vsel %vm285, %v2746, %v2735
  %v2817 = vunpack.c.l.s4 1983009808
  %v2818 = vunpack.c.0.s8 %v2817
  %v2819 = vperm.slane %v2815, %v2818
  %v2820 = vrot.slane %v2747, 4
  %v2821 = vsel %vm285, %v2820, %v2745
  %v2823 = vunpack.c.l.s4 1983009808
  %v2824 = vunpack.c.0.s8 %v2823
  %v2825 = vperm.slane %v2821, %v2824
  %v2826 = vrot.slane %v2814, 4
  %v2827 = vsel %vm285, %v2826, %v2808
  %v2828 = vrot.slane %v2808, 4
  %v2829 = vsel %vm285, %v2814, %v2828
  %v2831 = vunpack.c.l.s4 1934713408
  %v2832 = vunpack.c.0.s8 %v2831
  %v2833 = vperm.slane %v2827, %v2832
  %v2835 = vunpack.c.l.s4 1934713408
  %v2836 = vunpack.c.0.s8 %v2835
  %v2837 = vperm.slane %v2829, %v2836
  %v2838 = vrot.slane %v2825, 4
  %v2839 = vsel %vm285, %v2838, %v2819
  %v2840 = vrot.slane %v2819, 4
  %v2841 = vsel %vm285, %v2825, %v2840
  %v2843 = vunpack.c.l.s4 1934713408
  %v2844 = vunpack.c.0.s8 %v2843
  %v2845 = vperm.slane %v2839, %v2844
  %v2847 = vunpack.c.l.s4 1934713408
  %v2848 = vunpack.c.0.s8 %v2847
  %v2849 = vperm.slane %v2841, %v2848
  %v2850 = vrot.slane %v2845, 4
  %v2851 = vsel %vm285, %v2850, %v2833
  %v2852 = vrot.slane %v2833, 4
  %v2853 = vsel %vm285, %v2845, %v2852
  %v2854 = vrot.slane %v2849, 4
  %v2855 = vsel %vm285, %v2854, %v2837
  %v2856 = vrot.slane %v2837, 4
  %v2857 = vsel %vm285, %v2849, %v2856
  %v2858 = vsel %vm285, %v2798, %v2779
  %v2860 = vunpack.c.l.s4 1983009808
  %v2861 = vunpack.c.0.s8 %v2860
  %v2862 = vperm.slane %v2858, %v2861
  %v2863 = vrot.slane %v2799, 4
  %v2864 = vsel %vm285, %v2863, %v2797
  %v2866 = vunpack.c.l.s4 1983009808
  %v2867 = vunpack.c.0.s8 %v2866
  %v2868 = vperm.slane %v2864, %v2867
  %v2869 = vsel %vm285, %v2802, %v2791
  %v2871 = vunpack.c.l.s4 1983009808
  %v2872 = vunpack.c.0.s8 %v2871
  %v2873 = vperm.slane %v2869, %v2872
  %v2874 = vrot.slane %v2803, 4
  %v2875 = vsel %vm285, %v2874, %v2801
  %v2877 = vunpack.c.l.s4 1983009808
  %v2878 = vunpack.c.0.s8 %v2877
  %v2879 = vperm.slane %v2875, %v2878
  %v2880 = vrot.slane %v2868, 4
  %v2881 = vsel %vm285, %v2880, %v2862
  %v2882 = vrot.slane %v2862, 4
  %v2883 = vsel %vm285, %v2868, %v2882
  %v2885 = vunpack.c.l.s4 1934713408
  %v2886 = vunpack.c.0.s8 %v2885
  %v2887 = vperm.slane %v2881, %v2886
  %v2889 = vunpack.c.l.s4 1934713408
  %v2890 = vunpack.c.0.s8 %v2889
  %v2891 = vperm.slane %v2883, %v2890
  %v2892 = vrot.slane %v2879, 4
  %v2893 = vsel %vm285, %v2892, %v2873
  %v2894 = vrot.slane %v2873, 4
  %v2895 = vsel %vm285, %v2879, %v2894
  %v2897 = vunpack.c.l.s4 1934713408
  %v2898 = vunpack.c.0.s8 %v2897
  %v2899 = vperm.slane %v2893, %v2898
  %v2901 = vunpack.c.l.s4 1934713408
  %v2902 = vunpack.c.0.s8 %v2901
  %v2903 = vperm.slane %v2895, %v2902
  %v2904 = vrot.slane %v2899, 4
  %v2905 = vsel %vm285, %v2904, %v2887
  %v2906 = vrot.slane %v2887, 4
  %v2907 = vsel %vm285, %v2899, %v2906
  %v2908 = vrot.slane %v2903, 4
  %v2909 = vsel %vm285, %v2908, %v2891
  %v2910 = vrot.slane %v2891, 4
  %v2911 = vsel %vm285, %v2903, %v2910
  %2914 = vrot.lane.b32.xlu0 %v2853, 16
  %v2915 = vpop.permute.xlu0 %2914
  %2916 = vrot.lane.b32.xlu0 %v2907, 16
  %v2917 = vpop.permute.xlu0 %2916
  %2922 = vrot.lane.b32.xlu0 %v2855, 32
  %v2923 = vpop.permute.xlu0 %2922
  %2924 = vrot.lane.b32.xlu0 %v2909, 32
  %v2925 = vpop.permute.xlu0 %2924
  %2930 = vrot.lane.b32.xlu0 %v2857, 48
  %v2931 = vpop.permute.xlu0 %2930
  %2932 = vrot.lane.b32.xlu0 %v2911, 48
  %v2933 = vpop.permute.xlu0 %2932
  %v2936 = vsel %vm1015, %v2851, %v2915
  %v2937 = vsel %vm1015, %v2905, %v2917
  %v2938 = vsel %vm1596, %v2936, %v2923
  %v2939 = vsel %vm1596, %v2937, %v2925
  %v2940 = vsel %vm1599, %v2938, %v2931
  %v2941 = vsel %vm1599, %v2939, %v2933
  %2942 = vst.msk [vmem:[#allocation3 + $0x10] sm:$0xff] %vm46, %v2940
  %2943 = vst.msk [vmem:[#allocation3 + $0x18] sm:$0xff] %vm46, %v2941
  %v2944 = vld [vmem:[#allocation3] sm:$0xff]
  %v2945 = vld [vmem:[#allocation3 + $0x8] sm:$0xff]
  %v2946 = vld [vmem:[#allocation3 + $0x10] sm:$0xff]
  %v2947 = vld [vmem:[#allocation3 + $0x18] sm:$0xff]
  %v2948 = vpack.c.bf16 %v2945, %v2944
  %v2949 = vpack.c.bf16 %v2947, %v2946
  %v2950 = vld [vmem:[%s4] sm:$0xf]
  %v2951 = vld [vmem:[%s4 + $0x4] sm:$0xf]
  %v2952 = vld [vmem:[%s4 + $0x8] sm:$0xf]
  %v2953 = vld [vmem:[%s4 + $0xc] sm:$0xf]
  %v2954 = vld [vmem:[%s4 + $0x10] sm:$0xf]
  %v2955 = vld [vmem:[%s4 + $0x14] sm:$0xf]
  %v2956 = vld [vmem:[%s4 + $0x18] sm:$0xf]
  %v2957 = vld [vmem:[%s4 + $0x1c] sm:$0xf]
  %v2958 = vld [vmem:[%s5] sm:$0x1]
  %v2960 = vperm.slane %v2958, 0
  %v2970 = vunpack.c.l.b16 %v2950
  %v2971 = vunpack.c.l.b16 %v2951
  %v2972 = vunpack.c.l.b16 %v2952
  %v2973 = vunpack.c.l.b16 %v2953
  %v2974 = vunpack.c.l.b16 %v2954
  %v2975 = vunpack.c.l.b16 %v2955
  %v2976 = vunpack.c.l.b16 %v2956
  %v2977 = vunpack.c.l.b16 %v2957
  %v2978 = vpack.c.b16 %v2971, %v2970
  %v2979 = vpack.c.b16 %v2973, %v2972
  %v2980 = vpack.c.b16 %v2975, %v2974
  %v2981 = vpack.c.b16 %v2977, %v2976
  %v2987 = vsel %vm46, %v2948, 0
  %v2990 = vsel %vm46, %v2949, 0
  %2992 = vmatpush.bf16.msra.mxu0 0
  %2993 = vmatpush.bf16.msra.mxu0 0
  %2994 = vmatpush.bf16.msra.mxu0 0
  %2995 = vmatpush.bf16.msra.mxu0 0
  %2996 = vmatpush.bf16.msra.mxu0 %v2981
  %2997 = vmatpush.bf16.msra.mxu0 %v2980
  %2998 = vmatpush.bf16.msra.mxu0 %v2979
  %2999 = vmatpush.bf16.msra.mxu0 %v2978
  %3000 = vmatmul.bf16.gmra.mxu0 %v2987
  %v3001 = vpop.f32.mrf.mxu0
  %v3002 = vadd.f32 %v2960, %v3001
  %v3003 = vpop.f32.mrf.mxu0
  %v3004 = vadd.f32 %v2960, %v3003
  %3005 = vmatmul.bf16.gmra.mxu0 %v2990
  %v3006 = vpop.f32.mrf.mxu0
  %v3007 = vadd.f32 %v2960, %v3006
  %v3008 = vpop.f32.mrf.mxu0
  %v3009 = vadd.f32 %v2960, %v3008
  %3010 = vdwg.mxu0
  %v3011 = vadd.f32 %v42, %v3002
  %v3012 = vadd.f32 %v43, %v3004
  %v3013 = vadd.f32 %v44, %v3007
  %v3014 = vadd.f32 %v45, %v3009
  %v3015 = vsel %vm46, %v3011, 0.0
  %3016 = vadd.xlane.f32.xlu0 %v3015
  %v3017 = vpop.xlane.xlu0 %3016
  %v3018 = vsel %vm46, %v3012, 0.0
  %3019 = vadd.xlane.f32.xlu0 %v3018
  %v3020 = vpop.xlane.xlu0 %3019
  %v3021 = vsel %vm46, %v3013, 0.0
  %3022 = vadd.xlane.f32.xlu0 %v3021
  %v3023 = vpop.xlane.xlu0 %3022
  %v3024 = vsel %vm46, %v3014, 0.0
  %3025 = vadd.xlane.f32.xlu0 %v3024
  %v3026 = vpop.xlane.xlu0 %3025
  %v3027 = vmul.f32 %v3017, %v65
  %v3028 = vmul.f32 %v3020, %v65
  %v3029 = vmul.f32 %v3023, %v65
  %v3030 = vmul.f32 %v3026, %v65
  %v3031 = vsub.f32 %v3011, %v3027
  %v3032 = vsub.f32 %v3012, %v3028
  %v3033 = vsub.f32 %v3013, %v3029
  %v3034 = vsub.f32 %v3014, %v3030
  %v3035 = vmul.f32 %v3031, %v3031
  %v3036 = vmul.f32 %v3032, %v3032
  %v3037 = vmul.f32 %v3033, %v3033
  %v3038 = vmul.f32 %v3034, %v3034
  %v3039 = vsel %vm46, %v3035, 0.0
  %3040 = vadd.xlane.f32.xlu0 %v3039
  %v3041 = vpop.xlane.xlu0 %3040
  %v3042 = vsel %vm46, %v3036, 0.0
  %3043 = vadd.xlane.f32.xlu0 %v3042
  %v3044 = vpop.xlane.xlu0 %3043
  %v3045 = vsel %vm46, %v3037, 0.0
  %3046 = vadd.xlane.f32.xlu0 %v3045
  %v3047 = vpop.xlane.xlu0 %3046
  %v3048 = vsel %vm46, %v3038, 0.0
  %3049 = vadd.xlane.f32.xlu0 %v3048
  %v3050 = vpop.xlane.xlu0 %3049
  %v3051 = vmul.f32 %v3041, %v65
  %v3052 = vmul.f32 %v3044, %v65
  %v3053 = vmul.f32 %v3047, %v65
  %v3054 = vmul.f32 %v3050, %v65
  %v3055 = vadd.f32 %v3051, 1e-05
  %v3056 = vadd.f32 %v3052, 1e-05
  %v3057 = vadd.f32 %v3053, 1e-05
  %v3058 = vadd.f32 %v3054, 1e-05
  %v3059 = vrsqrt.pop %v3055
  %v3060 = vmul.f32 %v3059, %v3055
  %v3061 = vmul.f32 %v3060, %v3059
  %v3062 = vmul.f32 0.5, %v3061
  %v3063 = vsub.f32 1.5, %v3062
  %v3064 = vmul.f32 %v3059, %v3063
  %vm3065 = vweird.f32 %v3055
  %vm3066 = vweird.f32 %v3059
  %vm3067 = vmor %vm3065, %vm3066
  %v3068 = vsel %vm3067, %v3059, %v3064
  %v3069 = vrsqrt.pop %v3056
  %v3070 = vmul.f32 %v3069, %v3056
  %v3071 = vmul.f32 %v3070, %v3069
  %v3072 = vmul.f32 0.5, %v3071
  %v3073 = vsub.f32 1.5, %v3072
  %v3074 = vmul.f32 %v3069, %v3073
  %vm3075 = vweird.f32 %v3056
  %vm3076 = vweird.f32 %v3069
  %vm3077 = vmor %vm3075, %vm3076
  %v3078 = vsel %vm3077, %v3069, %v3074
  %v3079 = vrsqrt.pop %v3057
  %v3080 = vmul.f32 %v3079, %v3057
  %v3081 = vmul.f32 %v3080, %v3079
  %v3082 = vmul.f32 0.5, %v3081
  %v3083 = vsub.f32 1.5, %v3082
  %v3084 = vmul.f32 %v3079, %v3083
  %vm3085 = vweird.f32 %v3057
  %vm3086 = vweird.f32 %v3079
  %vm3087 = vmor %vm3085, %vm3086
  %v3088 = vsel %vm3087, %v3079, %v3084
  %v3089 = vrsqrt.pop %v3058
  %v3090 = vmul.f32 %v3089, %v3058
  %v3091 = vmul.f32 %v3090, %v3089
  %v3092 = vmul.f32 0.5, %v3091
  %v3093 = vsub.f32 1.5, %v3092
  %v3094 = vmul.f32 %v3089, %v3093
  %vm3095 = vweird.f32 %v3058
  %vm3096 = vweird.f32 %v3089
  %vm3097 = vmor %vm3095, %vm3096
  %v3098 = vsel %vm3097, %v3089, %v3094
  %v3099 = vmul.f32 %v3031, %v3068
  %v3100 = vmul.f32 %v3032, %v3078
  %v3101 = vmul.f32 %v3033, %v3088
  %v3102 = vmul.f32 %v3034, %v3098
  %v3103 = vld [vmem:[%s6] sm:$0x1]
  %v3105 = vperm.slane %v3103, 0
  %v3107 = vmul.f32 %v3099, %v3105
  %v3108 = vmul.f32 %v3100, %v3105
  %v3109 = vmul.f32 %v3101, %v3105
  %v3110 = vmul.f32 %v3102, %v3105
  %v3111 = vld [vmem:[%s7] sm:$0x1]
  %v3113 = vperm.slane %v3111, 0
  %v3115 = vadd.f32 %v3107, %v3113
  %v3116 = vadd.f32 %v3108, %v3113
  %v3117 = vadd.f32 %v3109, %v3113
  %v3118 = vadd.f32 %v3110, %v3113
  %v3119 = vpack.c.bf16 %v3116, %v3115
  %v3120 = vpack.c.bf16 %v3118, %v3117
  %v3121 = vld [vmem:[%s8] sm:$0xff]
  %v3122 = vld [vmem:[%s8 + $0x8] sm:$0xff]
  %v3123 = vld [vmem:[%s8 + $0x10] sm:$0xff]
  %v3124 = vld [vmem:[%s8 + $0x18] sm:$0xff]
  %v3125 = vld [vmem:[%s8 + $0x20] sm:$0xff]
  %v3126 = vld [vmem:[%s8 + $0x28] sm:$0xff]
  %v3127 = vld [vmem:[%s8 + $0x30] sm:$0xff]
  %v3128 = vld [vmem:[%s8 + $0x38] sm:$0xff]
  %v3129 = vld [vmem:[%s9] sm:$0x3]
  %v3131 = vperm.slane %v3129, 0
  %v3132 = vperm.slane %v3129, 1
  %v3143 = vunpack.c.l.b16 %v3121
  %v3144 = vunpack.c.h.b16 %v3121
  %v3145 = vunpack.c.l.b16 %v3122
  %v3146 = vunpack.c.h.b16 %v3122
  %v3147 = vunpack.c.l.b16 %v3123
  %v3148 = vunpack.c.h.b16 %v3123
  %v3149 = vunpack.c.l.b16 %v3124
  %v3150 = vunpack.c.h.b16 %v3124
  %v3151 = vunpack.c.l.b16 %v3125
  %v3152 = vunpack.c.h.b16 %v3125
  %v3153 = vunpack.c.l.b16 %v3126
  %v3154 = vunpack.c.h.b16 %v3126
  %v3155 = vunpack.c.l.b16 %v3127
  %v3156 = vunpack.c.h.b16 %v3127
  %v3157 = vunpack.c.l.b16 %v3128
  %v3158 = vunpack.c.h.b16 %v3128
  %v3159 = vpack.c.b16 %v3145, %v3143
  %v3160 = vpack.c.b16 %v3146, %v3144
  %v3161 = vpack.c.b16 %v3149, %v3147
  %v3162 = vpack.c.b16 %v3150, %v3148
  %v3163 = vpack.c.b16 %v3153, %v3151
  %v3164 = vpack.c.b16 %v3154, %v3152
  %v3165 = vpack.c.b16 %v3157, %v3155
  %v3166 = vpack.c.b16 %v3158, %v3156
  %v3176 = vsel %vm46, %v3119, 0
  %v3179 = vsel %vm46, %v3120, 0
  %3181 = vmatpush.bf16.msra.mxu0 0
  %3182 = vmatpush.bf16.msra.mxu0 0
  %3183 = vmatpush.bf16.msra.mxu0 0
  %3184 = vmatpush.bf16.msra.mxu0 0
  %3185 = vmatpush.bf16.msra.mxu0 %v3165
  %3186 = vmatpush.bf16.msra.mxu0 %v3163
  %3187 = vmatpush.bf16.msra.mxu0 %v3161
  %3188 = vmatpush.bf16.msra.mxu0 %v3159
  %3189 = vmatmul.bf16.gmra.mxu0 %v3176
  %v3190 = vpop.f32.mrf.mxu0
  %v3191 = vadd.f32 %v3131, %v3190
  %v3192 = vpop.f32.mrf.mxu0
  %v3193 = vadd.f32 %v3131, %v3192
  %3194 = vmatmul.bf16.gmra.mxu0 %v3179
  %v3195 = vpop.f32.mrf.mxu0
  %v3196 = vadd.f32 %v3131, %v3195
  %v3197 = vpop.f32.mrf.mxu0
  %v3198 = vadd.f32 %v3131, %v3197
  %3199 = vdwg.mxu0
  %3200 = vmatpush.bf16.msra.mxu0 0
  %3201 = vmatpush.bf16.msra.mxu0 0
  %3202 = vmatpush.bf16.msra.mxu0 0
  %3203 = vmatpush.bf16.msra.mxu0 0
  %3204 = vmatpush.bf16.msra.mxu0 %v3166
  %3205 = vmatpush.bf16.msra.mxu0 %v3164
  %3206 = vmatpush.bf16.msra.mxu0 %v3162
  %3207 = vmatpush.bf16.msra.mxu0 %v3160
  %3208 = vmatmul.bf16.gmra.mxu0 %v3176
  %v3209 = vpop.f32.mrf.mxu0
  %v3210 = vadd.f32 %v3132, %v3209
  %v3211 = vpop.f32.mrf.mxu0
  %v3212 = vadd.f32 %v3132, %v3211
  %3213 = vmatmul.bf16.gmra.mxu0 %v3179
  %v3214 = vpop.f32.mrf.mxu0
  %v3215 = vadd.f32 %v3132, %v3214
  %v3216 = vpop.f32.mrf.mxu0
  %v3217 = vadd.f32 %v3132, %v3216
  %3218 = vdwg.mxu0
  %v3219 = vmul.f32 %v3191, %v3191
  %v3220 = vmul.f32 %v3210, %v3210
  %v3221 = vmul.f32 %v3193, %v3193
  %v3222 = vmul.f32 %v3212, %v3212
  %v3223 = vmul.f32 %v3196, %v3196
  %v3224 = vmul.f32 %v3215, %v3215
  %v3225 = vmul.f32 %v3198, %v3198
  %v3226 = vmul.f32 %v3217, %v3217
  %v3227 = vmul.f32 %v3191, %v3219
  %v3228 = vmul.f32 %v3210, %v3220
  %v3229 = vmul.f32 %v3193, %v3221
  %v3230 = vmul.f32 %v3212, %v3222
  %v3231 = vmul.f32 %v3196, %v3223
  %v3232 = vmul.f32 %v3215, %v3224
  %v3233 = vmul.f32 %v3198, %v3225
  %v3234 = vmul.f32 %v3217, %v3226
  %v3235 = vmul.f32 %v3227, 0.044715
  %v3236 = vmul.f32 %v3228, 0.044715
  %v3237 = vmul.f32 %v3229, 0.044715
  %v3238 = vmul.f32 %v3230, 0.044715
  %v3239 = vmul.f32 %v3231, 0.044715
  %v3240 = vmul.f32 %v3232, 0.044715
  %v3241 = vmul.f32 %v3233, 0.044715
  %v3242 = vmul.f32 %v3234, 0.044715
  %v3243 = vadd.f32 %v3191, %v3235
  %v3244 = vadd.f32 %v3210, %v3236
  %v3245 = vadd.f32 %v3193, %v3237
  %v3246 = vadd.f32 %v3212, %v3238
  %v3247 = vadd.f32 %v3196, %v3239
  %v3248 = vadd.f32 %v3215, %v3240
  %v3249 = vadd.f32 %v3198, %v3241
  %v3250 = vadd.f32 %v3217, %v3242
  %v3251 = vmul.f32 %v3243, 0.7978846
  %v3252 = vmul.f32 %v3244, 0.7978846
  %v3253 = vmul.f32 %v3245, 0.7978846
  %v3254 = vmul.f32 %v3246, 0.7978846
  %v3255 = vmul.f32 %v3247, 0.7978846
  %v3256 = vmul.f32 %v3248, 0.7978846
  %v3257 = vmul.f32 %v3249, 0.7978846
  %v3258 = vmul.f32 %v3250, 0.7978846
  %v3259 = vtanh.pop %v3251
  %v3260 = vtanh.pop %v3252
  %v3261 = vtanh.pop %v3253
  %v3262 = vtanh.pop %v3254
  %v3263 = vtanh.pop %v3255
  %v3264 = vtanh.pop %v3256
  %v3265 = vtanh.pop %v3257
  %v3266 = vtanh.pop %v3258
  %v3267 = vadd.f32 %v3259, 1.0
  %v3268 = vadd.f32 %v3260, 1.0
  %v3269 = vadd.f32 %v3261, 1.0
  %v3270 = vadd.f32 %v3262, 1.0
  %v3271 = vadd.f32 %v3263, 1.0
  %v3272 = vadd.f32 %v3264, 1.0
  %v3273 = vadd.f32 %v3265, 1.0
  %v3274 = vadd.f32 %v3266, 1.0
  %v3275 = vmul.f32 %v3267, 0.5
  %v3276 = vmul.f32 %v3268, 0.5
  %v3277 = vmul.f32 %v3269, 0.5
  %v3278 = vmul.f32 %v3270, 0.5
  %v3279 = vmul.f32 %v3271, 0.5
  %v3280 = vmul.f32 %v3272, 0.5
  %v3281 = vmul.f32 %v3273, 0.5
  %v3282 = vmul.f32 %v3274, 0.5
  %v3283 = vmul.f32 %v3191, %v3275
  %v3284 = vmul.f32 %v3210, %v3276
  %v3285 = vmul.f32 %v3193, %v3277
  %v3286 = vmul.f32 %v3212, %v3278
  %v3287 = vmul.f32 %v3196, %v3279
  %v3288 = vmul.f32 %v3215, %v3280
  %v3289 = vmul.f32 %v3198, %v3281
  %v3290 = vmul.f32 %v3217, %v3282
  %v3291 = vpack.c.bf16 %v3285, %v3283
  %v3292 = vpack.c.bf16 %v3286, %v3284
  %v3293 = vpack.c.bf16 %v3289, %v3287
  %v3294 = vpack.c.bf16 %v3290, %v3288
  %v3295 = vld [vmem:[%s10] sm:$0xf]
  %v3296 = vld [vmem:[%s10 + $0x4] sm:$0xf]
  %v3297 = vld [vmem:[%s10 + $0x8] sm:$0xf]
  %v3298 = vld [vmem:[%s10 + $0xc] sm:$0xf]
  %v3299 = vld [vmem:[%s10 + $0x10] sm:$0xf]
  %v3300 = vld [vmem:[%s10 + $0x14] sm:$0xf]
  %v3301 = vld [vmem:[%s10 + $0x18] sm:$0xf]
  %v3302 = vld [vmem:[%s10 + $0x1c] sm:$0xf]
  %v3303 = vld [vmem:[%s10 + $0x20] sm:$0xf]
  %v3304 = vld [vmem:[%s10 + $0x24] sm:$0xf]
  %v3305 = vld [vmem:[%s10 + $0x28] sm:$0xf]
  %v3306 = vld [vmem:[%s10 + $0x2c] sm:$0xf]
  %v3307 = vld [vmem:[%s10 + $0x30] sm:$0xf]
  %v3308 = vld [vmem:[%s10 + $0x34] sm:$0xf]
  %v3309 = vld [vmem:[%s10 + $0x38] sm:$0xf]
  %v3310 = vld [vmem:[%s10 + $0x3c] sm:$0xf]
  %v3311 = vld [vmem:[%s10 + $0x40] sm:$0xf]
  %v3312 = vld [vmem:[%s10 + $0x44] sm:$0xf]
  %v3313 = vld [vmem:[%s10 + $0x48] sm:$0xf]
  %v3314 = vld [vmem:[%s10 + $0x4c] sm:$0xf]
  %v3315 = vld [vmem:[%s10 + $0x50] sm:$0xf]
  %v3316 = vld [vmem:[%s10 + $0x54] sm:$0xf]
  %v3317 = vld [vmem:[%s10 + $0x58] sm:$0xf]
  %v3318 = vld [vmem:[%s10 + $0x5c] sm:$0xf]
  %v3319 = vld [vmem:[%s10 + $0x60] sm:$0xf]
  %v3320 = vld [vmem:[%s10 + $0x64] sm:$0xf]
  %v3321 = vld [vmem:[%s10 + $0x68] sm:$0xf]
  %v3322 = vld [vmem:[%s10 + $0x6c] sm:$0xf]
  %v3323 = vld [vmem:[%s10 + $0x70] sm:$0xf]
  %v3324 = vld [vmem:[%s10 + $0x74] sm:$0xf]
  %v3325 = vld [vmem:[%s10 + $0x78] sm:$0xf]
  %v3326 = vld [vmem:[%s10 + $0x7c] sm:$0xf]
  %v3327 = vld [vmem:[%s11] sm:$0x1]
  %v3329 = vperm.slane %v3327, 0
  %v3363 = vunpack.c.l.b16 %v3295
  %v3364 = vunpack.c.l.b16 %v3296
  %v3365 = vunpack.c.l.b16 %v3297
  %v3366 = vunpack.c.l.b16 %v3298
  %v3367 = vunpack.c.l.b16 %v3299
  %v3368 = vunpack.c.l.b16 %v3300
  %v3369 = vunpack.c.l.b16 %v3301
  %v3370 = vunpack.c.l.b16 %v3302
  %v3371 = vunpack.c.l.b16 %v3303
  %v3372 = vunpack.c.l.b16 %v3304
  %v3373 = vunpack.c.l.b16 %v3305
  %v3374 = vunpack.c.l.b16 %v3306
  %v3375 = vunpack.c.l.b16 %v3307
  %v3376 = vunpack.c.l.b16 %v3308
  %v3377 = vunpack.c.l.b16 %v3309
  %v3378 = vunpack.c.l.b16 %v3310
  %v3379 = vunpack.c.l.b16 %v3311
  %v3380 = vunpack.c.l.b16 %v3312
  %v3381 = vunpack.c.l.b16 %v3313
  %v3382 = vunpack.c.l.b16 %v3314
  %v3383 = vunpack.c.l.b16 %v3315
  %v3384 = vunpack.c.l.b16 %v3316
  %v3385 = vunpack.c.l.b16 %v3317
  %v3386 = vunpack.c.l.b16 %v3318
  %v3387 = vunpack.c.l.b16 %v3319
  %v3388 = vunpack.c.l.b16 %v3320
  %v3389 = vunpack.c.l.b16 %v3321
  %v3390 = vunpack.c.l.b16 %v3322
  %v3391 = vunpack.c.l.b16 %v3323
  %v3392 = vunpack.c.l.b16 %v3324
  %v3393 = vunpack.c.l.b16 %v3325
  %v3394 = vunpack.c.l.b16 %v3326
  %v3395 = vpack.c.b16 %v3364, %v3363
  %v3396 = vpack.c.b16 %v3366, %v3365
  %v3397 = vpack.c.b16 %v3368, %v3367
  %v3398 = vpack.c.b16 %v3370, %v3369
  %v3399 = vpack.c.b16 %v3372, %v3371
  %v3400 = vpack.c.b16 %v3374, %v3373
  %v3401 = vpack.c.b16 %v3376, %v3375
  %v3402 = vpack.c.b16 %v3378, %v3377
  %v3403 = vpack.c.b16 %v3380, %v3379
  %v3404 = vpack.c.b16 %v3382, %v3381
  %v3405 = vpack.c.b16 %v3384, %v3383
  %v3406 = vpack.c.b16 %v3386, %v3385
  %v3407 = vpack.c.b16 %v3388, %v3387
  %v3408 = vpack.c.b16 %v3390, %v3389
  %v3409 = vpack.c.b16 %v3392, %v3391
  %v3410 = vpack.c.b16 %v3394, %v3393
  %3427 = vmatpush.bf16.msra.mxu0 %v3402
  %3428 = vmatpush.bf16.msra.mxu0 %v3401
  %3429 = vmatpush.bf16.msra.mxu0 %v3400
  %3430 = vmatpush.bf16.msra.mxu0 %v3399
  %3431 = vmatpush.bf16.msra.mxu0 %v3398
  %3432 = vmatpush.bf16.msra.mxu0 %v3397
  %3433 = vmatpush.bf16.msra.mxu0 %v3396
  %3434 = vmatpush.bf16.msra.mxu0 %v3395
  %3435 = vmatmul.bf16.gmra.mxu0 %v3291
  %v3436 = vpop.f32.mrf.mxu0
  %v3437 = vadd.f32 %v3329, %v3436
  %v3438 = vpop.f32.mrf.mxu0
  %v3439 = vadd.f32 %v3329, %v3438
  %3440 = vmatmul.bf16.gmra.mxu0 %v3293
  %v3441 = vpop.f32.mrf.mxu0
  %v3442 = vadd.f32 %v3329, %v3441
  %v3443 = vpop.f32.mrf.mxu0
  %v3444 = vadd.f32 %v3329, %v3443
  %3445 = vdwg.mxu0
  %3446 = vmatpush.bf16.msra.mxu0 %v3410
  %3447 = vmatpush.bf16.msra.mxu0 %v3409
  %3448 = vmatpush.bf16.msra.mxu0 %v3408
  %3449 = vmatpush.bf16.msra.mxu0 %v3407
  %3450 = vmatpush.bf16.msra.mxu0 %v3406
  %3451 = vmatpush.bf16.msra.mxu0 %v3405
  %3452 = vmatpush.bf16.msra.mxu0 %v3404
  %3453 = vmatpush.bf16.msra.mxu0 %v3403
  %3454 = vmatmul.bf16.gmra.mxu0 %v3292
  %v3455 = vpop.f32.mrf.mxu0
  %v3456 = vadd.f32 %v3437, %v3455
  %v3457 = vpop.f32.mrf.mxu0
  %v3458 = vadd.f32 %v3439, %v3457
  %3459 = vmatmul.bf16.gmra.mxu0 %v3294
  %v3460 = vpop.f32.mrf.mxu0
  %v3461 = vadd.f32 %v3442, %v3460
  %v3462 = vpop.f32.mrf.mxu0
  %v3463 = vadd.f32 %v3444, %v3462
  %3464 = vdwg.mxu0
  %v3465 = vadd.f32 %v3011, %v3456
  %v3466 = vadd.f32 %v3012, %v3458
  %v3467 = vadd.f32 %v3013, %v3461
  %v3468 = vadd.f32 %v3014, %v3463
  %3469 = vst.msk [vmem:[%s12] sm:$0xff] %vm46, %v3465
  %3470 = vst.msk [vmem:[%s12 + $0x8] sm:$0xff] %vm46, %v3466
  %3471 = vst.msk [vmem:[%s12 + $0x10] sm:$0xff] %vm46, %v3467
  %3472 = vst.msk [vmem:[%s12 + $0x18] sm:$0xff] %vm46, %v3468
  // Predicated region
  $region50: #{mae_forward.10} parent=0 // pred_check
    _
  $region51: #{mae_forward.10} parent=0 // pred_check_branch
    %3474 = sbr.rel (0) target = $region53
  $region52: #{mae_forward.10} parent=0 // pred_region
    _
  $region53: #{mae_forward.10} parent=0 // pred_fallthru
    _
  // Predicated region
  $region54: #{mae_forward.10} parent=0 // pred_check
    _
  $region55: #{mae_forward.10} parent=0 // pred_check_branch
    %3476 = sbr.rel (0) target = $region57
  $region56: #{mae_forward.10} parent=0 // pred_region
    _
  $region57: #{mae_forward.10} parent=0 // pred_fallthru
    _

</llo_original>
